<compile_context>
chip_gen: v7x
topology: tpu7x:2x2x1
jax: 0.10.0
libtpu: 0.0.40
codegen_flags: <defaults>
</compile_context>

<pallas_src>
import re
from functools import partial

import jax
import jax.numpy as jnp
from jax.experimental import pallas as pl
from jax.experimental.pallas import tpu as pltpu

LP = 128  # lane-padded latent width (n_latent <= LP)


def _round_up(x, m):
    return ((x + m - 1) // m) * m


def _tpu_generation():
    """Best-effort TPU generation from device_kind (e.g. 'TPU v5 lite' -> 5)."""
    try:
        kind = jax.devices()[0].device_kind
        m = re.search(r"(\d+)", kind)
        if m:
            return int(m.group(1))
    except Exception:
        pass
    return 6


def _tile_config(batch):
    """(TB, vmem_limit_bytes) tuned per TPU generation."""
    gen = _tpu_generation()
    if gen >= 7:
        # 2 TensorCores/chip, 64 MiB VMEM: guarantee >= 2 grid steps so the
        # "parallel" batch axis is sharded across both cores; keep VMEM modest.
        tb = min(256, _round_up(max(-(-batch // 2), 8), 8))
        vmem = 32 << 20
    else:
        # v6e / v5e: single TC, 128 MiB physical VMEM -> large lane-dense tiles.
        tb = min(512, _round_up(batch, 8))
        vmem = 48 << 20
    return tb, vmem


def vae_kernel(x_ref, eps_ref,
               w1_ref, b1_ref,
               wh_ref, bh_ref,      # fused + lane-padded [mu | logvar] head: (512, 2*LP) bf16
               wd1_ref, bd1_ref,
               wd2_ref, bd2_ref,
               recon_ref, mu_ref, logvar_ref):
    bf16 = jnp.bfloat16
    x = x_ref[...].astype(bf16)                                        # (TB, 1024) bf16

    # Encoder: Linear(1024, 512) + ReLU  (bf16 MXU, f32 accumulate + elementwise)
    h = jnp.dot(x, w1_ref[...], preferred_element_type=jnp.float32) + b1_ref[...]
    h = jnp.maximum(h, 0.0)                                            # (TB, 512) f32

    # Fused latent heads: one matmul -> (TB, 2*LP), split into mu | logvar.
    heads = jnp.dot(h.astype(bf16), wh_ref[...],
                    preferred_element_type=jnp.float32) + bh_ref[...]
    mu = heads[:, :LP]                                                 # (TB, LP) f32
    logvar = heads[:, LP:]                                             # (TB, LP) f32

    # Reparameterization trick (exactly as the PyTorch code: 0.5 * exp(logvar) * eps).
    # Padded columns: mu=0, logvar=0, eps=0  ->  z padded columns are 0.
    z = mu + 0.5 * jnp.exp(logvar) * eps_ref[...]                      # (TB, LP) f32

    # Decoder: Linear(LP, 512) + ReLU + Linear(512, 1024)
    d = jnp.dot(z.astype(bf16), wd1_ref[...],
                preferred_element_type=jnp.float32) + bd1_ref[...]
    d = jnp.maximum(d, 0.0)                                            # (TB, 512) f32
    xh = jnp.dot(d.astype(bf16), wd2_ref[...],
                 preferred_element_type=jnp.float32) + bd2_ref[...]    # (TB, 1024) f32

    # Sigmoid via tanh (single EUP op, overflow-robust): sigmoid(x) = 0.5*(tanh(x/2)+1)
    recon_ref[...] = 0.5 * (jnp.tanh(0.5 * xh) + 1.0)                  # (TB, 1024) f32
    mu_ref[...] = mu
    logvar_ref[...] = logvar


def pack_params(p, n_latent):
    """One-time (init-time) packing: pad/fuse the latent heads and the decoder
    input weight to lane-dense LP=128 and cast weight matrices to bf16
    (biases stay f32)."""
    f32, bf16 = jnp.float32, jnp.bfloat16
    wmu_p = jnp.zeros((512, LP), f32).at[:, :n_latent].set(p["wmu"])
    wlv_p = jnp.zeros((512, LP), f32).at[:, :n_latent].set(p["wlv"])
    bmu_p = jnp.zeros((1, LP), f32).at[:, :n_latent].set(p["bmu"])
    blv_p = jnp.zeros((1, LP), f32).at[:, :n_latent].set(p["blv"])
    wh = jnp.concatenate([wmu_p, wlv_p], axis=1).astype(bf16)          # (512, 2*LP)
    bh = jnp.concatenate([bmu_p, blv_p], axis=1)                       # (1, 2*LP) f32
    wd1_p = jnp.zeros((LP, 512), f32).at[:n_latent, :].set(p["wd1"]).astype(bf16)
    packed = dict(w1=p["w1"].astype(bf16), b1=p["b1"],
                  wh=wh, bh=bh,
                  wd1=wd1_p, bd1=p["bd1"],
                  wd2=p["wd2"].astype(bf16), bd2=p["bd2"])
    return jax.tree_util.tree_map(jnp.asarray, packed)


@partial(jax.jit, static_argnames=("n_latent", "tb", "vmem_limit", "single_buffer_weights"))
def _vae_forward_impl(x, eps, packed, *, n_latent, tb, vmem_limit, single_buffer_weights):
    B = x.shape[0]
    x = x.astype(jnp.float32)
    # Lane-pad eps to LP columns (zeros in pad region -> z pad region stays 0).
    eps_pad = jnp.zeros((B, LP), jnp.float32).at[:, :n_latent].set(eps.astype(jnp.float32))

    B_pad = _round_up(B, tb)
    if B_pad != B:
        x = jnp.pad(x, ((0, B_pad - B), (0, 0)))
        eps_pad = jnp.pad(eps_pad, ((0, B_pad - B), (0, 0)))
    grid = (B_pad // tb,)

    def batch_spec(n):
        return pl.BlockSpec((tb, n), lambda i: (i, 0))

    def weight_spec(shape):
        # Constant index_map -> weight stays VMEM-resident; single-buffer it to
        # halve its VMEM footprint (double-buffering buys nothing here).
        if single_buffer_weights:
            return pl.BlockSpec(shape, lambda i: (0, 0),
                                pipeline_mode=pl.Buffered(buffer_count=1))
        return pl.BlockSpec(shape, lambda i: (0, 0))

    in_specs = [
        batch_spec(1024),                  # x
        batch_spec(LP),                    # eps
        weight_spec((1024, 512)),          # w1   (bf16)
        weight_spec((1, 512)),             # b1   (f32)
        weight_spec((512, 2 * LP)),        # wh   (bf16, fused mu|logvar)
        weight_spec((1, 2 * LP)),          # bh   (f32)
        weight_spec((LP, 512)),            # wd1  (bf16)
        weight_spec((1, 512)),             # bd1  (f32)
        weight_spec((512, 1024)),          # wd2  (bf16)
        weight_spec((1, 1024)),            # bd2  (f32)
    ]
    out_specs = (batch_spec(1024), batch_spec(LP), batch_spec(LP))
    out_shape = (
        jax.ShapeDtypeStruct((B_pad, 1024), jnp.float32),
        jax.ShapeDtypeStruct((B_pad, LP), jnp.float32),
        jax.ShapeDtypeStruct((B_pad, LP), jnp.float32),
    )

    recon_p, mu_p, logvar_p = pl.pallas_call(
        vae_kernel,
        grid=grid,
        in_specs=in_specs,
        out_specs=out_specs,
        out_shape=out_shape,
        compiler_params=pltpu.CompilerParams(
            dimension_semantics=("parallel",),
            vmem_limit_bytes=vmem_limit,
        ),
    )(
        x, eps_pad,
        packed["w1"], packed["b1"],
        packed["wh"], packed["bh"],
        packed["wd1"], packed["bd1"],
        packed["wd2"], packed["bd2"],
    )

    return recon_p[:B], mu_p[:B, :n_latent], logvar_p[:B, :n_latent]


# One-time probe: fall back to default (double) buffering if this JAX build
# rejects pipeline_mode on BlockSpec.
_SINGLE_BUFFER_WEIGHTS_OK = True


def vae_forward(x, eps, packed, n_latent):
    """x: (B, 1024) f32, eps: (B, n_latent) f32, packed = pack_params(params).
    Returns (recon, mu, logvar)."""
    global _SINGLE_BUFFER_WEIGHTS_OK
    tb, vmem = _tile_config(x.shape[0])
    kwargs = dict(n_latent=n_latent, tb=tb, vmem_limit=vmem)
    if _SINGLE_BUFFER_WEIGHTS_OK:
        try:
            return _vae_forward_impl(x, eps, packed, single_buffer_weights=True, **kwargs)
        except Exception:
            _SINGLE_BUFFER_WEIGHTS_OK = False
    return _vae_forward_impl(x, eps, packed, single_buffer_weights=False, **kwargs)


def init_params(key, n_latent=10):
    """PyTorch-Linear-style init (uniform +/- 1/sqrt(fan_in)), weights stored
    already transposed to (in_features, out_features), all f32."""
    def linear(key, fan_in, fan_out):
        kw, kb = jax.random.split(key)
        bound = 1.0 / jnp.sqrt(fan_in)
        w = jax.random.uniform(kw, (fan_in, fan_out), jnp.float32, -bound, bound)
        b = jax.random.uniform(kb, (1, fan_out), jnp.float32, -bound, bound)
        return w, b

    keys = jax.random.split(key, 5)
    w1, b1 = linear(keys[0], 1024, 512)
    wmu, bmu = linear(keys[1], 512, n_latent)
    wlv, blv = linear(keys[2], 512, n_latent)
    wd1, bd1 = linear(keys[3], n_latent, 512)
    wd2, bd2 = linear(keys[4], 512, 1024)
    return dict(w1=w1, b1=b1, wmu=wmu, bmu=bmu, wlv=wlv, blv=blv,
                wd1=wd1, bd1=bd1, wd2=wd2, bd2=bd2)


def reference_forward(x, eps, p):
    """Pure-JAX f32 reference of the PyTorch forward for correctness checking."""
    h = jnp.maximum(x @ p["w1"] + p["b1"], 0.0)
    mu = h @ p["wmu"] + p["bmu"]
    logvar = h @ p["wlv"] + p["blv"]
    z = mu + 0.5 * jnp.exp(logvar) * eps
    d = jnp.maximum(z @ p["wd1"] + p["bd1"], 0.0)
    xh = d @ p["wd2"] + p["bd2"]
    return jax.nn.sigmoid(xh), mu, logvar


def _check(batch, n_latent, params, packed, key):
    k_x, k_eps = jax.random.split(key)
    x = jax.random.uniform(k_x, (batch, 1024), jnp.float32)
    eps = jax.random.normal(k_eps, (batch, n_latent), jnp.float32)

    recon, mu, logvar = jax.block_until_ready(vae_forward(x, eps, packed, n_latent))
    r_ref, mu_ref, lv_ref = reference_forward(x, eps, params)

    assert recon.shape == (batch, 1024) and mu.shape == (batch, n_latent)
    assert logvar.shape == (batch, n_latent)
    # bf16 matmuls with f32 accumulation vs. the f32 reference: ~1e-3 absolute
    # error on these magnitudes; 2e-2 tolerance leaves ample margin.
    assert jnp.allclose(recon, r_ref, atol=2e-2, rtol=2e-2)
    assert jnp.allclose(mu, mu_ref, atol=2e-2, rtol=2e-2)
    assert jnp.allclose(logvar, lv_ref, atol=2e-2, rtol=2e-2)


if __name__ == "__main__":
    key = jax.random.PRNGKey(0)
    k_params, k1, k2 = jax.random.split(key, 3)

    n_latent = 10
    params = init_params(k_params, n_latent=n_latent)
    packed = pack_params(params, n_latent)          # packed/cast ONCE at init

    # Small demo batch (single tile, grid of 1 on v5e/v6e).
    _check(batch=8, n_latent=n_latent, params=params, packed=packed, key=k1)
    # Non-multiple-of-tile batch exercising the batch grid + padding path
    # (and the 2-TensorCore split on v7x).
    _check(batch=300, n_latent=n_latent, params=params, packed=packed, key=k2)

    print("KERNEL_OK")
</pallas_src>

<mosaic_0001>
module attributes {stable_mosaic.version = 11 : i64} {
  func.func @vae_kernel(%arg0: i32, %arg1: memref<8x1024xf32, #tpu.memory_space<vmem>>, %arg2: memref<8x128xf32, #tpu.memory_space<vmem>>, %arg3: memref<1024x512xbf16, #tpu.memory_space<vmem>>, %arg4: memref<1x512xf32, #tpu.memory_space<vmem>>, %arg5: memref<512x256xbf16, #tpu.memory_space<vmem>>, %arg6: memref<1x256xf32, #tpu.memory_space<vmem>>, %arg7: memref<128x512xbf16, #tpu.memory_space<vmem>>, %arg8: memref<1x512xf32, #tpu.memory_space<vmem>>, %arg9: memref<512x1024xbf16, #tpu.memory_space<vmem>>, %arg10: memref<1x1024xf32, #tpu.memory_space<vmem>>, %arg11: memref<8x1024xf32, #tpu.memory_space<vmem>>, %arg12: memref<8x128xf32, #tpu.memory_space<vmem>>, %arg13: memref<8x128xf32, #tpu.memory_space<vmem>>) attributes {dimension_semantics = [#tpu.dimension_semantics<parallel>], iteration_bounds = array<i64: 1>, scalar_prefetch = 0 : i64, scratch_operands = 0 : i64, tpu.core_type = #tpu.core_type<tc>, window_params = [{transform_indices = @transform_0, window_bounds = array<i64: 8, 1024>}, {transform_indices = @transform_1, window_bounds = array<i64: 8, 128>}, {pipeline_mode = #tpu.pipeline_mode<synchronous>, transform_indices = @transform_2, window_bounds = array<i64: 1024, 512>}, {pipeline_mode = #tpu.pipeline_mode<synchronous>, transform_indices = @transform_3, window_bounds = array<i64: 1, 512>}, {pipeline_mode = #tpu.pipeline_mode<synchronous>, transform_indices = @transform_4, window_bounds = array<i64: 512, 256>}, {pipeline_mode = #tpu.pipeline_mode<synchronous>, transform_indices = @transform_5, window_bounds = array<i64: 1, 256>}, {pipeline_mode = #tpu.pipeline_mode<synchronous>, transform_indices = @transform_6, window_bounds = array<i64: 128, 512>}, {pipeline_mode = #tpu.pipeline_mode<synchronous>, transform_indices = @transform_7, window_bounds = array<i64: 1, 512>}, {pipeline_mode = #tpu.pipeline_mode<synchronous>, transform_indices = @transform_8, window_bounds = array<i64: 512, 1024>}, {pipeline_mode = #tpu.pipeline_mode<synchronous>, transform_indices = @transform_9, window_bounds = array<i64: 1, 1024>}, {transform_indices = @transform_10, window_bounds = array<i64: 8, 1024>}, {transform_indices = @transform_11, window_bounds = array<i64: 8, 128>}, {transform_indices = @transform_12, window_bounds = array<i64: 8, 128>}]} {
    %c0 = arith.constant 0 : index
    %c0_0 = arith.constant 0 : index
    %0 = vector.load %arg1[%c0, %c0_0] : memref<8x1024xf32, #tpu.memory_space<vmem>>, vector<8x1024xf32>
    %1 = arith.truncf %0 : vector<8x1024xf32> to vector<8x1024xbf16>
    %c0_1 = arith.constant 0 : index
    %c0_2 = arith.constant 0 : index
    %2 = vector.load %arg3[%c0_1, %c0_2] : memref<1024x512xbf16, #tpu.memory_space<vmem>>, vector<1024x512xbf16>
    %cst = arith.constant dense<0.000000e+00> : vector<8x512xf32>
    %3 = tpu.matmul %1, %2, %cst {dimension_numbers = #tpu.dot_dimension_numbers<[1], [0], [0], [1], [0, 0, 1, 1], [], []>} : vector<8x1024xbf16>, vector<1024x512xbf16>, vector<8x512xf32> -> vector<8x512xf32>
    %c0_3 = arith.constant 0 : index
    %c0_4 = arith.constant 0 : index
    %4 = vector.load %arg4[%c0_3, %c0_4] : memref<1x512xf32, #tpu.memory_space<vmem>>, vector<1x512xf32>
    %5 = vector.broadcast %4 : vector<1x512xf32> to vector<8x512xf32>
    %6 = arith.addf %3, %5 : vector<8x512xf32>
    %cst_5 = arith.constant 0.000000e+00 : f32
    %7 = vector.broadcast %cst_5 : f32 to vector<8x512xf32>
    %8 = arith.maximumf %6, %7 : vector<8x512xf32>
    %9 = arith.truncf %8 : vector<8x512xf32> to vector<8x512xbf16>
    %c0_6 = arith.constant 0 : index
    %c0_7 = arith.constant 0 : index
    %10 = vector.load %arg5[%c0_6, %c0_7] : memref<512x256xbf16, #tpu.memory_space<vmem>>, vector<512x256xbf16>
    %cst_8 = arith.constant dense<0.000000e+00> : vector<8x256xf32>
    %11 = tpu.matmul %9, %10, %cst_8 {dimension_numbers = #tpu.dot_dimension_numbers<[1], [0], [0], [1], [0, 0, 1, 1], [], []>} : vector<8x512xbf16>, vector<512x256xbf16>, vector<8x256xf32> -> vector<8x256xf32>
    %c0_9 = arith.constant 0 : index
    %c0_10 = arith.constant 0 : index
    %12 = vector.load %arg6[%c0_9, %c0_10] : memref<1x256xf32, #tpu.memory_space<vmem>>, vector<1x256xf32>
    %13 = vector.broadcast %12 : vector<1x256xf32> to vector<8x256xf32>
    %14 = arith.addf %11, %13 : vector<8x256xf32>
    %15 = vector.extract_strided_slice %14 {offsets = [0, 0], sizes = [8, 128], strides = [1, 1]} : vector<8x256xf32> to vector<8x128xf32>
    %16 = vector.extract_strided_slice %14 {offsets = [0, 128], sizes = [8, 128], strides = [1, 1]} : vector<8x256xf32> to vector<8x128xf32>
    %17 = math.exp %16 : vector<8x128xf32>
    %cst_11 = arith.constant 5.000000e-01 : f32
    %18 = vector.broadcast %cst_11 : f32 to vector<8x128xf32>
    %19 = arith.mulf %18, %17 : vector<8x128xf32>
    %c0_12 = arith.constant 0 : index
    %c0_13 = arith.constant 0 : index
    %20 = vector.load %arg2[%c0_12, %c0_13] : memref<8x128xf32, #tpu.memory_space<vmem>>, vector<8x128xf32>
    %21 = arith.mulf %19, %20 : vector<8x128xf32>
    %22 = arith.addf %15, %21 : vector<8x128xf32>
    %23 = arith.truncf %22 : vector<8x128xf32> to vector<8x128xbf16>
    %c0_14 = arith.constant 0 : index
    %c0_15 = arith.constant 0 : index
    %24 = vector.load %arg7[%c0_14, %c0_15] : memref<128x512xbf16, #tpu.memory_space<vmem>>, vector<128x512xbf16>
    %cst_16 = arith.constant dense<0.000000e+00> : vector<8x512xf32>
    %25 = tpu.matmul %23, %24, %cst_16 {dimension_numbers = #tpu.dot_dimension_numbers<[1], [0], [0], [1], [0, 0, 1, 1], [], []>} : vector<8x128xbf16>, vector<128x512xbf16>, vector<8x512xf32> -> vector<8x512xf32>
    %c0_17 = arith.constant 0 : index
    %c0_18 = arith.constant 0 : index
    %26 = vector.load %arg8[%c0_17, %c0_18] : memref<1x512xf32, #tpu.memory_space<vmem>>, vector<1x512xf32>
    %27 = vector.broadcast %26 : vector<1x512xf32> to vector<8x512xf32>
    %28 = arith.addf %25, %27 : vector<8x512xf32>
    %cst_19 = arith.constant 0.000000e+00 : f32
    %29 = vector.broadcast %cst_19 : f32 to vector<8x512xf32>
    %30 = arith.maximumf %28, %29 : vector<8x512xf32>
    %31 = arith.truncf %30 : vector<8x512xf32> to vector<8x512xbf16>
    %c0_20 = arith.constant 0 : index
    %c0_21 = arith.constant 0 : index
    %32 = vector.load %arg9[%c0_20, %c0_21] : memref<512x1024xbf16, #tpu.memory_space<vmem>>, vector<512x1024xbf16>
    %cst_22 = arith.constant dense<0.000000e+00> : vector<8x1024xf32>
    %33 = tpu.matmul %31, %32, %cst_22 {dimension_numbers = #tpu.dot_dimension_numbers<[1], [0], [0], [1], [0, 0, 1, 1], [], []>} : vector<8x512xbf16>, vector<512x1024xbf16>, vector<8x1024xf32> -> vector<8x1024xf32>
    %c0_23 = arith.constant 0 : index
    %c0_24 = arith.constant 0 : index
    %34 = vector.load %arg10[%c0_23, %c0_24] : memref<1x1024xf32, #tpu.memory_space<vmem>>, vector<1x1024xf32>
    %35 = vector.broadcast %34 : vector<1x1024xf32> to vector<8x1024xf32>
    %36 = arith.addf %33, %35 : vector<8x1024xf32>
    %cst_25 = arith.constant 5.000000e-01 : f32
    %37 = vector.broadcast %cst_25 : f32 to vector<8x1024xf32>
    %38 = arith.mulf %37, %36 : vector<8x1024xf32>
    %39 = math.tanh %38 : vector<8x1024xf32>
    %cst_26 = arith.constant 1.000000e+00 : f32
    %40 = vector.broadcast %cst_26 : f32 to vector<8x1024xf32>
    %41 = arith.addf %39, %40 : vector<8x1024xf32>
    %cst_27 = arith.constant 5.000000e-01 : f32
    %42 = vector.broadcast %cst_27 : f32 to vector<8x1024xf32>
    %43 = arith.mulf %42, %41 : vector<8x1024xf32>
    %c0_28 = arith.constant 0 : index
    %c0_29 = arith.constant 0 : index
    %44 = vector.load %arg11[%c0_28, %c0_29] : memref<8x1024xf32, #tpu.memory_space<vmem>>, vector<8x1024xf32>
    tpu.vector_store %arg11[%c0_28, %c0_29], %43 {strides = array<i32>} : memref<8x1024xf32, #tpu.memory_space<vmem>>, vector<8x1024xf32>,
    %c0_30 = arith.constant 0 : index
    %c0_31 = arith.constant 0 : index
    %45 = vector.load %arg12[%c0_30, %c0_31] : memref<8x128xf32, #tpu.memory_space<vmem>>, vector<8x128xf32>
    tpu.vector_store %arg12[%c0_30, %c0_31], %15 {strides = array<i32>} : memref<8x128xf32, #tpu.memory_space<vmem>>, vector<8x128xf32>,
    %c0_32 = arith.constant 0 : index
    %c0_33 = arith.constant 0 : index
    %46 = vector.load %arg13[%c0_32, %c0_33] : memref<8x128xf32, #tpu.memory_space<vmem>>, vector<8x128xf32>
    tpu.vector_store %arg13[%c0_32, %c0_33], %16 {strides = array<i32>} : memref<8x128xf32, #tpu.memory_space<vmem>>, vector<8x128xf32>,
    return
  }
  func.func @transform_0(%arg0: i32) -> (i32, i32) {
    %c0_i32 = arith.constant 0 : i32
    %c0_i32_0 = arith.constant 0 : i32
    return %arg0, %c0_i32 : i32, i32
  }
  func.func @transform_1(%arg0: i32) -> (i32, i32) {
    %c0_i32 = arith.constant 0 : i32
    %c0_i32_0 = arith.constant 0 : i32
    return %arg0, %c0_i32 : i32, i32
  }
  func.func @transform_2(%arg0: i32) -> (i32, i32) {
    %c0_i32 = arith.constant 0 : i32
    %c0_i32_0 = arith.constant 0 : i32
    %c0_i32_1 = arith.constant 0 : i32
    return %c0_i32, %c0_i32_0 : i32, i32
  }
  func.func @transform_3(%arg0: i32) -> (i32, i32) {
    %c0_i32 = arith.constant 0 : i32
    %c0_i32_0 = arith.constant 0 : i32
    %c0_i32_1 = arith.constant 0 : i32
    return %c0_i32, %c0_i32_0 : i32, i32
  }
  func.func @transform_4(%arg0: i32) -> (i32, i32) {
    %c0_i32 = arith.constant 0 : i32
    %c0_i32_0 = arith.constant 0 : i32
    %c0_i32_1 = arith.constant 0 : i32
    return %c0_i32, %c0_i32_0 : i32, i32
  }
  func.func @transform_5(%arg0: i32) -> (i32, i32) {
    %c0_i32 = arith.constant 0 : i32
    %c0_i32_0 = arith.constant 0 : i32
    %c0_i32_1 = arith.constant 0 : i32
    return %c0_i32, %c0_i32_0 : i32, i32
  }
  func.func @transform_6(%arg0: i32) -> (i32, i32) {
    %c0_i32 = arith.constant 0 : i32
    %c0_i32_0 = arith.constant 0 : i32
    %c0_i32_1 = arith.constant 0 : i32
    return %c0_i32, %c0_i32_0 : i32, i32
  }
  func.func @transform_7(%arg0: i32) -> (i32, i32) {
    %c0_i32 = arith.constant 0 : i32
    %c0_i32_0 = arith.constant 0 : i32
    %c0_i32_1 = arith.constant 0 : i32
    return %c0_i32, %c0_i32_0 : i32, i32
  }
  func.func @transform_8(%arg0: i32) -> (i32, i32) {
    %c0_i32 = arith.constant 0 : i32
    %c0_i32_0 = arith.constant 0 : i32
    %c0_i32_1 = arith.constant 0 : i32
    return %c0_i32, %c0_i32_0 : i32, i32
  }
  func.func @transform_9(%arg0: i32) -> (i32, i32) {
    %c0_i32 = arith.constant 0 : i32
    %c0_i32_0 = arith.constant 0 : i32
    %c0_i32_1 = arith.constant 0 : i32
    return %c0_i32, %c0_i32_0 : i32, i32
  }
  func.func @transform_10(%arg0: i32) -> (i32, i32) {
    %c0_i32 = arith.constant 0 : i32
    %c0_i32_0 = arith.constant 0 : i32
    return %arg0, %c0_i32 : i32, i32
  }
  func.func @transform_11(%arg0: i32) -> (i32, i32) {
    %c0_i32 = arith.constant 0 : i32
    %c0_i32_0 = arith.constant 0 : i32
    return %arg0, %c0_i32 : i32, i32
  }
  func.func @transform_12(%arg0: i32) -> (i32, i32) {
    %c0_i32 = arith.constant 0 : i32
    %c0_i32_0 = arith.constant 0 : i32
    return %arg0, %c0_i32 : i32, i32
  }
}

module attributes {stable_mosaic.version = 11 : i64} {
  func.func @vae_kernel(%arg0: i32, %arg1: memref<8x1024xf32, #tpu.memory_space<vmem>>, %arg2: memref<8x128xf32, #tpu.memory_space<vmem>>, %arg3: memref<1024x512xbf16, #tpu.memory_space<vmem>>, %arg4: memref<1x512xf32, #tpu.memory_space<vmem>>, %arg5: memref<512x256xbf16, #tpu.memory_space<vmem>>, %arg6: memref<1x256xf32, #tpu.memory_space<vmem>>, %arg7: memref<128x512xbf16, #tpu.memory_space<vmem>>, %arg8: memref<1x512xf32, #tpu.memory_space<vmem>>, %arg9: memref<512x1024xbf16, #tpu.memory_space<vmem>>, %arg10: memref<1x1024xf32, #tpu.memory_space<vmem>>, %arg11: memref<8x1024xf32, #tpu.memory_space<vmem>>, %arg12: memref<8x128xf32, #tpu.memory_space<vmem>>, %arg13: memref<8x128xf32, #tpu.memory_space<vmem>>) attributes {dimension_semantics = [#tpu.dimension_semantics<parallel>], iteration_bounds = array<i64: 1>, scalar_prefetch = 0 : i64, scratch_operands = 0 : i64, tpu.core_type = #tpu.core_type<tc>, window_params = [{transform_indices = @transform_0, window_bounds = array<i64: 8, 1024>}, {transform_indices = @transform_1, window_bounds = array<i64: 8, 128>}, {pipeline_mode = #tpu.pipeline_mode<synchronous>, transform_indices = @transform_2, window_bounds = array<i64: 1024, 512>}, {pipeline_mode = #tpu.pipeline_mode<synchronous>, transform_indices = @transform_3, window_bounds = array<i64: 1, 512>}, {pipeline_mode = #tpu.pipeline_mode<synchronous>, transform_indices = @transform_4, window_bounds = array<i64: 512, 256>}, {pipeline_mode = #tpu.pipeline_mode<synchronous>, transform_indices = @transform_5, window_bounds = array<i64: 1, 256>}, {pipeline_mode = #tpu.pipeline_mode<synchronous>, transform_indices = @transform_6, window_bounds = array<i64: 128, 512>}, {pipeline_mode = #tpu.pipeline_mode<synchronous>, transform_indices = @transform_7, window_bounds = array<i64: 1, 512>}, {pipeline_mode = #tpu.pipeline_mode<synchronous>, transform_indices = @transform_8, window_bounds = array<i64: 512, 1024>}, {pipeline_mode = #tpu.pipeline_mode<synchronous>, transform_indices = @transform_9, window_bounds = array<i64: 1, 1024>}, {transform_indices = @transform_10, window_bounds = array<i64: 8, 1024>}, {transform_indices = @transform_11, window_bounds = array<i64: 8, 128>}, {transform_indices = @transform_12, window_bounds = array<i64: 8, 128>}]} {
    %c0 = arith.constant 0 : index
    %c0_0 = arith.constant 0 : index
    %0 = vector.load %arg1[%c0, %c0_0] : memref<8x1024xf32, #tpu.memory_space<vmem>>, vector<8x1024xf32>
    %1 = arith.truncf %0 : vector<8x1024xf32> to vector<8x1024xbf16>
    %c0_1 = arith.constant 0 : index
    %c0_2 = arith.constant 0 : index
    %2 = vector.load %arg3[%c0_1, %c0_2] : memref<1024x512xbf16, #tpu.memory_space<vmem>>, vector<1024x512xbf16>
    %cst = arith.constant dense<0.000000e+00> : vector<8x512xf32>
    %3 = tpu.matmul %1, %2, %cst {dimension_numbers = #tpu.dot_dimension_numbers<[1], [0], [0], [1], [0, 0, 1, 1], [], []>} : vector<8x1024xbf16>, vector<1024x512xbf16>, vector<8x512xf32> -> vector<8x512xf32>
    %c0_3 = arith.constant 0 : index
    %c0_4 = arith.constant 0 : index
    %4 = vector.load %arg4[%c0_3, %c0_4] : memref<1x512xf32, #tpu.memory_space<vmem>>, vector<1x512xf32>
    %5 = vector.broadcast %4 : vector<1x512xf32> to vector<8x512xf32>
    %6 = arith.addf %3, %5 : vector<8x512xf32>
    %cst_5 = arith.constant 0.000000e+00 : f32
    %7 = vector.broadcast %cst_5 : f32 to vector<8x512xf32>
    %8 = arith.maximumf %6, %7 : vector<8x512xf32>
    %9 = arith.truncf %8 : vector<8x512xf32> to vector<8x512xbf16>
    %c0_6 = arith.constant 0 : index
    %c0_7 = arith.constant 0 : index
    %10 = vector.load %arg5[%c0_6, %c0_7] : memref<512x256xbf16, #tpu.memory_space<vmem>>, vector<512x256xbf16>
    %cst_8 = arith.constant dense<0.000000e+00> : vector<8x256xf32>
    %11 = tpu.matmul %9, %10, %cst_8 {dimension_numbers = #tpu.dot_dimension_numbers<[1], [0], [0], [1], [0, 0, 1, 1], [], []>} : vector<8x512xbf16>, vector<512x256xbf16>, vector<8x256xf32> -> vector<8x256xf32>
    %c0_9 = arith.constant 0 : index
    %c0_10 = arith.constant 0 : index
    %12 = vector.load %arg6[%c0_9, %c0_10] : memref<1x256xf32, #tpu.memory_space<vmem>>, vector<1x256xf32>
    %13 = vector.broadcast %12 : vector<1x256xf32> to vector<8x256xf32>
    %14 = arith.addf %11, %13 : vector<8x256xf32>
    %15 = vector.extract_strided_slice %14 {offsets = [0, 0], sizes = [8, 128], strides = [1, 1]} : vector<8x256xf32> to vector<8x128xf32>
    %16 = vector.extract_strided_slice %14 {offsets = [0, 128], sizes = [8, 128], strides = [1, 1]} : vector<8x256xf32> to vector<8x128xf32>
    %17 = math.exp %16 : vector<8x128xf32>
    %cst_11 = arith.constant 5.000000e-01 : f32
    %18 = vector.broadcast %cst_11 : f32 to vector<8x128xf32>
    %19 = arith.mulf %18, %17 : vector<8x128xf32>
    %c0_12 = arith.constant 0 : index
    %c0_13 = arith.constant 0 : index
    %20 = vector.load %arg2[%c0_12, %c0_13] : memref<8x128xf32, #tpu.memory_space<vmem>>, vector<8x128xf32>
    %21 = arith.mulf %19, %20 : vector<8x128xf32>
    %22 = arith.addf %15, %21 : vector<8x128xf32>
    %23 = arith.truncf %22 : vector<8x128xf32> to vector<8x128xbf16>
    %c0_14 = arith.constant 0 : index
    %c0_15 = arith.constant 0 : index
    %24 = vector.load %arg7[%c0_14, %c0_15] : memref<128x512xbf16, #tpu.memory_space<vmem>>, vector<128x512xbf16>
    %cst_16 = arith.constant dense<0.000000e+00> : vector<8x512xf32>
    %25 = tpu.matmul %23, %24, %cst_16 {dimension_numbers = #tpu.dot_dimension_numbers<[1], [0], [0], [1], [0, 0, 1, 1], [], []>} : vector<8x128xbf16>, vector<128x512xbf16>, vector<8x512xf32> -> vector<8x512xf32>
    %c0_17 = arith.constant 0 : index
    %c0_18 = arith.constant 0 : index
    %26 = vector.load %arg8[%c0_17, %c0_18] : memref<1x512xf32, #tpu.memory_space<vmem>>, vector<1x512xf32>
    %27 = vector.broadcast %26 : vector<1x512xf32> to vector<8x512xf32>
    %28 = arith.addf %25, %27 : vector<8x512xf32>
    %cst_19 = arith.constant 0.000000e+00 : f32
    %29 = vector.broadcast %cst_19 : f32 to vector<8x512xf32>
    %30 = arith.maximumf %28, %29 : vector<8x512xf32>
    %31 = arith.truncf %30 : vector<8x512xf32> to vector<8x512xbf16>
    %c0_20 = arith.constant 0 : index
    %c0_21 = arith.constant 0 : index
    %32 = vector.load %arg9[%c0_20, %c0_21] : memref<512x1024xbf16, #tpu.memory_space<vmem>>, vector<512x1024xbf16>
    %cst_22 = arith.constant dense<0.000000e+00> : vector<8x1024xf32>
    %33 = tpu.matmul %31, %32, %cst_22 {dimension_numbers = #tpu.dot_dimension_numbers<[1], [0], [0], [1], [0, 0, 1, 1], [], []>} : vector<8x512xbf16>, vector<512x1024xbf16>, vector<8x1024xf32> -> vector<8x1024xf32>
    %c0_23 = arith.constant 0 : index
    %c0_24 = arith.constant 0 : index
    %34 = vector.load %arg10[%c0_23, %c0_24] : memref<1x1024xf32, #tpu.memory_space<vmem>>, vector<1x1024xf32>
    %35 = vector.broadcast %34 : vector<1x1024xf32> to vector<8x1024xf32>
    %36 = arith.addf %33, %35 : vector<8x1024xf32>
    %cst_25 = arith.constant 5.000000e-01 : f32
    %37 = vector.broadcast %cst_25 : f32 to vector<8x1024xf32>
    %38 = arith.mulf %37, %36 : vector<8x1024xf32>
    %39 = math.tanh %38 : vector<8x1024xf32>
    %cst_26 = arith.constant 1.000000e+00 : f32
    %40 = vector.broadcast %cst_26 : f32 to vector<8x1024xf32>
    %41 = arith.addf %39, %40 : vector<8x1024xf32>
    %cst_27 = arith.constant 5.000000e-01 : f32
    %42 = vector.broadcast %cst_27 : f32 to vector<8x1024xf32>
    %43 = arith.mulf %42, %41 : vector<8x1024xf32>
    %c0_28 = arith.constant 0 : index
    %c0_29 = arith.constant 0 : index
    %44 = vector.load %arg11[%c0_28, %c0_29] : memref<8x1024xf32, #tpu.memory_space<vmem>>, vector<8x1024xf32>
    tpu.vector_store %arg11[%c0_28, %c0_29], %43 {strides = array<i32>} : memref<8x1024xf32, #tpu.memory_space<vmem>>, vector<8x1024xf32>,
    %c0_30 = arith.constant 0 : index
    %c0_31 = arith.constant 0 : index
    %45 = vector.load %arg12[%c0_30, %c0_31] : memref<8x128xf32, #tpu.memory_space<vmem>>, vector<8x128xf32>
    tpu.vector_store %arg12[%c0_30, %c0_31], %15 {strides = array<i32>} : memref<8x128xf32, #tpu.memory_space<vmem>>, vector<8x128xf32>,
    %c0_32 = arith.constant 0 : index
    %c0_33 = arith.constant 0 : index
    %46 = vector.load %arg13[%c0_32, %c0_33] : memref<8x128xf32, #tpu.memory_space<vmem>>, vector<8x128xf32>
    tpu.vector_store %arg13[%c0_32, %c0_33], %16 {strides = array<i32>} : memref<8x128xf32, #tpu.memory_space<vmem>>, vector<8x128xf32>,
    return
  }
  func.func @transform_0(%arg0: i32) -> (i32, i32) {
    %c0_i32 = arith.constant 0 : i32
    %c0_i32_0 = arith.constant 0 : i32
    return %arg0, %c0_i32 : i32, i32
  }
  func.func @transform_1(%arg0: i32) -> (i32, i32) {
    %c0_i32 = arith.constant 0 : i32
    %c0_i32_0 = arith.constant 0 : i32
    return %arg0, %c0_i32 : i32, i32
  }
  func.func @transform_2(%arg0: i32) -> (i32, i32) {
    %c0_i32 = arith.constant 0 : i32
    %c0_i32_0 = arith.constant 0 : i32
    %c0_i32_1 = arith.constant 0 : i32
    return %c0_i32, %c0_i32_0 : i32, i32
  }
  func.func @transform_3(%arg0: i32) -> (i32, i32) {
    %c0_i32 = arith.constant 0 : i32
    %c0_i32_0 = arith.constant 0 : i32
    %c0_i32_1 = arith.constant 0 : i32
    return %c0_i32, %c0_i32_0 : i32, i32
  }
  func.func @transform_4(%arg0: i32) -> (i32, i32) {
    %c0_i32 = arith.constant 0 : i32
    %c0_i32_0 = arith.constant 0 : i32
    %c0_i32_1 = arith.constant 0 : i32
    return %c0_i32, %c0_i32_0 : i32, i32
  }
  func.func @transform_5(%arg0: i32) -> (i32, i32) {
    %c0_i32 = arith.constant 0 : i32
    %c0_i32_0 = arith.constant 0 : i32
    %c0_i32_1 = arith.constant 0 : i32
    return %c0_i32, %c0_i32_0 : i32, i32
  }
  func.func @transform_6(%arg0: i32) -> (i32, i32) {
    %c0_i32 = arith.constant 0 : i32
    %c0_i32_0 = arith.constant 0 : i32
    %c0_i32_1 = arith.constant 0 : i32
    return %c0_i32, %c0_i32_0 : i32, i32
  }
  func.func @transform_7(%arg0: i32) -> (i32, i32) {
    %c0_i32 = arith.constant 0 : i32
    %c0_i32_0 = arith.constant 0 : i32
    %c0_i32_1 = arith.constant 0 : i32
    return %c0_i32, %c0_i32_0 : i32, i32
  }
  func.func @transform_8(%arg0: i32) -> (i32, i32) {
    %c0_i32 = arith.constant 0 : i32
    %c0_i32_0 = arith.constant 0 : i32
    %c0_i32_1 = arith.constant 0 : i32
    return %c0_i32, %c0_i32_0 : i32, i32
  }
  func.func @transform_9(%arg0: i32) -> (i32, i32) {
    %c0_i32 = arith.constant 0 : i32
    %c0_i32_0 = arith.constant 0 : i32
    %c0_i32_1 = arith.constant 0 : i32
    return %c0_i32, %c0_i32_0 : i32, i32
  }
  func.func @transform_10(%arg0: i32) -> (i32, i32) {
    %c0_i32 = arith.constant 0 : i32
    %c0_i32_0 = arith.constant 0 : i32
    return %arg0, %c0_i32 : i32, i32
  }
  func.func @transform_11(%arg0: i32) -> (i32, i32) {
    %c0_i32 = arith.constant 0 : i32
    %c0_i32_0 = arith.constant 0 : i32
    return %arg0, %c0_i32 : i32, i32
  }
  func.func @transform_12(%arg0: i32) -> (i32, i32) {
    %c0_i32 = arith.constant 0 : i32
    %c0_i32_0 = arith.constant 0 : i32
    return %arg0, %c0_i32 : i32, i32
  }
}

</mosaic_0001>

<llo_original>
// kernel: _vae_forward_impl.1
$region0: #{_vae_forward_impl.1}
  #allocation0 [shape = 'u32[]', space=smem, size = 0x4, offset = 0x4, fixed_abs, tag = 'smem constant byte address 0x4 - core index']
  #allocation1 [shape = 'u32[144,128]{1,0:T(1,128)}', space=vmem, size = 0x12000, scoped, tag = 'internal scratch']
  %s0 = inlined_call_operand.hbm [shape: f32[8,1024], index: 0, kind: input, shape index: {}]
  %s1 = inlined_call_operand.vmem [shape: f32[8,128], index: 1, kind: input, shape index: {}]
  %s2 = inlined_call_operand.hbm [shape: bf16[1024,512], index: 2, kind: input, shape index: {}]
  %s3 = inlined_call_operand.vmem [shape: f32[1,512], index: 3, kind: input, shape index: {}]
  %s4 = inlined_call_operand.hbm [shape: bf16[512,256], index: 4, kind: input, shape index: {}]
  %s5 = inlined_call_operand.vmem [shape: f32[1,256], index: 5, kind: input, shape index: {}]
  %s6 = inlined_call_operand.hbm [shape: bf16[128,512], index: 6, kind: input, shape index: {}]
  %s7 = inlined_call_operand.vmem [shape: f32[1,512], index: 7, kind: input, shape index: {}]
  %s8 = inlined_call_operand.hbm [shape: bf16[512,1024], index: 8, kind: input, shape index: {}]
  %s9 = inlined_call_operand.vmem [shape: f32[1,1024], index: 9, kind: input, shape index: {}]
  %s10 = inlined_call_operand.hbm [shape: f32[8,1024], index: 10, kind: output, shape index: {0}]
  %s11 = inlined_call_operand.hbm [shape: f32[8,128], index: 11, kind: output, shape index: {1}]
  %s12 = inlined_call_operand.hbm [shape: f32[8,128], index: 12, kind: output, shape index: {2}]
  %13 = xla_tuple %s10, %s11, %s12
  %s14 = sld [smem:[#allocation0]]
  $region86: #{_vae_forward_impl.1} parent=0
    _
  %s16 = ssub.s32 1, %s14
  %s17 = scalar_select 0, %s16, %s14
  $region1: #{_vae_forward_impl.1} parent=0
    #allocation2 [shape = 'u8[32768]{0}', space=vmem, size = 0x8000, scoped, tag = 'input window, operand 0, single buffered']
    #allocation3 [shape = 's32[1]{0}', space=sflag, size = 0x4, scoped, tag = 'scoped memory for _vae_forward_impl.1']
    #allocation4 [shape = 's32[1]{0}', space=sflag, size = 0x4, scoped, tag = 'scoped memory for _vae_forward_impl.1']
    #allocation5 [shape = 'u8[1048576]{0}', space=vmem, size = 0x100000, scoped, tag = 'input window, operand 2, single buffered']
    #allocation6 [shape = 's32[1]{0}', space=sflag, size = 0x4, scoped, tag = 'scoped memory for _vae_forward_impl.1']
    #allocation7 [shape = 'u8[262144]{0}', space=vmem, size = 0x40000, scoped, tag = 'input window, operand 4, single buffered']
    #allocation8 [shape = 'u8[131072]{0}', space=vmem, size = 0x20000, scoped, tag = 'input window, operand 6, single buffered']
    #allocation9 [shape = 's32[1]{0}', space=sflag, size = 0x4, scoped, tag = 'scoped memory for _vae_forward_impl.1']
    #allocation10 [shape = 'u8[1048576]{0}', space=vmem, size = 0x100000, scoped, tag = 'input window, operand 8, single buffered']
    #allocation11 [shape = 'u8[32768]{0}', space=vmem, size = 0x8000, scoped, tag = 'output window, operand 0, single buffered']
    #allocation12 [shape = 'u8[4096]{0}', space=vmem, size = 0x1000, scoped, tag = 'output window, operand 1, single buffered']
    #allocation13 [shape = 's32[1]{0}', space=sflag, size = 0x4, scoped, tag = 'scoped memory for _vae_forward_impl.1']
    #allocation14 [shape = 'u8[4096]{0}', space=vmem, size = 0x1000, scoped, tag = 'output window, operand 2, single buffered']
    %18 = vsyncpa [#allocation3], 0
    %19 = vsyncpa [#allocation6], 0
    %20 = vsyncpa [#allocation9], 0
    %21 = vsyncpa [#allocation4], 0
    %22 = vsyncpa [#allocation13], 0
    // Predicated region
    $region2: #{_vae_forward_impl.1} parent=1 // pred_check
      _
    $region3: #{_vae_forward_impl.1} parent=1 // pred_check_branch
      %24 = sbr.rel (0) target = $region5
    $region4: #{_vae_forward_impl.1} parent=1 // pred_region
      %s26 = ssub.s32 1024, 1024
      %27 = vsyncadd [#allocation3], %s26
      %s29 = sshll.u32 [#allocation2], 4
      %s30 = int_to_ptr.vmem [resolvable:$true] %s29
      %32 = dma.hbm_to_vmem [thread:$0]  %s0, 1024, %s30, [#allocation3]
    $region5: #{_vae_forward_impl.1} parent=1 // pred_fallthru
      _
    // Predicated region
    $region6: #{_vae_forward_impl.1} parent=1 // pred_check
      _
    $region7: #{_vae_forward_impl.1} parent=1 // pred_check_branch
      %34 = sbr.rel (0) target = $region9
    $region8: #{_vae_forward_impl.1} parent=1 // pred_region
      _
    $region9: #{_vae_forward_impl.1} parent=1 // pred_fallthru
      _
    // Predicated region
    $region10: #{_vae_forward_impl.1} parent=1 // pred_check
      _
    $region11: #{_vae_forward_impl.1} parent=1 // pred_check_branch
      %36 = sbr.rel (0) target = $region13
    $region12: #{_vae_forward_impl.1} parent=1 // pred_region
      %s38 = ssub.s32 32768, 32768
      %39 = vsyncadd [#allocation6], %s38
      %s40 = sshll.u32 [#allocation5], 4
      %s41 = int_to_ptr.vmem [resolvable:$true] %s40
      %46 = dma.hbm_to_vmem [thread:$0]  %s2, 32768, %s41, [#allocation6], 256, 256, 16
    $region13: #{_vae_forward_impl.1} parent=1 // pred_fallthru
      _
    // Predicated region
    $region14: #{_vae_forward_impl.1} parent=1 // pred_check
      _
    $region15: #{_vae_forward_impl.1} parent=1 // pred_check_branch
      %48 = sbr.rel (0) target = $region17
    $region16: #{_vae_forward_impl.1} parent=1 // pred_region
      _
    $region17: #{_vae_forward_impl.1} parent=1 // pred_fallthru
      _
    // Predicated region
    $region18: #{_vae_forward_impl.1} parent=1 // pred_check
      _
    $region19: #{_vae_forward_impl.1} parent=1 // pred_check_branch
      %50 = sbr.rel (0) target = $region21
    $region20: #{_vae_forward_impl.1} parent=1 // pred_region
      %s52 = ssub.s32 8192, 8192
      %53 = vsyncadd [#allocation6], %s52
      %s54 = sshll.u32 [#allocation7], 4
      %s55 = int_to_ptr.vmem [resolvable:$true] %s54
      %60 = dma.hbm_to_vmem [thread:$0]  %s4, 8192, %s55, [#allocation6], 128, 128, 8
    $region21: #{_vae_forward_impl.1} parent=1 // pred_fallthru
      _
    // Predicated region
    $region22: #{_vae_forward_impl.1} parent=1 // pred_check
      _
    $region23: #{_vae_forward_impl.1} parent=1 // pred_check_branch
      %62 = sbr.rel (0) target = $region25
    $region24: #{_vae_forward_impl.1} parent=1 // pred_region
      _
    $region25: #{_vae_forward_impl.1} parent=1 // pred_fallthru
      _
    // Predicated region
    $region26: #{_vae_forward_impl.1} parent=1 // pred_check
      _
    $region27: #{_vae_forward_impl.1} parent=1 // pred_check_branch
      %64 = sbr.rel (0) target = $region29
    $region28: #{_vae_forward_impl.1} parent=1 // pred_region
      %s66 = ssub.s32 4096, 4096
      %67 = vsyncadd [#allocation9], %s66
      %s68 = sshll.u32 [#allocation8], 4
      %s69 = int_to_ptr.vmem [resolvable:$true] %s68
      %74 = dma.hbm_to_vmem [thread:$0]  %s6, 4096, %s69, [#allocation9], 256, 256, 16
    $region29: #{_vae_forward_impl.1} parent=1 // pred_fallthru
      _
    // Predicated region
    $region30: #{_vae_forward_impl.1} parent=1 // pred_check
      _
    $region31: #{_vae_forward_impl.1} parent=1 // pred_check_branch
      %76 = sbr.rel (0) target = $region33
    $region32: #{_vae_forward_impl.1} parent=1 // pred_region
      _
    $region33: #{_vae_forward_impl.1} parent=1 // pred_fallthru
      _
    // Predicated region
    $region34: #{_vae_forward_impl.1} parent=1 // pred_check
      _
    $region35: #{_vae_forward_impl.1} parent=1 // pred_check_branch
      %78 = sbr.rel (0) target = $region37
    $region36: #{_vae_forward_impl.1} parent=1 // pred_region
      %s80 = ssub.s32 32768, 32768
      %81 = vsyncadd [#allocation9], %s80
      %s82 = sshll.u32 [#allocation10], 4
      %s83 = int_to_ptr.vmem [resolvable:$true] %s82
      %88 = dma.hbm_to_vmem [thread:$0]  %s8, 32768, %s83, [#allocation9], 512, 512, 32
    $region37: #{_vae_forward_impl.1} parent=1 // pred_fallthru
      _
    // Predicated region
    $region38: #{_vae_forward_impl.1} parent=1 // pred_check
      _
    $region39: #{_vae_forward_impl.1} parent=1 // pred_check_branch
      %90 = sbr.rel (0) target = $region41
    $region40: #{_vae_forward_impl.1} parent=1 // pred_region
      _
    $region41: #{_vae_forward_impl.1} parent=1 // pred_fallthru
      _
    // Predicated region
    $region42: #{_vae_forward_impl.1} parent=1 // pred_check
      _
    $region43: #{_vae_forward_impl.1} parent=1 // pred_check_branch
      %92 = sbr.rel (0) target = $region45
    $region44: #{_vae_forward_impl.1} parent=1 // pred_region
      %93 = dma.done [#allocation3], 1024
    $region45: #{_vae_forward_impl.1} parent=1 // pred_fallthru
      _
    // Predicated region
    $region46: #{_vae_forward_impl.1} parent=1 // pred_check
      _
    $region47: #{_vae_forward_impl.1} parent=1 // pred_check_branch
      %95 = sbr.rel (0) target = $region49
    $region48: #{_vae_forward_impl.1} parent=1 // pred_region
      %96 = dma.done [#allocation6], 32768
    $region49: #{_vae_forward_impl.1} parent=1 // pred_fallthru
      _
    // Predicated region
    $region50: #{_vae_forward_impl.1} parent=1 // pred_check
      _
    $region51: #{_vae_forward_impl.1} parent=1 // pred_check_branch
      %98 = sbr.rel (0) target = $region53
    $region52: #{_vae_forward_impl.1} parent=1 // pred_region
      %99 = dma.done [#allocation6], 8192
    $region53: #{_vae_forward_impl.1} parent=1 // pred_fallthru
      _
    // Predicated region
    $region54: #{_vae_forward_impl.1} parent=1 // pred_check
      _
    $region55: #{_vae_forward_impl.1} parent=1 // pred_check_branch
      %101 = sbr.rel (0) target = $region57
    $region56: #{_vae_forward_impl.1} parent=1 // pred_region
      %102 = dma.done [#allocation9], 4096
    $region57: #{_vae_forward_impl.1} parent=1 // pred_fallthru
      _
    // Predicated region
    $region58: #{_vae_forward_impl.1} parent=1 // pred_check
      _
    $region59: #{_vae_forward_impl.1} parent=1 // pred_check_branch
      %104 = sbr.rel (0) target = $region61
    $region60: #{_vae_forward_impl.1} parent=1 // pred_region
      %105 = dma.done [#allocation9], 32768
    $region61: #{_vae_forward_impl.1} parent=1 // pred_fallthru
      _
    %v107 = vld [vmem:[#allocation2] sm:$0xff]
    %v108 = vld [vmem:[#allocation2 + $0x8] sm:$0xff]
    %v109 = vld [vmem:[#allocation2 + $0x10] sm:$0xff]
    %v110 = vld [vmem:[#allocation2 + $0x18] sm:$0xff]
    %v111 = vld [vmem:[#allocation2 + $0x20] sm:$0xff]
    %v112 = vld [vmem:[#allocation2 + $0x28] sm:$0xff]
    %v113 = vld [vmem:[#allocation2 + $0x30] sm:$0xff]
    %v114 = vld [vmem:[#allocation2 + $0x38] sm:$0xff]
    %v115 = vpack.c.bf16 %v107, %v107
    %v116 = vpack.c.bf16 %v108, %v108
    %v117 = vpack.c.bf16 %v109, %v109
    %v118 = vpack.c.bf16 %v110, %v110
    %v119 = vpack.c.bf16 %v111, %v111
    %v120 = vpack.c.bf16 %v112, %v112
    %v121 = vpack.c.bf16 %v113, %v113
    %v122 = vpack.c.bf16 %v114, %v114
    %v123 = vld [vmem:[#allocation5] sm:$0xff]
    %v124 = vld [vmem:[#allocation5 + $0x8] sm:$0xff]
    %v125 = vld [vmem:[#allocation5 + $0x10] sm:$0xff]
    %v126 = vld [vmem:[#allocation5 + $0x18] sm:$0xff]
    %v127 = vld [vmem:[#allocation5 + $0x20] sm:$0xff]
    %v128 = vld [vmem:[#allocation5 + $0x28] sm:$0xff]
    %v129 = vld [vmem:[#allocation5 + $0x30] sm:$0xff]
    %v130 = vld [vmem:[#allocation5 + $0x38] sm:$0xff]
    %v131 = vld [vmem:[#allocation5 + $0x40] sm:$0xff]
    %v132 = vld [vmem:[#allocation5 + $0x48] sm:$0xff]
    %v133 = vld [vmem:[#allocation5 + $0x50] sm:$0xff]
    %v134 = vld [vmem:[#allocation5 + $0x58] sm:$0xff]
    %v135 = vld [vmem:[#allocation5 + $0x60] sm:$0xff]
    %v136 = vld [vmem:[#allocation5 + $0x68] sm:$0xff]
    %v137 = vld [vmem:[#allocation5 + $0x70] sm:$0xff]
    %v138 = vld [vmem:[#allocation5 + $0x78] sm:$0xff]
    %v139 = vld [vmem:[#allocation5 + $0x80] sm:$0xff]
    %v140 = vld [vmem:[#allocation5 + $0x88] sm:$0xff]
    %v141 = vld [vmem:[#allocation5 + $0x90] sm:$0xff]
    %v142 = vld [vmem:[#allocation5 + $0x98] sm:$0xff]
    %v143 = vld [vmem:[#allocation5 + $0xa0] sm:$0xff]
    %v144 = vld [vmem:[#allocation5 + $0xa8] sm:$0xff]
    %v145 = vld [vmem:[#allocation5 + $0xb0] sm:$0xff]
    %v146 = vld [vmem:[#allocation5 + $0xb8] sm:$0xff]
    %v147 = vld [vmem:[#allocation5 + $0xc0] sm:$0xff]
    %v148 = vld [vmem:[#allocation5 + $0xc8] sm:$0xff]
    %v149 = vld [vmem:[#allocation5 + $0xd0] sm:$0xff]
    %v150 = vld [vmem:[#allocation5 + $0xd8] sm:$0xff]
    %v151 = vld [vmem:[#allocation5 + $0xe0] sm:$0xff]
    %v152 = vld [vmem:[#allocation5 + $0xe8] sm:$0xff]
    %v153 = vld [vmem:[#allocation5 + $0xf0] sm:$0xff]
    %v154 = vld [vmem:[#allocation5 + $0xf8] sm:$0xff]
    %v155 = vld [vmem:[#allocation5 + $0x100] sm:$0xff]
    %v156 = vld [vmem:[#allocation5 + $0x108] sm:$0xff]
    %v157 = vld [vmem:[#allocation5 + $0x110] sm:$0xff]
    %v158 = vld [vmem:[#allocation5 + $0x118] sm:$0xff]
    %v159 = vld [vmem:[#allocation5 + $0x120] sm:$0xff]
    %v160 = vld [vmem:[#allocation5 + $0x128] sm:$0xff]
    %v161 = vld [vmem:[#allocation5 + $0x130] sm:$0xff]
    %v162 = vld [vmem:[#allocation5 + $0x138] sm:$0xff]
    %v163 = vld [vmem:[#allocation5 + $0x140] sm:$0xff]
    %v164 = vld [vmem:[#allocation5 + $0x148] sm:$0xff]
    %v165 = vld [vmem:[#allocation5 + $0x150] sm:$0xff]
    %v166 = vld [vmem:[#allocation5 + $0x158] sm:$0xff]
    %v167 = vld [vmem:[#allocation5 + $0x160] sm:$0xff]
    %v168 = vld [vmem:[#allocation5 + $0x168] sm:$0xff]
    %v169 = vld [vmem:[#allocation5 + $0x170] sm:$0xff]
    %v170 = vld [vmem:[#allocation5 + $0x178] sm:$0xff]
    %v171 = vld [vmem:[#allocation5 + $0x180] sm:$0xff]
    %v172 = vld [vmem:[#allocation5 + $0x188] sm:$0xff]
    %v173 = vld [vmem:[#allocation5 + $0x190] sm:$0xff]
    %v174 = vld [vmem:[#allocation5 + $0x198] sm:$0xff]
    %v175 = vld [vmem:[#allocation5 + $0x1a0] sm:$0xff]
    %v176 = vld [vmem:[#allocation5 + $0x1a8] sm:$0xff]
    %v177 = vld [vmem:[#allocation5 + $0x1b0] sm:$0xff]
    %v178 = vld [vmem:[#allocation5 + $0x1b8] sm:$0xff]
    %v179 = vld [vmem:[#allocation5 + $0x1c0] sm:$0xff]
    %v180 = vld [vmem:[#allocation5 + $0x1c8] sm:$0xff]
    %v181 = vld [vmem:[#allocation5 + $0x1d0] sm:$0xff]
    %v182 = vld [vmem:[#allocation5 + $0x1d8] sm:$0xff]
    %v183 = vld [vmem:[#allocation5 + $0x1e0] sm:$0xff]
    %v184 = vld [vmem:[#allocation5 + $0x1e8] sm:$0xff]
    %v185 = vld [vmem:[#allocation5 + $0x1f0] sm:$0xff]
    %v186 = vld [vmem:[#allocation5 + $0x1f8] sm:$0xff]
    %v187 = vld [vmem:[#allocation5 + $0x200] sm:$0xff]
    %v188 = vld [vmem:[#allocation5 + $0x208] sm:$0xff]
    %v189 = vld [vmem:[#allocation5 + $0x210] sm:$0xff]
    %v190 = vld [vmem:[#allocation5 + $0x218] sm:$0xff]
    %v191 = vld [vmem:[#allocation5 + $0x220] sm:$0xff]
    %v192 = vld [vmem:[#allocation5 + $0x228] sm:$0xff]
    %v193 = vld [vmem:[#allocation5 + $0x230] sm:$0xff]
    %v194 = vld [vmem:[#allocation5 + $0x238] sm:$0xff]
    %v195 = vld [vmem:[#allocation5 + $0x240] sm:$0xff]
    %v196 = vld [vmem:[#allocation5 + $0x248] sm:$0xff]
    %v197 = vld [vmem:[#allocation5 + $0x250] sm:$0xff]
    %v198 = vld [vmem:[#allocation5 + $0x258] sm:$0xff]
    %v199 = vld [vmem:[#allocation5 + $0x260] sm:$0xff]
    %v200 = vld [vmem:[#allocation5 + $0x268] sm:$0xff]
    %v201 = vld [vmem:[#allocation5 + $0x270] sm:$0xff]
    %v202 = vld [vmem:[#allocation5 + $0x278] sm:$0xff]
    %v203 = vld [vmem:[#allocation5 + $0x280] sm:$0xff]
    %v204 = vld [vmem:[#allocation5 + $0x288] sm:$0xff]
    %v205 = vld [vmem:[#allocation5 + $0x290] sm:$0xff]
    %v206 = vld [vmem:[#allocation5 + $0x298] sm:$0xff]
    %v207 = vld [vmem:[#allocation5 + $0x2a0] sm:$0xff]
    %v208 = vld [vmem:[#allocation5 + $0x2a8] sm:$0xff]
    %v209 = vld [vmem:[#allocation5 + $0x2b0] sm:$0xff]
    %v210 = vld [vmem:[#allocation5 + $0x2b8] sm:$0xff]
    %v211 = vld [vmem:[#allocation5 + $0x2c0] sm:$0xff]
    %v212 = vld [vmem:[#allocation5 + $0x2c8] sm:$0xff]
    %v213 = vld [vmem:[#allocation5 + $0x2d0] sm:$0xff]
    %v214 = vld [vmem:[#allocation5 + $0x2d8] sm:$0xff]
    %v215 = vld [vmem:[#allocation5 + $0x2e0] sm:$0xff]
    %v216 = vld [vmem:[#allocation5 + $0x2e8] sm:$0xff]
    %v217 = vld [vmem:[#allocation5 + $0x2f0] sm:$0xff]
    %v218 = vld [vmem:[#allocation5 + $0x2f8] sm:$0xff]
    %v219 = vld [vmem:[#allocation5 + $0x300] sm:$0xff]
    %v220 = vld [vmem:[#allocation5 + $0x308] sm:$0xff]
    %v221 = vld [vmem:[#allocation5 + $0x310] sm:$0xff]
    %v222 = vld [vmem:[#allocation5 + $0x318] sm:$0xff]
    %v223 = vld [vmem:[#allocation5 + $0x320] sm:$0xff]
    %v224 = vld [vmem:[#allocation5 + $0x328] sm:$0xff]
    %v225 = vld [vmem:[#allocation5 + $0x330] sm:$0xff]
    %v226 = vld [vmem:[#allocation5 + $0x338] sm:$0xff]
    %v227 = vld [vmem:[#allocation5 + $0x340] sm:$0xff]
    %v228 = vld [vmem:[#allocation5 + $0x348] sm:$0xff]
    %v229 = vld [vmem:[#allocation5 + $0x350] sm:$0xff]
    %v230 = vld [vmem:[#allocation5 + $0x358] sm:$0xff]
    %v231 = vld [vmem:[#allocation5 + $0x360] sm:$0xff]
    %v232 = vld [vmem:[#allocation5 + $0x368] sm:$0xff]
    %v233 = vld [vmem:[#allocation5 + $0x370] sm:$0xff]
    %v234 = vld [vmem:[#allocation5 + $0x378] sm:$0xff]
    %v235 = vld [vmem:[#allocation5 + $0x380] sm:$0xff]
    %v236 = vld [vmem:[#allocation5 + $0x388] sm:$0xff]
    %v237 = vld [vmem:[#allocation5 + $0x390] sm:$0xff]
    %v238 = vld [vmem:[#allocation5 + $0x398] sm:$0xff]
    %v239 = vld [vmem:[#allocation5 + $0x3a0] sm:$0xff]
    %v240 = vld [vmem:[#allocation5 + $0x3a8] sm:$0xff]
    %v241 = vld [vmem:[#allocation5 + $0x3b0] sm:$0xff]
    %v242 = vld [vmem:[#allocation5 + $0x3b8] sm:$0xff]
    %v243 = vld [vmem:[#allocation5 + $0x3c0] sm:$0xff]
    %v244 = vld [vmem:[#allocation5 + $0x3c8] sm:$0xff]
    %v245 = vld [vmem:[#allocation5 + $0x3d0] sm:$0xff]
    %v246 = vld [vmem:[#allocation5 + $0x3d8] sm:$0xff]
    %v247 = vld [vmem:[#allocation5 + $0x3e0] sm:$0xff]
    %v248 = vld [vmem:[#allocation5 + $0x3e8] sm:$0xff]
    %v249 = vld [vmem:[#allocation5 + $0x3f0] sm:$0xff]
    %v250 = vld [vmem:[#allocation5 + $0x3f8] sm:$0xff]
    %v251 = vld [vmem:[#allocation5 + $0x400] sm:$0xff]
    %v252 = vld [vmem:[#allocation5 + $0x408] sm:$0xff]
    %v253 = vld [vmem:[#allocation5 + $0x410] sm:$0xff]
    %v254 = vld [vmem:[#allocation5 + $0x418] sm:$0xff]
    %v255 = vld [vmem:[#allocation5 + $0x420] sm:$0xff]
    %v256 = vld [vmem:[#allocation5 + $0x428] sm:$0xff]
    %v257 = vld [vmem:[#allocation5 + $0x430] sm:$0xff]
    %v258 = vld [vmem:[#allocation5 + $0x438] sm:$0xff]
    %v259 = vld [vmem:[#allocation5 + $0x440] sm:$0xff]
    %v260 = vld [vmem:[#allocation5 + $0x448] sm:$0xff]
    %v261 = vld [vmem:[#allocation5 + $0x450] sm:$0xff]
    %v262 = vld [vmem:[#allocation5 + $0x458] sm:$0xff]
    %v263 = vld [vmem:[#allocation5 + $0x460] sm:$0xff]
    %v264 = vld [vmem:[#allocation5 + $0x468] sm:$0xff]
    %v265 = vld [vmem:[#allocation5 + $0x470] sm:$0xff]
    %v266 = vld [vmem:[#allocation5 + $0x478] sm:$0xff]
    %v267 = vld [vmem:[#allocation5 + $0x480] sm:$0xff]
    %v268 = vld [vmem:[#allocation5 + $0x488] sm:$0xff]
    %v269 = vld [vmem:[#allocation5 + $0x490] sm:$0xff]
    %v270 = vld [vmem:[#allocation5 + $0x498] sm:$0xff]
    %v271 = vld [vmem:[#allocation5 + $0x4a0] sm:$0xff]
    %v272 = vld [vmem:[#allocation5 + $0x4a8] sm:$0xff]
    %v273 = vld [vmem:[#allocation5 + $0x4b0] sm:$0xff]
    %v274 = vld [vmem:[#allocation5 + $0x4b8] sm:$0xff]
    %v275 = vld [vmem:[#allocation5 + $0x4c0] sm:$0xff]
    %v276 = vld [vmem:[#allocation5 + $0x4c8] sm:$0xff]
    %v277 = vld [vmem:[#allocation5 + $0x4d0] sm:$0xff]
    %v278 = vld [vmem:[#allocation5 + $0x4d8] sm:$0xff]
    %v279 = vld [vmem:[#allocation5 + $0x4e0] sm:$0xff]
    %v280 = vld [vmem:[#allocation5 + $0x4e8] sm:$0xff]
    %v281 = vld [vmem:[#allocation5 + $0x4f0] sm:$0xff]
    %v282 = vld [vmem:[#allocation5 + $0x4f8] sm:$0xff]
    %v283 = vld [vmem:[#allocation5 + $0x500] sm:$0xff]
    %v284 = vld [vmem:[#allocation5 + $0x508] sm:$0xff]
    %v285 = vld [vmem:[#allocation5 + $0x510] sm:$0xff]
    %v286 = vld [vmem:[#allocation5 + $0x518] sm:$0xff]
    %v287 = vld [vmem:[#allocation5 + $0x520] sm:$0xff]
    %v288 = vld [vmem:[#allocation5 + $0x528] sm:$0xff]
    %v289 = vld [vmem:[#allocation5 + $0x530] sm:$0xff]
    %v290 = vld [vmem:[#allocation5 + $0x538] sm:$0xff]
    %v291 = vld [vmem:[#allocation5 + $0x540] sm:$0xff]
    %v292 = vld [vmem:[#allocation5 + $0x548] sm:$0xff]
    %v293 = vld [vmem:[#allocation5 + $0x550] sm:$0xff]
    %v294 = vld [vmem:[#allocation5 + $0x558] sm:$0xff]
    %v295 = vld [vmem:[#allocation5 + $0x560] sm:$0xff]
    %v296 = vld [vmem:[#allocation5 + $0x568] sm:$0xff]
    %v297 = vld [vmem:[#allocation5 + $0x570] sm:$0xff]
    %v298 = vld [vmem:[#allocation5 + $0x578] sm:$0xff]
    %v299 = vld [vmem:[#allocation5 + $0x580] sm:$0xff]
    %v300 = vld [vmem:[#allocation5 + $0x588] sm:$0xff]
    %v301 = vld [vmem:[#allocation5 + $0x590] sm:$0xff]
    %v302 = vld [vmem:[#allocation5 + $0x598] sm:$0xff]
    %v303 = vld [vmem:[#allocation5 + $0x5a0] sm:$0xff]
    %v304 = vld [vmem:[#allocation5 + $0x5a8] sm:$0xff]
    %v305 = vld [vmem:[#allocation5 + $0x5b0] sm:$0xff]
    %v306 = vld [vmem:[#allocation5 + $0x5b8] sm:$0xff]
    %v307 = vld [vmem:[#allocation5 + $0x5c0] sm:$0xff]
    %v308 = vld [vmem:[#allocation5 + $0x5c8] sm:$0xff]
    %v309 = vld [vmem:[#allocation5 + $0x5d0] sm:$0xff]
    %v310 = vld [vmem:[#allocation5 + $0x5d8] sm:$0xff]
    %v311 = vld [vmem:[#allocation5 + $0x5e0] sm:$0xff]
    %v312 = vld [vmem:[#allocation5 + $0x5e8] sm:$0xff]
    %v313 = vld [vmem:[#allocation5 + $0x5f0] sm:$0xff]
    %v314 = vld [vmem:[#allocation5 + $0x5f8] sm:$0xff]
    %v315 = vld [vmem:[#allocation5 + $0x600] sm:$0xff]
    %v316 = vld [vmem:[#allocation5 + $0x608] sm:$0xff]
    %v317 = vld [vmem:[#allocation5 + $0x610] sm:$0xff]
    %v318 = vld [vmem:[#allocation5 + $0x618] sm:$0xff]
    %v319 = vld [vmem:[#allocation5 + $0x620] sm:$0xff]
    %v320 = vld [vmem:[#allocation5 + $0x628] sm:$0xff]
    %v321 = vld [vmem:[#allocation5 + $0x630] sm:$0xff]
    %v322 = vld [vmem:[#allocation5 + $0x638] sm:$0xff]
    %v323 = vld [vmem:[#allocation5 + $0x640] sm:$0xff]
    %v324 = vld [vmem:[#allocation5 + $0x648] sm:$0xff]
    %v325 = vld [vmem:[#allocation5 + $0x650] sm:$0xff]
    %v326 = vld [vmem:[#allocation5 + $0x658] sm:$0xff]
    %v327 = vld [vmem:[#allocation5 + $0x660] sm:$0xff]
    %v328 = vld [vmem:[#allocation5 + $0x668] sm:$0xff]
    %v329 = vld [vmem:[#allocation5 + $0x670] sm:$0xff]
    %v330 = vld [vmem:[#allocation5 + $0x678] sm:$0xff]
    %v331 = vld [vmem:[#allocation5 + $0x680] sm:$0xff]
    %v332 = vld [vmem:[#allocation5 + $0x688] sm:$0xff]
    %v333 = vld [vmem:[#allocation5 + $0x690] sm:$0xff]
    %v334 = vld [vmem:[#allocation5 + $0x698] sm:$0xff]
    %v335 = vld [vmem:[#allocation5 + $0x6a0] sm:$0xff]
    %v336 = vld [vmem:[#allocation5 + $0x6a8] sm:$0xff]
    %v337 = vld [vmem:[#allocation5 + $0x6b0] sm:$0xff]
    %v338 = vld [vmem:[#allocation5 + $0x6b8] sm:$0xff]
    %v339 = vld [vmem:[#allocation5 + $0x6c0] sm:$0xff]
    %v340 = vld [vmem:[#allocation5 + $0x6c8] sm:$0xff]
    %v341 = vld [vmem:[#allocation5 + $0x6d0] sm:$0xff]
    %v342 = vld [vmem:[#allocation5 + $0x6d8] sm:$0xff]
    %v343 = vld [vmem:[#allocation5 + $0x6e0] sm:$0xff]
    %v344 = vld [vmem:[#allocation5 + $0x6e8] sm:$0xff]
    %v345 = vld [vmem:[#allocation5 + $0x6f0] sm:$0xff]
    %v346 = vld [vmem:[#allocation5 + $0x6f8] sm:$0xff]
    %v347 = vld [vmem:[#allocation5 + $0x700] sm:$0xff]
    %v348 = vld [vmem:[#allocation5 + $0x708] sm:$0xff]
    %v349 = vld [vmem:[#allocation5 + $0x710] sm:$0xff]
    %v350 = vld [vmem:[#allocation5 + $0x718] sm:$0xff]
    %v351 = vld [vmem:[#allocation5 + $0x720] sm:$0xff]
    %v352 = vld [vmem:[#allocation5 + $0x728] sm:$0xff]
    %v353 = vld [vmem:[#allocation5 + $0x730] sm:$0xff]
    %v354 = vld [vmem:[#allocation5 + $0x738] sm:$0xff]
    %v355 = vld [vmem:[#allocation5 + $0x740] sm:$0xff]
    %v356 = vld [vmem:[#allocation5 + $0x748] sm:$0xff]
    %v357 = vld [vmem:[#allocation5 + $0x750] sm:$0xff]
    %v358 = vld [vmem:[#allocation5 + $0x758] sm:$0xff]
    %v359 = vld [vmem:[#allocation5 + $0x760] sm:$0xff]
    %v360 = vld [vmem:[#allocation5 + $0x768] sm:$0xff]
    %v361 = vld [vmem:[#allocation5 + $0x770] sm:$0xff]
    %v362 = vld [vmem:[#allocation5 + $0x778] sm:$0xff]
    %v363 = vld [vmem:[#allocation5 + $0x780] sm:$0xff]
    %v364 = vld [vmem:[#allocation5 + $0x788] sm:$0xff]
    %v365 = vld [vmem:[#allocation5 + $0x790] sm:$0xff]
    %v366 = vld [vmem:[#allocation5 + $0x798] sm:$0xff]
    %v367 = vld [vmem:[#allocation5 + $0x7a0] sm:$0xff]
    %v368 = vld [vmem:[#allocation5 + $0x7a8] sm:$0xff]
    %v369 = vld [vmem:[#allocation5 + $0x7b0] sm:$0xff]
    %v370 = vld [vmem:[#allocation5 + $0x7b8] sm:$0xff]
    %v371 = vld [vmem:[#allocation5 + $0x7c0] sm:$0xff]
    %v372 = vld [vmem:[#allocation5 + $0x7c8] sm:$0xff]
    %v373 = vld [vmem:[#allocation5 + $0x7d0] sm:$0xff]
    %v374 = vld [vmem:[#allocation5 + $0x7d8] sm:$0xff]
    %v375 = vld [vmem:[#allocation5 + $0x7e0] sm:$0xff]
    %v376 = vld [vmem:[#allocation5 + $0x7e8] sm:$0xff]
    %v377 = vld [vmem:[#allocation5 + $0x7f0] sm:$0xff]
    %v378 = vld [vmem:[#allocation5 + $0x7f8] sm:$0xff]
    %v379 = vld [vmem:[%s3] sm:$0xf]
    %v381 = vlaneseq
    %v382 = vshrl.u32 %v381, 7
    %v383 = vsub.s32 0, %v382
    %v384 = vrot.slane %v379, %v383
    %v385 = vlaneseq
    %v386 = vshrl.u32 %v385, 7
    %v387 = vsub.s32 1, %v386
    %v388 = vrot.slane %v379, %v387
    %v389 = vlaneseq
    %v390 = vshrl.u32 %v389, 7
    %v391 = vsub.s32 2, %v390
    %v392 = vrot.slane %v379, %v391
    %v393 = vlaneseq
    %v394 = vshrl.u32 %v393, 7
    %v395 = vsub.s32 3, %v394
    %v396 = vrot.slane %v379, %v395
    %v657 = vunpack.c.l.b16 %v123
    %v658 = vunpack.c.h.b16 %v123
    %v659 = vunpack.c.l.b16 %v124
    %v660 = vunpack.c.h.b16 %v124
    %v661 = vunpack.c.l.b16 %v125
    %v662 = vunpack.c.h.b16 %v125
    %v663 = vunpack.c.l.b16 %v126
    %v664 = vunpack.c.h.b16 %v126
    %v665 = vunpack.c.l.b16 %v127
    %v666 = vunpack.c.h.b16 %v127
    %v667 = vunpack.c.l.b16 %v128
    %v668 = vunpack.c.h.b16 %v128
    %v669 = vunpack.c.l.b16 %v129
    %v670 = vunpack.c.h.b16 %v129
    %v671 = vunpack.c.l.b16 %v130
    %v672 = vunpack.c.h.b16 %v130
    %v673 = vunpack.c.l.b16 %v131
    %v674 = vunpack.c.h.b16 %v131
    %v675 = vunpack.c.l.b16 %v132
    %v676 = vunpack.c.h.b16 %v132
    %v677 = vunpack.c.l.b16 %v133
    %v678 = vunpack.c.h.b16 %v133
    %v679 = vunpack.c.l.b16 %v134
    %v680 = vunpack.c.h.b16 %v134
    %v681 = vunpack.c.l.b16 %v135
    %v682 = vunpack.c.h.b16 %v135
    %v683 = vunpack.c.l.b16 %v136
    %v684 = vunpack.c.h.b16 %v136
    %v685 = vunpack.c.l.b16 %v137
    %v686 = vunpack.c.h.b16 %v137
    %v687 = vunpack.c.l.b16 %v138
    %v688 = vunpack.c.h.b16 %v138
    %v689 = vunpack.c.l.b16 %v139
    %v690 = vunpack.c.h.b16 %v139
    %v691 = vunpack.c.l.b16 %v140
    %v692 = vunpack.c.h.b16 %v140
    %v693 = vunpack.c.l.b16 %v141
    %v694 = vunpack.c.h.b16 %v141
    %v695 = vunpack.c.l.b16 %v142
    %v696 = vunpack.c.h.b16 %v142
    %v697 = vunpack.c.l.b16 %v143
    %v698 = vunpack.c.h.b16 %v143
    %v699 = vunpack.c.l.b16 %v144
    %v700 = vunpack.c.h.b16 %v144
    %v701 = vunpack.c.l.b16 %v145
    %v702 = vunpack.c.h.b16 %v145
    %v703 = vunpack.c.l.b16 %v146
    %v704 = vunpack.c.h.b16 %v146
    %v705 = vunpack.c.l.b16 %v147
    %v706 = vunpack.c.h.b16 %v147
    %v707 = vunpack.c.l.b16 %v148
    %v708 = vunpack.c.h.b16 %v148
    %v709 = vunpack.c.l.b16 %v149
    %v710 = vunpack.c.h.b16 %v149
    %v711 = vunpack.c.l.b16 %v150
    %v712 = vunpack.c.h.b16 %v150
    %v713 = vunpack.c.l.b16 %v151
    %v714 = vunpack.c.h.b16 %v151
    %v715 = vunpack.c.l.b16 %v152
    %v716 = vunpack.c.h.b16 %v152
    %v717 = vunpack.c.l.b16 %v153
    %v718 = vunpack.c.h.b16 %v153
    %v719 = vunpack.c.l.b16 %v154
    %v720 = vunpack.c.h.b16 %v154
    %v721 = vunpack.c.l.b16 %v155
    %v722 = vunpack.c.h.b16 %v155
    %v723 = vunpack.c.l.b16 %v156
    %v724 = vunpack.c.h.b16 %v156
    %v725 = vunpack.c.l.b16 %v157
    %v726 = vunpack.c.h.b16 %v157
    %v727 = vunpack.c.l.b16 %v158
    %v728 = vunpack.c.h.b16 %v158
    %v729 = vunpack.c.l.b16 %v159
    %v730 = vunpack.c.h.b16 %v159
    %v731 = vunpack.c.l.b16 %v160
    %v732 = vunpack.c.h.b16 %v160
    %v733 = vunpack.c.l.b16 %v161
    %v734 = vunpack.c.h.b16 %v161
    %v735 = vunpack.c.l.b16 %v162
    %v736 = vunpack.c.h.b16 %v162
    %v737 = vunpack.c.l.b16 %v163
    %v738 = vunpack.c.h.b16 %v163
    %v739 = vunpack.c.l.b16 %v164
    %v740 = vunpack.c.h.b16 %v164
    %v741 = vunpack.c.l.b16 %v165
    %v742 = vunpack.c.h.b16 %v165
    %v743 = vunpack.c.l.b16 %v166
    %v744 = vunpack.c.h.b16 %v166
    %v745 = vunpack.c.l.b16 %v167
    %v746 = vunpack.c.h.b16 %v167
    %v747 = vunpack.c.l.b16 %v168
    %v748 = vunpack.c.h.b16 %v168
    %v749 = vunpack.c.l.b16 %v169
    %v750 = vunpack.c.h.b16 %v169
    %v751 = vunpack.c.l.b16 %v170
    %v752 = vunpack.c.h.b16 %v170
    %v753 = vunpack.c.l.b16 %v171
    %v754 = vunpack.c.h.b16 %v171
    %v755 = vunpack.c.l.b16 %v172
    %v756 = vunpack.c.h.b16 %v172
    %v757 = vunpack.c.l.b16 %v173
    %v758 = vunpack.c.h.b16 %v173
    %v759 = vunpack.c.l.b16 %v174
    %v760 = vunpack.c.h.b16 %v174
    %v761 = vunpack.c.l.b16 %v175
    %v762 = vunpack.c.h.b16 %v175
    %v763 = vunpack.c.l.b16 %v176
    %v764 = vunpack.c.h.b16 %v176
    %v765 = vunpack.c.l.b16 %v177
    %v766 = vunpack.c.h.b16 %v177
    %v767 = vunpack.c.l.b16 %v178
    %v768 = vunpack.c.h.b16 %v178
    %v769 = vunpack.c.l.b16 %v179
    %v770 = vunpack.c.h.b16 %v179
    %v771 = vunpack.c.l.b16 %v180
    %v772 = vunpack.c.h.b16 %v180
    %v773 = vunpack.c.l.b16 %v181
    %v774 = vunpack.c.h.b16 %v181
    %v775 = vunpack.c.l.b16 %v182
    %v776 = vunpack.c.h.b16 %v182
    %v777 = vunpack.c.l.b16 %v183
    %v778 = vunpack.c.h.b16 %v183
    %v779 = vunpack.c.l.b16 %v184
    %v780 = vunpack.c.h.b16 %v184
    %v781 = vunpack.c.l.b16 %v185
    %v782 = vunpack.c.h.b16 %v185
    %v783 = vunpack.c.l.b16 %v186
    %v784 = vunpack.c.h.b16 %v186
    %v785 = vunpack.c.l.b16 %v187
    %v786 = vunpack.c.h.b16 %v187
    %v787 = vunpack.c.l.b16 %v188
    %v788 = vunpack.c.h.b16 %v188
    %v789 = vunpack.c.l.b16 %v189
    %v790 = vunpack.c.h.b16 %v189
    %v791 = vunpack.c.l.b16 %v190
    %v792 = vunpack.c.h.b16 %v190
    %v793 = vunpack.c.l.b16 %v191
    %v794 = vunpack.c.h.b16 %v191
    %v795 = vunpack.c.l.b16 %v192
    %v796 = vunpack.c.h.b16 %v192
    %v797 = vunpack.c.l.b16 %v193
    %v798 = vunpack.c.h.b16 %v193
    %v799 = vunpack.c.l.b16 %v194
    %v800 = vunpack.c.h.b16 %v194
    %v801 = vunpack.c.l.b16 %v195
    %v802 = vunpack.c.h.b16 %v195
    %v803 = vunpack.c.l.b16 %v196
    %v804 = vunpack.c.h.b16 %v196
    %v805 = vunpack.c.l.b16 %v197
    %v806 = vunpack.c.h.b16 %v197
    %v807 = vunpack.c.l.b16 %v198
    %v808 = vunpack.c.h.b16 %v198
    %v809 = vunpack.c.l.b16 %v199
    %v810 = vunpack.c.h.b16 %v199
    %v811 = vunpack.c.l.b16 %v200
    %v812 = vunpack.c.h.b16 %v200
    %v813 = vunpack.c.l.b16 %v201
    %v814 = vunpack.c.h.b16 %v201
    %v815 = vunpack.c.l.b16 %v202
    %v816 = vunpack.c.h.b16 %v202
    %v817 = vunpack.c.l.b16 %v203
    %v818 = vunpack.c.h.b16 %v203
    %v819 = vunpack.c.l.b16 %v204
    %v820 = vunpack.c.h.b16 %v204
    %v821 = vunpack.c.l.b16 %v205
    %v822 = vunpack.c.h.b16 %v205
    %v823 = vunpack.c.l.b16 %v206
    %v824 = vunpack.c.h.b16 %v206
    %v825 = vunpack.c.l.b16 %v207
    %v826 = vunpack.c.h.b16 %v207
    %v827 = vunpack.c.l.b16 %v208
    %v828 = vunpack.c.h.b16 %v208
    %v829 = vunpack.c.l.b16 %v209
    %v830 = vunpack.c.h.b16 %v209
    %v831 = vunpack.c.l.b16 %v210
    %v832 = vunpack.c.h.b16 %v210
    %v833 = vunpack.c.l.b16 %v211
    %v834 = vunpack.c.h.b16 %v211
    %v835 = vunpack.c.l.b16 %v212
    %v836 = vunpack.c.h.b16 %v212
    %v837 = vunpack.c.l.b16 %v213
    %v838 = vunpack.c.h.b16 %v213
    %v839 = vunpack.c.l.b16 %v214
    %v840 = vunpack.c.h.b16 %v214
    %v841 = vunpack.c.l.b16 %v215
    %v842 = vunpack.c.h.b16 %v215
    %v843 = vunpack.c.l.b16 %v216
    %v844 = vunpack.c.h.b16 %v216
    %v845 = vunpack.c.l.b16 %v217
    %v846 = vunpack.c.h.b16 %v217
    %v847 = vunpack.c.l.b16 %v218
    %v848 = vunpack.c.h.b16 %v218
    %v849 = vunpack.c.l.b16 %v219
    %v850 = vunpack.c.h.b16 %v219
    %v851 = vunpack.c.l.b16 %v220
    %v852 = vunpack.c.h.b16 %v220
    %v853 = vunpack.c.l.b16 %v221
    %v854 = vunpack.c.h.b16 %v221
    %v855 = vunpack.c.l.b16 %v222
    %v856 = vunpack.c.h.b16 %v222
    %v857 = vunpack.c.l.b16 %v223
    %v858 = vunpack.c.h.b16 %v223
    %v859 = vunpack.c.l.b16 %v224
    %v860 = vunpack.c.h.b16 %v224
    %v861 = vunpack.c.l.b16 %v225
    %v862 = vunpack.c.h.b16 %v225
    %v863 = vunpack.c.l.b16 %v226
    %v864 = vunpack.c.h.b16 %v226
    %v865 = vunpack.c.l.b16 %v227
    %v866 = vunpack.c.h.b16 %v227
    %v867 = vunpack.c.l.b16 %v228
    %v868 = vunpack.c.h.b16 %v228
    %v869 = vunpack.c.l.b16 %v229
    %v870 = vunpack.c.h.b16 %v229
    %v871 = vunpack.c.l.b16 %v230
    %v872 = vunpack.c.h.b16 %v230
    %v873 = vunpack.c.l.b16 %v231
    %v874 = vunpack.c.h.b16 %v231
    %v875 = vunpack.c.l.b16 %v232
    %v876 = vunpack.c.h.b16 %v232
    %v877 = vunpack.c.l.b16 %v233
    %v878 = vunpack.c.h.b16 %v233
    %v879 = vunpack.c.l.b16 %v234
    %v880 = vunpack.c.h.b16 %v234
    %v881 = vunpack.c.l.b16 %v235
    %v882 = vunpack.c.h.b16 %v235
    %v883 = vunpack.c.l.b16 %v236
    %v884 = vunpack.c.h.b16 %v236
    %v885 = vunpack.c.l.b16 %v237
    %v886 = vunpack.c.h.b16 %v237
    %v887 = vunpack.c.l.b16 %v238
    %v888 = vunpack.c.h.b16 %v238
    %v889 = vunpack.c.l.b16 %v239
    %v890 = vunpack.c.h.b16 %v239
    %v891 = vunpack.c.l.b16 %v240
    %v892 = vunpack.c.h.b16 %v240
    %v893 = vunpack.c.l.b16 %v241
    %v894 = vunpack.c.h.b16 %v241
    %v895 = vunpack.c.l.b16 %v242
    %v896 = vunpack.c.h.b16 %v242
    %v897 = vunpack.c.l.b16 %v243
    %v898 = vunpack.c.h.b16 %v243
    %v899 = vunpack.c.l.b16 %v244
    %v900 = vunpack.c.h.b16 %v244
    %v901 = vunpack.c.l.b16 %v245
    %v902 = vunpack.c.h.b16 %v245
    %v903 = vunpack.c.l.b16 %v246
    %v904 = vunpack.c.h.b16 %v246
    %v905 = vunpack.c.l.b16 %v247
    %v906 = vunpack.c.h.b16 %v247
    %v907 = vunpack.c.l.b16 %v248
    %v908 = vunpack.c.h.b16 %v248
    %v909 = vunpack.c.l.b16 %v249
    %v910 = vunpack.c.h.b16 %v249
    %v911 = vunpack.c.l.b16 %v250
    %v912 = vunpack.c.h.b16 %v250
    %v913 = vunpack.c.l.b16 %v251
    %v914 = vunpack.c.h.b16 %v251
    %v915 = vunpack.c.l.b16 %v252
    %v916 = vunpack.c.h.b16 %v252
    %v917 = vunpack.c.l.b16 %v253
    %v918 = vunpack.c.h.b16 %v253
    %v919 = vunpack.c.l.b16 %v254
    %v920 = vunpack.c.h.b16 %v254
    %v921 = vunpack.c.l.b16 %v255
    %v922 = vunpack.c.h.b16 %v255
    %v923 = vunpack.c.l.b16 %v256
    %v924 = vunpack.c.h.b16 %v256
    %v925 = vunpack.c.l.b16 %v257
    %v926 = vunpack.c.h.b16 %v257
    %v927 = vunpack.c.l.b16 %v258
    %v928 = vunpack.c.h.b16 %v258
    %v929 = vunpack.c.l.b16 %v259
    %v930 = vunpack.c.h.b16 %v259
    %v931 = vunpack.c.l.b16 %v260
    %v932 = vunpack.c.h.b16 %v260
    %v933 = vunpack.c.l.b16 %v261
    %v934 = vunpack.c.h.b16 %v261
    %v935 = vunpack.c.l.b16 %v262
    %v936 = vunpack.c.h.b16 %v262
    %v937 = vunpack.c.l.b16 %v263
    %v938 = vunpack.c.h.b16 %v263
    %v939 = vunpack.c.l.b16 %v264
    %v940 = vunpack.c.h.b16 %v264
    %v941 = vunpack.c.l.b16 %v265
    %v942 = vunpack.c.h.b16 %v265
    %v943 = vunpack.c.l.b16 %v266
    %v944 = vunpack.c.h.b16 %v266
    %v945 = vunpack.c.l.b16 %v267
    %v946 = vunpack.c.h.b16 %v267
    %v947 = vunpack.c.l.b16 %v268
    %v948 = vunpack.c.h.b16 %v268
    %v949 = vunpack.c.l.b16 %v269
    %v950 = vunpack.c.h.b16 %v269
    %v951 = vunpack.c.l.b16 %v270
    %v952 = vunpack.c.h.b16 %v270
    %v953 = vunpack.c.l.b16 %v271
    %v954 = vunpack.c.h.b16 %v271
    %v955 = vunpack.c.l.b16 %v272
    %v956 = vunpack.c.h.b16 %v272
    %v957 = vunpack.c.l.b16 %v273
    %v958 = vunpack.c.h.b16 %v273
    %v959 = vunpack.c.l.b16 %v274
    %v960 = vunpack.c.h.b16 %v274
    %v961 = vunpack.c.l.b16 %v275
    %v962 = vunpack.c.h.b16 %v275
    %v963 = vunpack.c.l.b16 %v276
    %v964 = vunpack.c.h.b16 %v276
    %v965 = vunpack.c.l.b16 %v277
    %v966 = vunpack.c.h.b16 %v277
    %v967 = vunpack.c.l.b16 %v278
    %v968 = vunpack.c.h.b16 %v278
    %v969 = vunpack.c.l.b16 %v279
    %v970 = vunpack.c.h.b16 %v279
    %v971 = vunpack.c.l.b16 %v280
    %v972 = vunpack.c.h.b16 %v280
    %v973 = vunpack.c.l.b16 %v281
    %v974 = vunpack.c.h.b16 %v281
    %v975 = vunpack.c.l.b16 %v282
    %v976 = vunpack.c.h.b16 %v282
    %v977 = vunpack.c.l.b16 %v283
    %v978 = vunpack.c.h.b16 %v283
    %v979 = vunpack.c.l.b16 %v284
    %v980 = vunpack.c.h.b16 %v284
    %v981 = vunpack.c.l.b16 %v285
    %v982 = vunpack.c.h.b16 %v285
    %v983 = vunpack.c.l.b16 %v286
    %v984 = vunpack.c.h.b16 %v286
    %v985 = vunpack.c.l.b16 %v287
    %v986 = vunpack.c.h.b16 %v287
    %v987 = vunpack.c.l.b16 %v288
    %v988 = vunpack.c.h.b16 %v288
    %v989 = vunpack.c.l.b16 %v289
    %v990 = vunpack.c.h.b16 %v289
    %v991 = vunpack.c.l.b16 %v290
    %v992 = vunpack.c.h.b16 %v290
    %v993 = vunpack.c.l.b16 %v291
    %v994 = vunpack.c.h.b16 %v291
    %v995 = vunpack.c.l.b16 %v292
    %v996 = vunpack.c.h.b16 %v292
    %v997 = vunpack.c.l.b16 %v293
    %v998 = vunpack.c.h.b16 %v293
    %v999 = vunpack.c.l.b16 %v294
    %v1000 = vunpack.c.h.b16 %v294
    %v1001 = vunpack.c.l.b16 %v295
    %v1002 = vunpack.c.h.b16 %v295
    %v1003 = vunpack.c.l.b16 %v296
    %v1004 = vunpack.c.h.b16 %v296
    %v1005 = vunpack.c.l.b16 %v297
    %v1006 = vunpack.c.h.b16 %v297
    %v1007 = vunpack.c.l.b16 %v298
    %v1008 = vunpack.c.h.b16 %v298
    %v1009 = vunpack.c.l.b16 %v299
    %v1010 = vunpack.c.h.b16 %v299
    %v1011 = vunpack.c.l.b16 %v300
    %v1012 = vunpack.c.h.b16 %v300
    %v1013 = vunpack.c.l.b16 %v301
    %v1014 = vunpack.c.h.b16 %v301
    %v1015 = vunpack.c.l.b16 %v302
    %v1016 = vunpack.c.h.b16 %v302
    %v1017 = vunpack.c.l.b16 %v303
    %v1018 = vunpack.c.h.b16 %v303
    %v1019 = vunpack.c.l.b16 %v304
    %v1020 = vunpack.c.h.b16 %v304
    %v1021 = vunpack.c.l.b16 %v305
    %v1022 = vunpack.c.h.b16 %v305
    %v1023 = vunpack.c.l.b16 %v306
    %v1024 = vunpack.c.h.b16 %v306
    %v1025 = vunpack.c.l.b16 %v307
    %v1026 = vunpack.c.h.b16 %v307
    %v1027 = vunpack.c.l.b16 %v308
    %v1028 = vunpack.c.h.b16 %v308
    %v1029 = vunpack.c.l.b16 %v309
    %v1030 = vunpack.c.h.b16 %v309
    %v1031 = vunpack.c.l.b16 %v310
    %v1032 = vunpack.c.h.b16 %v310
    %v1033 = vunpack.c.l.b16 %v311
    %v1034 = vunpack.c.h.b16 %v311
    %v1035 = vunpack.c.l.b16 %v312
    %v1036 = vunpack.c.h.b16 %v312
    %v1037 = vunpack.c.l.b16 %v313
    %v1038 = vunpack.c.h.b16 %v313
    %v1039 = vunpack.c.l.b16 %v314
    %v1040 = vunpack.c.h.b16 %v314
    %v1041 = vunpack.c.l.b16 %v315
    %v1042 = vunpack.c.h.b16 %v315
    %v1043 = vunpack.c.l.b16 %v316
    %v1044 = vunpack.c.h.b16 %v316
    %v1045 = vunpack.c.l.b16 %v317
    %v1046 = vunpack.c.h.b16 %v317
    %v1047 = vunpack.c.l.b16 %v318
    %v1048 = vunpack.c.h.b16 %v318
    %v1049 = vunpack.c.l.b16 %v319
    %v1050 = vunpack.c.h.b16 %v319
    %v1051 = vunpack.c.l.b16 %v320
    %v1052 = vunpack.c.h.b16 %v320
    %v1053 = vunpack.c.l.b16 %v321
    %v1054 = vunpack.c.h.b16 %v321
    %v1055 = vunpack.c.l.b16 %v322
    %v1056 = vunpack.c.h.b16 %v322
    %v1057 = vunpack.c.l.b16 %v323
    %v1058 = vunpack.c.h.b16 %v323
    %v1059 = vunpack.c.l.b16 %v324
    %v1060 = vunpack.c.h.b16 %v324
    %v1061 = vunpack.c.l.b16 %v325
    %v1062 = vunpack.c.h.b16 %v325
    %v1063 = vunpack.c.l.b16 %v326
    %v1064 = vunpack.c.h.b16 %v326
    %v1065 = vunpack.c.l.b16 %v327
    %v1066 = vunpack.c.h.b16 %v327
    %v1067 = vunpack.c.l.b16 %v328
    %v1068 = vunpack.c.h.b16 %v328
    %v1069 = vunpack.c.l.b16 %v329
    %v1070 = vunpack.c.h.b16 %v329
    %v1071 = vunpack.c.l.b16 %v330
    %v1072 = vunpack.c.h.b16 %v330
    %v1073 = vunpack.c.l.b16 %v331
    %v1074 = vunpack.c.h.b16 %v331
    %v1075 = vunpack.c.l.b16 %v332
    %v1076 = vunpack.c.h.b16 %v332
    %v1077 = vunpack.c.l.b16 %v333
    %v1078 = vunpack.c.h.b16 %v333
    %v1079 = vunpack.c.l.b16 %v334
    %v1080 = vunpack.c.h.b16 %v334
    %v1081 = vunpack.c.l.b16 %v335
    %v1082 = vunpack.c.h.b16 %v335
    %v1083 = vunpack.c.l.b16 %v336
    %v1084 = vunpack.c.h.b16 %v336
    %v1085 = vunpack.c.l.b16 %v337
    %v1086 = vunpack.c.h.b16 %v337
    %v1087 = vunpack.c.l.b16 %v338
    %v1088 = vunpack.c.h.b16 %v338
    %v1089 = vunpack.c.l.b16 %v339
    %v1090 = vunpack.c.h.b16 %v339
    %v1091 = vunpack.c.l.b16 %v340
    %v1092 = vunpack.c.h.b16 %v340
    %v1093 = vunpack.c.l.b16 %v341
    %v1094 = vunpack.c.h.b16 %v341
    %v1095 = vunpack.c.l.b16 %v342
    %v1096 = vunpack.c.h.b16 %v342
    %v1097 = vunpack.c.l.b16 %v343
    %v1098 = vunpack.c.h.b16 %v343
    %v1099 = vunpack.c.l.b16 %v344
    %v1100 = vunpack.c.h.b16 %v344
    %v1101 = vunpack.c.l.b16 %v345
    %v1102 = vunpack.c.h.b16 %v345
    %v1103 = vunpack.c.l.b16 %v346
    %v1104 = vunpack.c.h.b16 %v346
    %v1105 = vunpack.c.l.b16 %v347
    %v1106 = vunpack.c.h.b16 %v347
    %v1107 = vunpack.c.l.b16 %v348
    %v1108 = vunpack.c.h.b16 %v348
    %v1109 = vunpack.c.l.b16 %v349
    %v1110 = vunpack.c.h.b16 %v349
    %v1111 = vunpack.c.l.b16 %v350
    %v1112 = vunpack.c.h.b16 %v350
    %v1113 = vunpack.c.l.b16 %v351
    %v1114 = vunpack.c.h.b16 %v351
    %v1115 = vunpack.c.l.b16 %v352
    %v1116 = vunpack.c.h.b16 %v352
    %v1117 = vunpack.c.l.b16 %v353
    %v1118 = vunpack.c.h.b16 %v353
    %v1119 = vunpack.c.l.b16 %v354
    %v1120 = vunpack.c.h.b16 %v354
    %v1121 = vunpack.c.l.b16 %v355
    %v1122 = vunpack.c.h.b16 %v355
    %v1123 = vunpack.c.l.b16 %v356
    %v1124 = vunpack.c.h.b16 %v356
    %v1125 = vunpack.c.l.b16 %v357
    %v1126 = vunpack.c.h.b16 %v357
    %v1127 = vunpack.c.l.b16 %v358
    %v1128 = vunpack.c.h.b16 %v358
    %v1129 = vunpack.c.l.b16 %v359
    %v1130 = vunpack.c.h.b16 %v359
    %v1131 = vunpack.c.l.b16 %v360
    %v1132 = vunpack.c.h.b16 %v360
    %v1133 = vunpack.c.l.b16 %v361
    %v1134 = vunpack.c.h.b16 %v361
    %v1135 = vunpack.c.l.b16 %v362
    %v1136 = vunpack.c.h.b16 %v362
    %v1137 = vunpack.c.l.b16 %v363
    %v1138 = vunpack.c.h.b16 %v363
    %v1139 = vunpack.c.l.b16 %v364
    %v1140 = vunpack.c.h.b16 %v364
    %v1141 = vunpack.c.l.b16 %v365
    %v1142 = vunpack.c.h.b16 %v365
    %v1143 = vunpack.c.l.b16 %v366
    %v1144 = vunpack.c.h.b16 %v366
    %v1145 = vunpack.c.l.b16 %v367
    %v1146 = vunpack.c.h.b16 %v367
    %v1147 = vunpack.c.l.b16 %v368
    %v1148 = vunpack.c.h.b16 %v368
    %v1149 = vunpack.c.l.b16 %v369
    %v1150 = vunpack.c.h.b16 %v369
    %v1151 = vunpack.c.l.b16 %v370
    %v1152 = vunpack.c.h.b16 %v370
    %v1153 = vunpack.c.l.b16 %v371
    %v1154 = vunpack.c.h.b16 %v371
    %v1155 = vunpack.c.l.b16 %v372
    %v1156 = vunpack.c.h.b16 %v372
    %v1157 = vunpack.c.l.b16 %v373
    %v1158 = vunpack.c.h.b16 %v373
    %v1159 = vunpack.c.l.b16 %v374
    %v1160 = vunpack.c.h.b16 %v374
    %v1161 = vunpack.c.l.b16 %v375
    %v1162 = vunpack.c.h.b16 %v375
    %v1163 = vunpack.c.l.b16 %v376
    %v1164 = vunpack.c.h.b16 %v376
    %v1165 = vunpack.c.l.b16 %v377
    %v1166 = vunpack.c.h.b16 %v377
    %v1167 = vunpack.c.l.b16 %v378
    %v1168 = vunpack.c.h.b16 %v378
    %v1169 = vpack.c.b16 %v661, %v657
    %v1170 = vpack.c.b16 %v662, %v658
    %v1171 = vpack.c.b16 %v663, %v659
    %v1172 = vpack.c.b16 %v664, %v660
    %v1173 = vpack.c.b16 %v669, %v665
    %v1174 = vpack.c.b16 %v670, %v666
    %v1175 = vpack.c.b16 %v671, %v667
    %v1176 = vpack.c.b16 %v672, %v668
    %v1177 = vpack.c.b16 %v677, %v673
    %v1178 = vpack.c.b16 %v678, %v674
    %v1179 = vpack.c.b16 %v679, %v675
    %v1180 = vpack.c.b16 %v680, %v676
    %v1181 = vpack.c.b16 %v685, %v681
    %v1182 = vpack.c.b16 %v686, %v682
    %v1183 = vpack.c.b16 %v687, %v683
    %v1184 = vpack.c.b16 %v688, %v684
    %v1185 = vpack.c.b16 %v693, %v689
    %v1186 = vpack.c.b16 %v694, %v690
    %v1187 = vpack.c.b16 %v695, %v691
    %v1188 = vpack.c.b16 %v696, %v692
    %v1189 = vpack.c.b16 %v701, %v697
    %v1190 = vpack.c.b16 %v702, %v698
    %v1191 = vpack.c.b16 %v703, %v699
    %v1192 = vpack.c.b16 %v704, %v700
    %v1193 = vpack.c.b16 %v709, %v705
    %v1194 = vpack.c.b16 %v710, %v706
    %v1195 = vpack.c.b16 %v711, %v707
    %v1196 = vpack.c.b16 %v712, %v708
    %v1197 = vpack.c.b16 %v717, %v713
    %v1198 = vpack.c.b16 %v718, %v714
    %v1199 = vpack.c.b16 %v719, %v715
    %v1200 = vpack.c.b16 %v720, %v716
    %v1201 = vpack.c.b16 %v725, %v721
    %v1202 = vpack.c.b16 %v726, %v722
    %v1203 = vpack.c.b16 %v727, %v723
    %v1204 = vpack.c.b16 %v728, %v724
    %v1205 = vpack.c.b16 %v733, %v729
    %v1206 = vpack.c.b16 %v734, %v730
    %v1207 = vpack.c.b16 %v735, %v731
    %v1208 = vpack.c.b16 %v736, %v732
    %v1209 = vpack.c.b16 %v741, %v737
    %v1210 = vpack.c.b16 %v742, %v738
    %v1211 = vpack.c.b16 %v743, %v739
    %v1212 = vpack.c.b16 %v744, %v740
    %v1213 = vpack.c.b16 %v749, %v745
    %v1214 = vpack.c.b16 %v750, %v746
    %v1215 = vpack.c.b16 %v751, %v747
    %v1216 = vpack.c.b16 %v752, %v748
    %v1217 = vpack.c.b16 %v757, %v753
    %v1218 = vpack.c.b16 %v758, %v754
    %v1219 = vpack.c.b16 %v759, %v755
    %v1220 = vpack.c.b16 %v760, %v756
    %v1221 = vpack.c.b16 %v765, %v761
    %v1222 = vpack.c.b16 %v766, %v762
    %v1223 = vpack.c.b16 %v767, %v763
    %v1224 = vpack.c.b16 %v768, %v764
    %v1225 = vpack.c.b16 %v773, %v769
    %v1226 = vpack.c.b16 %v774, %v770
    %v1227 = vpack.c.b16 %v775, %v771
    %v1228 = vpack.c.b16 %v776, %v772
    %v1229 = vpack.c.b16 %v781, %v777
    %v1230 = vpack.c.b16 %v782, %v778
    %v1231 = vpack.c.b16 %v783, %v779
    %v1232 = vpack.c.b16 %v784, %v780
    %v1233 = vpack.c.b16 %v789, %v785
    %v1234 = vpack.c.b16 %v790, %v786
    %v1235 = vpack.c.b16 %v791, %v787
    %v1236 = vpack.c.b16 %v792, %v788
    %v1237 = vpack.c.b16 %v797, %v793
    %v1238 = vpack.c.b16 %v798, %v794
    %v1239 = vpack.c.b16 %v799, %v795
    %v1240 = vpack.c.b16 %v800, %v796
    %v1241 = vpack.c.b16 %v805, %v801
    %v1242 = vpack.c.b16 %v806, %v802
    %v1243 = vpack.c.b16 %v807, %v803
    %v1244 = vpack.c.b16 %v808, %v804
    %v1245 = vpack.c.b16 %v813, %v809
    %v1246 = vpack.c.b16 %v814, %v810
    %v1247 = vpack.c.b16 %v815, %v811
    %v1248 = vpack.c.b16 %v816, %v812
    %v1249 = vpack.c.b16 %v821, %v817
    %v1250 = vpack.c.b16 %v822, %v818
    %v1251 = vpack.c.b16 %v823, %v819
    %v1252 = vpack.c.b16 %v824, %v820
    %v1253 = vpack.c.b16 %v829, %v825
    %v1254 = vpack.c.b16 %v830, %v826
    %v1255 = vpack.c.b16 %v831, %v827
    %v1256 = vpack.c.b16 %v832, %v828
    %v1257 = vpack.c.b16 %v837, %v833
    %v1258 = vpack.c.b16 %v838, %v834
    %v1259 = vpack.c.b16 %v839, %v835
    %v1260 = vpack.c.b16 %v840, %v836
    %v1261 = vpack.c.b16 %v845, %v841
    %v1262 = vpack.c.b16 %v846, %v842
    %v1263 = vpack.c.b16 %v847, %v843
    %v1264 = vpack.c.b16 %v848, %v844
    %v1265 = vpack.c.b16 %v853, %v849
    %v1266 = vpack.c.b16 %v854, %v850
    %v1267 = vpack.c.b16 %v855, %v851
    %v1268 = vpack.c.b16 %v856, %v852
    %v1269 = vpack.c.b16 %v861, %v857
    %v1270 = vpack.c.b16 %v862, %v858
    %v1271 = vpack.c.b16 %v863, %v859
    %v1272 = vpack.c.b16 %v864, %v860
    %v1273 = vpack.c.b16 %v869, %v865
    %v1274 = vpack.c.b16 %v870, %v866
    %v1275 = vpack.c.b16 %v871, %v867
    %v1276 = vpack.c.b16 %v872, %v868
    %v1277 = vpack.c.b16 %v877, %v873
    %v1278 = vpack.c.b16 %v878, %v874
    %v1279 = vpack.c.b16 %v879, %v875
    %v1280 = vpack.c.b16 %v880, %v876
    %v1281 = vpack.c.b16 %v885, %v881
    %v1282 = vpack.c.b16 %v886, %v882
    %v1283 = vpack.c.b16 %v887, %v883
    %v1284 = vpack.c.b16 %v888, %v884
    %v1285 = vpack.c.b16 %v893, %v889
    %v1286 = vpack.c.b16 %v894, %v890
    %v1287 = vpack.c.b16 %v895, %v891
    %v1288 = vpack.c.b16 %v896, %v892
    %v1289 = vpack.c.b16 %v901, %v897
    %v1290 = vpack.c.b16 %v902, %v898
    %v1291 = vpack.c.b16 %v903, %v899
    %v1292 = vpack.c.b16 %v904, %v900
    %v1293 = vpack.c.b16 %v909, %v905
    %v1294 = vpack.c.b16 %v910, %v906
    %v1295 = vpack.c.b16 %v911, %v907
    %v1296 = vpack.c.b16 %v912, %v908
    %v1297 = vpack.c.b16 %v917, %v913
    %v1298 = vpack.c.b16 %v918, %v914
    %v1299 = vpack.c.b16 %v919, %v915
    %v1300 = vpack.c.b16 %v920, %v916
    %v1301 = vpack.c.b16 %v925, %v921
    %v1302 = vpack.c.b16 %v926, %v922
    %v1303 = vpack.c.b16 %v927, %v923
    %v1304 = vpack.c.b16 %v928, %v924
    %v1305 = vpack.c.b16 %v933, %v929
    %v1306 = vpack.c.b16 %v934, %v930
    %v1307 = vpack.c.b16 %v935, %v931
    %v1308 = vpack.c.b16 %v936, %v932
    %v1309 = vpack.c.b16 %v941, %v937
    %v1310 = vpack.c.b16 %v942, %v938
    %v1311 = vpack.c.b16 %v943, %v939
    %v1312 = vpack.c.b16 %v944, %v940
    %v1313 = vpack.c.b16 %v949, %v945
    %v1314 = vpack.c.b16 %v950, %v946
    %v1315 = vpack.c.b16 %v951, %v947
    %v1316 = vpack.c.b16 %v952, %v948
    %v1317 = vpack.c.b16 %v957, %v953
    %v1318 = vpack.c.b16 %v958, %v954
    %v1319 = vpack.c.b16 %v959, %v955
    %v1320 = vpack.c.b16 %v960, %v956
    %v1321 = vpack.c.b16 %v965, %v961
    %v1322 = vpack.c.b16 %v966, %v962
    %v1323 = vpack.c.b16 %v967, %v963
    %v1324 = vpack.c.b16 %v968, %v964
    %v1325 = vpack.c.b16 %v973, %v969
    %v1326 = vpack.c.b16 %v974, %v970
    %v1327 = vpack.c.b16 %v975, %v971
    %v1328 = vpack.c.b16 %v976, %v972
    %v1329 = vpack.c.b16 %v981, %v977
    %v1330 = vpack.c.b16 %v982, %v978
    %v1331 = vpack.c.b16 %v983, %v979
    %v1332 = vpack.c.b16 %v984, %v980
    %v1333 = vpack.c.b16 %v989, %v985
    %v1334 = vpack.c.b16 %v990, %v986
    %v1335 = vpack.c.b16 %v991, %v987
    %v1336 = vpack.c.b16 %v992, %v988
    %v1337 = vpack.c.b16 %v997, %v993
    %v1338 = vpack.c.b16 %v998, %v994
    %v1339 = vpack.c.b16 %v999, %v995
    %v1340 = vpack.c.b16 %v1000, %v996
    %v1341 = vpack.c.b16 %v1005, %v1001
    %v1342 = vpack.c.b16 %v1006, %v1002
    %v1343 = vpack.c.b16 %v1007, %v1003
    %v1344 = vpack.c.b16 %v1008, %v1004
    %v1345 = vpack.c.b16 %v1013, %v1009
    %v1346 = vpack.c.b16 %v1014, %v1010
    %v1347 = vpack.c.b16 %v1015, %v1011
    %v1348 = vpack.c.b16 %v1016, %v1012
    %v1349 = vpack.c.b16 %v1021, %v1017
    %v1350 = vpack.c.b16 %v1022, %v1018
    %v1351 = vpack.c.b16 %v1023, %v1019
    %v1352 = vpack.c.b16 %v1024, %v1020
    %v1353 = vpack.c.b16 %v1029, %v1025
    %v1354 = vpack.c.b16 %v1030, %v1026
    %v1355 = vpack.c.b16 %v1031, %v1027
    %v1356 = vpack.c.b16 %v1032, %v1028
    %v1357 = vpack.c.b16 %v1037, %v1033
    %v1358 = vpack.c.b16 %v1038, %v1034
    %v1359 = vpack.c.b16 %v1039, %v1035
    %v1360 = vpack.c.b16 %v1040, %v1036
    %v1361 = vpack.c.b16 %v1045, %v1041
    %v1362 = vpack.c.b16 %v1046, %v1042
    %v1363 = vpack.c.b16 %v1047, %v1043
    %v1364 = vpack.c.b16 %v1048, %v1044
    %v1365 = vpack.c.b16 %v1053, %v1049
    %v1366 = vpack.c.b16 %v1054, %v1050
    %v1367 = vpack.c.b16 %v1055, %v1051
    %v1368 = vpack.c.b16 %v1056, %v1052
    %v1369 = vpack.c.b16 %v1061, %v1057
    %v1370 = vpack.c.b16 %v1062, %v1058
    %v1371 = vpack.c.b16 %v1063, %v1059
    %v1372 = vpack.c.b16 %v1064, %v1060
    %v1373 = vpack.c.b16 %v1069, %v1065
    %v1374 = vpack.c.b16 %v1070, %v1066
    %v1375 = vpack.c.b16 %v1071, %v1067
    %v1376 = vpack.c.b16 %v1072, %v1068
    %v1377 = vpack.c.b16 %v1077, %v1073
    %v1378 = vpack.c.b16 %v1078, %v1074
    %v1379 = vpack.c.b16 %v1079, %v1075
    %v1380 = vpack.c.b16 %v1080, %v1076
    %v1381 = vpack.c.b16 %v1085, %v1081
    %v1382 = vpack.c.b16 %v1086, %v1082
    %v1383 = vpack.c.b16 %v1087, %v1083
    %v1384 = vpack.c.b16 %v1088, %v1084
    %v1385 = vpack.c.b16 %v1093, %v1089
    %v1386 = vpack.c.b16 %v1094, %v1090
    %v1387 = vpack.c.b16 %v1095, %v1091
    %v1388 = vpack.c.b16 %v1096, %v1092
    %v1389 = vpack.c.b16 %v1101, %v1097
    %v1390 = vpack.c.b16 %v1102, %v1098
    %v1391 = vpack.c.b16 %v1103, %v1099
    %v1392 = vpack.c.b16 %v1104, %v1100
    %v1393 = vpack.c.b16 %v1109, %v1105
    %v1394 = vpack.c.b16 %v1110, %v1106
    %v1395 = vpack.c.b16 %v1111, %v1107
    %v1396 = vpack.c.b16 %v1112, %v1108
    %v1397 = vpack.c.b16 %v1117, %v1113
    %v1398 = vpack.c.b16 %v1118, %v1114
    %v1399 = vpack.c.b16 %v1119, %v1115
    %v1400 = vpack.c.b16 %v1120, %v1116
    %v1401 = vpack.c.b16 %v1125, %v1121
    %v1402 = vpack.c.b16 %v1126, %v1122
    %v1403 = vpack.c.b16 %v1127, %v1123
    %v1404 = vpack.c.b16 %v1128, %v1124
    %v1405 = vpack.c.b16 %v1133, %v1129
    %v1406 = vpack.c.b16 %v1134, %v1130
    %v1407 = vpack.c.b16 %v1135, %v1131
    %v1408 = vpack.c.b16 %v1136, %v1132
    %v1409 = vpack.c.b16 %v1141, %v1137
    %v1410 = vpack.c.b16 %v1142, %v1138
    %v1411 = vpack.c.b16 %v1143, %v1139
    %v1412 = vpack.c.b16 %v1144, %v1140
    %v1413 = vpack.c.b16 %v1149, %v1145
    %v1414 = vpack.c.b16 %v1150, %v1146
    %v1415 = vpack.c.b16 %v1151, %v1147
    %v1416 = vpack.c.b16 %v1152, %v1148
    %v1417 = vpack.c.b16 %v1157, %v1153
    %v1418 = vpack.c.b16 %v1158, %v1154
    %v1419 = vpack.c.b16 %v1159, %v1155
    %v1420 = vpack.c.b16 %v1160, %v1156
    %v1421 = vpack.c.b16 %v1165, %v1161
    %v1422 = vpack.c.b16 %v1166, %v1162
    %v1423 = vpack.c.b16 %v1167, %v1163
    %v1424 = vpack.c.b16 %v1168, %v1164
    %1681 = vmatprep.subr.bf16.mxu0 %v1170
    %1682 = vmatpush1.bf16.msra.mxu0 %v1169
    %1683 = vmatprep.subr.bf16.mxu0 %v1174
    %1684 = vmatpush1.bf16.msra.mxu0 %v1173
    %1685 = vmatprep.subr.bf16.mxu0 %v1178
    %1686 = vmatpush1.bf16.msra.mxu0 %v1177
    %1687 = vmatprep.subr.bf16.mxu0 %v1182
    %1688 = vmatpush1.bf16.msra.mxu0 %v1181
    %1689 = vmatprep.subr.bf16.mxu0 %v1186
    %1690 = vmatpush1.bf16.msra.mxu0 %v1185
    %1691 = vmatprep.subr.bf16.mxu0 %v1190
    %1692 = vmatpush1.bf16.msra.mxu0 %v1189
    %1693 = vmatprep.subr.bf16.mxu0 %v1194
    %1694 = vmatpush1.bf16.msra.mxu0 %v1193
    %1695 = vmatprep.subr.bf16.mxu0 %v1198
    %1696 = vmatpush1.bf16.msra.mxu0 %v1197
    %1697 = vmatprep.subr.bf16.mxu0 %v1202
    %1698 = vmatpush1.bf16.msra.mxu0 %v1201
    %1699 = vmatprep.subr.bf16.mxu0 %v1206
    %1700 = vmatpush1.bf16.msra.mxu0 %v1205
    %1701 = vmatprep.subr.bf16.mxu0 %v1210
    %1702 = vmatpush1.bf16.msra.mxu0 %v1209
    %1703 = vmatprep.subr.bf16.mxu0 %v1214
    %1704 = vmatpush1.bf16.msra.mxu0 %v1213
    %1705 = vmatprep.subr.bf16.mxu0 %v1218
    %1706 = vmatpush1.bf16.msra.mxu0 %v1217
    %1707 = vmatprep.subr.bf16.mxu0 %v1222
    %1708 = vmatpush1.bf16.msra.mxu0 %v1221
    %1709 = vmatprep.subr.bf16.mxu0 %v1226
    %1710 = vmatpush1.bf16.msra.mxu0 %v1225
    %1711 = vmatprep.subr.bf16.mxu0 %v1230
    %1712 = vmatpush1.bf16.msra.mxu0 %v1229
    %1713 = vmatprep.mubr.bf16.mxu0 %v116
    %1714 = vmatmul.mubr.bf16.gmra.mrb[0].mxu0 %v115
    %v1715 = vpop.f32.mrb[0].mxu0
    %v1716 = vadd.f32 %v384, %v1715
    %v1717 = vpop.f32.mrb[0].mxu0
    %v1718 = vadd.f32 %v388, %v1717
    %v1719 = vpop.f32.mrb[0].mxu0
    %v1720 = vpop.f32.mrb[0].mxu0
    %1721 = vdwg.mxu0
    %1722 = vmatprep.subr.bf16.mxu0 %v1234
    %1723 = vmatpush1.bf16.msra.mxu0 %v1233
    %1724 = vmatprep.subr.bf16.mxu0 %v1238
    %1725 = vmatpush1.bf16.msra.mxu0 %v1237
    %1726 = vmatprep.subr.bf16.mxu0 %v1242
    %1727 = vmatpush1.bf16.msra.mxu0 %v1241
    %1728 = vmatprep.subr.bf16.mxu0 %v1246
    %1729 = vmatpush1.bf16.msra.mxu0 %v1245
    %1730 = vmatprep.subr.bf16.mxu0 %v1250
    %1731 = vmatpush1.bf16.msra.mxu0 %v1249
    %1732 = vmatprep.subr.bf16.mxu0 %v1254
    %1733 = vmatpush1.bf16.msra.mxu0 %v1253
    %1734 = vmatprep.subr.bf16.mxu0 %v1258
    %1735 = vmatpush1.bf16.msra.mxu0 %v1257
    %1736 = vmatprep.subr.bf16.mxu0 %v1262
    %1737 = vmatpush1.bf16.msra.mxu0 %v1261
    %1738 = vmatprep.subr.bf16.mxu0 %v1266
    %1739 = vmatpush1.bf16.msra.mxu0 %v1265
    %1740 = vmatprep.subr.bf16.mxu0 %v1270
    %1741 = vmatpush1.bf16.msra.mxu0 %v1269
    %1742 = vmatprep.subr.bf16.mxu0 %v1274
    %1743 = vmatpush1.bf16.msra.mxu0 %v1273
    %1744 = vmatprep.subr.bf16.mxu0 %v1278
    %1745 = vmatpush1.bf16.msra.mxu0 %v1277
    %1746 = vmatprep.subr.bf16.mxu0 %v1282
    %1747 = vmatpush1.bf16.msra.mxu0 %v1281
    %1748 = vmatprep.subr.bf16.mxu0 %v1286
    %1749 = vmatpush1.bf16.msra.mxu0 %v1285
    %1750 = vmatprep.subr.bf16.mxu0 %v1290
    %1751 = vmatpush1.bf16.msra.mxu0 %v1289
    %1752 = vmatprep.subr.bf16.mxu0 %v1294
    %1753 = vmatpush1.bf16.msra.mxu0 %v1293
    %1754 = vmatprep.mubr.bf16.mxu0 %v118
    %1755 = vmatmul.mubr.bf16.gmra.mrb[0].mxu0 %v117
    %v1756 = vpop.f32.mrb[0].mxu0
    %v1757 = vadd.f32 %v1716, %v1756
    %v1758 = vpop.f32.mrb[0].mxu0
    %v1759 = vadd.f32 %v1718, %v1758
    %v1760 = vpop.f32.mrb[0].mxu0
    %v1761 = vpop.f32.mrb[0].mxu0
    %1762 = vdwg.mxu0
    %1763 = vmatprep.subr.bf16.mxu0 %v1298
    %1764 = vmatpush1.bf16.msra.mxu0 %v1297
    %1765 = vmatprep.subr.bf16.mxu0 %v1302
    %1766 = vmatpush1.bf16.msra.mxu0 %v1301
    %1767 = vmatprep.subr.bf16.mxu0 %v1306
    %1768 = vmatpush1.bf16.msra.mxu0 %v1305
    %1769 = vmatprep.subr.bf16.mxu0 %v1310
    %1770 = vmatpush1.bf16.msra.mxu0 %v1309
    %1771 = vmatprep.subr.bf16.mxu0 %v1314
    %1772 = vmatpush1.bf16.msra.mxu0 %v1313
    %1773 = vmatprep.subr.bf16.mxu0 %v1318
    %1774 = vmatpush1.bf16.msra.mxu0 %v1317
    %1775 = vmatprep.subr.bf16.mxu0 %v1322
    %1776 = vmatpush1.bf16.msra.mxu0 %v1321
    %1777 = vmatprep.subr.bf16.mxu0 %v1326
    %1778 = vmatpush1.bf16.msra.mxu0 %v1325
    %1779 = vmatprep.subr.bf16.mxu0 %v1330
    %1780 = vmatpush1.bf16.msra.mxu0 %v1329
    %1781 = vmatprep.subr.bf16.mxu0 %v1334
    %1782 = vmatpush1.bf16.msra.mxu0 %v1333
    %1783 = vmatprep.subr.bf16.mxu0 %v1338
    %1784 = vmatpush1.bf16.msra.mxu0 %v1337
    %1785 = vmatprep.subr.bf16.mxu0 %v1342
    %1786 = vmatpush1.bf16.msra.mxu0 %v1341
    %1787 = vmatprep.subr.bf16.mxu0 %v1346
    %1788 = vmatpush1.bf16.msra.mxu0 %v1345
    %1789 = vmatprep.subr.bf16.mxu0 %v1350
    %1790 = vmatpush1.bf16.msra.mxu0 %v1349
    %1791 = vmatprep.subr.bf16.mxu0 %v1354
    %1792 = vmatpush1.bf16.msra.mxu0 %v1353
    %1793 = vmatprep.subr.bf16.mxu0 %v1358
    %1794 = vmatpush1.bf16.msra.mxu0 %v1357
    %1795 = vmatprep.mubr.bf16.mxu0 %v120
    %1796 = vmatmul.mubr.bf16.gmra.mrb[0].mxu0 %v119
    %v1797 = vpop.f32.mrb[0].mxu0
    %v1798 = vadd.f32 %v1757, %v1797
    %v1799 = vpop.f32.mrb[0].mxu0
    %v1800 = vadd.f32 %v1759, %v1799
    %v1801 = vpop.f32.mrb[0].mxu0
    %v1802 = vpop.f32.mrb[0].mxu0
    %1803 = vdwg.mxu0
    %1804 = vmatprep.subr.bf16.mxu0 %v1362
    %1805 = vmatpush1.bf16.msra.mxu0 %v1361
    %1806 = vmatprep.subr.bf16.mxu0 %v1366
    %1807 = vmatpush1.bf16.msra.mxu0 %v1365
    %1808 = vmatprep.subr.bf16.mxu0 %v1370
    %1809 = vmatpush1.bf16.msra.mxu0 %v1369
    %1810 = vmatprep.subr.bf16.mxu0 %v1374
    %1811 = vmatpush1.bf16.msra.mxu0 %v1373
    %1812 = vmatprep.subr.bf16.mxu0 %v1378
    %1813 = vmatpush1.bf16.msra.mxu0 %v1377
    %1814 = vmatprep.subr.bf16.mxu0 %v1382
    %1815 = vmatpush1.bf16.msra.mxu0 %v1381
    %1816 = vmatprep.subr.bf16.mxu0 %v1386
    %1817 = vmatpush1.bf16.msra.mxu0 %v1385
    %1818 = vmatprep.subr.bf16.mxu0 %v1390
    %1819 = vmatpush1.bf16.msra.mxu0 %v1389
    %1820 = vmatprep.subr.bf16.mxu0 %v1394
    %1821 = vmatpush1.bf16.msra.mxu0 %v1393
    %1822 = vmatprep.subr.bf16.mxu0 %v1398
    %1823 = vmatpush1.bf16.msra.mxu0 %v1397
    %1824 = vmatprep.subr.bf16.mxu0 %v1402
    %1825 = vmatpush1.bf16.msra.mxu0 %v1401
    %1826 = vmatprep.subr.bf16.mxu0 %v1406
    %1827 = vmatpush1.bf16.msra.mxu0 %v1405
    %1828 = vmatprep.subr.bf16.mxu0 %v1410
    %1829 = vmatpush1.bf16.msra.mxu0 %v1409
    %1830 = vmatprep.subr.bf16.mxu0 %v1414
    %1831 = vmatpush1.bf16.msra.mxu0 %v1413
    %1832 = vmatprep.subr.bf16.mxu0 %v1418
    %1833 = vmatpush1.bf16.msra.mxu0 %v1417
    %1834 = vmatprep.subr.bf16.mxu0 %v1422
    %1835 = vmatpush1.bf16.msra.mxu0 %v1421
    %1836 = vmatprep.mubr.bf16.mxu0 %v122
    %1837 = vmatmul.mubr.bf16.gmra.mrb[0].mxu0 %v121
    %v1838 = vpop.f32.mrb[0].mxu0
    %v1839 = vadd.f32 %v1798, %v1838
    %v1840 = vpop.f32.mrb[0].mxu0
    %v1841 = vadd.f32 %v1800, %v1840
    %v1842 = vpop.f32.mrb[0].mxu0
    %v1843 = vpop.f32.mrb[0].mxu0
    %1844 = vdwg.mxu0
    %1845 = vmatprep.subr.bf16.mxu0 %v1172
    %1846 = vmatpush1.bf16.msra.mxu0 %v1171
    %1847 = vmatprep.subr.bf16.mxu0 %v1176
    %1848 = vmatpush1.bf16.msra.mxu0 %v1175
    %1849 = vmatprep.subr.bf16.mxu0 %v1180
    %1850 = vmatpush1.bf16.msra.mxu0 %v1179
    %1851 = vmatprep.subr.bf16.mxu0 %v1184
    %1852 = vmatpush1.bf16.msra.mxu0 %v1183
    %1853 = vmatprep.subr.bf16.mxu0 %v1188
    %1854 = vmatpush1.bf16.msra.mxu0 %v1187
    %1855 = vmatprep.subr.bf16.mxu0 %v1192
    %1856 = vmatpush1.bf16.msra.mxu0 %v1191
    %1857 = vmatprep.subr.bf16.mxu0 %v1196
    %1858 = vmatpush1.bf16.msra.mxu0 %v1195
    %1859 = vmatprep.subr.bf16.mxu0 %v1200
    %1860 = vmatpush1.bf16.msra.mxu0 %v1199
    %1861 = vmatprep.subr.bf16.mxu0 %v1204
    %1862 = vmatpush1.bf16.msra.mxu0 %v1203
    %1863 = vmatprep.subr.bf16.mxu0 %v1208
    %1864 = vmatpush1.bf16.msra.mxu0 %v1207
    %1865 = vmatprep.subr.bf16.mxu0 %v1212
    %1866 = vmatpush1.bf16.msra.mxu0 %v1211
    %1867 = vmatprep.subr.bf16.mxu0 %v1216
    %1868 = vmatpush1.bf16.msra.mxu0 %v1215
    %1869 = vmatprep.subr.bf16.mxu0 %v1220
    %1870 = vmatpush1.bf16.msra.mxu0 %v1219
    %1871 = vmatprep.subr.bf16.mxu0 %v1224
    %1872 = vmatpush1.bf16.msra.mxu0 %v1223
    %1873 = vmatprep.subr.bf16.mxu0 %v1228
    %1874 = vmatpush1.bf16.msra.mxu0 %v1227
    %1875 = vmatprep.subr.bf16.mxu0 %v1232
    %1876 = vmatpush1.bf16.msra.mxu0 %v1231
    %1877 = vmatprep.mubr.bf16.mxu0 %v116
    %1878 = vmatmul.mubr.bf16.gmra.mrb[0].mxu0 %v115
    %v1879 = vpop.f32.mrb[0].mxu0
    %v1880 = vadd.f32 %v392, %v1879
    %v1881 = vpop.f32.mrb[0].mxu0
    %v1882 = vadd.f32 %v396, %v1881
    %v1883 = vpop.f32.mrb[0].mxu0
    %v1884 = vpop.f32.mrb[0].mxu0
    %1885 = vdwg.mxu0
    %1886 = vmatprep.subr.bf16.mxu0 %v1236
    %1887 = vmatpush1.bf16.msra.mxu0 %v1235
    %1888 = vmatprep.subr.bf16.mxu0 %v1240
    %1889 = vmatpush1.bf16.msra.mxu0 %v1239
    %1890 = vmatprep.subr.bf16.mxu0 %v1244
    %1891 = vmatpush1.bf16.msra.mxu0 %v1243
    %1892 = vmatprep.subr.bf16.mxu0 %v1248
    %1893 = vmatpush1.bf16.msra.mxu0 %v1247
    %1894 = vmatprep.subr.bf16.mxu0 %v1252
    %1895 = vmatpush1.bf16.msra.mxu0 %v1251
    %1896 = vmatprep.subr.bf16.mxu0 %v1256
    %1897 = vmatpush1.bf16.msra.mxu0 %v1255
    %1898 = vmatprep.subr.bf16.mxu0 %v1260
    %1899 = vmatpush1.bf16.msra.mxu0 %v1259
    %1900 = vmatprep.subr.bf16.mxu0 %v1264
    %1901 = vmatpush1.bf16.msra.mxu0 %v1263
    %1902 = vmatprep.subr.bf16.mxu0 %v1268
    %1903 = vmatpush1.bf16.msra.mxu0 %v1267
    %1904 = vmatprep.subr.bf16.mxu0 %v1272
    %1905 = vmatpush1.bf16.msra.mxu0 %v1271
    %1906 = vmatprep.subr.bf16.mxu0 %v1276
    %1907 = vmatpush1.bf16.msra.mxu0 %v1275
    %1908 = vmatprep.subr.bf16.mxu0 %v1280
    %1909 = vmatpush1.bf16.msra.mxu0 %v1279
    %1910 = vmatprep.subr.bf16.mxu0 %v1284
    %1911 = vmatpush1.bf16.msra.mxu0 %v1283
    %1912 = vmatprep.subr.bf16.mxu0 %v1288
    %1913 = vmatpush1.bf16.msra.mxu0 %v1287
    %1914 = vmatprep.subr.bf16.mxu0 %v1292
    %1915 = vmatpush1.bf16.msra.mxu0 %v1291
    %1916 = vmatprep.subr.bf16.mxu0 %v1296
    %1917 = vmatpush1.bf16.msra.mxu0 %v1295
    %1918 = vmatprep.mubr.bf16.mxu0 %v118
    %1919 = vmatmul.mubr.bf16.gmra.mrb[0].mxu0 %v117
    %v1920 = vpop.f32.mrb[0].mxu0
    %v1921 = vadd.f32 %v1880, %v1920
    %v1922 = vpop.f32.mrb[0].mxu0
    %v1923 = vadd.f32 %v1882, %v1922
    %v1924 = vpop.f32.mrb[0].mxu0
    %v1925 = vpop.f32.mrb[0].mxu0
    %1926 = vdwg.mxu0
    %1927 = vmatprep.subr.bf16.mxu0 %v1300
    %1928 = vmatpush1.bf16.msra.mxu0 %v1299
    %1929 = vmatprep.subr.bf16.mxu0 %v1304
    %1930 = vmatpush1.bf16.msra.mxu0 %v1303
    %1931 = vmatprep.subr.bf16.mxu0 %v1308
    %1932 = vmatpush1.bf16.msra.mxu0 %v1307
    %1933 = vmatprep.subr.bf16.mxu0 %v1312
    %1934 = vmatpush1.bf16.msra.mxu0 %v1311
    %1935 = vmatprep.subr.bf16.mxu0 %v1316
    %1936 = vmatpush1.bf16.msra.mxu0 %v1315
    %1937 = vmatprep.subr.bf16.mxu0 %v1320
    %1938 = vmatpush1.bf16.msra.mxu0 %v1319
    %1939 = vmatprep.subr.bf16.mxu0 %v1324
    %1940 = vmatpush1.bf16.msra.mxu0 %v1323
    %1941 = vmatprep.subr.bf16.mxu0 %v1328
    %1942 = vmatpush1.bf16.msra.mxu0 %v1327
    %1943 = vmatprep.subr.bf16.mxu0 %v1332
    %1944 = vmatpush1.bf16.msra.mxu0 %v1331
    %1945 = vmatprep.subr.bf16.mxu0 %v1336
    %1946 = vmatpush1.bf16.msra.mxu0 %v1335
    %1947 = vmatprep.subr.bf16.mxu0 %v1340
    %1948 = vmatpush1.bf16.msra.mxu0 %v1339
    %1949 = vmatprep.subr.bf16.mxu0 %v1344
    %1950 = vmatpush1.bf16.msra.mxu0 %v1343
    %1951 = vmatprep.subr.bf16.mxu0 %v1348
    %1952 = vmatpush1.bf16.msra.mxu0 %v1347
    %1953 = vmatprep.subr.bf16.mxu0 %v1352
    %1954 = vmatpush1.bf16.msra.mxu0 %v1351
    %1955 = vmatprep.subr.bf16.mxu0 %v1356
    %1956 = vmatpush1.bf16.msra.mxu0 %v1355
    %1957 = vmatprep.subr.bf16.mxu0 %v1360
    %1958 = vmatpush1.bf16.msra.mxu0 %v1359
    %1959 = vmatprep.mubr.bf16.mxu0 %v120
    %1960 = vmatmul.mubr.bf16.gmra.mrb[0].mxu0 %v119
    %v1961 = vpop.f32.mrb[0].mxu0
    %v1962 = vadd.f32 %v1921, %v1961
    %v1963 = vpop.f32.mrb[0].mxu0
    %v1964 = vadd.f32 %v1923, %v1963
    %v1965 = vpop.f32.mrb[0].mxu0
    %v1966 = vpop.f32.mrb[0].mxu0
    %1967 = vdwg.mxu0
    %1968 = vmatprep.subr.bf16.mxu0 %v1364
    %1969 = vmatpush1.bf16.msra.mxu0 %v1363
    %1970 = vmatprep.subr.bf16.mxu0 %v1368
    %1971 = vmatpush1.bf16.msra.mxu0 %v1367
    %1972 = vmatprep.subr.bf16.mxu0 %v1372
    %1973 = vmatpush1.bf16.msra.mxu0 %v1371
    %1974 = vmatprep.subr.bf16.mxu0 %v1376
    %1975 = vmatpush1.bf16.msra.mxu0 %v1375
    %1976 = vmatprep.subr.bf16.mxu0 %v1380
    %1977 = vmatpush1.bf16.msra.mxu0 %v1379
    %1978 = vmatprep.subr.bf16.mxu0 %v1384
    %1979 = vmatpush1.bf16.msra.mxu0 %v1383
    %1980 = vmatprep.subr.bf16.mxu0 %v1388
    %1981 = vmatpush1.bf16.msra.mxu0 %v1387
    %1982 = vmatprep.subr.bf16.mxu0 %v1392
    %1983 = vmatpush1.bf16.msra.mxu0 %v1391
    %1984 = vmatprep.subr.bf16.mxu0 %v1396
    %1985 = vmatpush1.bf16.msra.mxu0 %v1395
    %1986 = vmatprep.subr.bf16.mxu0 %v1400
    %1987 = vmatpush1.bf16.msra.mxu0 %v1399
    %1988 = vmatprep.subr.bf16.mxu0 %v1404
    %1989 = vmatpush1.bf16.msra.mxu0 %v1403
    %1990 = vmatprep.subr.bf16.mxu0 %v1408
    %1991 = vmatpush1.bf16.msra.mxu0 %v1407
    %1992 = vmatprep.subr.bf16.mxu0 %v1412
    %1993 = vmatpush1.bf16.msra.mxu0 %v1411
    %1994 = vmatprep.subr.bf16.mxu0 %v1416
    %1995 = vmatpush1.bf16.msra.mxu0 %v1415
    %1996 = vmatprep.subr.bf16.mxu0 %v1420
    %1997 = vmatpush1.bf16.msra.mxu0 %v1419
    %1998 = vmatprep.subr.bf16.mxu0 %v1424
    %1999 = vmatpush1.bf16.msra.mxu0 %v1423
    %2000 = vmatprep.mubr.bf16.mxu0 %v122
    %2001 = vmatmul.mubr.bf16.gmra.mrb[0].mxu0 %v121
    %v2002 = vpop.f32.mrb[0].mxu0
    %v2003 = vadd.f32 %v1962, %v2002
    %v2004 = vpop.f32.mrb[0].mxu0
    %v2005 = vadd.f32 %v1964, %v2004
    %v2006 = vpop.f32.mrb[0].mxu0
    %v2007 = vpop.f32.mrb[0].mxu0
    %2008 = vdwg.mxu0
    %v2009 = vmax.f32 %v1839, 0.0
    %v2010 = vmax.f32 %v1841, 0.0
    %v2011 = vmax.f32 %v2003, 0.0
    %v2012 = vmax.f32 %v2005, 0.0
    %v2013 = vpack.c.bf16 %v2009, %v2009
    %v2014 = vpack.c.bf16 %v2010, %v2010
    %v2015 = vpack.c.bf16 %v2011, %v2011
    %v2016 = vpack.c.bf16 %v2012, %v2012
    %v2017 = vld [vmem:[#allocation7] sm:$0xff]
    %v2018 = vld [vmem:[#allocation7 + $0x8] sm:$0xff]
    %v2019 = vld [vmem:[#allocation7 + $0x10] sm:$0xff]
    %v2020 = vld [vmem:[#allocation7 + $0x18] sm:$0xff]
    %v2021 = vld [vmem:[#allocation7 + $0x20] sm:$0xff]
    %v2022 = vld [vmem:[#allocation7 + $0x28] sm:$0xff]
    %v2023 = vld [vmem:[#allocation7 + $0x30] sm:$0xff]
    %v2024 = vld [vmem:[#allocation7 + $0x38] sm:$0xff]
    %v2025 = vld [vmem:[#allocation7 + $0x40] sm:$0xff]
    %v2026 = vld [vmem:[#allocation7 + $0x48] sm:$0xff]
    %v2027 = vld [vmem:[#allocation7 + $0x50] sm:$0xff]
    %v2028 = vld [vmem:[#allocation7 + $0x58] sm:$0xff]
    %v2029 = vld [vmem:[#allocation7 + $0x60] sm:$0xff]
    %v2030 = vld [vmem:[#allocation7 + $0x68] sm:$0xff]
    %v2031 = vld [vmem:[#allocation7 + $0x70] sm:$0xff]
    %v2032 = vld [vmem:[#allocation7 + $0x78] sm:$0xff]
    %v2033 = vld [vmem:[#allocation7 + $0x80] sm:$0xff]
    %v2034 = vld [vmem:[#allocation7 + $0x88] sm:$0xff]
    %v2035 = vld [vmem:[#allocation7 + $0x90] sm:$0xff]
    %v2036 = vld [vmem:[#allocation7 + $0x98] sm:$0xff]
    %v2037 = vld [vmem:[#allocation7 + $0xa0] sm:$0xff]
    %v2038 = vld [vmem:[#allocation7 + $0xa8] sm:$0xff]
    %v2039 = vld [vmem:[#allocation7 + $0xb0] sm:$0xff]
    %v2040 = vld [vmem:[#allocation7 + $0xb8] sm:$0xff]
    %v2041 = vld [vmem:[#allocation7 + $0xc0] sm:$0xff]
    %v2042 = vld [vmem:[#allocation7 + $0xc8] sm:$0xff]
    %v2043 = vld [vmem:[#allocation7 + $0xd0] sm:$0xff]
    %v2044 = vld [vmem:[#allocation7 + $0xd8] sm:$0xff]
    %v2045 = vld [vmem:[#allocation7 + $0xe0] sm:$0xff]
    %v2046 = vld [vmem:[#allocation7 + $0xe8] sm:$0xff]
    %v2047 = vld [vmem:[#allocation7 + $0xf0] sm:$0xff]
    %v2048 = vld [vmem:[#allocation7 + $0xf8] sm:$0xff]
    %v2049 = vld [vmem:[#allocation7 + $0x100] sm:$0xff]
    %v2050 = vld [vmem:[#allocation7 + $0x108] sm:$0xff]
    %v2051 = vld [vmem:[#allocation7 + $0x110] sm:$0xff]
    %v2052 = vld [vmem:[#allocation7 + $0x118] sm:$0xff]
    %v2053 = vld [vmem:[#allocation7 + $0x120] sm:$0xff]
    %v2054 = vld [vmem:[#allocation7 + $0x128] sm:$0xff]
    %v2055 = vld [vmem:[#allocation7 + $0x130] sm:$0xff]
    %v2056 = vld [vmem:[#allocation7 + $0x138] sm:$0xff]
    %v2057 = vld [vmem:[#allocation7 + $0x140] sm:$0xff]
    %v2058 = vld [vmem:[#allocation7 + $0x148] sm:$0xff]
    %v2059 = vld [vmem:[#allocation7 + $0x150] sm:$0xff]
    %v2060 = vld [vmem:[#allocation7 + $0x158] sm:$0xff]
    %v2061 = vld [vmem:[#allocation7 + $0x160] sm:$0xff]
    %v2062 = vld [vmem:[#allocation7 + $0x168] sm:$0xff]
    %v2063 = vld [vmem:[#allocation7 + $0x170] sm:$0xff]
    %v2064 = vld [vmem:[#allocation7 + $0x178] sm:$0xff]
    %v2065 = vld [vmem:[#allocation7 + $0x180] sm:$0xff]
    %v2066 = vld [vmem:[#allocation7 + $0x188] sm:$0xff]
    %v2067 = vld [vmem:[#allocation7 + $0x190] sm:$0xff]
    %v2068 = vld [vmem:[#allocation7 + $0x198] sm:$0xff]
    %v2069 = vld [vmem:[#allocation7 + $0x1a0] sm:$0xff]
    %v2070 = vld [vmem:[#allocation7 + $0x1a8] sm:$0xff]
    %v2071 = vld [vmem:[#allocation7 + $0x1b0] sm:$0xff]
    %v2072 = vld [vmem:[#allocation7 + $0x1b8] sm:$0xff]
    %v2073 = vld [vmem:[#allocation7 + $0x1c0] sm:$0xff]
    %v2074 = vld [vmem:[#allocation7 + $0x1c8] sm:$0xff]
    %v2075 = vld [vmem:[#allocation7 + $0x1d0] sm:$0xff]
    %v2076 = vld [vmem:[#allocation7 + $0x1d8] sm:$0xff]
    %v2077 = vld [vmem:[#allocation7 + $0x1e0] sm:$0xff]
    %v2078 = vld [vmem:[#allocation7 + $0x1e8] sm:$0xff]
    %v2079 = vld [vmem:[#allocation7 + $0x1f0] sm:$0xff]
    %v2080 = vld [vmem:[#allocation7 + $0x1f8] sm:$0xff]
    %v2081 = vld [vmem:[%s5] sm:$0x3]
    %v2083 = vlaneseq
    %v2084 = vshrl.u32 %v2083, 7
    %v2085 = vsub.s32 0, %v2084
    %v2086 = vrot.slane %v2081, %v2085
    %v2087 = vlaneseq
    %v2088 = vshrl.u32 %v2087, 7
    %v2089 = vsub.s32 1, %v2088
    %v2090 = vrot.slane %v2081, %v2089
    %v2157 = vunpack.c.l.b16 %v2017
    %v2158 = vunpack.c.h.b16 %v2017
    %v2159 = vunpack.c.l.b16 %v2018
    %v2160 = vunpack.c.h.b16 %v2018
    %v2161 = vunpack.c.l.b16 %v2019
    %v2162 = vunpack.c.h.b16 %v2019
    %v2163 = vunpack.c.l.b16 %v2020
    %v2164 = vunpack.c.h.b16 %v2020
    %v2165 = vunpack.c.l.b16 %v2021
    %v2166 = vunpack.c.h.b16 %v2021
    %v2167 = vunpack.c.l.b16 %v2022
    %v2168 = vunpack.c.h.b16 %v2022
    %v2169 = vunpack.c.l.b16 %v2023
    %v2170 = vunpack.c.h.b16 %v2023
    %v2171 = vunpack.c.l.b16 %v2024
    %v2172 = vunpack.c.h.b16 %v2024
    %v2173 = vunpack.c.l.b16 %v2025
    %v2174 = vunpack.c.h.b16 %v2025
    %v2175 = vunpack.c.l.b16 %v2026
    %v2176 = vunpack.c.h.b16 %v2026
    %v2177 = vunpack.c.l.b16 %v2027
    %v2178 = vunpack.c.h.b16 %v2027
    %v2179 = vunpack.c.l.b16 %v2028
    %v2180 = vunpack.c.h.b16 %v2028
    %v2181 = vunpack.c.l.b16 %v2029
    %v2182 = vunpack.c.h.b16 %v2029
    %v2183 = vunpack.c.l.b16 %v2030
    %v2184 = vunpack.c.h.b16 %v2030
    %v2185 = vunpack.c.l.b16 %v2031
    %v2186 = vunpack.c.h.b16 %v2031
    %v2187 = vunpack.c.l.b16 %v2032
    %v2188 = vunpack.c.h.b16 %v2032
    %v2189 = vunpack.c.l.b16 %v2033
    %v2190 = vunpack.c.h.b16 %v2033
    %v2191 = vunpack.c.l.b16 %v2034
    %v2192 = vunpack.c.h.b16 %v2034
    %v2193 = vunpack.c.l.b16 %v2035
    %v2194 = vunpack.c.h.b16 %v2035
    %v2195 = vunpack.c.l.b16 %v2036
    %v2196 = vunpack.c.h.b16 %v2036
    %v2197 = vunpack.c.l.b16 %v2037
    %v2198 = vunpack.c.h.b16 %v2037
    %v2199 = vunpack.c.l.b16 %v2038
    %v2200 = vunpack.c.h.b16 %v2038
    %v2201 = vunpack.c.l.b16 %v2039
    %v2202 = vunpack.c.h.b16 %v2039
    %v2203 = vunpack.c.l.b16 %v2040
    %v2204 = vunpack.c.h.b16 %v2040
    %v2205 = vunpack.c.l.b16 %v2041
    %v2206 = vunpack.c.h.b16 %v2041
    %v2207 = vunpack.c.l.b16 %v2042
    %v2208 = vunpack.c.h.b16 %v2042
    %v2209 = vunpack.c.l.b16 %v2043
    %v2210 = vunpack.c.h.b16 %v2043
    %v2211 = vunpack.c.l.b16 %v2044
    %v2212 = vunpack.c.h.b16 %v2044
    %v2213 = vunpack.c.l.b16 %v2045
    %v2214 = vunpack.c.h.b16 %v2045
    %v2215 = vunpack.c.l.b16 %v2046
    %v2216 = vunpack.c.h.b16 %v2046
    %v2217 = vunpack.c.l.b16 %v2047
    %v2218 = vunpack.c.h.b16 %v2047
    %v2219 = vunpack.c.l.b16 %v2048
    %v2220 = vunpack.c.h.b16 %v2048
    %v2221 = vunpack.c.l.b16 %v2049
    %v2222 = vunpack.c.h.b16 %v2049
    %v2223 = vunpack.c.l.b16 %v2050
    %v2224 = vunpack.c.h.b16 %v2050
    %v2225 = vunpack.c.l.b16 %v2051
    %v2226 = vunpack.c.h.b16 %v2051
    %v2227 = vunpack.c.l.b16 %v2052
    %v2228 = vunpack.c.h.b16 %v2052
    %v2229 = vunpack.c.l.b16 %v2053
    %v2230 = vunpack.c.h.b16 %v2053
    %v2231 = vunpack.c.l.b16 %v2054
    %v2232 = vunpack.c.h.b16 %v2054
    %v2233 = vunpack.c.l.b16 %v2055
    %v2234 = vunpack.c.h.b16 %v2055
    %v2235 = vunpack.c.l.b16 %v2056
    %v2236 = vunpack.c.h.b16 %v2056
    %v2237 = vunpack.c.l.b16 %v2057
    %v2238 = vunpack.c.h.b16 %v2057
    %v2239 = vunpack.c.l.b16 %v2058
    %v2240 = vunpack.c.h.b16 %v2058
    %v2241 = vunpack.c.l.b16 %v2059
    %v2242 = vunpack.c.h.b16 %v2059
    %v2243 = vunpack.c.l.b16 %v2060
    %v2244 = vunpack.c.h.b16 %v2060
    %v2245 = vunpack.c.l.b16 %v2061
    %v2246 = vunpack.c.h.b16 %v2061
    %v2247 = vunpack.c.l.b16 %v2062
    %v2248 = vunpack.c.h.b16 %v2062
    %v2249 = vunpack.c.l.b16 %v2063
    %v2250 = vunpack.c.h.b16 %v2063
    %v2251 = vunpack.c.l.b16 %v2064
    %v2252 = vunpack.c.h.b16 %v2064
    %v2253 = vunpack.c.l.b16 %v2065
    %v2254 = vunpack.c.h.b16 %v2065
    %v2255 = vunpack.c.l.b16 %v2066
    %v2256 = vunpack.c.h.b16 %v2066
    %v2257 = vunpack.c.l.b16 %v2067
    %v2258 = vunpack.c.h.b16 %v2067
    %v2259 = vunpack.c.l.b16 %v2068
    %v2260 = vunpack.c.h.b16 %v2068
    %v2261 = vunpack.c.l.b16 %v2069
    %v2262 = vunpack.c.h.b16 %v2069
    %v2263 = vunpack.c.l.b16 %v2070
    %v2264 = vunpack.c.h.b16 %v2070
    %v2265 = vunpack.c.l.b16 %v2071
    %v2266 = vunpack.c.h.b16 %v2071
    %v2267 = vunpack.c.l.b16 %v2072
    %v2268 = vunpack.c.h.b16 %v2072
    %v2269 = vunpack.c.l.b16 %v2073
    %v2270 = vunpack.c.h.b16 %v2073
    %v2271 = vunpack.c.l.b16 %v2074
    %v2272 = vunpack.c.h.b16 %v2074
    %v2273 = vunpack.c.l.b16 %v2075
    %v2274 = vunpack.c.h.b16 %v2075
    %v2275 = vunpack.c.l.b16 %v2076
    %v2276 = vunpack.c.h.b16 %v2076
    %v2277 = vunpack.c.l.b16 %v2077
    %v2278 = vunpack.c.h.b16 %v2077
    %v2279 = vunpack.c.l.b16 %v2078
    %v2280 = vunpack.c.h.b16 %v2078
    %v2281 = vunpack.c.l.b16 %v2079
    %v2282 = vunpack.c.h.b16 %v2079
    %v2283 = vunpack.c.l.b16 %v2080
    %v2284 = vunpack.c.h.b16 %v2080
    %v2285 = vpack.c.b16 %v2159, %v2157
    %v2286 = vpack.c.b16 %v2160, %v2158
    %v2287 = vpack.c.b16 %v2163, %v2161
    %v2288 = vpack.c.b16 %v2164, %v2162
    %v2289 = vpack.c.b16 %v2167, %v2165
    %v2290 = vpack.c.b16 %v2168, %v2166
    %v2291 = vpack.c.b16 %v2171, %v2169
    %v2292 = vpack.c.b16 %v2172, %v2170
    %v2293 = vpack.c.b16 %v2175, %v2173
    %v2294 = vpack.c.b16 %v2176, %v2174
    %v2295 = vpack.c.b16 %v2179, %v2177
    %v2296 = vpack.c.b16 %v2180, %v2178
    %v2297 = vpack.c.b16 %v2183, %v2181
    %v2298 = vpack.c.b16 %v2184, %v2182
    %v2299 = vpack.c.b16 %v2187, %v2185
    %v2300 = vpack.c.b16 %v2188, %v2186
    %v2301 = vpack.c.b16 %v2191, %v2189
    %v2302 = vpack.c.b16 %v2192, %v2190
    %v2303 = vpack.c.b16 %v2195, %v2193
    %v2304 = vpack.c.b16 %v2196, %v2194
    %v2305 = vpack.c.b16 %v2199, %v2197
    %v2306 = vpack.c.b16 %v2200, %v2198
    %v2307 = vpack.c.b16 %v2203, %v2201
    %v2308 = vpack.c.b16 %v2204, %v2202
    %v2309 = vpack.c.b16 %v2207, %v2205
    %v2310 = vpack.c.b16 %v2208, %v2206
    %v2311 = vpack.c.b16 %v2211, %v2209
    %v2312 = vpack.c.b16 %v2212, %v2210
    %v2313 = vpack.c.b16 %v2215, %v2213
    %v2314 = vpack.c.b16 %v2216, %v2214
    %v2315 = vpack.c.b16 %v2219, %v2217
    %v2316 = vpack.c.b16 %v2220, %v2218
    %v2317 = vpack.c.b16 %v2223, %v2221
    %v2318 = vpack.c.b16 %v2224, %v2222
    %v2319 = vpack.c.b16 %v2227, %v2225
    %v2320 = vpack.c.b16 %v2228, %v2226
    %v2321 = vpack.c.b16 %v2231, %v2229
    %v2322 = vpack.c.b16 %v2232, %v2230
    %v2323 = vpack.c.b16 %v2235, %v2233
    %v2324 = vpack.c.b16 %v2236, %v2234
    %v2325 = vpack.c.b16 %v2239, %v2237
    %v2326 = vpack.c.b16 %v2240, %v2238
    %v2327 = vpack.c.b16 %v2243, %v2241
    %v2328 = vpack.c.b16 %v2244, %v2242
    %v2329 = vpack.c.b16 %v2247, %v2245
    %v2330 = vpack.c.b16 %v2248, %v2246
    %v2331 = vpack.c.b16 %v2251, %v2249
    %v2332 = vpack.c.b16 %v2252, %v2250
    %v2333 = vpack.c.b16 %v2255, %v2253
    %v2334 = vpack.c.b16 %v2256, %v2254
    %v2335 = vpack.c.b16 %v2259, %v2257
    %v2336 = vpack.c.b16 %v2260, %v2258
    %v2337 = vpack.c.b16 %v2263, %v2261
    %v2338 = vpack.c.b16 %v2264, %v2262
    %v2339 = vpack.c.b16 %v2267, %v2265
    %v2340 = vpack.c.b16 %v2268, %v2266
    %v2341 = vpack.c.b16 %v2271, %v2269
    %v2342 = vpack.c.b16 %v2272, %v2270
    %v2343 = vpack.c.b16 %v2275, %v2273
    %v2344 = vpack.c.b16 %v2276, %v2274
    %v2345 = vpack.c.b16 %v2279, %v2277
    %v2346 = vpack.c.b16 %v2280, %v2278
    %v2347 = vpack.c.b16 %v2283, %v2281
    %v2348 = vpack.c.b16 %v2284, %v2282
    %2413 = vmatprep.subr.bf16.mxu0 %v2286
    %2414 = vmatpush1.bf16.msra.mxu0 %v2285
    %2415 = vmatprep.subr.bf16.mxu0 %v2288
    %2416 = vmatpush1.bf16.msra.mxu0 %v2287
    %2417 = vmatprep.subr.bf16.mxu0 %v2290
    %2418 = vmatpush1.bf16.msra.mxu0 %v2289
    %2419 = vmatprep.subr.bf16.mxu0 %v2292
    %2420 = vmatpush1.bf16.msra.mxu0 %v2291
    %2421 = vmatprep.subr.bf16.mxu0 %v2294
    %2422 = vmatpush1.bf16.msra.mxu0 %v2293
    %2423 = vmatprep.subr.bf16.mxu0 %v2296
    %2424 = vmatpush1.bf16.msra.mxu0 %v2295
    %2425 = vmatprep.subr.bf16.mxu0 %v2298
    %2426 = vmatpush1.bf16.msra.mxu0 %v2297
    %2427 = vmatprep.subr.bf16.mxu0 %v2300
    %2428 = vmatpush1.bf16.msra.mxu0 %v2299
    %2429 = vmatprep.subr.bf16.mxu0 %v2302
    %2430 = vmatpush1.bf16.msra.mxu0 %v2301
    %2431 = vmatprep.subr.bf16.mxu0 %v2304
    %2432 = vmatpush1.bf16.msra.mxu0 %v2303
    %2433 = vmatprep.subr.bf16.mxu0 %v2306
    %2434 = vmatpush1.bf16.msra.mxu0 %v2305
    %2435 = vmatprep.subr.bf16.mxu0 %v2308
    %2436 = vmatpush1.bf16.msra.mxu0 %v2307
    %2437 = vmatprep.subr.bf16.mxu0 %v2310
    %2438 = vmatpush1.bf16.msra.mxu0 %v2309
    %2439 = vmatprep.subr.bf16.mxu0 %v2312
    %2440 = vmatpush1.bf16.msra.mxu0 %v2311
    %2441 = vmatprep.subr.bf16.mxu0 %v2314
    %2442 = vmatpush1.bf16.msra.mxu0 %v2313
    %2443 = vmatprep.subr.bf16.mxu0 %v2316
    %2444 = vmatpush1.bf16.msra.mxu0 %v2315
    %2445 = vmatprep.mubr.bf16.mxu0 %v2014
    %2446 = vmatmul.mubr.bf16.gmra.mrb[0].mxu0 %v2013
    %v2447 = vpop.f32.mrb[0].mxu0
    %v2448 = vadd.f32 %v2086, %v2447
    %v2449 = vpop.f32.mrb[0].mxu0
    %v2450 = vadd.f32 %v2090, %v2449
    %v2451 = vpop.f32.mrb[0].mxu0
    %v2452 = vpop.f32.mrb[0].mxu0
    %2453 = vdwg.mxu0
    %2454 = vmatprep.subr.bf16.mxu0 %v2318
    %2455 = vmatpush1.bf16.msra.mxu0 %v2317
    %2456 = vmatprep.subr.bf16.mxu0 %v2320
    %2457 = vmatpush1.bf16.msra.mxu0 %v2319
    %2458 = vmatprep.subr.bf16.mxu0 %v2322
    %2459 = vmatpush1.bf16.msra.mxu0 %v2321
    %2460 = vmatprep.subr.bf16.mxu0 %v2324
    %2461 = vmatpush1.bf16.msra.mxu0 %v2323
    %2462 = vmatprep.subr.bf16.mxu0 %v2326
    %2463 = vmatpush1.bf16.msra.mxu0 %v2325
    %2464 = vmatprep.subr.bf16.mxu0 %v2328
    %2465 = vmatpush1.bf16.msra.mxu0 %v2327
    %2466 = vmatprep.subr.bf16.mxu0 %v2330
    %2467 = vmatpush1.bf16.msra.mxu0 %v2329
    %2468 = vmatprep.subr.bf16.mxu0 %v2332
    %2469 = vmatpush1.bf16.msra.mxu0 %v2331
    %2470 = vmatprep.subr.bf16.mxu0 %v2334
    %2471 = vmatpush1.bf16.msra.mxu0 %v2333
    %2472 = vmatprep.subr.bf16.mxu0 %v2336
    %2473 = vmatpush1.bf16.msra.mxu0 %v2335
    %2474 = vmatprep.subr.bf16.mxu0 %v2338
    %2475 = vmatpush1.bf16.msra.mxu0 %v2337
    %2476 = vmatprep.subr.bf16.mxu0 %v2340
    %2477 = vmatpush1.bf16.msra.mxu0 %v2339
    %2478 = vmatprep.subr.bf16.mxu0 %v2342
    %2479 = vmatpush1.bf16.msra.mxu0 %v2341
    %2480 = vmatprep.subr.bf16.mxu0 %v2344
    %2481 = vmatpush1.bf16.msra.mxu0 %v2343
    %2482 = vmatprep.subr.bf16.mxu0 %v2346
    %2483 = vmatpush1.bf16.msra.mxu0 %v2345
    %2484 = vmatprep.subr.bf16.mxu0 %v2348
    %2485 = vmatpush1.bf16.msra.mxu0 %v2347
    %2486 = vmatprep.mubr.bf16.mxu0 %v2016
    %2487 = vmatmul.mubr.bf16.gmra.mrb[0].mxu0 %v2015
    %v2488 = vpop.f32.mrb[0].mxu0
    %v2489 = vadd.f32 %v2448, %v2488
    %v2490 = vpop.f32.mrb[0].mxu0
    %v2491 = vadd.f32 %v2450, %v2490
    %v2492 = vpop.f32.mrb[0].mxu0
    %v2493 = vpop.f32.mrb[0].mxu0
    %2494 = vdwg.mxu0
    %v2495 = vmul.f32 %v2491, 1.442695
    %v2496 = vpow.pop %v2495
    %v2497 = vmul.f32 %v2496, 0.5
    %v2498 = vld [vmem:[%s1] sm:$0xff]
    %v2499 = vmul.f32 %v2497, %v2498
    %v2500 = vadd.f32 %v2489, %v2499
    %v2501 = vpack.c.bf16 %v2500, %v2500
    %v2502 = vld [vmem:[#allocation8] sm:$0xff]
    %v2503 = vld [vmem:[#allocation8 + $0x8] sm:$0xff]
    %v2504 = vld [vmem:[#allocation8 + $0x10] sm:$0xff]
    %v2505 = vld [vmem:[#allocation8 + $0x18] sm:$0xff]
    %v2506 = vld [vmem:[#allocation8 + $0x20] sm:$0xff]
    %v2507 = vld [vmem:[#allocation8 + $0x28] sm:$0xff]
    %v2508 = vld [vmem:[#allocation8 + $0x30] sm:$0xff]
    %v2509 = vld [vmem:[#allocation8 + $0x38] sm:$0xff]
    %v2510 = vld [vmem:[#allocation8 + $0x40] sm:$0xff]
    %v2511 = vld [vmem:[#allocation8 + $0x48] sm:$0xff]
    %v2512 = vld [vmem:[#allocation8 + $0x50] sm:$0xff]
    %v2513 = vld [vmem:[#allocation8 + $0x58] sm:$0xff]
    %v2514 = vld [vmem:[#allocation8 + $0x60] sm:$0xff]
    %v2515 = vld [vmem:[#allocation8 + $0x68] sm:$0xff]
    %v2516 = vld [vmem:[#allocation8 + $0x70] sm:$0xff]
    %v2517 = vld [vmem:[#allocation8 + $0x78] sm:$0xff]
    %v2518 = vld [vmem:[#allocation8 + $0x80] sm:$0xff]
    %v2519 = vld [vmem:[#allocation8 + $0x88] sm:$0xff]
    %v2520 = vld [vmem:[#allocation8 + $0x90] sm:$0xff]
    %v2521 = vld [vmem:[#allocation8 + $0x98] sm:$0xff]
    %v2522 = vld [vmem:[#allocation8 + $0xa0] sm:$0xff]
    %v2523 = vld [vmem:[#allocation8 + $0xa8] sm:$0xff]
    %v2524 = vld [vmem:[#allocation8 + $0xb0] sm:$0xff]
    %v2525 = vld [vmem:[#allocation8 + $0xb8] sm:$0xff]
    %v2526 = vld [vmem:[#allocation8 + $0xc0] sm:$0xff]
    %v2527 = vld [vmem:[#allocation8 + $0xc8] sm:$0xff]
    %v2528 = vld [vmem:[#allocation8 + $0xd0] sm:$0xff]
    %v2529 = vld [vmem:[#allocation8 + $0xd8] sm:$0xff]
    %v2530 = vld [vmem:[#allocation8 + $0xe0] sm:$0xff]
    %v2531 = vld [vmem:[#allocation8 + $0xe8] sm:$0xff]
    %v2532 = vld [vmem:[#allocation8 + $0xf0] sm:$0xff]
    %v2533 = vld [vmem:[#allocation8 + $0xf8] sm:$0xff]
    %v2534 = vld [vmem:[%s7] sm:$0xf]
    %v2536 = vlaneseq
    %v2537 = vshrl.u32 %v2536, 7
    %v2538 = vsub.s32 0, %v2537
    %v2539 = vrot.slane %v2534, %v2538
    %v2540 = vlaneseq
    %v2541 = vshrl.u32 %v2540, 7
    %v2542 = vsub.s32 1, %v2541
    %v2543 = vrot.slane %v2534, %v2542
    %v2544 = vlaneseq
    %v2545 = vshrl.u32 %v2544, 7
    %v2546 = vsub.s32 2, %v2545
    %v2547 = vrot.slane %v2534, %v2546
    %v2548 = vlaneseq
    %v2549 = vshrl.u32 %v2548, 7
    %v2550 = vsub.s32 3, %v2549
    %v2551 = vrot.slane %v2534, %v2550
    %v2588 = vunpack.c.l.b16 %v2502
    %v2589 = vunpack.c.h.b16 %v2502
    %v2590 = vunpack.c.l.b16 %v2503
    %v2591 = vunpack.c.h.b16 %v2503
    %v2592 = vunpack.c.l.b16 %v2504
    %v2593 = vunpack.c.h.b16 %v2504
    %v2594 = vunpack.c.l.b16 %v2505
    %v2595 = vunpack.c.h.b16 %v2505
    %v2596 = vunpack.c.l.b16 %v2506
    %v2597 = vunpack.c.h.b16 %v2506
    %v2598 = vunpack.c.l.b16 %v2507
    %v2599 = vunpack.c.h.b16 %v2507
    %v2600 = vunpack.c.l.b16 %v2508
    %v2601 = vunpack.c.h.b16 %v2508
    %v2602 = vunpack.c.l.b16 %v2509
    %v2603 = vunpack.c.h.b16 %v2509
    %v2604 = vunpack.c.l.b16 %v2510
    %v2605 = vunpack.c.h.b16 %v2510
    %v2606 = vunpack.c.l.b16 %v2511
    %v2607 = vunpack.c.h.b16 %v2511
    %v2608 = vunpack.c.l.b16 %v2512
    %v2609 = vunpack.c.h.b16 %v2512
    %v2610 = vunpack.c.l.b16 %v2513
    %v2611 = vunpack.c.h.b16 %v2513
    %v2612 = vunpack.c.l.b16 %v2514
    %v2613 = vunpack.c.h.b16 %v2514
    %v2614 = vunpack.c.l.b16 %v2515
    %v2615 = vunpack.c.h.b16 %v2515
    %v2616 = vunpack.c.l.b16 %v2516
    %v2617 = vunpack.c.h.b16 %v2516
    %v2618 = vunpack.c.l.b16 %v2517
    %v2619 = vunpack.c.h.b16 %v2517
    %v2620 = vunpack.c.l.b16 %v2518
    %v2621 = vunpack.c.h.b16 %v2518
    %v2622 = vunpack.c.l.b16 %v2519
    %v2623 = vunpack.c.h.b16 %v2519
    %v2624 = vunpack.c.l.b16 %v2520
    %v2625 = vunpack.c.h.b16 %v2520
    %v2626 = vunpack.c.l.b16 %v2521
    %v2627 = vunpack.c.h.b16 %v2521
    %v2628 = vunpack.c.l.b16 %v2522
    %v2629 = vunpack.c.h.b16 %v2522
    %v2630 = vunpack.c.l.b16 %v2523
    %v2631 = vunpack.c.h.b16 %v2523
    %v2632 = vunpack.c.l.b16 %v2524
    %v2633 = vunpack.c.h.b16 %v2524
    %v2634 = vunpack.c.l.b16 %v2525
    %v2635 = vunpack.c.h.b16 %v2525
    %v2636 = vunpack.c.l.b16 %v2526
    %v2637 = vunpack.c.h.b16 %v2526
    %v2638 = vunpack.c.l.b16 %v2527
    %v2639 = vunpack.c.h.b16 %v2527
    %v2640 = vunpack.c.l.b16 %v2528
    %v2641 = vunpack.c.h.b16 %v2528
    %v2642 = vunpack.c.l.b16 %v2529
    %v2643 = vunpack.c.h.b16 %v2529
    %v2644 = vunpack.c.l.b16 %v2530
    %v2645 = vunpack.c.h.b16 %v2530
    %v2646 = vunpack.c.l.b16 %v2531
    %v2647 = vunpack.c.h.b16 %v2531
    %v2648 = vunpack.c.l.b16 %v2532
    %v2649 = vunpack.c.h.b16 %v2532
    %v2650 = vunpack.c.l.b16 %v2533
    %v2651 = vunpack.c.h.b16 %v2533
    %v2652 = vpack.c.b16 %v2592, %v2588
    %v2653 = vpack.c.b16 %v2593, %v2589
    %v2654 = vpack.c.b16 %v2594, %v2590
    %v2655 = vpack.c.b16 %v2595, %v2591
    %v2656 = vpack.c.b16 %v2600, %v2596
    %v2657 = vpack.c.b16 %v2601, %v2597
    %v2658 = vpack.c.b16 %v2602, %v2598
    %v2659 = vpack.c.b16 %v2603, %v2599
    %v2660 = vpack.c.b16 %v2608, %v2604
    %v2661 = vpack.c.b16 %v2609, %v2605
    %v2662 = vpack.c.b16 %v2610, %v2606
    %v2663 = vpack.c.b16 %v2611, %v2607
    %v2664 = vpack.c.b16 %v2616, %v2612
    %v2665 = vpack.c.b16 %v2617, %v2613
    %v2666 = vpack.c.b16 %v2618, %v2614
    %v2667 = vpack.c.b16 %v2619, %v2615
    %v2668 = vpack.c.b16 %v2624, %v2620
    %v2669 = vpack.c.b16 %v2625, %v2621
    %v2670 = vpack.c.b16 %v2626, %v2622
    %v2671 = vpack.c.b16 %v2627, %v2623
    %v2672 = vpack.c.b16 %v2632, %v2628
    %v2673 = vpack.c.b16 %v2633, %v2629
    %v2674 = vpack.c.b16 %v2634, %v2630
    %v2675 = vpack.c.b16 %v2635, %v2631
    %v2676 = vpack.c.b16 %v2640, %v2636
    %v2677 = vpack.c.b16 %v2641, %v2637
    %v2678 = vpack.c.b16 %v2642, %v2638
    %v2679 = vpack.c.b16 %v2643, %v2639
    %v2680 = vpack.c.b16 %v2648, %v2644
    %v2681 = vpack.c.b16 %v2649, %v2645
    %v2682 = vpack.c.b16 %v2650, %v2646
    %v2683 = vpack.c.b16 %v2651, %v2647
    %2716 = vmatprep.subr.bf16.mxu0 %v2653
    %2717 = vmatpush1.bf16.msra.mxu0 %v2652
    %2718 = vmatprep.subr.bf16.mxu0 %v2657
    %2719 = vmatpush1.bf16.msra.mxu0 %v2656
    %2720 = vmatprep.subr.bf16.mxu0 %v2661
    %2721 = vmatpush1.bf16.msra.mxu0 %v2660
    %2722 = vmatprep.subr.bf16.mxu0 %v2665
    %2723 = vmatpush1.bf16.msra.mxu0 %v2664
    %2724 = vmatprep.subr.bf16.mxu0 %v2669
    %2725 = vmatpush1.bf16.msra.mxu0 %v2668
    %2726 = vmatprep.subr.bf16.mxu0 %v2673
    %2727 = vmatpush1.bf16.msra.mxu0 %v2672
    %2728 = vmatprep.subr.bf16.mxu0 %v2677
    %2729 = vmatpush1.bf16.msra.mxu0 %v2676
    %2730 = vmatprep.subr.bf16.mxu0 %v2681
    %2731 = vmatpush1.bf16.msra.mxu0 %v2680
    %2732 = vmatprep.subr.bf16.mxu0 0
    %2733 = vmatpush1.bf16.msra.mxu0 0
    %2734 = vmatprep.subr.bf16.mxu0 0
    %2735 = vmatpush1.bf16.msra.mxu0 0
    %2736 = vmatprep.subr.bf16.mxu0 0
    %2737 = vmatpush1.bf16.msra.mxu0 0
    %2738 = vmatprep.subr.bf16.mxu0 0
    %2739 = vmatpush1.bf16.msra.mxu0 0
    %2740 = vmatprep.subr.bf16.mxu0 0
    %2741 = vmatpush1.bf16.msra.mxu0 0
    %2742 = vmatprep.subr.bf16.mxu0 0
    %2743 = vmatpush1.bf16.msra.mxu0 0
    %2744 = vmatprep.subr.bf16.mxu0 0
    %2745 = vmatpush1.bf16.msra.mxu0 0
    %2746 = vmatprep.subr.bf16.mxu0 0
    %2747 = vmatpush1.bf16.msra.mxu0 0
    %2748 = vmatprep.mubr.bf16.mxu0 0
    %2749 = vmatmul.mubr.bf16.gmra.mrb[0].mxu0 %v2501
    %v2750 = vpop.f32.mrb[0].mxu0
    %v2751 = vadd.f32 %v2539, %v2750
    %v2752 = vpop.f32.mrb[0].mxu0
    %v2753 = vadd.f32 %v2543, %v2752
    %v2754 = vpop.f32.mrb[0].mxu0
    %v2755 = vpop.f32.mrb[0].mxu0
    %2756 = vdwg.mxu0
    %2757 = vmatprep.subr.bf16.mxu0 %v2655
    %2758 = vmatpush1.bf16.msra.mxu0 %v2654
    %2759 = vmatprep.subr.bf16.mxu0 %v2659
    %2760 = vmatpush1.bf16.msra.mxu0 %v2658
    %2761 = vmatprep.subr.bf16.mxu0 %v2663
    %2762 = vmatpush1.bf16.msra.mxu0 %v2662
    %2763 = vmatprep.subr.bf16.mxu0 %v2667
    %2764 = vmatpush1.bf16.msra.mxu0 %v2666
    %2765 = vmatprep.subr.bf16.mxu0 %v2671
    %2766 = vmatpush1.bf16.msra.mxu0 %v2670
    %2767 = vmatprep.subr.bf16.mxu0 %v2675
    %2768 = vmatpush1.bf16.msra.mxu0 %v2674
    %2769 = vmatprep.subr.bf16.mxu0 %v2679
    %2770 = vmatpush1.bf16.msra.mxu0 %v2678
    %2771 = vmatprep.subr.bf16.mxu0 %v2683
    %2772 = vmatpush1.bf16.msra.mxu0 %v2682
    %2773 = vmatprep.subr.bf16.mxu0 0
    %2774 = vmatpush1.bf16.msra.mxu0 0
    %2775 = vmatprep.subr.bf16.mxu0 0
    %2776 = vmatpush1.bf16.msra.mxu0 0
    %2777 = vmatprep.subr.bf16.mxu0 0
    %2778 = vmatpush1.bf16.msra.mxu0 0
    %2779 = vmatprep.subr.bf16.mxu0 0
    %2780 = vmatpush1.bf16.msra.mxu0 0
    %2781 = vmatprep.subr.bf16.mxu0 0
    %2782 = vmatpush1.bf16.msra.mxu0 0
    %2783 = vmatprep.subr.bf16.mxu0 0
    %2784 = vmatpush1.bf16.msra.mxu0 0
    %2785 = vmatprep.subr.bf16.mxu0 0
    %2786 = vmatpush1.bf16.msra.mxu0 0
    %2787 = vmatprep.subr.bf16.mxu0 0
    %2788 = vmatpush1.bf16.msra.mxu0 0
    %2789 = vmatprep.mubr.bf16.mxu0 0
    %2790 = vmatmul.mubr.bf16.gmra.mrb[0].mxu0 %v2501
    %v2791 = vpop.f32.mrb[0].mxu0
    %v2792 = vadd.f32 %v2547, %v2791
    %v2793 = vpop.f32.mrb[0].mxu0
    %v2794 = vadd.f32 %v2551, %v2793
    %v2795 = vpop.f32.mrb[0].mxu0
    %v2796 = vpop.f32.mrb[0].mxu0
    %2797 = vdwg.mxu0
    %v2798 = vmax.f32 %v2751, 0.0
    %v2799 = vmax.f32 %v2753, 0.0
    %v2800 = vmax.f32 %v2792, 0.0
    %v2801 = vmax.f32 %v2794, 0.0
    %v2802 = vpack.c.bf16 %v2798, %v2798
    %v2803 = vpack.c.bf16 %v2799, %v2799
    %v2804 = vpack.c.bf16 %v2800, %v2800
    %v2805 = vpack.c.bf16 %v2801, %v2801
    %v2806 = vld [vmem:[#allocation10] sm:$0xff]
    %v2807 = vld [vmem:[#allocation10 + $0x8] sm:$0xff]
    %v2808 = vld [vmem:[#allocation10 + $0x10] sm:$0xff]
    %v2809 = vld [vmem:[#allocation10 + $0x18] sm:$0xff]
    %v2810 = vld [vmem:[#allocation10 + $0x20] sm:$0xff]
    %v2811 = vld [vmem:[#allocation10 + $0x28] sm:$0xff]
    %v2812 = vld [vmem:[#allocation10 + $0x30] sm:$0xff]
    %v2813 = vld [vmem:[#allocation10 + $0x38] sm:$0xff]
    %v2814 = vld [vmem:[#allocation10 + $0x40] sm:$0xff]
    %v2815 = vld [vmem:[#allocation10 + $0x48] sm:$0xff]
    %v2816 = vld [vmem:[#allocation10 + $0x50] sm:$0xff]
    %v2817 = vld [vmem:[#allocation10 + $0x58] sm:$0xff]
    %v2818 = vld [vmem:[#allocation10 + $0x60] sm:$0xff]
    %v2819 = vld [vmem:[#allocation10 + $0x68] sm:$0xff]
    %v2820 = vld [vmem:[#allocation10 + $0x70] sm:$0xff]
    %v2821 = vld [vmem:[#allocation10 + $0x78] sm:$0xff]
    %v2822 = vld [vmem:[#allocation10 + $0x80] sm:$0xff]
    %v2823 = vld [vmem:[#allocation10 + $0x88] sm:$0xff]
    %v2824 = vld [vmem:[#allocation10 + $0x90] sm:$0xff]
    %v2825 = vld [vmem:[#allocation10 + $0x98] sm:$0xff]
    %v2826 = vld [vmem:[#allocation10 + $0xa0] sm:$0xff]
    %v2827 = vld [vmem:[#allocation10 + $0xa8] sm:$0xff]
    %v2828 = vld [vmem:[#allocation10 + $0xb0] sm:$0xff]
    %v2829 = vld [vmem:[#allocation10 + $0xb8] sm:$0xff]
    %v2830 = vld [vmem:[#allocation10 + $0xc0] sm:$0xff]
    %v2831 = vld [vmem:[#allocation10 + $0xc8] sm:$0xff]
    %v2832 = vld [vmem:[#allocation10 + $0xd0] sm:$0xff]
    %v2833 = vld [vmem:[#allocation10 + $0xd8] sm:$0xff]
    %v2834 = vld [vmem:[#allocation10 + $0xe0] sm:$0xff]
    %v2835 = vld [vmem:[#allocation10 + $0xe8] sm:$0xff]
    %v2836 = vld [vmem:[#allocation10 + $0xf0] sm:$0xff]
    %v2837 = vld [vmem:[#allocation10 + $0xf8] sm:$0xff]
    %v2838 = vld [vmem:[#allocation10 + $0x100] sm:$0xff]
    %v2839 = vld [vmem:[#allocation10 + $0x108] sm:$0xff]
    %v2840 = vld [vmem:[#allocation10 + $0x110] sm:$0xff]
    %v2841 = vld [vmem:[#allocation10 + $0x118] sm:$0xff]
    %v2842 = vld [vmem:[#allocation10 + $0x120] sm:$0xff]
    %v2843 = vld [vmem:[#allocation10 + $0x128] sm:$0xff]
    %v2844 = vld [vmem:[#allocation10 + $0x130] sm:$0xff]
    %v2845 = vld [vmem:[#allocation10 + $0x138] sm:$0xff]
    %v2846 = vld [vmem:[#allocation10 + $0x140] sm:$0xff]
    %v2847 = vld [vmem:[#allocation10 + $0x148] sm:$0xff]
    %v2848 = vld [vmem:[#allocation10 + $0x150] sm:$0xff]
    %v2849 = vld [vmem:[#allocation10 + $0x158] sm:$0xff]
    %v2850 = vld [vmem:[#allocation10 + $0x160] sm:$0xff]
    %v2851 = vld [vmem:[#allocation10 + $0x168] sm:$0xff]
    %v2852 = vld [vmem:[#allocation10 + $0x170] sm:$0xff]
    %v2853 = vld [vmem:[#allocation10 + $0x178] sm:$0xff]
    %v2854 = vld [vmem:[#allocation10 + $0x180] sm:$0xff]
    %v2855 = vld [vmem:[#allocation10 + $0x188] sm:$0xff]
    %v2856 = vld [vmem:[#allocation10 + $0x190] sm:$0xff]
    %v2857 = vld [vmem:[#allocation10 + $0x198] sm:$0xff]
    %v2858 = vld [vmem:[#allocation10 + $0x1a0] sm:$0xff]
    %v2859 = vld [vmem:[#allocation10 + $0x1a8] sm:$0xff]
    %v2860 = vld [vmem:[#allocation10 + $0x1b0] sm:$0xff]
    %v2861 = vld [vmem:[#allocation10 + $0x1b8] sm:$0xff]
    %v2862 = vld [vmem:[#allocation10 + $0x1c0] sm:$0xff]
    %v2863 = vld [vmem:[#allocation10 + $0x1c8] sm:$0xff]
    %v2864 = vld [vmem:[#allocation10 + $0x1d0] sm:$0xff]
    %v2865 = vld [vmem:[#allocation10 + $0x1d8] sm:$0xff]
    %v2866 = vld [vmem:[#allocation10 + $0x1e0] sm:$0xff]
    %v2867 = vld [vmem:[#allocation10 + $0x1e8] sm:$0xff]
    %v2868 = vld [vmem:[#allocation10 + $0x1f0] sm:$0xff]
    %v2869 = vld [vmem:[#allocation10 + $0x1f8] sm:$0xff]
    %v2870 = vld [vmem:[#allocation10 + $0x200] sm:$0xff]
    %v2871 = vld [vmem:[#allocation10 + $0x208] sm:$0xff]
    %v2872 = vld [vmem:[#allocation10 + $0x210] sm:$0xff]
    %v2873 = vld [vmem:[#allocation10 + $0x218] sm:$0xff]
    %v2874 = vld [vmem:[#allocation10 + $0x220] sm:$0xff]
    %v2875 = vld [vmem:[#allocation10 + $0x228] sm:$0xff]
    %v2876 = vld [vmem:[#allocation10 + $0x230] sm:$0xff]
    %v2877 = vld [vmem:[#allocation10 + $0x238] sm:$0xff]
    %v2878 = vld [vmem:[#allocation10 + $0x240] sm:$0xff]
    %v2879 = vld [vmem:[#allocation10 + $0x248] sm:$0xff]
    %v2880 = vld [vmem:[#allocation10 + $0x250] sm:$0xff]
    %v2881 = vld [vmem:[#allocation10 + $0x258] sm:$0xff]
    %v2882 = vld [vmem:[#allocation10 + $0x260] sm:$0xff]
    %v2883 = vld [vmem:[#allocation10 + $0x268] sm:$0xff]
    %v2884 = vld [vmem:[#allocation10 + $0x270] sm:$0xff]
    %v2885 = vld [vmem:[#allocation10 + $0x278] sm:$0xff]
    %v2886 = vld [vmem:[#allocation10 + $0x280] sm:$0xff]
    %v2887 = vld [vmem:[#allocation10 + $0x288] sm:$0xff]
    %v2888 = vld [vmem:[#allocation10 + $0x290] sm:$0xff]
    %v2889 = vld [vmem:[#allocation10 + $0x298] sm:$0xff]
    %v2890 = vld [vmem:[#allocation10 + $0x2a0] sm:$0xff]
    %v2891 = vld [vmem:[#allocation10 + $0x2a8] sm:$0xff]
    %v2892 = vld [vmem:[#allocation10 + $0x2b0] sm:$0xff]
    %v2893 = vld [vmem:[#allocation10 + $0x2b8] sm:$0xff]
    %v2894 = vld [vmem:[#allocation10 + $0x2c0] sm:$0xff]
    %v2895 = vld [vmem:[#allocation10 + $0x2c8] sm:$0xff]
    %v2896 = vld [vmem:[#allocation10 + $0x2d0] sm:$0xff]
    %v2897 = vld [vmem:[#allocation10 + $0x2d8] sm:$0xff]
    %v2898 = vld [vmem:[#allocation10 + $0x2e0] sm:$0xff]
    %v2899 = vld [vmem:[#allocation10 + $0x2e8] sm:$0xff]
    %v2900 = vld [vmem:[#allocation10 + $0x2f0] sm:$0xff]
    %v2901 = vld [vmem:[#allocation10 + $0x2f8] sm:$0xff]
    %v2902 = vld [vmem:[#allocation10 + $0x300] sm:$0xff]
    %v2903 = vld [vmem:[#allocation10 + $0x308] sm:$0xff]
    %v2904 = vld [vmem:[#allocation10 + $0x310] sm:$0xff]
    %v2905 = vld [vmem:[#allocation10 + $0x318] sm:$0xff]
    %v2906 = vld [vmem:[#allocation10 + $0x320] sm:$0xff]
    %v2907 = vld [vmem:[#allocation10 + $0x328] sm:$0xff]
    %v2908 = vld [vmem:[#allocation10 + $0x330] sm:$0xff]
    %v2909 = vld [vmem:[#allocation10 + $0x338] sm:$0xff]
    %v2910 = vld [vmem:[#allocation10 + $0x340] sm:$0xff]
    %v2911 = vld [vmem:[#allocation10 + $0x348] sm:$0xff]
    %v2912 = vld [vmem:[#allocation10 + $0x350] sm:$0xff]
    %v2913 = vld [vmem:[#allocation10 + $0x358] sm:$0xff]
    %v2914 = vld [vmem:[#allocation10 + $0x360] sm:$0xff]
    %v2915 = vld [vmem:[#allocation10 + $0x368] sm:$0xff]
    %v2916 = vld [vmem:[#allocation10 + $0x370] sm:$0xff]
    %v2917 = vld [vmem:[#allocation10 + $0x378] sm:$0xff]
    %v2918 = vld [vmem:[#allocation10 + $0x380] sm:$0xff]
    %v2919 = vld [vmem:[#allocation10 + $0x388] sm:$0xff]
    %v2920 = vld [vmem:[#allocation10 + $0x390] sm:$0xff]
    %v2921 = vld [vmem:[#allocation10 + $0x398] sm:$0xff]
    %v2922 = vld [vmem:[#allocation10 + $0x3a0] sm:$0xff]
    %v2923 = vld [vmem:[#allocation10 + $0x3a8] sm:$0xff]
    %v2924 = vld [vmem:[#allocation10 + $0x3b0] sm:$0xff]
    %v2925 = vld [vmem:[#allocation10 + $0x3b8] sm:$0xff]
    %v2926 = vld [vmem:[#allocation10 + $0x3c0] sm:$0xff]
    %v2927 = vld [vmem:[#allocation10 + $0x3c8] sm:$0xff]
    %v2928 = vld [vmem:[#allocation10 + $0x3d0] sm:$0xff]
    %v2929 = vld [vmem:[#allocation10 + $0x3d8] sm:$0xff]
    %v2930 = vld [vmem:[#allocation10 + $0x3e0] sm:$0xff]
    %v2931 = vld [vmem:[#allocation10 + $0x3e8] sm:$0xff]
    %v2932 = vld [vmem:[#allocation10 + $0x3f0] sm:$0xff]
    %v2933 = vld [vmem:[#allocation10 + $0x3f8] sm:$0xff]
    %v2934 = vld [vmem:[#allocation10 + $0x400] sm:$0xff]
    %v2935 = vld [vmem:[#allocation10 + $0x408] sm:$0xff]
    %v2936 = vld [vmem:[#allocation10 + $0x410] sm:$0xff]
    %v2937 = vld [vmem:[#allocation10 + $0x418] sm:$0xff]
    %v2938 = vld [vmem:[#allocation10 + $0x420] sm:$0xff]
    %v2939 = vld [vmem:[#allocation10 + $0x428] sm:$0xff]
    %v2940 = vld [vmem:[#allocation10 + $0x430] sm:$0xff]
    %v2941 = vld [vmem:[#allocation10 + $0x438] sm:$0xff]
    %v2942 = vld [vmem:[#allocation10 + $0x440] sm:$0xff]
    %v2943 = vld [vmem:[#allocation10 + $0x448] sm:$0xff]
    %v2944 = vld [vmem:[#allocation10 + $0x450] sm:$0xff]
    %v2945 = vld [vmem:[#allocation10 + $0x458] sm:$0xff]
    %v2946 = vld [vmem:[#allocation10 + $0x460] sm:$0xff]
    %v2947 = vld [vmem:[#allocation10 + $0x468] sm:$0xff]
    %v2948 = vld [vmem:[#allocation10 + $0x470] sm:$0xff]
    %v2949 = vld [vmem:[#allocation10 + $0x478] sm:$0xff]
    %v2950 = vld [vmem:[#allocation10 + $0x480] sm:$0xff]
    %v2951 = vld [vmem:[#allocation10 + $0x488] sm:$0xff]
    %v2952 = vld [vmem:[#allocation10 + $0x490] sm:$0xff]
    %v2953 = vld [vmem:[#allocation10 + $0x498] sm:$0xff]
    %v2954 = vld [vmem:[#allocation10 + $0x4a0] sm:$0xff]
    %v2955 = vld [vmem:[#allocation10 + $0x4a8] sm:$0xff]
    %v2956 = vld [vmem:[#allocation10 + $0x4b0] sm:$0xff]
    %v2957 = vld [vmem:[#allocation10 + $0x4b8] sm:$0xff]
    %v2958 = vld [vmem:[#allocation10 + $0x4c0] sm:$0xff]
    %v2959 = vld [vmem:[#allocation10 + $0x4c8] sm:$0xff]
    %v2960 = vld [vmem:[#allocation10 + $0x4d0] sm:$0xff]
    %v2961 = vld [vmem:[#allocation10 + $0x4d8] sm:$0xff]
    %v2962 = vld [vmem:[#allocation10 + $0x4e0] sm:$0xff]
    %v2963 = vld [vmem:[#allocation10 + $0x4e8] sm:$0xff]
    %v2964 = vld [vmem:[#allocation10 + $0x4f0] sm:$0xff]
    %v2965 = vld [vmem:[#allocation10 + $0x4f8] sm:$0xff]
    %v2966 = vld [vmem:[#allocation10 + $0x500] sm:$0xff]
    %v2967 = vld [vmem:[#allocation10 + $0x508] sm:$0xff]
    %v2968 = vld [vmem:[#allocation10 + $0x510] sm:$0xff]
    %v2969 = vld [vmem:[#allocation10 + $0x518] sm:$0xff]
    %v2970 = vld [vmem:[#allocation10 + $0x520] sm:$0xff]
    %v2971 = vld [vmem:[#allocation10 + $0x528] sm:$0xff]
    %v2972 = vld [vmem:[#allocation10 + $0x530] sm:$0xff]
    %v2973 = vld [vmem:[#allocation10 + $0x538] sm:$0xff]
    %v2974 = vld [vmem:[#allocation10 + $0x540] sm:$0xff]
    %v2975 = vld [vmem:[#allocation10 + $0x548] sm:$0xff]
    %v2976 = vld [vmem:[#allocation10 + $0x550] sm:$0xff]
    %v2977 = vld [vmem:[#allocation10 + $0x558] sm:$0xff]
    %v2978 = vld [vmem:[#allocation10 + $0x560] sm:$0xff]
    %v2979 = vld [vmem:[#allocation10 + $0x568] sm:$0xff]
    %v2980 = vld [vmem:[#allocation10 + $0x570] sm:$0xff]
    %v2981 = vld [vmem:[#allocation10 + $0x578] sm:$0xff]
    %v2982 = vld [vmem:[#allocation10 + $0x580] sm:$0xff]
    %v2983 = vld [vmem:[#allocation10 + $0x588] sm:$0xff]
    %v2984 = vld [vmem:[#allocation10 + $0x590] sm:$0xff]
    %v2985 = vld [vmem:[#allocation10 + $0x598] sm:$0xff]
    %v2986 = vld [vmem:[#allocation10 + $0x5a0] sm:$0xff]
    %v2987 = vld [vmem:[#allocation10 + $0x5a8] sm:$0xff]
    %v2988 = vld [vmem:[#allocation10 + $0x5b0] sm:$0xff]
    %v2989 = vld [vmem:[#allocation10 + $0x5b8] sm:$0xff]
    %v2990 = vld [vmem:[#allocation10 + $0x5c0] sm:$0xff]
    %v2991 = vld [vmem:[#allocation10 + $0x5c8] sm:$0xff]
    %v2992 = vld [vmem:[#allocation10 + $0x5d0] sm:$0xff]
    %v2993 = vld [vmem:[#allocation10 + $0x5d8] sm:$0xff]
    %v2994 = vld [vmem:[#allocation10 + $0x5e0] sm:$0xff]
    %v2995 = vld [vmem:[#allocation10 + $0x5e8] sm:$0xff]
    %v2996 = vld [vmem:[#allocation10 + $0x5f0] sm:$0xff]
    %v2997 = vld [vmem:[#allocation10 + $0x5f8] sm:$0xff]
    %v2998 = vld [vmem:[#allocation10 + $0x600] sm:$0xff]
    %v2999 = vld [vmem:[#allocation10 + $0x608] sm:$0xff]
    %v3000 = vld [vmem:[#allocation10 + $0x610] sm:$0xff]
    %v3001 = vld [vmem:[#allocation10 + $0x618] sm:$0xff]
    %v3002 = vld [vmem:[#allocation10 + $0x620] sm:$0xff]
    %v3003 = vld [vmem:[#allocation10 + $0x628] sm:$0xff]
    %v3004 = vld [vmem:[#allocation10 + $0x630] sm:$0xff]
    %v3005 = vld [vmem:[#allocation10 + $0x638] sm:$0xff]
    %v3006 = vld [vmem:[#allocation10 + $0x640] sm:$0xff]
    %v3007 = vld [vmem:[#allocation10 + $0x648] sm:$0xff]
    %v3008 = vld [vmem:[#allocation10 + $0x650] sm:$0xff]
    %v3009 = vld [vmem:[#allocation10 + $0x658] sm:$0xff]
    %v3010 = vld [vmem:[#allocation10 + $0x660] sm:$0xff]
    %v3011 = vld [vmem:[#allocation10 + $0x668] sm:$0xff]
    %v3012 = vld [vmem:[#allocation10 + $0x670] sm:$0xff]
    %v3013 = vld [vmem:[#allocation10 + $0x678] sm:$0xff]
    %v3014 = vld [vmem:[#allocation10 + $0x680] sm:$0xff]
    %v3015 = vld [vmem:[#allocation10 + $0x688] sm:$0xff]
    %v3016 = vld [vmem:[#allocation10 + $0x690] sm:$0xff]
    %v3017 = vld [vmem:[#allocation10 + $0x698] sm:$0xff]
    %v3018 = vld [vmem:[#allocation10 + $0x6a0] sm:$0xff]
    %v3019 = vld [vmem:[#allocation10 + $0x6a8] sm:$0xff]
    %v3020 = vld [vmem:[#allocation10 + $0x6b0] sm:$0xff]
    %v3021 = vld [vmem:[#allocation10 + $0x6b8] sm:$0xff]
    %v3022 = vld [vmem:[#allocation10 + $0x6c0] sm:$0xff]
    %v3023 = vld [vmem:[#allocation10 + $0x6c8] sm:$0xff]
    %v3024 = vld [vmem:[#allocation10 + $0x6d0] sm:$0xff]
    %v3025 = vld [vmem:[#allocation10 + $0x6d8] sm:$0xff]
    %v3026 = vld [vmem:[#allocation10 + $0x6e0] sm:$0xff]
    %v3027 = vld [vmem:[#allocation10 + $0x6e8] sm:$0xff]
    %v3028 = vld [vmem:[#allocation10 + $0x6f0] sm:$0xff]
    %v3029 = vld [vmem:[#allocation10 + $0x6f8] sm:$0xff]
    %v3030 = vld [vmem:[#allocation10 + $0x700] sm:$0xff]
    %v3031 = vld [vmem:[#allocation10 + $0x708] sm:$0xff]
    %v3032 = vld [vmem:[#allocation10 + $0x710] sm:$0xff]
    %v3033 = vld [vmem:[#allocation10 + $0x718] sm:$0xff]
    %v3034 = vld [vmem:[#allocation10 + $0x720] sm:$0xff]
    %v3035 = vld [vmem:[#allocation10 + $0x728] sm:$0xff]
    %v3036 = vld [vmem:[#allocation10 + $0x730] sm:$0xff]
    %v3037 = vld [vmem:[#allocation10 + $0x738] sm:$0xff]
    %v3038 = vld [vmem:[#allocation10 + $0x740] sm:$0xff]
    %v3039 = vld [vmem:[#allocation10 + $0x748] sm:$0xff]
    %v3040 = vld [vmem:[#allocation10 + $0x750] sm:$0xff]
    %v3041 = vld [vmem:[#allocation10 + $0x758] sm:$0xff]
    %v3042 = vld [vmem:[#allocation10 + $0x760] sm:$0xff]
    %v3043 = vld [vmem:[#allocation10 + $0x768] sm:$0xff]
    %v3044 = vld [vmem:[#allocation10 + $0x770] sm:$0xff]
    %v3045 = vld [vmem:[#allocation10 + $0x778] sm:$0xff]
    %v3046 = vld [vmem:[#allocation10 + $0x780] sm:$0xff]
    %v3047 = vld [vmem:[#allocation10 + $0x788] sm:$0xff]
    %v3048 = vld [vmem:[#allocation10 + $0x790] sm:$0xff]
    %v3049 = vld [vmem:[#allocation10 + $0x798] sm:$0xff]
    %v3050 = vld [vmem:[#allocation10 + $0x7a0] sm:$0xff]
    %v3051 = vld [vmem:[#allocation10 + $0x7a8] sm:$0xff]
    %v3052 = vld [vmem:[#allocation10 + $0x7b0] sm:$0xff]
    %v3053 = vld [vmem:[#allocation10 + $0x7b8] sm:$0xff]
    %v3054 = vld [vmem:[#allocation10 + $0x7c0] sm:$0xff]
    %v3055 = vld [vmem:[#allocation10 + $0x7c8] sm:$0xff]
    %v3056 = vld [vmem:[#allocation10 + $0x7d0] sm:$0xff]
    %v3057 = vld [vmem:[#allocation10 + $0x7d8] sm:$0xff]
    %v3058 = vld [vmem:[#allocation10 + $0x7e0] sm:$0xff]
    %v3059 = vld [vmem:[#allocation10 + $0x7e8] sm:$0xff]
    %v3060 = vld [vmem:[#allocation10 + $0x7f0] sm:$0xff]
    %v3061 = vld [vmem:[#allocation10 + $0x7f8] sm:$0xff]
    %v3062 = vld [vmem:[%s9] sm:$0xff]
    %v3064 = vlaneseq
    %v3065 = vshrl.u32 %v3064, 7
    %v3066 = vsub.s32 0, %v3065
    %v3067 = vrot.slane %v3062, %v3066
    %v3068 = vlaneseq
    %v3069 = vshrl.u32 %v3068, 7
    %v3070 = vsub.s32 1, %v3069
    %v3071 = vrot.slane %v3062, %v3070
    %v3072 = vlaneseq
    %v3073 = vshrl.u32 %v3072, 7
    %v3074 = vsub.s32 2, %v3073
    %v3075 = vrot.slane %v3062, %v3074
    %v3076 = vlaneseq
    %v3077 = vshrl.u32 %v3076, 7
    %v3078 = vsub.s32 3, %v3077
    %v3079 = vrot.slane %v3062, %v3078
    %v3080 = vlaneseq
    %v3081 = vshrl.u32 %v3080, 7
    %v3082 = vsub.s32 4, %v3081
    %v3083 = vrot.slane %v3062, %v3082
    %v3084 = vlaneseq
    %v3085 = vshrl.u32 %v3084, 7
    %v3086 = vsub.s32 5, %v3085
    %v3087 = vrot.slane %v3062, %v3086
    %v3088 = vlaneseq
    %v3089 = vshrl.u32 %v3088, 7
    %v3090 = vsub.s32 6, %v3089
    %v3091 = vrot.slane %v3062, %v3090
    %v3092 = vlaneseq
    %v3093 = vshrl.u32 %v3092, 7
    %v3094 = vsub.s32 7, %v3093
    %v3095 = vrot.slane %v3062, %v3094
    %v3360 = vunpack.c.l.b16 %v2806
    %v3361 = vunpack.c.h.b16 %v2806
    %v3362 = vunpack.c.l.b16 %v2807
    %v3363 = vunpack.c.h.b16 %v2807
    %v3364 = vunpack.c.l.b16 %v2808
    %v3365 = vunpack.c.h.b16 %v2808
    %v3366 = vunpack.c.l.b16 %v2809
    %v3367 = vunpack.c.h.b16 %v2809
    %v3368 = vunpack.c.l.b16 %v2810
    %v3369 = vunpack.c.h.b16 %v2810
    %v3370 = vunpack.c.l.b16 %v2811
    %v3371 = vunpack.c.h.b16 %v2811
    %v3372 = vunpack.c.l.b16 %v2812
    %v3373 = vunpack.c.h.b16 %v2812
    %v3374 = vunpack.c.l.b16 %v2813
    %v3375 = vunpack.c.h.b16 %v2813
    %v3376 = vunpack.c.l.b16 %v2814
    %v3377 = vunpack.c.h.b16 %v2814
    %v3378 = vunpack.c.l.b16 %v2815
    %v3379 = vunpack.c.h.b16 %v2815
    %v3380 = vunpack.c.l.b16 %v2816
    %v3381 = vunpack.c.h.b16 %v2816
    %v3382 = vunpack.c.l.b16 %v2817
    %v3383 = vunpack.c.h.b16 %v2817
    %v3384 = vunpack.c.l.b16 %v2818
    %v3385 = vunpack.c.h.b16 %v2818
    %v3386 = vunpack.c.l.b16 %v2819
    %v3387 = vunpack.c.h.b16 %v2819
    %v3388 = vunpack.c.l.b16 %v2820
    %v3389 = vunpack.c.h.b16 %v2820
    %v3390 = vunpack.c.l.b16 %v2821
    %v3391 = vunpack.c.h.b16 %v2821
    %v3392 = vunpack.c.l.b16 %v2822
    %v3393 = vunpack.c.h.b16 %v2822
    %v3394 = vunpack.c.l.b16 %v2823
    %v3395 = vunpack.c.h.b16 %v2823
    %v3396 = vunpack.c.l.b16 %v2824
    %v3397 = vunpack.c.h.b16 %v2824
    %v3398 = vunpack.c.l.b16 %v2825
    %v3399 = vunpack.c.h.b16 %v2825
    %v3400 = vunpack.c.l.b16 %v2826
    %v3401 = vunpack.c.h.b16 %v2826
    %v3402 = vunpack.c.l.b16 %v2827
    %v3403 = vunpack.c.h.b16 %v2827
    %v3404 = vunpack.c.l.b16 %v2828
    %v3405 = vunpack.c.h.b16 %v2828
    %v3406 = vunpack.c.l.b16 %v2829
    %v3407 = vunpack.c.h.b16 %v2829
    %v3408 = vunpack.c.l.b16 %v2830
    %v3409 = vunpack.c.h.b16 %v2830
    %v3410 = vunpack.c.l.b16 %v2831
    %v3411 = vunpack.c.h.b16 %v2831
    %v3412 = vunpack.c.l.b16 %v2832
    %v3413 = vunpack.c.h.b16 %v2832
    %v3414 = vunpack.c.l.b16 %v2833
    %v3415 = vunpack.c.h.b16 %v2833
    %v3416 = vunpack.c.l.b16 %v2834
    %v3417 = vunpack.c.h.b16 %v2834
    %v3418 = vunpack.c.l.b16 %v2835
    %v3419 = vunpack.c.h.b16 %v2835
    %v3420 = vunpack.c.l.b16 %v2836
    %v3421 = vunpack.c.h.b16 %v2836
    %v3422 = vunpack.c.l.b16 %v2837
    %v3423 = vunpack.c.h.b16 %v2837
    %v3424 = vunpack.c.l.b16 %v2838
    %v3425 = vunpack.c.h.b16 %v2838
    %v3426 = vunpack.c.l.b16 %v2839
    %v3427 = vunpack.c.h.b16 %v2839
    %v3428 = vunpack.c.l.b16 %v2840
    %v3429 = vunpack.c.h.b16 %v2840
    %v3430 = vunpack.c.l.b16 %v2841
    %v3431 = vunpack.c.h.b16 %v2841
    %v3432 = vunpack.c.l.b16 %v2842
    %v3433 = vunpack.c.h.b16 %v2842
    %v3434 = vunpack.c.l.b16 %v2843
    %v3435 = vunpack.c.h.b16 %v2843
    %v3436 = vunpack.c.l.b16 %v2844
    %v3437 = vunpack.c.h.b16 %v2844
    %v3438 = vunpack.c.l.b16 %v2845
    %v3439 = vunpack.c.h.b16 %v2845
    %v3440 = vunpack.c.l.b16 %v2846
    %v3441 = vunpack.c.h.b16 %v2846
    %v3442 = vunpack.c.l.b16 %v2847
    %v3443 = vunpack.c.h.b16 %v2847
    %v3444 = vunpack.c.l.b16 %v2848
    %v3445 = vunpack.c.h.b16 %v2848
    %v3446 = vunpack.c.l.b16 %v2849
    %v3447 = vunpack.c.h.b16 %v2849
    %v3448 = vunpack.c.l.b16 %v2850
    %v3449 = vunpack.c.h.b16 %v2850
    %v3450 = vunpack.c.l.b16 %v2851
    %v3451 = vunpack.c.h.b16 %v2851
    %v3452 = vunpack.c.l.b16 %v2852
    %v3453 = vunpack.c.h.b16 %v2852
    %v3454 = vunpack.c.l.b16 %v2853
    %v3455 = vunpack.c.h.b16 %v2853
    %v3456 = vunpack.c.l.b16 %v2854
    %v3457 = vunpack.c.h.b16 %v2854
    %v3458 = vunpack.c.l.b16 %v2855
    %v3459 = vunpack.c.h.b16 %v2855
    %v3460 = vunpack.c.l.b16 %v2856
    %v3461 = vunpack.c.h.b16 %v2856
    %v3462 = vunpack.c.l.b16 %v2857
    %v3463 = vunpack.c.h.b16 %v2857
    %v3464 = vunpack.c.l.b16 %v2858
    %v3465 = vunpack.c.h.b16 %v2858
    %v3466 = vunpack.c.l.b16 %v2859
    %v3467 = vunpack.c.h.b16 %v2859
    %v3468 = vunpack.c.l.b16 %v2860
    %v3469 = vunpack.c.h.b16 %v2860
    %v3470 = vunpack.c.l.b16 %v2861
    %v3471 = vunpack.c.h.b16 %v2861
    %v3472 = vunpack.c.l.b16 %v2862
    %v3473 = vunpack.c.h.b16 %v2862
    %v3474 = vunpack.c.l.b16 %v2863
    %v3475 = vunpack.c.h.b16 %v2863
    %v3476 = vunpack.c.l.b16 %v2864
    %v3477 = vunpack.c.h.b16 %v2864
    %v3478 = vunpack.c.l.b16 %v2865
    %v3479 = vunpack.c.h.b16 %v2865
    %v3480 = vunpack.c.l.b16 %v2866
    %v3481 = vunpack.c.h.b16 %v2866
    %v3482 = vunpack.c.l.b16 %v2867
    %v3483 = vunpack.c.h.b16 %v2867
    %v3484 = vunpack.c.l.b16 %v2868
    %v3485 = vunpack.c.h.b16 %v2868
    %v3486 = vunpack.c.l.b16 %v2869
    %v3487 = vunpack.c.h.b16 %v2869
    %v3488 = vunpack.c.l.b16 %v2870
    %v3489 = vunpack.c.h.b16 %v2870
    %v3490 = vunpack.c.l.b16 %v2871
    %v3491 = vunpack.c.h.b16 %v2871
    %v3492 = vunpack.c.l.b16 %v2872
    %v3493 = vunpack.c.h.b16 %v2872
    %v3494 = vunpack.c.l.b16 %v2873
    %v3495 = vunpack.c.h.b16 %v2873
    %v3496 = vunpack.c.l.b16 %v2874
    %v3497 = vunpack.c.h.b16 %v2874
    %v3498 = vunpack.c.l.b16 %v2875
    %v3499 = vunpack.c.h.b16 %v2875
    %v3500 = vunpack.c.l.b16 %v2876
    %v3501 = vunpack.c.h.b16 %v2876
    %v3502 = vunpack.c.l.b16 %v2877
    %v3503 = vunpack.c.h.b16 %v2877
    %v3504 = vunpack.c.l.b16 %v2878
    %v3505 = vunpack.c.h.b16 %v2878
    %v3506 = vunpack.c.l.b16 %v2879
    %v3507 = vunpack.c.h.b16 %v2879
    %v3508 = vunpack.c.l.b16 %v2880
    %v3509 = vunpack.c.h.b16 %v2880
    %v3510 = vunpack.c.l.b16 %v2881
    %v3511 = vunpack.c.h.b16 %v2881
    %v3512 = vunpack.c.l.b16 %v2882
    %v3513 = vunpack.c.h.b16 %v2882
    %v3514 = vunpack.c.l.b16 %v2883
    %v3515 = vunpack.c.h.b16 %v2883
    %v3516 = vunpack.c.l.b16 %v2884
    %v3517 = vunpack.c.h.b16 %v2884
    %v3518 = vunpack.c.l.b16 %v2885
    %v3519 = vunpack.c.h.b16 %v2885
    %v3520 = vunpack.c.l.b16 %v2886
    %v3521 = vunpack.c.h.b16 %v2886
    %v3522 = vunpack.c.l.b16 %v2887
    %v3523 = vunpack.c.h.b16 %v2887
    %v3524 = vunpack.c.l.b16 %v2888
    %v3525 = vunpack.c.h.b16 %v2888
    %v3526 = vunpack.c.l.b16 %v2889
    %v3527 = vunpack.c.h.b16 %v2889
    %v3528 = vunpack.c.l.b16 %v2890
    %v3529 = vunpack.c.h.b16 %v2890
    %v3530 = vunpack.c.l.b16 %v2891
    %v3531 = vunpack.c.h.b16 %v2891
    %v3532 = vunpack.c.l.b16 %v2892
    %v3533 = vunpack.c.h.b16 %v2892
    %v3534 = vunpack.c.l.b16 %v2893
    %v3535 = vunpack.c.h.b16 %v2893
    %v3536 = vunpack.c.l.b16 %v2894
    %v3537 = vunpack.c.h.b16 %v2894
    %v3538 = vunpack.c.l.b16 %v2895
    %v3539 = vunpack.c.h.b16 %v2895
    %v3540 = vunpack.c.l.b16 %v2896
    %v3541 = vunpack.c.h.b16 %v2896
    %v3542 = vunpack.c.l.b16 %v2897
    %v3543 = vunpack.c.h.b16 %v2897
    %v3544 = vunpack.c.l.b16 %v2898
    %v3545 = vunpack.c.h.b16 %v2898
    %v3546 = vunpack.c.l.b16 %v2899
    %v3547 = vunpack.c.h.b16 %v2899
    %v3548 = vunpack.c.l.b16 %v2900
    %v3549 = vunpack.c.h.b16 %v2900
    %v3550 = vunpack.c.l.b16 %v2901
    %v3551 = vunpack.c.h.b16 %v2901
    %v3552 = vunpack.c.l.b16 %v2902
    %v3553 = vunpack.c.h.b16 %v2902
    %v3554 = vunpack.c.l.b16 %v2903
    %v3555 = vunpack.c.h.b16 %v2903
    %v3556 = vunpack.c.l.b16 %v2904
    %v3557 = vunpack.c.h.b16 %v2904
    %v3558 = vunpack.c.l.b16 %v2905
    %v3559 = vunpack.c.h.b16 %v2905
    %v3560 = vunpack.c.l.b16 %v2906
    %v3561 = vunpack.c.h.b16 %v2906
    %v3562 = vunpack.c.l.b16 %v2907
    %v3563 = vunpack.c.h.b16 %v2907
    %v3564 = vunpack.c.l.b16 %v2908
    %v3565 = vunpack.c.h.b16 %v2908
    %v3566 = vunpack.c.l.b16 %v2909
    %v3567 = vunpack.c.h.b16 %v2909
    %v3568 = vunpack.c.l.b16 %v2910
    %v3569 = vunpack.c.h.b16 %v2910
    %v3570 = vunpack.c.l.b16 %v2911
    %v3571 = vunpack.c.h.b16 %v2911
    %v3572 = vunpack.c.l.b16 %v2912
    %v3573 = vunpack.c.h.b16 %v2912
    %v3574 = vunpack.c.l.b16 %v2913
    %v3575 = vunpack.c.h.b16 %v2913
    %v3576 = vunpack.c.l.b16 %v2914
    %v3577 = vunpack.c.h.b16 %v2914
    %v3578 = vunpack.c.l.b16 %v2915
    %v3579 = vunpack.c.h.b16 %v2915
    %v3580 = vunpack.c.l.b16 %v2916
    %v3581 = vunpack.c.h.b16 %v2916
    %v3582 = vunpack.c.l.b16 %v2917
    %v3583 = vunpack.c.h.b16 %v2917
    %v3584 = vunpack.c.l.b16 %v2918
    %v3585 = vunpack.c.h.b16 %v2918
    %v3586 = vunpack.c.l.b16 %v2919
    %v3587 = vunpack.c.h.b16 %v2919
    %v3588 = vunpack.c.l.b16 %v2920
    %v3589 = vunpack.c.h.b16 %v2920
    %v3590 = vunpack.c.l.b16 %v2921
    %v3591 = vunpack.c.h.b16 %v2921
    %v3592 = vunpack.c.l.b16 %v2922
    %v3593 = vunpack.c.h.b16 %v2922
    %v3594 = vunpack.c.l.b16 %v2923
    %v3595 = vunpack.c.h.b16 %v2923
    %v3596 = vunpack.c.l.b16 %v2924
    %v3597 = vunpack.c.h.b16 %v2924
    %v3598 = vunpack.c.l.b16 %v2925
    %v3599 = vunpack.c.h.b16 %v2925
    %v3600 = vunpack.c.l.b16 %v2926
    %v3601 = vunpack.c.h.b16 %v2926
    %v3602 = vunpack.c.l.b16 %v2927
    %v3603 = vunpack.c.h.b16 %v2927
    %v3604 = vunpack.c.l.b16 %v2928
    %v3605 = vunpack.c.h.b16 %v2928
    %v3606 = vunpack.c.l.b16 %v2929
    %v3607 = vunpack.c.h.b16 %v2929
    %v3608 = vunpack.c.l.b16 %v2930
    %v3609 = vunpack.c.h.b16 %v2930
    %v3610 = vunpack.c.l.b16 %v2931
    %v3611 = vunpack.c.h.b16 %v2931
    %v3612 = vunpack.c.l.b16 %v2932
    %v3613 = vunpack.c.h.b16 %v2932
    %v3614 = vunpack.c.l.b16 %v2933
    %v3615 = vunpack.c.h.b16 %v2933
    %v3616 = vunpack.c.l.b16 %v2934
    %v3617 = vunpack.c.h.b16 %v2934
    %v3618 = vunpack.c.l.b16 %v2935
    %v3619 = vunpack.c.h.b16 %v2935
    %v3620 = vunpack.c.l.b16 %v2936
    %v3621 = vunpack.c.h.b16 %v2936
    %v3622 = vunpack.c.l.b16 %v2937
    %v3623 = vunpack.c.h.b16 %v2937
    %v3624 = vunpack.c.l.b16 %v2938
    %v3625 = vunpack.c.h.b16 %v2938
    %v3626 = vunpack.c.l.b16 %v2939
    %v3627 = vunpack.c.h.b16 %v2939
    %v3628 = vunpack.c.l.b16 %v2940
    %v3629 = vunpack.c.h.b16 %v2940
    %v3630 = vunpack.c.l.b16 %v2941
    %v3631 = vunpack.c.h.b16 %v2941
    %v3632 = vunpack.c.l.b16 %v2942
    %v3633 = vunpack.c.h.b16 %v2942
    %v3634 = vunpack.c.l.b16 %v2943
    %v3635 = vunpack.c.h.b16 %v2943
    %v3636 = vunpack.c.l.b16 %v2944
    %v3637 = vunpack.c.h.b16 %v2944
    %v3638 = vunpack.c.l.b16 %v2945
    %v3639 = vunpack.c.h.b16 %v2945
    %v3640 = vunpack.c.l.b16 %v2946
    %v3641 = vunpack.c.h.b16 %v2946
    %v3642 = vunpack.c.l.b16 %v2947
    %v3643 = vunpack.c.h.b16 %v2947
    %v3644 = vunpack.c.l.b16 %v2948
    %v3645 = vunpack.c.h.b16 %v2948
    %v3646 = vunpack.c.l.b16 %v2949
    %v3647 = vunpack.c.h.b16 %v2949
    %v3648 = vunpack.c.l.b16 %v2950
    %v3649 = vunpack.c.h.b16 %v2950
    %v3650 = vunpack.c.l.b16 %v2951
    %v3651 = vunpack.c.h.b16 %v2951
    %v3652 = vunpack.c.l.b16 %v2952
    %v3653 = vunpack.c.h.b16 %v2952
    %v3654 = vunpack.c.l.b16 %v2953
    %v3655 = vunpack.c.h.b16 %v2953
    %v3656 = vunpack.c.l.b16 %v2954
    %v3657 = vunpack.c.h.b16 %v2954
    %v3658 = vunpack.c.l.b16 %v2955
    %v3659 = vunpack.c.h.b16 %v2955
    %v3660 = vunpack.c.l.b16 %v2956
    %v3661 = vunpack.c.h.b16 %v2956
    %v3662 = vunpack.c.l.b16 %v2957
    %v3663 = vunpack.c.h.b16 %v2957
    %v3664 = vunpack.c.l.b16 %v2958
    %v3665 = vunpack.c.h.b16 %v2958
    %v3666 = vunpack.c.l.b16 %v2959
    %v3667 = vunpack.c.h.b16 %v2959
    %v3668 = vunpack.c.l.b16 %v2960
    %v3669 = vunpack.c.h.b16 %v2960
    %v3670 = vunpack.c.l.b16 %v2961
    %v3671 = vunpack.c.h.b16 %v2961
    %v3672 = vunpack.c.l.b16 %v2962
    %v3673 = vunpack.c.h.b16 %v2962
    %v3674 = vunpack.c.l.b16 %v2963
    %v3675 = vunpack.c.h.b16 %v2963
    %v3676 = vunpack.c.l.b16 %v2964
    %v3677 = vunpack.c.h.b16 %v2964
    %v3678 = vunpack.c.l.b16 %v2965
    %v3679 = vunpack.c.h.b16 %v2965
    %v3680 = vunpack.c.l.b16 %v2966
    %v3681 = vunpack.c.h.b16 %v2966
    %v3682 = vunpack.c.l.b16 %v2967
    %v3683 = vunpack.c.h.b16 %v2967
    %v3684 = vunpack.c.l.b16 %v2968
    %v3685 = vunpack.c.h.b16 %v2968
    %v3686 = vunpack.c.l.b16 %v2969
    %v3687 = vunpack.c.h.b16 %v2969
    %v3688 = vunpack.c.l.b16 %v2970
    %v3689 = vunpack.c.h.b16 %v2970
    %v3690 = vunpack.c.l.b16 %v2971
    %v3691 = vunpack.c.h.b16 %v2971
    %v3692 = vunpack.c.l.b16 %v2972
    %v3693 = vunpack.c.h.b16 %v2972
    %v3694 = vunpack.c.l.b16 %v2973
    %v3695 = vunpack.c.h.b16 %v2973
    %v3696 = vunpack.c.l.b16 %v2974
    %v3697 = vunpack.c.h.b16 %v2974
    %v3698 = vunpack.c.l.b16 %v2975
    %v3699 = vunpack.c.h.b16 %v2975
    %v3700 = vunpack.c.l.b16 %v2976
    %v3701 = vunpack.c.h.b16 %v2976
    %v3702 = vunpack.c.l.b16 %v2977
    %v3703 = vunpack.c.h.b16 %v2977
    %v3704 = vunpack.c.l.b16 %v2978
    %v3705 = vunpack.c.h.b16 %v2978
    %v3706 = vunpack.c.l.b16 %v2979
    %v3707 = vunpack.c.h.b16 %v2979
    %v3708 = vunpack.c.l.b16 %v2980
    %v3709 = vunpack.c.h.b16 %v2980
    %v3710 = vunpack.c.l.b16 %v2981
    %v3711 = vunpack.c.h.b16 %v2981
    %v3712 = vunpack.c.l.b16 %v2982
    %v3713 = vunpack.c.h.b16 %v2982
    %v3714 = vunpack.c.l.b16 %v2983
    %v3715 = vunpack.c.h.b16 %v2983
    %v3716 = vunpack.c.l.b16 %v2984
    %v3717 = vunpack.c.h.b16 %v2984
    %v3718 = vunpack.c.l.b16 %v2985
    %v3719 = vunpack.c.h.b16 %v2985
    %v3720 = vunpack.c.l.b16 %v2986
    %v3721 = vunpack.c.h.b16 %v2986
    %v3722 = vunpack.c.l.b16 %v2987
    %v3723 = vunpack.c.h.b16 %v2987
    %v3724 = vunpack.c.l.b16 %v2988
    %v3725 = vunpack.c.h.b16 %v2988
    %v3726 = vunpack.c.l.b16 %v2989
    %v3727 = vunpack.c.h.b16 %v2989
    %v3728 = vunpack.c.l.b16 %v2990
    %v3729 = vunpack.c.h.b16 %v2990
    %v3730 = vunpack.c.l.b16 %v2991
    %v3731 = vunpack.c.h.b16 %v2991
    %v3732 = vunpack.c.l.b16 %v2992
    %v3733 = vunpack.c.h.b16 %v2992
    %v3734 = vunpack.c.l.b16 %v2993
    %v3735 = vunpack.c.h.b16 %v2993
    %v3736 = vunpack.c.l.b16 %v2994
    %v3737 = vunpack.c.h.b16 %v2994
    %v3738 = vunpack.c.l.b16 %v2995
    %v3739 = vunpack.c.h.b16 %v2995
    %v3740 = vunpack.c.l.b16 %v2996
    %v3741 = vunpack.c.h.b16 %v2996
    %v3742 = vunpack.c.l.b16 %v2997
    %v3743 = vunpack.c.h.b16 %v2997
    %v3744 = vunpack.c.l.b16 %v2998
    %v3745 = vunpack.c.h.b16 %v2998
    %v3746 = vunpack.c.l.b16 %v2999
    %v3747 = vunpack.c.h.b16 %v2999
    %v3748 = vunpack.c.l.b16 %v3000
    %v3749 = vunpack.c.h.b16 %v3000
    %v3750 = vunpack.c.l.b16 %v3001
    %v3751 = vunpack.c.h.b16 %v3001
    %v3752 = vunpack.c.l.b16 %v3002
    %v3753 = vunpack.c.h.b16 %v3002
    %v3754 = vunpack.c.l.b16 %v3003
    %v3755 = vunpack.c.h.b16 %v3003
    %v3756 = vunpack.c.l.b16 %v3004
    %v3757 = vunpack.c.h.b16 %v3004
    %v3758 = vunpack.c.l.b16 %v3005
    %v3759 = vunpack.c.h.b16 %v3005
    %v3760 = vunpack.c.l.b16 %v3006
    %v3761 = vunpack.c.h.b16 %v3006
    %v3762 = vunpack.c.l.b16 %v3007
    %v3763 = vunpack.c.h.b16 %v3007
    %v3764 = vunpack.c.l.b16 %v3008
    %v3765 = vunpack.c.h.b16 %v3008
    %v3766 = vunpack.c.l.b16 %v3009
    %v3767 = vunpack.c.h.b16 %v3009
    %v3768 = vunpack.c.l.b16 %v3010
    %v3769 = vunpack.c.h.b16 %v3010
    %v3770 = vunpack.c.l.b16 %v3011
    %v3771 = vunpack.c.h.b16 %v3011
    %v3772 = vunpack.c.l.b16 %v3012
    %v3773 = vunpack.c.h.b16 %v3012
    %v3774 = vunpack.c.l.b16 %v3013
    %v3775 = vunpack.c.h.b16 %v3013
    %v3776 = vunpack.c.l.b16 %v3014
    %v3777 = vunpack.c.h.b16 %v3014
    %v3778 = vunpack.c.l.b16 %v3015
    %v3779 = vunpack.c.h.b16 %v3015
    %v3780 = vunpack.c.l.b16 %v3016
    %v3781 = vunpack.c.h.b16 %v3016
    %v3782 = vunpack.c.l.b16 %v3017
    %v3783 = vunpack.c.h.b16 %v3017
    %v3784 = vunpack.c.l.b16 %v3018
    %v3785 = vunpack.c.h.b16 %v3018
    %v3786 = vunpack.c.l.b16 %v3019
    %v3787 = vunpack.c.h.b16 %v3019
    %v3788 = vunpack.c.l.b16 %v3020
    %v3789 = vunpack.c.h.b16 %v3020
    %v3790 = vunpack.c.l.b16 %v3021
    %v3791 = vunpack.c.h.b16 %v3021
    %v3792 = vunpack.c.l.b16 %v3022
    %v3793 = vunpack.c.h.b16 %v3022
    %v3794 = vunpack.c.l.b16 %v3023
    %v3795 = vunpack.c.h.b16 %v3023
    %v3796 = vunpack.c.l.b16 %v3024
    %v3797 = vunpack.c.h.b16 %v3024
    %v3798 = vunpack.c.l.b16 %v3025
    %v3799 = vunpack.c.h.b16 %v3025
    %v3800 = vunpack.c.l.b16 %v3026
    %v3801 = vunpack.c.h.b16 %v3026
    %v3802 = vunpack.c.l.b16 %v3027
    %v3803 = vunpack.c.h.b16 %v3027
    %v3804 = vunpack.c.l.b16 %v3028
    %v3805 = vunpack.c.h.b16 %v3028
    %v3806 = vunpack.c.l.b16 %v3029
    %v3807 = vunpack.c.h.b16 %v3029
    %v3808 = vunpack.c.l.b16 %v3030
    %v3809 = vunpack.c.h.b16 %v3030
    %v3810 = vunpack.c.l.b16 %v3031
    %v3811 = vunpack.c.h.b16 %v3031
    %v3812 = vunpack.c.l.b16 %v3032
    %v3813 = vunpack.c.h.b16 %v3032
    %v3814 = vunpack.c.l.b16 %v3033
    %v3815 = vunpack.c.h.b16 %v3033
    %v3816 = vunpack.c.l.b16 %v3034
    %v3817 = vunpack.c.h.b16 %v3034
    %v3818 = vunpack.c.l.b16 %v3035
    %v3819 = vunpack.c.h.b16 %v3035
    %v3820 = vunpack.c.l.b16 %v3036
    %v3821 = vunpack.c.h.b16 %v3036
    %v3822 = vunpack.c.l.b16 %v3037
    %v3823 = vunpack.c.h.b16 %v3037
    %v3824 = vunpack.c.l.b16 %v3038
    %v3825 = vunpack.c.h.b16 %v3038
    %v3826 = vunpack.c.l.b16 %v3039
    %v3827 = vunpack.c.h.b16 %v3039
    %v3828 = vunpack.c.l.b16 %v3040
    %v3829 = vunpack.c.h.b16 %v3040
    %v3830 = vunpack.c.l.b16 %v3041
    %v3831 = vunpack.c.h.b16 %v3041
    %v3832 = vunpack.c.l.b16 %v3042
    %v3833 = vunpack.c.h.b16 %v3042
    %v3834 = vunpack.c.l.b16 %v3043
    %v3835 = vunpack.c.h.b16 %v3043
    %v3836 = vunpack.c.l.b16 %v3044
    %v3837 = vunpack.c.h.b16 %v3044
    %v3838 = vunpack.c.l.b16 %v3045
    %v3839 = vunpack.c.h.b16 %v3045
    %v3840 = vunpack.c.l.b16 %v3046
    %v3841 = vunpack.c.h.b16 %v3046
    %v3842 = vunpack.c.l.b16 %v3047
    %v3843 = vunpack.c.h.b16 %v3047
    %v3844 = vunpack.c.l.b16 %v3048
    %v3845 = vunpack.c.h.b16 %v3048
    %v3846 = vunpack.c.l.b16 %v3049
    %v3847 = vunpack.c.h.b16 %v3049
    %v3848 = vunpack.c.l.b16 %v3050
    %v3849 = vunpack.c.h.b16 %v3050
    %v3850 = vunpack.c.l.b16 %v3051
    %v3851 = vunpack.c.h.b16 %v3051
    %v3852 = vunpack.c.l.b16 %v3052
    %v3853 = vunpack.c.h.b16 %v3052
    %v3854 = vunpack.c.l.b16 %v3053
    %v3855 = vunpack.c.h.b16 %v3053
    %v3856 = vunpack.c.l.b16 %v3054
    %v3857 = vunpack.c.h.b16 %v3054
    %v3858 = vunpack.c.l.b16 %v3055
    %v3859 = vunpack.c.h.b16 %v3055
    %v3860 = vunpack.c.l.b16 %v3056
    %v3861 = vunpack.c.h.b16 %v3056
    %v3862 = vunpack.c.l.b16 %v3057
    %v3863 = vunpack.c.h.b16 %v3057
    %v3864 = vunpack.c.l.b16 %v3058
    %v3865 = vunpack.c.h.b16 %v3058
    %v3866 = vunpack.c.l.b16 %v3059
    %v3867 = vunpack.c.h.b16 %v3059
    %v3868 = vunpack.c.l.b16 %v3060
    %v3869 = vunpack.c.h.b16 %v3060
    %v3870 = vunpack.c.l.b16 %v3061
    %v3871 = vunpack.c.h.b16 %v3061
    %v3872 = vpack.c.b16 %v3368, %v3360
    %v3873 = vpack.c.b16 %v3369, %v3361
    %v3874 = vpack.c.b16 %v3370, %v3362
    %v3875 = vpack.c.b16 %v3371, %v3363
    %v3876 = vpack.c.b16 %v3372, %v3364
    %v3877 = vpack.c.b16 %v3373, %v3365
    %v3878 = vpack.c.b16 %v3374, %v3366
    %v3879 = vpack.c.b16 %v3375, %v3367
    %v3880 = vpack.c.b16 %v3384, %v3376
    %v3881 = vpack.c.b16 %v3385, %v3377
    %v3882 = vpack.c.b16 %v3386, %v3378
    %v3883 = vpack.c.b16 %v3387, %v3379
    %v3884 = vpack.c.b16 %v3388, %v3380
    %v3885 = vpack.c.b16 %v3389, %v3381
    %v3886 = vpack.c.b16 %v3390, %v3382
    %v3887 = vpack.c.b16 %v3391, %v3383
    %v3888 = vpack.c.b16 %v3400, %v3392
    %v3889 = vpack.c.b16 %v3401, %v3393
    %v3890 = vpack.c.b16 %v3402, %v3394
    %v3891 = vpack.c.b16 %v3403, %v3395
    %v3892 = vpack.c.b16 %v3404, %v3396
    %v3893 = vpack.c.b16 %v3405, %v3397
    %v3894 = vpack.c.b16 %v3406, %v3398
    %v3895 = vpack.c.b16 %v3407, %v3399
    %v3896 = vpack.c.b16 %v3416, %v3408
    %v3897 = vpack.c.b16 %v3417, %v3409
    %v3898 = vpack.c.b16 %v3418, %v3410
    %v3899 = vpack.c.b16 %v3419, %v3411
    %v3900 = vpack.c.b16 %v3420, %v3412
    %v3901 = vpack.c.b16 %v3421, %v3413
    %v3902 = vpack.c.b16 %v3422, %v3414
    %v3903 = vpack.c.b16 %v3423, %v3415
    %v3904 = vpack.c.b16 %v3432, %v3424
    %v3905 = vpack.c.b16 %v3433, %v3425
    %v3906 = vpack.c.b16 %v3434, %v3426
    %v3907 = vpack.c.b16 %v3435, %v3427
    %v3908 = vpack.c.b16 %v3436, %v3428
    %v3909 = vpack.c.b16 %v3437, %v3429
    %v3910 = vpack.c.b16 %v3438, %v3430
    %v3911 = vpack.c.b16 %v3439, %v3431
    %v3912 = vpack.c.b16 %v3448, %v3440
    %v3913 = vpack.c.b16 %v3449, %v3441
    %v3914 = vpack.c.b16 %v3450, %v3442
    %v3915 = vpack.c.b16 %v3451, %v3443
    %v3916 = vpack.c.b16 %v3452, %v3444
    %v3917 = vpack.c.b16 %v3453, %v3445
    %v3918 = vpack.c.b16 %v3454, %v3446
    %v3919 = vpack.c.b16 %v3455, %v3447
    %v3920 = vpack.c.b16 %v3464, %v3456
    %v3921 = vpack.c.b16 %v3465, %v3457
    %v3922 = vpack.c.b16 %v3466, %v3458
    %v3923 = vpack.c.b16 %v3467, %v3459
    %v3924 = vpack.c.b16 %v3468, %v3460
    %v3925 = vpack.c.b16 %v3469, %v3461
    %v3926 = vpack.c.b16 %v3470, %v3462
    %v3927 = vpack.c.b16 %v3471, %v3463
    %v3928 = vpack.c.b16 %v3480, %v3472
    %v3929 = vpack.c.b16 %v3481, %v3473
    %v3930 = vpack.c.b16 %v3482, %v3474
    %v3931 = vpack.c.b16 %v3483, %v3475
    %v3932 = vpack.c.b16 %v3484, %v3476
    %v3933 = vpack.c.b16 %v3485, %v3477
    %v3934 = vpack.c.b16 %v3486, %v3478
    %v3935 = vpack.c.b16 %v3487, %v3479
    %v3936 = vpack.c.b16 %v3496, %v3488
    %v3937 = vpack.c.b16 %v3497, %v3489
    %v3938 = vpack.c.b16 %v3498, %v3490
    %v3939 = vpack.c.b16 %v3499, %v3491
    %v3940 = vpack.c.b16 %v3500, %v3492
    %v3941 = vpack.c.b16 %v3501, %v3493
    %v3942 = vpack.c.b16 %v3502, %v3494
    %v3943 = vpack.c.b16 %v3503, %v3495
    %v3944 = vpack.c.b16 %v3512, %v3504
    %v3945 = vpack.c.b16 %v3513, %v3505
    %v3946 = vpack.c.b16 %v3514, %v3506
    %v3947 = vpack.c.b16 %v3515, %v3507
    %v3948 = vpack.c.b16 %v3516, %v3508
    %v3949 = vpack.c.b16 %v3517, %v3509
    %v3950 = vpack.c.b16 %v3518, %v3510
    %v3951 = vpack.c.b16 %v3519, %v3511
    %v3952 = vpack.c.b16 %v3528, %v3520
    %v3953 = vpack.c.b16 %v3529, %v3521
    %v3954 = vpack.c.b16 %v3530, %v3522
    %v3955 = vpack.c.b16 %v3531, %v3523
    %v3956 = vpack.c.b16 %v3532, %v3524
    %v3957 = vpack.c.b16 %v3533, %v3525
    %v3958 = vpack.c.b16 %v3534, %v3526
    %v3959 = vpack.c.b16 %v3535, %v3527
    %v3960 = vpack.c.b16 %v3544, %v3536
    %v3961 = vpack.c.b16 %v3545, %v3537
    %v3962 = vpack.c.b16 %v3546, %v3538
    %v3963 = vpack.c.b16 %v3547, %v3539
    %v3964 = vpack.c.b16 %v3548, %v3540
    %v3965 = vpack.c.b16 %v3549, %v3541
    %v3966 = vpack.c.b16 %v3550, %v3542
    %v3967 = vpack.c.b16 %v3551, %v3543
    %v3968 = vpack.c.b16 %v3560, %v3552
    %v3969 = vpack.c.b16 %v3561, %v3553
    %v3970 = vpack.c.b16 %v3562, %v3554
    %v3971 = vpack.c.b16 %v3563, %v3555
    %v3972 = vpack.c.b16 %v3564, %v3556
    %v3973 = vpack.c.b16 %v3565, %v3557
    %v3974 = vpack.c.b16 %v3566, %v3558
    %v3975 = vpack.c.b16 %v3567, %v3559
    %v3976 = vpack.c.b16 %v3576, %v3568
    %v3977 = vpack.c.b16 %v3577, %v3569
    %v3978 = vpack.c.b16 %v3578, %v3570
    %v3979 = vpack.c.b16 %v3579, %v3571
    %v3980 = vpack.c.b16 %v3580, %v3572
    %v3981 = vpack.c.b16 %v3581, %v3573
    %v3982 = vpack.c.b16 %v3582, %v3574
    %v3983 = vpack.c.b16 %v3583, %v3575
    %v3984 = vpack.c.b16 %v3592, %v3584
    %v3985 = vpack.c.b16 %v3593, %v3585
    %v3986 = vpack.c.b16 %v3594, %v3586
    %v3987 = vpack.c.b16 %v3595, %v3587
    %v3988 = vpack.c.b16 %v3596, %v3588
    %v3989 = vpack.c.b16 %v3597, %v3589
    %v3990 = vpack.c.b16 %v3598, %v3590
    %v3991 = vpack.c.b16 %v3599, %v3591
    %v3992 = vpack.c.b16 %v3608, %v3600
    %v3993 = vpack.c.b16 %v3609, %v3601
    %v3994 = vpack.c.b16 %v3610, %v3602
    %v3995 = vpack.c.b16 %v3611, %v3603
    %v3996 = vpack.c.b16 %v3612, %v3604
    %v3997 = vpack.c.b16 %v3613, %v3605
    %v3998 = vpack.c.b16 %v3614, %v3606
    %v3999 = vpack.c.b16 %v3615, %v3607
    %v4000 = vpack.c.b16 %v3624, %v3616
    %v4001 = vpack.c.b16 %v3625, %v3617
    %v4002 = vpack.c.b16 %v3626, %v3618
    %v4003 = vpack.c.b16 %v3627, %v3619
    %v4004 = vpack.c.b16 %v3628, %v3620
    %v4005 = vpack.c.b16 %v3629, %v3621
    %v4006 = vpack.c.b16 %v3630, %v3622
    %v4007 = vpack.c.b16 %v3631, %v3623
    %v4008 = vpack.c.b16 %v3640, %v3632
    %v4009 = vpack.c.b16 %v3641, %v3633
    %v4010 = vpack.c.b16 %v3642, %v3634
    %v4011 = vpack.c.b16 %v3643, %v3635
    %v4012 = vpack.c.b16 %v3644, %v3636
    %v4013 = vpack.c.b16 %v3645, %v3637
    %v4014 = vpack.c.b16 %v3646, %v3638
    %v4015 = vpack.c.b16 %v3647, %v3639
    %v4016 = vpack.c.b16 %v3656, %v3648
    %v4017 = vpack.c.b16 %v3657, %v3649
    %v4018 = vpack.c.b16 %v3658, %v3650
    %v4019 = vpack.c.b16 %v3659, %v3651
    %v4020 = vpack.c.b16 %v3660, %v3652
    %v4021 = vpack.c.b16 %v3661, %v3653
    %v4022 = vpack.c.b16 %v3662, %v3654
    %v4023 = vpack.c.b16 %v3663, %v3655
    %v4024 = vpack.c.b16 %v3672, %v3664
    %v4025 = vpack.c.b16 %v3673, %v3665
    %v4026 = vpack.c.b16 %v3674, %v3666
    %v4027 = vpack.c.b16 %v3675, %v3667
    %v4028 = vpack.c.b16 %v3676, %v3668
    %v4029 = vpack.c.b16 %v3677, %v3669
    %v4030 = vpack.c.b16 %v3678, %v3670
    %v4031 = vpack.c.b16 %v3679, %v3671
    %v4032 = vpack.c.b16 %v3688, %v3680
    %v4033 = vpack.c.b16 %v3689, %v3681
    %v4034 = vpack.c.b16 %v3690, %v3682
    %v4035 = vpack.c.b16 %v3691, %v3683
    %v4036 = vpack.c.b16 %v3692, %v3684
    %v4037 = vpack.c.b16 %v3693, %v3685
    %v4038 = vpack.c.b16 %v3694, %v3686
    %v4039 = vpack.c.b16 %v3695, %v3687
    %v4040 = vpack.c.b16 %v3704, %v3696
    %v4041 = vpack.c.b16 %v3705, %v3697
    %v4042 = vpack.c.b16 %v3706, %v3698
    %v4043 = vpack.c.b16 %v3707, %v3699
    %v4044 = vpack.c.b16 %v3708, %v3700
    %v4045 = vpack.c.b16 %v3709, %v3701
    %v4046 = vpack.c.b16 %v3710, %v3702
    %v4047 = vpack.c.b16 %v3711, %v3703
    %v4048 = vpack.c.b16 %v3720, %v3712
    %v4049 = vpack.c.b16 %v3721, %v3713
    %v4050 = vpack.c.b16 %v3722, %v3714
    %v4051 = vpack.c.b16 %v3723, %v3715
    %v4052 = vpack.c.b16 %v3724, %v3716
    %v4053 = vpack.c.b16 %v3725, %v3717
    %v4054 = vpack.c.b16 %v3726, %v3718
    %v4055 = vpack.c.b16 %v3727, %v3719
    %v4056 = vpack.c.b16 %v3736, %v3728
    %v4057 = vpack.c.b16 %v3737, %v3729
    %v4058 = vpack.c.b16 %v3738, %v3730
    %v4059 = vpack.c.b16 %v3739, %v3731
    %v4060 = vpack.c.b16 %v3740, %v3732
    %v4061 = vpack.c.b16 %v3741, %v3733
    %v4062 = vpack.c.b16 %v3742, %v3734
    %v4063 = vpack.c.b16 %v3743, %v3735
    %v4064 = vpack.c.b16 %v3752, %v3744
    %v4065 = vpack.c.b16 %v3753, %v3745
    %v4066 = vpack.c.b16 %v3754, %v3746
    %v4067 = vpack.c.b16 %v3755, %v3747
    %v4068 = vpack.c.b16 %v3756, %v3748
    %v4069 = vpack.c.b16 %v3757, %v3749
    %v4070 = vpack.c.b16 %v3758, %v3750
    %v4071 = vpack.c.b16 %v3759, %v3751
    %v4072 = vpack.c.b16 %v3768, %v3760
    %v4073 = vpack.c.b16 %v3769, %v3761
    %v4074 = vpack.c.b16 %v3770, %v3762
    %v4075 = vpack.c.b16 %v3771, %v3763
    %v4076 = vpack.c.b16 %v3772, %v3764
    %v4077 = vpack.c.b16 %v3773, %v3765
    %v4078 = vpack.c.b16 %v3774, %v3766
    %v4079 = vpack.c.b16 %v3775, %v3767
    %v4080 = vpack.c.b16 %v3784, %v3776
    %v4081 = vpack.c.b16 %v3785, %v3777
    %v4082 = vpack.c.b16 %v3786, %v3778
    %v4083 = vpack.c.b16 %v3787, %v3779
    %v4084 = vpack.c.b16 %v3788, %v3780
    %v4085 = vpack.c.b16 %v3789, %v3781
    %v4086 = vpack.c.b16 %v3790, %v3782
    %v4087 = vpack.c.b16 %v3791, %v3783
    %v4088 = vpack.c.b16 %v3800, %v3792
    %v4089 = vpack.c.b16 %v3801, %v3793
    %v4090 = vpack.c.b16 %v3802, %v3794
    %v4091 = vpack.c.b16 %v3803, %v3795
    %v4092 = vpack.c.b16 %v3804, %v3796
    %v4093 = vpack.c.b16 %v3805, %v3797
    %v4094 = vpack.c.b16 %v3806, %v3798
    %v4095 = vpack.c.b16 %v3807, %v3799
    %v4096 = vpack.c.b16 %v3816, %v3808
    %v4097 = vpack.c.b16 %v3817, %v3809
    %v4098 = vpack.c.b16 %v3818, %v3810
    %v4099 = vpack.c.b16 %v3819, %v3811
    %v4100 = vpack.c.b16 %v3820, %v3812
    %v4101 = vpack.c.b16 %v3821, %v3813
    %v4102 = vpack.c.b16 %v3822, %v3814
    %v4103 = vpack.c.b16 %v3823, %v3815
    %v4104 = vpack.c.b16 %v3832, %v3824
    %v4105 = vpack.c.b16 %v3833, %v3825
    %v4106 = vpack.c.b16 %v3834, %v3826
    %v4107 = vpack.c.b16 %v3835, %v3827
    %v4108 = vpack.c.b16 %v3836, %v3828
    %v4109 = vpack.c.b16 %v3837, %v3829
    %v4110 = vpack.c.b16 %v3838, %v3830
    %v4111 = vpack.c.b16 %v3839, %v3831
    %v4112 = vpack.c.b16 %v3848, %v3840
    %v4113 = vpack.c.b16 %v3849, %v3841
    %v4114 = vpack.c.b16 %v3850, %v3842
    %v4115 = vpack.c.b16 %v3851, %v3843
    %v4116 = vpack.c.b16 %v3852, %v3844
    %v4117 = vpack.c.b16 %v3853, %v3845
    %v4118 = vpack.c.b16 %v3854, %v3846
    %v4119 = vpack.c.b16 %v3855, %v3847
    %v4120 = vpack.c.b16 %v3864, %v3856
    %v4121 = vpack.c.b16 %v3865, %v3857
    %v4122 = vpack.c.b16 %v3866, %v3858
    %v4123 = vpack.c.b16 %v3867, %v3859
    %v4124 = vpack.c.b16 %v3868, %v3860
    %v4125 = vpack.c.b16 %v3869, %v3861
    %v4126 = vpack.c.b16 %v3870, %v3862
    %v4127 = vpack.c.b16 %v3871, %v3863
    %4384 = vmatprep.subr.bf16.mxu0 %v3873
    %4385 = vmatpush1.bf16.msra.mxu0 %v3872
    %4386 = vmatprep.subr.bf16.mxu0 %v3881
    %4387 = vmatpush1.bf16.msra.mxu0 %v3880
    %4388 = vmatprep.subr.bf16.mxu0 %v3889
    %4389 = vmatpush1.bf16.msra.mxu0 %v3888
    %4390 = vmatprep.subr.bf16.mxu0 %v3897
    %4391 = vmatpush1.bf16.msra.mxu0 %v3896
    %4392 = vmatprep.subr.bf16.mxu0 %v3905
    %4393 = vmatpush1.bf16.msra.mxu0 %v3904
    %4394 = vmatprep.subr.bf16.mxu0 %v3913
    %4395 = vmatpush1.bf16.msra.mxu0 %v3912
    %4396 = vmatprep.subr.bf16.mxu0 %v3921
    %4397 = vmatpush1.bf16.msra.mxu0 %v3920
    %4398 = vmatprep.subr.bf16.mxu0 %v3929
    %4399 = vmatpush1.bf16.msra.mxu0 %v3928
    %4400 = vmatprep.subr.bf16.mxu0 %v3937
    %4401 = vmatpush1.bf16.msra.mxu0 %v3936
    %4402 = vmatprep.subr.bf16.mxu0 %v3945
    %4403 = vmatpush1.bf16.msra.mxu0 %v3944
    %4404 = vmatprep.subr.bf16.mxu0 %v3953
    %4405 = vmatpush1.bf16.msra.mxu0 %v3952
    %4406 = vmatprep.subr.bf16.mxu0 %v3961
    %4407 = vmatpush1.bf16.msra.mxu0 %v3960
    %4408 = vmatprep.subr.bf16.mxu0 %v3969
    %4409 = vmatpush1.bf16.msra.mxu0 %v3968
    %4410 = vmatprep.subr.bf16.mxu0 %v3977
    %4411 = vmatpush1.bf16.msra.mxu0 %v3976
    %4412 = vmatprep.subr.bf16.mxu0 %v3985
    %4413 = vmatpush1.bf16.msra.mxu0 %v3984
    %4414 = vmatprep.subr.bf16.mxu0 %v3993
    %4415 = vmatpush1.bf16.msra.mxu0 %v3992
    %4416 = vmatprep.mubr.bf16.mxu0 %v2803
    %4417 = vmatmul.mubr.bf16.gmra.mrb[0].mxu0 %v2802
    %v4418 = vpop.f32.mrb[0].mxu0
    %v4419 = vadd.f32 %v3067, %v4418
    %v4420 = vpop.f32.mrb[0].mxu0
    %v4421 = vadd.f32 %v3071, %v4420
    %v4422 = vpop.f32.mrb[0].mxu0
    %v4423 = vpop.f32.mrb[0].mxu0
    %4424 = vdwg.mxu0
    %4425 = vmatprep.subr.bf16.mxu0 %v4001
    %4426 = vmatpush1.bf16.msra.mxu0 %v4000
    %4427 = vmatprep.subr.bf16.mxu0 %v4009
    %4428 = vmatpush1.bf16.msra.mxu0 %v4008
    %4429 = vmatprep.subr.bf16.mxu0 %v4017
    %4430 = vmatpush1.bf16.msra.mxu0 %v4016
    %4431 = vmatprep.subr.bf16.mxu0 %v4025
    %4432 = vmatpush1.bf16.msra.mxu0 %v4024
    %4433 = vmatprep.subr.bf16.mxu0 %v4033
    %4434 = vmatpush1.bf16.msra.mxu0 %v4032
    %4435 = vmatprep.subr.bf16.mxu0 %v4041
    %4436 = vmatpush1.bf16.msra.mxu0 %v4040
    %4437 = vmatprep.subr.bf16.mxu0 %v4049
    %4438 = vmatpush1.bf16.msra.mxu0 %v4048
    %4439 = vmatprep.subr.bf16.mxu0 %v4057
    %4440 = vmatpush1.bf16.msra.mxu0 %v4056
    %4441 = vmatprep.subr.bf16.mxu0 %v4065
    %4442 = vmatpush1.bf16.msra.mxu0 %v4064
    %4443 = vmatprep.subr.bf16.mxu0 %v4073
    %4444 = vmatpush1.bf16.msra.mxu0 %v4072
    %4445 = vmatprep.subr.bf16.mxu0 %v4081
    %4446 = vmatpush1.bf16.msra.mxu0 %v4080
    %4447 = vmatprep.subr.bf16.mxu0 %v4089
    %4448 = vmatpush1.bf16.msra.mxu0 %v4088
    %4449 = vmatprep.subr.bf16.mxu0 %v4097
    %4450 = vmatpush1.bf16.msra.mxu0 %v4096
    %4451 = vmatprep.subr.bf16.mxu0 %v4105
    %4452 = vmatpush1.bf16.msra.mxu0 %v4104
    %4453 = vmatprep.subr.bf16.mxu0 %v4113
    %4454 = vmatpush1.bf16.msra.mxu0 %v4112
    %4455 = vmatprep.subr.bf16.mxu0 %v4121
    %4456 = vmatpush1.bf16.msra.mxu0 %v4120
    %4457 = vmatprep.mubr.bf16.mxu0 %v2805
    %4458 = vmatmul.mubr.bf16.gmra.mrb[0].mxu0 %v2804
    %v4459 = vpop.f32.mrb[0].mxu0
    %v4460 = vadd.f32 %v4419, %v4459
    %v4461 = vpop.f32.mrb[0].mxu0
    %v4462 = vadd.f32 %v4421, %v4461
    %v4463 = vpop.f32.mrb[0].mxu0
    %v4464 = vpop.f32.mrb[0].mxu0
    %4465 = vdwg.mxu0
    %4466 = vmatprep.subr.bf16.mxu0 %v3875
    %4467 = vmatpush1.bf16.msra.mxu0 %v3874
    %4468 = vmatprep.subr.bf16.mxu0 %v3883
    %4469 = vmatpush1.bf16.msra.mxu0 %v3882
    %4470 = vmatprep.subr.bf16.mxu0 %v3891
    %4471 = vmatpush1.bf16.msra.mxu0 %v3890
    %4472 = vmatprep.subr.bf16.mxu0 %v3899
    %4473 = vmatpush1.bf16.msra.mxu0 %v3898
    %4474 = vmatprep.subr.bf16.mxu0 %v3907
    %4475 = vmatpush1.bf16.msra.mxu0 %v3906
    %4476 = vmatprep.subr.bf16.mxu0 %v3915
    %4477 = vmatpush1.bf16.msra.mxu0 %v3914
    %4478 = vmatprep.subr.bf16.mxu0 %v3923
    %4479 = vmatpush1.bf16.msra.mxu0 %v3922
    %4480 = vmatprep.subr.bf16.mxu0 %v3931
    %4481 = vmatpush1.bf16.msra.mxu0 %v3930
    %4482 = vmatprep.subr.bf16.mxu0 %v3939
    %4483 = vmatpush1.bf16.msra.mxu0 %v3938
    %4484 = vmatprep.subr.bf16.mxu0 %v3947
    %4485 = vmatpush1.bf16.msra.mxu0 %v3946
    %4486 = vmatprep.subr.bf16.mxu0 %v3955
    %4487 = vmatpush1.bf16.msra.mxu0 %v3954
    %4488 = vmatprep.subr.bf16.mxu0 %v3963
    %4489 = vmatpush1.bf16.msra.mxu0 %v3962
    %4490 = vmatprep.subr.bf16.mxu0 %v3971
    %4491 = vmatpush1.bf16.msra.mxu0 %v3970
    %4492 = vmatprep.subr.bf16.mxu0 %v3979
    %4493 = vmatpush1.bf16.msra.mxu0 %v3978
    %4494 = vmatprep.subr.bf16.mxu0 %v3987
    %4495 = vmatpush1.bf16.msra.mxu0 %v3986
    %4496 = vmatprep.subr.bf16.mxu0 %v3995
    %4497 = vmatpush1.bf16.msra.mxu0 %v3994
    %4498 = vmatprep.mubr.bf16.mxu0 %v2803
    %4499 = vmatmul.mubr.bf16.gmra.mrb[0].mxu0 %v2802
    %v4500 = vpop.f32.mrb[0].mxu0
    %v4501 = vadd.f32 %v3075, %v4500
    %v4502 = vpop.f32.mrb[0].mxu0
    %v4503 = vadd.f32 %v3079, %v4502
    %v4504 = vpop.f32.mrb[0].mxu0
    %v4505 = vpop.f32.mrb[0].mxu0
    %4506 = vdwg.mxu0
    %4507 = vmatprep.subr.bf16.mxu0 %v4003
    %4508 = vmatpush1.bf16.msra.mxu0 %v4002
    %4509 = vmatprep.subr.bf16.mxu0 %v4011
    %4510 = vmatpush1.bf16.msra.mxu0 %v4010
    %4511 = vmatprep.subr.bf16.mxu0 %v4019
    %4512 = vmatpush1.bf16.msra.mxu0 %v4018
    %4513 = vmatprep.subr.bf16.mxu0 %v4027
    %4514 = vmatpush1.bf16.msra.mxu0 %v4026
    %4515 = vmatprep.subr.bf16.mxu0 %v4035
    %4516 = vmatpush1.bf16.msra.mxu0 %v4034
    %4517 = vmatprep.subr.bf16.mxu0 %v4043
    %4518 = vmatpush1.bf16.msra.mxu0 %v4042
    %4519 = vmatprep.subr.bf16.mxu0 %v4051
    %4520 = vmatpush1.bf16.msra.mxu0 %v4050
    %4521 = vmatprep.subr.bf16.mxu0 %v4059
    %4522 = vmatpush1.bf16.msra.mxu0 %v4058
    %4523 = vmatprep.subr.bf16.mxu0 %v4067
    %4524 = vmatpush1.bf16.msra.mxu0 %v4066
    %4525 = vmatprep.subr.bf16.mxu0 %v4075
    %4526 = vmatpush1.bf16.msra.mxu0 %v4074
    %4527 = vmatprep.subr.bf16.mxu0 %v4083
    %4528 = vmatpush1.bf16.msra.mxu0 %v4082
    %4529 = vmatprep.subr.bf16.mxu0 %v4091
    %4530 = vmatpush1.bf16.msra.mxu0 %v4090
    %4531 = vmatprep.subr.bf16.mxu0 %v4099
    %4532 = vmatpush1.bf16.msra.mxu0 %v4098
    %4533 = vmatprep.subr.bf16.mxu0 %v4107
    %4534 = vmatpush1.bf16.msra.mxu0 %v4106
    %4535 = vmatprep.subr.bf16.mxu0 %v4115
    %4536 = vmatpush1.bf16.msra.mxu0 %v4114
    %4537 = vmatprep.subr.bf16.mxu0 %v4123
    %4538 = vmatpush1.bf16.msra.mxu0 %v4122
    %4539 = vmatprep.mubr.bf16.mxu0 %v2805
    %4540 = vmatmul.mubr.bf16.gmra.mrb[0].mxu0 %v2804
    %v4541 = vpop.f32.mrb[0].mxu0
    %v4542 = vadd.f32 %v4501, %v4541
    %v4543 = vpop.f32.mrb[0].mxu0
    %v4544 = vadd.f32 %v4503, %v4543
    %v4545 = vpop.f32.mrb[0].mxu0
    %v4546 = vpop.f32.mrb[0].mxu0
    %4547 = vdwg.mxu0
    %4548 = vmatprep.subr.bf16.mxu0 %v3877
    %4549 = vmatpush1.bf16.msra.mxu0 %v3876
    %4550 = vmatprep.subr.bf16.mxu0 %v3885
    %4551 = vmatpush1.bf16.msra.mxu0 %v3884
    %4552 = vmatprep.subr.bf16.mxu0 %v3893
    %4553 = vmatpush1.bf16.msra.mxu0 %v3892
    %4554 = vmatprep.subr.bf16.mxu0 %v3901
    %4555 = vmatpush1.bf16.msra.mxu0 %v3900
    %4556 = vmatprep.subr.bf16.mxu0 %v3909
    %4557 = vmatpush1.bf16.msra.mxu0 %v3908
    %4558 = vmatprep.subr.bf16.mxu0 %v3917
    %4559 = vmatpush1.bf16.msra.mxu0 %v3916
    %4560 = vmatprep.subr.bf16.mxu0 %v3925
    %4561 = vmatpush1.bf16.msra.mxu0 %v3924
    %4562 = vmatprep.subr.bf16.mxu0 %v3933
    %4563 = vmatpush1.bf16.msra.mxu0 %v3932
    %4564 = vmatprep.subr.bf16.mxu0 %v3941
    %4565 = vmatpush1.bf16.msra.mxu0 %v3940
    %4566 = vmatprep.subr.bf16.mxu0 %v3949
    %4567 = vmatpush1.bf16.msra.mxu0 %v3948
    %4568 = vmatprep.subr.bf16.mxu0 %v3957
    %4569 = vmatpush1.bf16.msra.mxu0 %v3956
    %4570 = vmatprep.subr.bf16.mxu0 %v3965
    %4571 = vmatpush1.bf16.msra.mxu0 %v3964
    %4572 = vmatprep.subr.bf16.mxu0 %v3973
    %4573 = vmatpush1.bf16.msra.mxu0 %v3972
    %4574 = vmatprep.subr.bf16.mxu0 %v3981
    %4575 = vmatpush1.bf16.msra.mxu0 %v3980
    %4576 = vmatprep.subr.bf16.mxu0 %v3989
    %4577 = vmatpush1.bf16.msra.mxu0 %v3988
    %4578 = vmatprep.subr.bf16.mxu0 %v3997
    %4579 = vmatpush1.bf16.msra.mxu0 %v3996
    %4580 = vmatprep.mubr.bf16.mxu0 %v2803
    %4581 = vmatmul.mubr.bf16.gmra.mrb[0].mxu0 %v2802
    %v4582 = vpop.f32.mrb[0].mxu0
    %v4583 = vadd.f32 %v3083, %v4582
    %v4584 = vpop.f32.mrb[0].mxu0
    %v4585 = vadd.f32 %v3087, %v4584
    %v4586 = vpop.f32.mrb[0].mxu0
    %v4587 = vpop.f32.mrb[0].mxu0
    %4588 = vdwg.mxu0
    %4589 = vmatprep.subr.bf16.mxu0 %v4005
    %4590 = vmatpush1.bf16.msra.mxu0 %v4004
    %4591 = vmatprep.subr.bf16.mxu0 %v4013
    %4592 = vmatpush1.bf16.msra.mxu0 %v4012
    %4593 = vmatprep.subr.bf16.mxu0 %v4021
    %4594 = vmatpush1.bf16.msra.mxu0 %v4020
    %4595 = vmatprep.subr.bf16.mxu0 %v4029
    %4596 = vmatpush1.bf16.msra.mxu0 %v4028
    %4597 = vmatprep.subr.bf16.mxu0 %v4037
    %4598 = vmatpush1.bf16.msra.mxu0 %v4036
    %4599 = vmatprep.subr.bf16.mxu0 %v4045
    %4600 = vmatpush1.bf16.msra.mxu0 %v4044
    %4601 = vmatprep.subr.bf16.mxu0 %v4053
    %4602 = vmatpush1.bf16.msra.mxu0 %v4052
    %4603 = vmatprep.subr.bf16.mxu0 %v4061
    %4604 = vmatpush1.bf16.msra.mxu0 %v4060
    %4605 = vmatprep.subr.bf16.mxu0 %v4069
    %4606 = vmatpush1.bf16.msra.mxu0 %v4068
    %4607 = vmatprep.subr.bf16.mxu0 %v4077
    %4608 = vmatpush1.bf16.msra.mxu0 %v4076
    %4609 = vmatprep.subr.bf16.mxu0 %v4085
    %4610 = vmatpush1.bf16.msra.mxu0 %v4084
    %4611 = vmatprep.subr.bf16.mxu0 %v4093
    %4612 = vmatpush1.bf16.msra.mxu0 %v4092
    %4613 = vmatprep.subr.bf16.mxu0 %v4101
    %4614 = vmatpush1.bf16.msra.mxu0 %v4100
    %4615 = vmatprep.subr.bf16.mxu0 %v4109
    %4616 = vmatpush1.bf16.msra.mxu0 %v4108
    %4617 = vmatprep.subr.bf16.mxu0 %v4117
    %4618 = vmatpush1.bf16.msra.mxu0 %v4116
    %4619 = vmatprep.subr.bf16.mxu0 %v4125
    %4620 = vmatpush1.bf16.msra.mxu0 %v4124
    %4621 = vmatprep.mubr.bf16.mxu0 %v2805
    %4622 = vmatmul.mubr.bf16.gmra.mrb[0].mxu0 %v2804
    %v4623 = vpop.f32.mrb[0].mxu0
    %v4624 = vadd.f32 %v4583, %v4623
    %v4625 = vpop.f32.mrb[0].mxu0
    %v4626 = vadd.f32 %v4585, %v4625
    %v4627 = vpop.f32.mrb[0].mxu0
    %v4628 = vpop.f32.mrb[0].mxu0
    %4629 = vdwg.mxu0
    %4630 = vmatprep.subr.bf16.mxu0 %v3879
    %4631 = vmatpush1.bf16.msra.mxu0 %v3878
    %4632 = vmatprep.subr.bf16.mxu0 %v3887
    %4633 = vmatpush1.bf16.msra.mxu0 %v3886
    %4634 = vmatprep.subr.bf16.mxu0 %v3895
    %4635 = vmatpush1.bf16.msra.mxu0 %v3894
    %4636 = vmatprep.subr.bf16.mxu0 %v3903
    %4637 = vmatpush1.bf16.msra.mxu0 %v3902
    %4638 = vmatprep.subr.bf16.mxu0 %v3911
    %4639 = vmatpush1.bf16.msra.mxu0 %v3910
    %4640 = vmatprep.subr.bf16.mxu0 %v3919
    %4641 = vmatpush1.bf16.msra.mxu0 %v3918
    %4642 = vmatprep.subr.bf16.mxu0 %v3927
    %4643 = vmatpush1.bf16.msra.mxu0 %v3926
    %4644 = vmatprep.subr.bf16.mxu0 %v3935
    %4645 = vmatpush1.bf16.msra.mxu0 %v3934
    %4646 = vmatprep.subr.bf16.mxu0 %v3943
    %4647 = vmatpush1.bf16.msra.mxu0 %v3942
    %4648 = vmatprep.subr.bf16.mxu0 %v3951
    %4649 = vmatpush1.bf16.msra.mxu0 %v3950
    %4650 = vmatprep.subr.bf16.mxu0 %v3959
    %4651 = vmatpush1.bf16.msra.mxu0 %v3958
    %4652 = vmatprep.subr.bf16.mxu0 %v3967
    %4653 = vmatpush1.bf16.msra.mxu0 %v3966
    %4654 = vmatprep.subr.bf16.mxu0 %v3975
    %4655 = vmatpush1.bf16.msra.mxu0 %v3974
    %4656 = vmatprep.subr.bf16.mxu0 %v3983
    %4657 = vmatpush1.bf16.msra.mxu0 %v3982
    %4658 = vmatprep.subr.bf16.mxu0 %v3991
    %4659 = vmatpush1.bf16.msra.mxu0 %v3990
    %4660 = vmatprep.subr.bf16.mxu0 %v3999
    %4661 = vmatpush1.bf16.msra.mxu0 %v3998
    %4662 = vmatprep.mubr.bf16.mxu0 %v2803
    %4663 = vmatmul.mubr.bf16.gmra.mrb[0].mxu0 %v2802
    %v4664 = vpop.f32.mrb[0].mxu0
    %v4665 = vadd.f32 %v3091, %v4664
    %v4666 = vpop.f32.mrb[0].mxu0
    %v4667 = vadd.f32 %v3095, %v4666
    %v4668 = vpop.f32.mrb[0].mxu0
    %v4669 = vpop.f32.mrb[0].mxu0
    %4670 = vdwg.mxu0
    %4671 = vmatprep.subr.bf16.mxu0 %v4007
    %4672 = vmatpush1.bf16.msra.mxu0 %v4006
    %4673 = vmatprep.subr.bf16.mxu0 %v4015
    %4674 = vmatpush1.bf16.msra.mxu0 %v4014
    %4675 = vmatprep.subr.bf16.mxu0 %v4023
    %4676 = vmatpush1.bf16.msra.mxu0 %v4022
    %4677 = vmatprep.subr.bf16.mxu0 %v4031
    %4678 = vmatpush1.bf16.msra.mxu0 %v4030
    %4679 = vmatprep.subr.bf16.mxu0 %v4039
    %4680 = vmatpush1.bf16.msra.mxu0 %v4038
    %4681 = vmatprep.subr.bf16.mxu0 %v4047
    %4682 = vmatpush1.bf16.msra.mxu0 %v4046
    %4683 = vmatprep.subr.bf16.mxu0 %v4055
    %4684 = vmatpush1.bf16.msra.mxu0 %v4054
    %4685 = vmatprep.subr.bf16.mxu0 %v4063
    %4686 = vmatpush1.bf16.msra.mxu0 %v4062
    %4687 = vmatprep.subr.bf16.mxu0 %v4071
    %4688 = vmatpush1.bf16.msra.mxu0 %v4070
    %4689 = vmatprep.subr.bf16.mxu0 %v4079
    %4690 = vmatpush1.bf16.msra.mxu0 %v4078
    %4691 = vmatprep.subr.bf16.mxu0 %v4087
    %4692 = vmatpush1.bf16.msra.mxu0 %v4086
    %4693 = vmatprep.subr.bf16.mxu0 %v4095
    %4694 = vmatpush1.bf16.msra.mxu0 %v4094
    %4695 = vmatprep.subr.bf16.mxu0 %v4103
    %4696 = vmatpush1.bf16.msra.mxu0 %v4102
    %4697 = vmatprep.subr.bf16.mxu0 %v4111
    %4698 = vmatpush1.bf16.msra.mxu0 %v4110
    %4699 = vmatprep.subr.bf16.mxu0 %v4119
    %4700 = vmatpush1.bf16.msra.mxu0 %v4118
    %4701 = vmatprep.subr.bf16.mxu0 %v4127
    %4702 = vmatpush1.bf16.msra.mxu0 %v4126
    %4703 = vmatprep.mubr.bf16.mxu0 %v2805
    %4704 = vmatmul.mubr.bf16.gmra.mrb[0].mxu0 %v2804
    %v4705 = vpop.f32.mrb[0].mxu0
    %v4706 = vadd.f32 %v4665, %v4705
    %v4707 = vpop.f32.mrb[0].mxu0
    %v4708 = vadd.f32 %v4667, %v4707
    %v4709 = vpop.f32.mrb[0].mxu0
    %v4710 = vpop.f32.mrb[0].mxu0
    %4711 = vdwg.mxu0
    %v4712 = vmul.f32 %v4460, 0.5
    %v4713 = vmul.f32 %v4462, 0.5
    %v4714 = vmul.f32 %v4542, 0.5
    %v4715 = vmul.f32 %v4544, 0.5
    %v4716 = vmul.f32 %v4624, 0.5
    %v4717 = vmul.f32 %v4626, 0.5
    %v4718 = vmul.f32 %v4706, 0.5
    %v4719 = vmul.f32 %v4708, 0.5
    %v4720 = vtanh.pop %v4712
    %v4721 = vtanh.pop %v4713
    %v4722 = vtanh.pop %v4714
    %v4723 = vtanh.pop %v4715
    %v4724 = vtanh.pop %v4716
    %v4725 = vtanh.pop %v4717
    %v4726 = vtanh.pop %v4718
    %v4727 = vtanh.pop %v4719
    %v4728 = vadd.f32 %v4720, 1.0
    %v4729 = vadd.f32 %v4721, 1.0
    %v4730 = vadd.f32 %v4722, 1.0
    %v4731 = vadd.f32 %v4723, 1.0
    %v4732 = vadd.f32 %v4724, 1.0
    %v4733 = vadd.f32 %v4725, 1.0
    %v4734 = vadd.f32 %v4726, 1.0
    %v4735 = vadd.f32 %v4727, 1.0
    %v4736 = vmul.f32 %v4728, 0.5
    %v4737 = vmul.f32 %v4729, 0.5
    %v4738 = vmul.f32 %v4730, 0.5
    %v4739 = vmul.f32 %v4731, 0.5
    %v4740 = vmul.f32 %v4732, 0.5
    %v4741 = vmul.f32 %v4733, 0.5
    %v4742 = vmul.f32 %v4734, 0.5
    %v4743 = vmul.f32 %v4735, 0.5
    %4744 = vst [vmem:[#allocation11] sm:$0xff] %v4736
    %4745 = vst [vmem:[#allocation11 + $0x8] sm:$0xff] %v4737
    %4746 = vst [vmem:[#allocation11 + $0x10] sm:$0xff] %v4738
    %4747 = vst [vmem:[#allocation11 + $0x18] sm:$0xff] %v4739
    %4748 = vst [vmem:[#allocation11 + $0x20] sm:$0xff] %v4740
    %4749 = vst [vmem:[#allocation11 + $0x28] sm:$0xff] %v4741
    %4750 = vst [vmem:[#allocation11 + $0x30] sm:$0xff] %v4742
    %4751 = vst [vmem:[#allocation11 + $0x38] sm:$0xff] %v4743
    %4752 = vst [vmem:[#allocation12] sm:$0xff] %v2489
    %4753 = vst [vmem:[#allocation14] sm:$0xff] %v2491
    // Predicated region
    $region62: #{_vae_forward_impl.1} parent=1 // pred_check
      _
    $region63: #{_vae_forward_impl.1} parent=1 // pred_check_branch
      %4755 = sbr.rel (0) target = $region65
    $region64: #{_vae_forward_impl.1} parent=1 // pred_region
      %s4757 = ssub.s32 1024, 1024
      %4758 = vsyncadd [#allocation4], %s4757
      %s4760 = sshll.u32 [#allocation11], 4
      %s4761 = int_to_ptr.vmem [resolvable:$true] %s4760
      %4763 = dma.vmem_to_hbm [thread:$0]  %s4761, 1024, %s10, [#allocation4]
    $region65: #{_vae_forward_impl.1} parent=1 // pred_fallthru
      _
    // Predicated region
    $region66: #{_vae_forward_impl.1} parent=1 // pred_check
      _
    $region67: #{_vae_forward_impl.1} parent=1 // pred_check_branch
      %4765 = sbr.rel (0) target = $region69
    $region68: #{_vae_forward_impl.1} parent=1 // pred_region
      %s4767 = ssub.s32 128, 128
      %4768 = vsyncadd [#allocation13], %s4767
      %s4770 = sshll.u32 [#allocation12], 4
      %s4771 = int_to_ptr.vmem [resolvable:$true] %s4770
      %4773 = dma.vmem_to_hbm [thread:$0]  %s4771, 128, %s11, [#allocation13]
    $region69: #{_vae_forward_impl.1} parent=1 // pred_fallthru
      _
    // Predicated region
    $region70: #{_vae_forward_impl.1} parent=1 // pred_check
      _
    $region71: #{_vae_forward_impl.1} parent=1 // pred_check_branch
      %4775 = sbr.rel (0) target = $region73
    $region72: #{_vae_forward_impl.1} parent=1 // pred_region
      %s4777 = ssub.s32 128, 128
      %4778 = vsyncadd [#allocation13], %s4777
      %s4780 = sshll.u32 [#allocation14], 4
      %s4781 = int_to_ptr.vmem [resolvable:$true] %s4780
      %4783 = dma.vmem_to_hbm [thread:$0]  %s4781, 128, %s12, [#allocation13]
    $region73: #{_vae_forward_impl.1} parent=1 // pred_fallthru
      _
    // Predicated region
    $region74: #{_vae_forward_impl.1} parent=1 // pred_check
      _
    $region75: #{_vae_forward_impl.1} parent=1 // pred_check_branch
      %4785 = sbr.rel (0) target = $region77
    $region76: #{_vae_forward_impl.1} parent=1 // pred_region
      %4786 = dma.done [#allocation4], 1024
    $region77: #{_vae_forward_impl.1} parent=1 // pred_fallthru
      _
    // Predicated region
    $region78: #{_vae_forward_impl.1} parent=1 // pred_check
      _
    $region79: #{_vae_forward_impl.1} parent=1 // pred_check_branch
      %4788 = sbr.rel (0) target = $region81
    $region80: #{_vae_forward_impl.1} parent=1 // pred_region
      %4789 = dma.done [#allocation13], 128
    $region81: #{_vae_forward_impl.1} parent=1 // pred_fallthru
      _
    // Predicated region
    $region82: #{_vae_forward_impl.1} parent=1 // pred_check
      _
    $region83: #{_vae_forward_impl.1} parent=1 // pred_check_branch
      %4791 = sbr.rel (0) target = $region85
    $region84: #{_vae_forward_impl.1} parent=1 // pred_region
      %4792 = dma.done [#allocation13], 128
    $region85: #{_vae_forward_impl.1} parent=1 // pred_fallthru
      _
    %4793 = vsyncpa [#allocation3], 1
    %4794 = vsyncpa [#allocation6], 1
    %4795 = vsyncpa [#allocation9], 1
    %4796 = vsyncpa [#allocation4], 1
    %4797 = vsyncpa [#allocation13], 1

// kernel: _vae_forward_impl.1
$region0: #{_vae_forward_impl.1}
  #allocation0 [shape = 'u32[]', space=smem, size = 0x4, offset = 0x4, fixed_abs, tag = 'smem constant byte address 0x4 - core index']
  #allocation1 [shape = 'u32[144,128]{1,0:T(1,128)}', space=vmem, size = 0x12000, scoped, tag = 'internal scratch']
  %s0 = inlined_call_operand.hbm [shape: f32[8,1024], index: 0, kind: input, shape index: {}]
  %s1 = inlined_call_operand.vmem [shape: f32[8,128], index: 1, kind: input, shape index: {}]
  %s2 = inlined_call_operand.hbm [shape: bf16[1024,512], index: 2, kind: input, shape index: {}]
  %s3 = inlined_call_operand.vmem [shape: f32[1,512], index: 3, kind: input, shape index: {}]
  %s4 = inlined_call_operand.hbm [shape: bf16[512,256], index: 4, kind: input, shape index: {}]
  %s5 = inlined_call_operand.vmem [shape: f32[1,256], index: 5, kind: input, shape index: {}]
  %s6 = inlined_call_operand.hbm [shape: bf16[128,512], index: 6, kind: input, shape index: {}]
  %s7 = inlined_call_operand.vmem [shape: f32[1,512], index: 7, kind: input, shape index: {}]
  %s8 = inlined_call_operand.hbm [shape: bf16[512,1024], index: 8, kind: input, shape index: {}]
  %s9 = inlined_call_operand.vmem [shape: f32[1,1024], index: 9, kind: input, shape index: {}]
  %s10 = inlined_call_operand.hbm [shape: f32[8,1024], index: 10, kind: output, shape index: {0}]
  %s11 = inlined_call_operand.hbm [shape: f32[8,128], index: 11, kind: output, shape index: {1}]
  %s12 = inlined_call_operand.hbm [shape: f32[8,128], index: 12, kind: output, shape index: {2}]
  %13 = xla_tuple %s10, %s11, %s12
  %s14 = sld [smem:[#allocation0]]
  $region86: #{_vae_forward_impl.1} parent=0
    _
  %s16 = ssub.s32 1, %s14
  %s17 = scalar_select 0, %s16, %s14
  $region1: #{_vae_forward_impl.1} parent=0
    #allocation2 [shape = 'u8[32768]{0}', space=vmem, size = 0x8000, scoped, tag = 'input window, operand 0, single buffered']
    #allocation3 [shape = 's32[1]{0}', space=sflag, size = 0x4, scoped, tag = 'scoped memory for _vae_forward_impl.1']
    #allocation4 [shape = 's32[1]{0}', space=sflag, size = 0x4, scoped, tag = 'scoped memory for _vae_forward_impl.1']
    #allocation5 [shape = 'u8[1048576]{0}', space=vmem, size = 0x100000, scoped, tag = 'input window, operand 2, single buffered']
    #allocation6 [shape = 's32[1]{0}', space=sflag, size = 0x4, scoped, tag = 'scoped memory for _vae_forward_impl.1']
    #allocation7 [shape = 'u8[262144]{0}', space=vmem, size = 0x40000, scoped, tag = 'input window, operand 4, single buffered']
    #allocation8 [shape = 'u8[131072]{0}', space=vmem, size = 0x20000, scoped, tag = 'input window, operand 6, single buffered']
    #allocation9 [shape = 's32[1]{0}', space=sflag, size = 0x4, scoped, tag = 'scoped memory for _vae_forward_impl.1']
    #allocation10 [shape = 'u8[1048576]{0}', space=vmem, size = 0x100000, scoped, tag = 'input window, operand 8, single buffered']
    #allocation11 [shape = 'u8[32768]{0}', space=vmem, size = 0x8000, scoped, tag = 'output window, operand 0, single buffered']
    #allocation12 [shape = 'u8[4096]{0}', space=vmem, size = 0x1000, scoped, tag = 'output window, operand 1, single buffered']
    #allocation13 [shape = 's32[1]{0}', space=sflag, size = 0x4, scoped, tag = 'scoped memory for _vae_forward_impl.1']
    #allocation14 [shape = 'u8[4096]{0}', space=vmem, size = 0x1000, scoped, tag = 'output window, operand 2, single buffered']
    %18 = vsyncpa [#allocation3], 0
    %19 = vsyncpa [#allocation6], 0
    %20 = vsyncpa [#allocation9], 0
    %21 = vsyncpa [#allocation4], 0
    %22 = vsyncpa [#allocation13], 0
    // Predicated region
    $region2: #{_vae_forward_impl.1} parent=1 // pred_check
      _
    $region3: #{_vae_forward_impl.1} parent=1 // pred_check_branch
      %24 = sbr.rel (0) target = $region5
    $region4: #{_vae_forward_impl.1} parent=1 // pred_region
      %s26 = ssub.s32 1024, 1024
      %27 = vsyncadd [#allocation3], %s26
      %s29 = sshll.u32 [#allocation2], 4
      %s30 = int_to_ptr.vmem [resolvable:$true] %s29
      %32 = dma.hbm_to_vmem [thread:$0]  %s0, 1024, %s30, [#allocation3]
    $region5: #{_vae_forward_impl.1} parent=1 // pred_fallthru
      _
    // Predicated region
    $region6: #{_vae_forward_impl.1} parent=1 // pred_check
      _
    $region7: #{_vae_forward_impl.1} parent=1 // pred_check_branch
      %34 = sbr.rel (0) target = $region9
    $region8: #{_vae_forward_impl.1} parent=1 // pred_region
      _
    $region9: #{_vae_forward_impl.1} parent=1 // pred_fallthru
      _
    // Predicated region
    $region10: #{_vae_forward_impl.1} parent=1 // pred_check
      _
    $region11: #{_vae_forward_impl.1} parent=1 // pred_check_branch
      %36 = sbr.rel (0) target = $region13
    $region12: #{_vae_forward_impl.1} parent=1 // pred_region
      %s38 = ssub.s32 32768, 32768
      %39 = vsyncadd [#allocation6], %s38
      %s40 = sshll.u32 [#allocation5], 4
      %s41 = int_to_ptr.vmem [resolvable:$true] %s40
      %46 = dma.hbm_to_vmem [thread:$0]  %s2, 32768, %s41, [#allocation6], 256, 256, 16
    $region13: #{_vae_forward_impl.1} parent=1 // pred_fallthru
      _
    // Predicated region
    $region14: #{_vae_forward_impl.1} parent=1 // pred_check
      _
    $region15: #{_vae_forward_impl.1} parent=1 // pred_check_branch
      %48 = sbr.rel (0) target = $region17
    $region16: #{_vae_forward_impl.1} parent=1 // pred_region
      _
    $region17: #{_vae_forward_impl.1} parent=1 // pred_fallthru
      _
    // Predicated region
    $region18: #{_vae_forward_impl.1} parent=1 // pred_check
      _
    $region19: #{_vae_forward_impl.1} parent=1 // pred_check_branch
      %50 = sbr.rel (0) target = $region21
    $region20: #{_vae_forward_impl.1} parent=1 // pred_region
      %s52 = ssub.s32 8192, 8192
      %53 = vsyncadd [#allocation6], %s52
      %s54 = sshll.u32 [#allocation7], 4
      %s55 = int_to_ptr.vmem [resolvable:$true] %s54
      %60 = dma.hbm_to_vmem [thread:$0]  %s4, 8192, %s55, [#allocation6], 128, 128, 8
    $region21: #{_vae_forward_impl.1} parent=1 // pred_fallthru
      _
    // Predicated region
    $region22: #{_vae_forward_impl.1} parent=1 // pred_check
      _
    $region23: #{_vae_forward_impl.1} parent=1 // pred_check_branch
      %62 = sbr.rel (0) target = $region25
    $region24: #{_vae_forward_impl.1} parent=1 // pred_region
      _
    $region25: #{_vae_forward_impl.1} parent=1 // pred_fallthru
      _
    // Predicated region
    $region26: #{_vae_forward_impl.1} parent=1 // pred_check
      _
    $region27: #{_vae_forward_impl.1} parent=1 // pred_check_branch
      %64 = sbr.rel (0) target = $region29
    $region28: #{_vae_forward_impl.1} parent=1 // pred_region
      %s66 = ssub.s32 4096, 4096
      %67 = vsyncadd [#allocation9], %s66
      %s68 = sshll.u32 [#allocation8], 4
      %s69 = int_to_ptr.vmem [resolvable:$true] %s68
      %74 = dma.hbm_to_vmem [thread:$0]  %s6, 4096, %s69, [#allocation9], 256, 256, 16
    $region29: #{_vae_forward_impl.1} parent=1 // pred_fallthru
      _
    // Predicated region
    $region30: #{_vae_forward_impl.1} parent=1 // pred_check
      _
    $region31: #{_vae_forward_impl.1} parent=1 // pred_check_branch
      %76 = sbr.rel (0) target = $region33
    $region32: #{_vae_forward_impl.1} parent=1 // pred_region
      _
    $region33: #{_vae_forward_impl.1} parent=1 // pred_fallthru
      _
    // Predicated region
    $region34: #{_vae_forward_impl.1} parent=1 // pred_check
      _
    $region35: #{_vae_forward_impl.1} parent=1 // pred_check_branch
      %78 = sbr.rel (0) target = $region37
    $region36: #{_vae_forward_impl.1} parent=1 // pred_region
      %s80 = ssub.s32 32768, 32768
      %81 = vsyncadd [#allocation9], %s80
      %s82 = sshll.u32 [#allocation10], 4
      %s83 = int_to_ptr.vmem [resolvable:$true] %s82
      %88 = dma.hbm_to_vmem [thread:$0]  %s8, 32768, %s83, [#allocation9], 512, 512, 32
    $region37: #{_vae_forward_impl.1} parent=1 // pred_fallthru
      _
    // Predicated region
    $region38: #{_vae_forward_impl.1} parent=1 // pred_check
      _
    $region39: #{_vae_forward_impl.1} parent=1 // pred_check_branch
      %90 = sbr.rel (0) target = $region41
    $region40: #{_vae_forward_impl.1} parent=1 // pred_region
      _
    $region41: #{_vae_forward_impl.1} parent=1 // pred_fallthru
      _
    // Predicated region
    $region42: #{_vae_forward_impl.1} parent=1 // pred_check
      _
    $region43: #{_vae_forward_impl.1} parent=1 // pred_check_branch
      %92 = sbr.rel (0) target = $region45
    $region44: #{_vae_forward_impl.1} parent=1 // pred_region
      %93 = dma.done [#allocation3], 1024
    $region45: #{_vae_forward_impl.1} parent=1 // pred_fallthru
      _
    // Predicated region
    $region46: #{_vae_forward_impl.1} parent=1 // pred_check
      _
    $region47: #{_vae_forward_impl.1} parent=1 // pred_check_branch
      %95 = sbr.rel (0) target = $region49
    $region48: #{_vae_forward_impl.1} parent=1 // pred_region
      %96 = dma.done [#allocation6], 32768
    $region49: #{_vae_forward_impl.1} parent=1 // pred_fallthru
      _
    // Predicated region
    $region50: #{_vae_forward_impl.1} parent=1 // pred_check
      _
    $region51: #{_vae_forward_impl.1} parent=1 // pred_check_branch
      %98 = sbr.rel (0) target = $region53
    $region52: #{_vae_forward_impl.1} parent=1 // pred_region
      %99 = dma.done [#allocation6], 8192
    $region53: #{_vae_forward_impl.1} parent=1 // pred_fallthru
      _
    // Predicated region
    $region54: #{_vae_forward_impl.1} parent=1 // pred_check
      _
    $region55: #{_vae_forward_impl.1} parent=1 // pred_check_branch
      %101 = sbr.rel (0) target = $region57
    $region56: #{_vae_forward_impl.1} parent=1 // pred_region
      %102 = dma.done [#allocation9], 4096
    $region57: #{_vae_forward_impl.1} parent=1 // pred_fallthru
      _
    // Predicated region
    $region58: #{_vae_forward_impl.1} parent=1 // pred_check
      _
    $region59: #{_vae_forward_impl.1} parent=1 // pred_check_branch
      %104 = sbr.rel (0) target = $region61
    $region60: #{_vae_forward_impl.1} parent=1 // pred_region
      %105 = dma.done [#allocation9], 32768
    $region61: #{_vae_forward_impl.1} parent=1 // pred_fallthru
      _
    %v107 = vld [vmem:[#allocation2] sm:$0xff]
    %v108 = vld [vmem:[#allocation2 + $0x8] sm:$0xff]
    %v109 = vld [vmem:[#allocation2 + $0x10] sm:$0xff]
    %v110 = vld [vmem:[#allocation2 + $0x18] sm:$0xff]
    %v111 = vld [vmem:[#allocation2 + $0x20] sm:$0xff]
    %v112 = vld [vmem:[#allocation2 + $0x28] sm:$0xff]
    %v113 = vld [vmem:[#allocation2 + $0x30] sm:$0xff]
    %v114 = vld [vmem:[#allocation2 + $0x38] sm:$0xff]
    %v115 = vpack.c.bf16 %v107, %v107
    %v116 = vpack.c.bf16 %v108, %v108
    %v117 = vpack.c.bf16 %v109, %v109
    %v118 = vpack.c.bf16 %v110, %v110
    %v119 = vpack.c.bf16 %v111, %v111
    %v120 = vpack.c.bf16 %v112, %v112
    %v121 = vpack.c.bf16 %v113, %v113
    %v122 = vpack.c.bf16 %v114, %v114
    %v123 = vld [vmem:[#allocation5] sm:$0xff]
    %v124 = vld [vmem:[#allocation5 + $0x8] sm:$0xff]
    %v125 = vld [vmem:[#allocation5 + $0x10] sm:$0xff]
    %v126 = vld [vmem:[#allocation5 + $0x18] sm:$0xff]
    %v127 = vld [vmem:[#allocation5 + $0x20] sm:$0xff]
    %v128 = vld [vmem:[#allocation5 + $0x28] sm:$0xff]
    %v129 = vld [vmem:[#allocation5 + $0x30] sm:$0xff]
    %v130 = vld [vmem:[#allocation5 + $0x38] sm:$0xff]
    %v131 = vld [vmem:[#allocation5 + $0x40] sm:$0xff]
    %v132 = vld [vmem:[#allocation5 + $0x48] sm:$0xff]
    %v133 = vld [vmem:[#allocation5 + $0x50] sm:$0xff]
    %v134 = vld [vmem:[#allocation5 + $0x58] sm:$0xff]
    %v135 = vld [vmem:[#allocation5 + $0x60] sm:$0xff]
    %v136 = vld [vmem:[#allocation5 + $0x68] sm:$0xff]
    %v137 = vld [vmem:[#allocation5 + $0x70] sm:$0xff]
    %v138 = vld [vmem:[#allocation5 + $0x78] sm:$0xff]
    %v139 = vld [vmem:[#allocation5 + $0x80] sm:$0xff]
    %v140 = vld [vmem:[#allocation5 + $0x88] sm:$0xff]
    %v141 = vld [vmem:[#allocation5 + $0x90] sm:$0xff]
    %v142 = vld [vmem:[#allocation5 + $0x98] sm:$0xff]
    %v143 = vld [vmem:[#allocation5 + $0xa0] sm:$0xff]
    %v144 = vld [vmem:[#allocation5 + $0xa8] sm:$0xff]
    %v145 = vld [vmem:[#allocation5 + $0xb0] sm:$0xff]
    %v146 = vld [vmem:[#allocation5 + $0xb8] sm:$0xff]
    %v147 = vld [vmem:[#allocation5 + $0xc0] sm:$0xff]
    %v148 = vld [vmem:[#allocation5 + $0xc8] sm:$0xff]
    %v149 = vld [vmem:[#allocation5 + $0xd0] sm:$0xff]
    %v150 = vld [vmem:[#allocation5 + $0xd8] sm:$0xff]
    %v151 = vld [vmem:[#allocation5 + $0xe0] sm:$0xff]
    %v152 = vld [vmem:[#allocation5 + $0xe8] sm:$0xff]
    %v153 = vld [vmem:[#allocation5 + $0xf0] sm:$0xff]
    %v154 = vld [vmem:[#allocation5 + $0xf8] sm:$0xff]
    %v155 = vld [vmem:[#allocation5 + $0x100] sm:$0xff]
    %v156 = vld [vmem:[#allocation5 + $0x108] sm:$0xff]
    %v157 = vld [vmem:[#allocation5 + $0x110] sm:$0xff]
    %v158 = vld [vmem:[#allocation5 + $0x118] sm:$0xff]
    %v159 = vld [vmem:[#allocation5 + $0x120] sm:$0xff]
    %v160 = vld [vmem:[#allocation5 + $0x128] sm:$0xff]
    %v161 = vld [vmem:[#allocation5 + $0x130] sm:$0xff]
    %v162 = vld [vmem:[#allocation5 + $0x138] sm:$0xff]
    %v163 = vld [vmem:[#allocation5 + $0x140] sm:$0xff]
    %v164 = vld [vmem:[#allocation5 + $0x148] sm:$0xff]
    %v165 = vld [vmem:[#allocation5 + $0x150] sm:$0xff]
    %v166 = vld [vmem:[#allocation5 + $0x158] sm:$0xff]
    %v167 = vld [vmem:[#allocation5 + $0x160] sm:$0xff]
    %v168 = vld [vmem:[#allocation5 + $0x168] sm:$0xff]
    %v169 = vld [vmem:[#allocation5 + $0x170] sm:$0xff]
    %v170 = vld [vmem:[#allocation5 + $0x178] sm:$0xff]
    %v171 = vld [vmem:[#allocation5 + $0x180] sm:$0xff]
    %v172 = vld [vmem:[#allocation5 + $0x188] sm:$0xff]
    %v173 = vld [vmem:[#allocation5 + $0x190] sm:$0xff]
    %v174 = vld [vmem:[#allocation5 + $0x198] sm:$0xff]
    %v175 = vld [vmem:[#allocation5 + $0x1a0] sm:$0xff]
    %v176 = vld [vmem:[#allocation5 + $0x1a8] sm:$0xff]
    %v177 = vld [vmem:[#allocation5 + $0x1b0] sm:$0xff]
    %v178 = vld [vmem:[#allocation5 + $0x1b8] sm:$0xff]
    %v179 = vld [vmem:[#allocation5 + $0x1c0] sm:$0xff]
    %v180 = vld [vmem:[#allocation5 + $0x1c8] sm:$0xff]
    %v181 = vld [vmem:[#allocation5 + $0x1d0] sm:$0xff]
    %v182 = vld [vmem:[#allocation5 + $0x1d8] sm:$0xff]
    %v183 = vld [vmem:[#allocation5 + $0x1e0] sm:$0xff]
    %v184 = vld [vmem:[#allocation5 + $0x1e8] sm:$0xff]
    %v185 = vld [vmem:[#allocation5 + $0x1f0] sm:$0xff]
    %v186 = vld [vmem:[#allocation5 + $0x1f8] sm:$0xff]
    %v187 = vld [vmem:[#allocation5 + $0x200] sm:$0xff]
    %v188 = vld [vmem:[#allocation5 + $0x208] sm:$0xff]
    %v189 = vld [vmem:[#allocation5 + $0x210] sm:$0xff]
    %v190 = vld [vmem:[#allocation5 + $0x218] sm:$0xff]
    %v191 = vld [vmem:[#allocation5 + $0x220] sm:$0xff]
    %v192 = vld [vmem:[#allocation5 + $0x228] sm:$0xff]
    %v193 = vld [vmem:[#allocation5 + $0x230] sm:$0xff]
    %v194 = vld [vmem:[#allocation5 + $0x238] sm:$0xff]
    %v195 = vld [vmem:[#allocation5 + $0x240] sm:$0xff]
    %v196 = vld [vmem:[#allocation5 + $0x248] sm:$0xff]
    %v197 = vld [vmem:[#allocation5 + $0x250] sm:$0xff]
    %v198 = vld [vmem:[#allocation5 + $0x258] sm:$0xff]
    %v199 = vld [vmem:[#allocation5 + $0x260] sm:$0xff]
    %v200 = vld [vmem:[#allocation5 + $0x268] sm:$0xff]
    %v201 = vld [vmem:[#allocation5 + $0x270] sm:$0xff]
    %v202 = vld [vmem:[#allocation5 + $0x278] sm:$0xff]
    %v203 = vld [vmem:[#allocation5 + $0x280] sm:$0xff]
    %v204 = vld [vmem:[#allocation5 + $0x288] sm:$0xff]
    %v205 = vld [vmem:[#allocation5 + $0x290] sm:$0xff]
    %v206 = vld [vmem:[#allocation5 + $0x298] sm:$0xff]
    %v207 = vld [vmem:[#allocation5 + $0x2a0] sm:$0xff]
    %v208 = vld [vmem:[#allocation5 + $0x2a8] sm:$0xff]
    %v209 = vld [vmem:[#allocation5 + $0x2b0] sm:$0xff]
    %v210 = vld [vmem:[#allocation5 + $0x2b8] sm:$0xff]
    %v211 = vld [vmem:[#allocation5 + $0x2c0] sm:$0xff]
    %v212 = vld [vmem:[#allocation5 + $0x2c8] sm:$0xff]
    %v213 = vld [vmem:[#allocation5 + $0x2d0] sm:$0xff]
    %v214 = vld [vmem:[#allocation5 + $0x2d8] sm:$0xff]
    %v215 = vld [vmem:[#allocation5 + $0x2e0] sm:$0xff]
    %v216 = vld [vmem:[#allocation5 + $0x2e8] sm:$0xff]
    %v217 = vld [vmem:[#allocation5 + $0x2f0] sm:$0xff]
    %v218 = vld [vmem:[#allocation5 + $0x2f8] sm:$0xff]
    %v219 = vld [vmem:[#allocation5 + $0x300] sm:$0xff]
    %v220 = vld [vmem:[#allocation5 + $0x308] sm:$0xff]
    %v221 = vld [vmem:[#allocation5 + $0x310] sm:$0xff]
    %v222 = vld [vmem:[#allocation5 + $0x318] sm:$0xff]
    %v223 = vld [vmem:[#allocation5 + $0x320] sm:$0xff]
    %v224 = vld [vmem:[#allocation5 + $0x328] sm:$0xff]
    %v225 = vld [vmem:[#allocation5 + $0x330] sm:$0xff]
    %v226 = vld [vmem:[#allocation5 + $0x338] sm:$0xff]
    %v227 = vld [vmem:[#allocation5 + $0x340] sm:$0xff]
    %v228 = vld [vmem:[#allocation5 + $0x348] sm:$0xff]
    %v229 = vld [vmem:[#allocation5 + $0x350] sm:$0xff]
    %v230 = vld [vmem:[#allocation5 + $0x358] sm:$0xff]
    %v231 = vld [vmem:[#allocation5 + $0x360] sm:$0xff]
    %v232 = vld [vmem:[#allocation5 + $0x368] sm:$0xff]
    %v233 = vld [vmem:[#allocation5 + $0x370] sm:$0xff]
    %v234 = vld [vmem:[#allocation5 + $0x378] sm:$0xff]
    %v235 = vld [vmem:[#allocation5 + $0x380] sm:$0xff]
    %v236 = vld [vmem:[#allocation5 + $0x388] sm:$0xff]
    %v237 = vld [vmem:[#allocation5 + $0x390] sm:$0xff]
    %v238 = vld [vmem:[#allocation5 + $0x398] sm:$0xff]
    %v239 = vld [vmem:[#allocation5 + $0x3a0] sm:$0xff]
    %v240 = vld [vmem:[#allocation5 + $0x3a8] sm:$0xff]
    %v241 = vld [vmem:[#allocation5 + $0x3b0] sm:$0xff]
    %v242 = vld [vmem:[#allocation5 + $0x3b8] sm:$0xff]
    %v243 = vld [vmem:[#allocation5 + $0x3c0] sm:$0xff]
    %v244 = vld [vmem:[#allocation5 + $0x3c8] sm:$0xff]
    %v245 = vld [vmem:[#allocation5 + $0x3d0] sm:$0xff]
    %v246 = vld [vmem:[#allocation5 + $0x3d8] sm:$0xff]
    %v247 = vld [vmem:[#allocation5 + $0x3e0] sm:$0xff]
    %v248 = vld [vmem:[#allocation5 + $0x3e8] sm:$0xff]
    %v249 = vld [vmem:[#allocation5 + $0x3f0] sm:$0xff]
    %v250 = vld [vmem:[#allocation5 + $0x3f8] sm:$0xff]
    %v251 = vld [vmem:[#allocation5 + $0x400] sm:$0xff]
    %v252 = vld [vmem:[#allocation5 + $0x408] sm:$0xff]
    %v253 = vld [vmem:[#allocation5 + $0x410] sm:$0xff]
    %v254 = vld [vmem:[#allocation5 + $0x418] sm:$0xff]
    %v255 = vld [vmem:[#allocation5 + $0x420] sm:$0xff]
    %v256 = vld [vmem:[#allocation5 + $0x428] sm:$0xff]
    %v257 = vld [vmem:[#allocation5 + $0x430] sm:$0xff]
    %v258 = vld [vmem:[#allocation5 + $0x438] sm:$0xff]
    %v259 = vld [vmem:[#allocation5 + $0x440] sm:$0xff]
    %v260 = vld [vmem:[#allocation5 + $0x448] sm:$0xff]
    %v261 = vld [vmem:[#allocation5 + $0x450] sm:$0xff]
    %v262 = vld [vmem:[#allocation5 + $0x458] sm:$0xff]
    %v263 = vld [vmem:[#allocation5 + $0x460] sm:$0xff]
    %v264 = vld [vmem:[#allocation5 + $0x468] sm:$0xff]
    %v265 = vld [vmem:[#allocation5 + $0x470] sm:$0xff]
    %v266 = vld [vmem:[#allocation5 + $0x478] sm:$0xff]
    %v267 = vld [vmem:[#allocation5 + $0x480] sm:$0xff]
    %v268 = vld [vmem:[#allocation5 + $0x488] sm:$0xff]
    %v269 = vld [vmem:[#allocation5 + $0x490] sm:$0xff]
    %v270 = vld [vmem:[#allocation5 + $0x498] sm:$0xff]
    %v271 = vld [vmem:[#allocation5 + $0x4a0] sm:$0xff]
    %v272 = vld [vmem:[#allocation5 + $0x4a8] sm:$0xff]
    %v273 = vld [vmem:[#allocation5 + $0x4b0] sm:$0xff]
    %v274 = vld [vmem:[#allocation5 + $0x4b8] sm:$0xff]
    %v275 = vld [vmem:[#allocation5 + $0x4c0] sm:$0xff]
    %v276 = vld [vmem:[#allocation5 + $0x4c8] sm:$0xff]
    %v277 = vld [vmem:[#allocation5 + $0x4d0] sm:$0xff]
    %v278 = vld [vmem:[#allocation5 + $0x4d8] sm:$0xff]
    %v279 = vld [vmem:[#allocation5 + $0x4e0] sm:$0xff]
    %v280 = vld [vmem:[#allocation5 + $0x4e8] sm:$0xff]
    %v281 = vld [vmem:[#allocation5 + $0x4f0] sm:$0xff]
    %v282 = vld [vmem:[#allocation5 + $0x4f8] sm:$0xff]
    %v283 = vld [vmem:[#allocation5 + $0x500] sm:$0xff]
    %v284 = vld [vmem:[#allocation5 + $0x508] sm:$0xff]
    %v285 = vld [vmem:[#allocation5 + $0x510] sm:$0xff]
    %v286 = vld [vmem:[#allocation5 + $0x518] sm:$0xff]
    %v287 = vld [vmem:[#allocation5 + $0x520] sm:$0xff]
    %v288 = vld [vmem:[#allocation5 + $0x528] sm:$0xff]
    %v289 = vld [vmem:[#allocation5 + $0x530] sm:$0xff]
    %v290 = vld [vmem:[#allocation5 + $0x538] sm:$0xff]
    %v291 = vld [vmem:[#allocation5 + $0x540] sm:$0xff]
    %v292 = vld [vmem:[#allocation5 + $0x548] sm:$0xff]
    %v293 = vld [vmem:[#allocation5 + $0x550] sm:$0xff]
    %v294 = vld [vmem:[#allocation5 + $0x558] sm:$0xff]
    %v295 = vld [vmem:[#allocation5 + $0x560] sm:$0xff]
    %v296 = vld [vmem:[#allocation5 + $0x568] sm:$0xff]
    %v297 = vld [vmem:[#allocation5 + $0x570] sm:$0xff]
    %v298 = vld [vmem:[#allocation5 + $0x578] sm:$0xff]
    %v299 = vld [vmem:[#allocation5 + $0x580] sm:$0xff]
    %v300 = vld [vmem:[#allocation5 + $0x588] sm:$0xff]
    %v301 = vld [vmem:[#allocation5 + $0x590] sm:$0xff]
    %v302 = vld [vmem:[#allocation5 + $0x598] sm:$0xff]
    %v303 = vld [vmem:[#allocation5 + $0x5a0] sm:$0xff]
    %v304 = vld [vmem:[#allocation5 + $0x5a8] sm:$0xff]
    %v305 = vld [vmem:[#allocation5 + $0x5b0] sm:$0xff]
    %v306 = vld [vmem:[#allocation5 + $0x5b8] sm:$0xff]
    %v307 = vld [vmem:[#allocation5 + $0x5c0] sm:$0xff]
    %v308 = vld [vmem:[#allocation5 + $0x5c8] sm:$0xff]
    %v309 = vld [vmem:[#allocation5 + $0x5d0] sm:$0xff]
    %v310 = vld [vmem:[#allocation5 + $0x5d8] sm:$0xff]
    %v311 = vld [vmem:[#allocation5 + $0x5e0] sm:$0xff]
    %v312 = vld [vmem:[#allocation5 + $0x5e8] sm:$0xff]
    %v313 = vld [vmem:[#allocation5 + $0x5f0] sm:$0xff]
    %v314 = vld [vmem:[#allocation5 + $0x5f8] sm:$0xff]
    %v315 = vld [vmem:[#allocation5 + $0x600] sm:$0xff]
    %v316 = vld [vmem:[#allocation5 + $0x608] sm:$0xff]
    %v317 = vld [vmem:[#allocation5 + $0x610] sm:$0xff]
    %v318 = vld [vmem:[#allocation5 + $0x618] sm:$0xff]
    %v319 = vld [vmem:[#allocation5 + $0x620] sm:$0xff]
    %v320 = vld [vmem:[#allocation5 + $0x628] sm:$0xff]
    %v321 = vld [vmem:[#allocation5 + $0x630] sm:$0xff]
    %v322 = vld [vmem:[#allocation5 + $0x638] sm:$0xff]
    %v323 = vld [vmem:[#allocation5 + $0x640] sm:$0xff]
    %v324 = vld [vmem:[#allocation5 + $0x648] sm:$0xff]
    %v325 = vld [vmem:[#allocation5 + $0x650] sm:$0xff]
    %v326 = vld [vmem:[#allocation5 + $0x658] sm:$0xff]
    %v327 = vld [vmem:[#allocation5 + $0x660] sm:$0xff]
    %v328 = vld [vmem:[#allocation5 + $0x668] sm:$0xff]
    %v329 = vld [vmem:[#allocation5 + $0x670] sm:$0xff]
    %v330 = vld [vmem:[#allocation5 + $0x678] sm:$0xff]
    %v331 = vld [vmem:[#allocation5 + $0x680] sm:$0xff]
    %v332 = vld [vmem:[#allocation5 + $0x688] sm:$0xff]
    %v333 = vld [vmem:[#allocation5 + $0x690] sm:$0xff]
    %v334 = vld [vmem:[#allocation5 + $0x698] sm:$0xff]
    %v335 = vld [vmem:[#allocation5 + $0x6a0] sm:$0xff]
    %v336 = vld [vmem:[#allocation5 + $0x6a8] sm:$0xff]
    %v337 = vld [vmem:[#allocation5 + $0x6b0] sm:$0xff]
    %v338 = vld [vmem:[#allocation5 + $0x6b8] sm:$0xff]
    %v339 = vld [vmem:[#allocation5 + $0x6c0] sm:$0xff]
    %v340 = vld [vmem:[#allocation5 + $0x6c8] sm:$0xff]
    %v341 = vld [vmem:[#allocation5 + $0x6d0] sm:$0xff]
    %v342 = vld [vmem:[#allocation5 + $0x6d8] sm:$0xff]
    %v343 = vld [vmem:[#allocation5 + $0x6e0] sm:$0xff]
    %v344 = vld [vmem:[#allocation5 + $0x6e8] sm:$0xff]
    %v345 = vld [vmem:[#allocation5 + $0x6f0] sm:$0xff]
    %v346 = vld [vmem:[#allocation5 + $0x6f8] sm:$0xff]
    %v347 = vld [vmem:[#allocation5 + $0x700] sm:$0xff]
    %v348 = vld [vmem:[#allocation5 + $0x708] sm:$0xff]
    %v349 = vld [vmem:[#allocation5 + $0x710] sm:$0xff]
    %v350 = vld [vmem:[#allocation5 + $0x718] sm:$0xff]
    %v351 = vld [vmem:[#allocation5 + $0x720] sm:$0xff]
    %v352 = vld [vmem:[#allocation5 + $0x728] sm:$0xff]
    %v353 = vld [vmem:[#allocation5 + $0x730] sm:$0xff]
    %v354 = vld [vmem:[#allocation5 + $0x738] sm:$0xff]
    %v355 = vld [vmem:[#allocation5 + $0x740] sm:$0xff]
    %v356 = vld [vmem:[#allocation5 + $0x748] sm:$0xff]
    %v357 = vld [vmem:[#allocation5 + $0x750] sm:$0xff]
    %v358 = vld [vmem:[#allocation5 + $0x758] sm:$0xff]
    %v359 = vld [vmem:[#allocation5 + $0x760] sm:$0xff]
    %v360 = vld [vmem:[#allocation5 + $0x768] sm:$0xff]
    %v361 = vld [vmem:[#allocation5 + $0x770] sm:$0xff]
    %v362 = vld [vmem:[#allocation5 + $0x778] sm:$0xff]
    %v363 = vld [vmem:[#allocation5 + $0x780] sm:$0xff]
    %v364 = vld [vmem:[#allocation5 + $0x788] sm:$0xff]
    %v365 = vld [vmem:[#allocation5 + $0x790] sm:$0xff]
    %v366 = vld [vmem:[#allocation5 + $0x798] sm:$0xff]
    %v367 = vld [vmem:[#allocation5 + $0x7a0] sm:$0xff]
    %v368 = vld [vmem:[#allocation5 + $0x7a8] sm:$0xff]
    %v369 = vld [vmem:[#allocation5 + $0x7b0] sm:$0xff]
    %v370 = vld [vmem:[#allocation5 + $0x7b8] sm:$0xff]
    %v371 = vld [vmem:[#allocation5 + $0x7c0] sm:$0xff]
    %v372 = vld [vmem:[#allocation5 + $0x7c8] sm:$0xff]
    %v373 = vld [vmem:[#allocation5 + $0x7d0] sm:$0xff]
    %v374 = vld [vmem:[#allocation5 + $0x7d8] sm:$0xff]
    %v375 = vld [vmem:[#allocation5 + $0x7e0] sm:$0xff]
    %v376 = vld [vmem:[#allocation5 + $0x7e8] sm:$0xff]
    %v377 = vld [vmem:[#allocation5 + $0x7f0] sm:$0xff]
    %v378 = vld [vmem:[#allocation5 + $0x7f8] sm:$0xff]
    %v379 = vld [vmem:[%s3] sm:$0xf]
    %v381 = vlaneseq
    %v382 = vshrl.u32 %v381, 7
    %v383 = vsub.s32 0, %v382
    %v384 = vrot.slane %v379, %v383
    %v385 = vlaneseq
    %v386 = vshrl.u32 %v385, 7
    %v387 = vsub.s32 1, %v386
    %v388 = vrot.slane %v379, %v387
    %v389 = vlaneseq
    %v390 = vshrl.u32 %v389, 7
    %v391 = vsub.s32 2, %v390
    %v392 = vrot.slane %v379, %v391
    %v393 = vlaneseq
    %v394 = vshrl.u32 %v393, 7
    %v395 = vsub.s32 3, %v394
    %v396 = vrot.slane %v379, %v395
    %v657 = vunpack.c.l.b16 %v123
    %v658 = vunpack.c.h.b16 %v123
    %v659 = vunpack.c.l.b16 %v124
    %v660 = vunpack.c.h.b16 %v124
    %v661 = vunpack.c.l.b16 %v125
    %v662 = vunpack.c.h.b16 %v125
    %v663 = vunpack.c.l.b16 %v126
    %v664 = vunpack.c.h.b16 %v126
    %v665 = vunpack.c.l.b16 %v127
    %v666 = vunpack.c.h.b16 %v127
    %v667 = vunpack.c.l.b16 %v128
    %v668 = vunpack.c.h.b16 %v128
    %v669 = vunpack.c.l.b16 %v129
    %v670 = vunpack.c.h.b16 %v129
    %v671 = vunpack.c.l.b16 %v130
    %v672 = vunpack.c.h.b16 %v130
    %v673 = vunpack.c.l.b16 %v131
    %v674 = vunpack.c.h.b16 %v131
    %v675 = vunpack.c.l.b16 %v132
    %v676 = vunpack.c.h.b16 %v132
    %v677 = vunpack.c.l.b16 %v133
    %v678 = vunpack.c.h.b16 %v133
    %v679 = vunpack.c.l.b16 %v134
    %v680 = vunpack.c.h.b16 %v134
    %v681 = vunpack.c.l.b16 %v135
    %v682 = vunpack.c.h.b16 %v135
    %v683 = vunpack.c.l.b16 %v136
    %v684 = vunpack.c.h.b16 %v136
    %v685 = vunpack.c.l.b16 %v137
    %v686 = vunpack.c.h.b16 %v137
    %v687 = vunpack.c.l.b16 %v138
    %v688 = vunpack.c.h.b16 %v138
    %v689 = vunpack.c.l.b16 %v139
    %v690 = vunpack.c.h.b16 %v139
    %v691 = vunpack.c.l.b16 %v140
    %v692 = vunpack.c.h.b16 %v140
    %v693 = vunpack.c.l.b16 %v141
    %v694 = vunpack.c.h.b16 %v141
    %v695 = vunpack.c.l.b16 %v142
    %v696 = vunpack.c.h.b16 %v142
    %v697 = vunpack.c.l.b16 %v143
    %v698 = vunpack.c.h.b16 %v143
    %v699 = vunpack.c.l.b16 %v144
    %v700 = vunpack.c.h.b16 %v144
    %v701 = vunpack.c.l.b16 %v145
    %v702 = vunpack.c.h.b16 %v145
    %v703 = vunpack.c.l.b16 %v146
    %v704 = vunpack.c.h.b16 %v146
    %v705 = vunpack.c.l.b16 %v147
    %v706 = vunpack.c.h.b16 %v147
    %v707 = vunpack.c.l.b16 %v148
    %v708 = vunpack.c.h.b16 %v148
    %v709 = vunpack.c.l.b16 %v149
    %v710 = vunpack.c.h.b16 %v149
    %v711 = vunpack.c.l.b16 %v150
    %v712 = vunpack.c.h.b16 %v150
    %v713 = vunpack.c.l.b16 %v151
    %v714 = vunpack.c.h.b16 %v151
    %v715 = vunpack.c.l.b16 %v152
    %v716 = vunpack.c.h.b16 %v152
    %v717 = vunpack.c.l.b16 %v153
    %v718 = vunpack.c.h.b16 %v153
    %v719 = vunpack.c.l.b16 %v154
    %v720 = vunpack.c.h.b16 %v154
    %v721 = vunpack.c.l.b16 %v155
    %v722 = vunpack.c.h.b16 %v155
    %v723 = vunpack.c.l.b16 %v156
    %v724 = vunpack.c.h.b16 %v156
    %v725 = vunpack.c.l.b16 %v157
    %v726 = vunpack.c.h.b16 %v157
    %v727 = vunpack.c.l.b16 %v158
    %v728 = vunpack.c.h.b16 %v158
    %v729 = vunpack.c.l.b16 %v159
    %v730 = vunpack.c.h.b16 %v159
    %v731 = vunpack.c.l.b16 %v160
    %v732 = vunpack.c.h.b16 %v160
    %v733 = vunpack.c.l.b16 %v161
    %v734 = vunpack.c.h.b16 %v161
    %v735 = vunpack.c.l.b16 %v162
    %v736 = vunpack.c.h.b16 %v162
    %v737 = vunpack.c.l.b16 %v163
    %v738 = vunpack.c.h.b16 %v163
    %v739 = vunpack.c.l.b16 %v164
    %v740 = vunpack.c.h.b16 %v164
    %v741 = vunpack.c.l.b16 %v165
    %v742 = vunpack.c.h.b16 %v165
    %v743 = vunpack.c.l.b16 %v166
    %v744 = vunpack.c.h.b16 %v166
    %v745 = vunpack.c.l.b16 %v167
    %v746 = vunpack.c.h.b16 %v167
    %v747 = vunpack.c.l.b16 %v168
    %v748 = vunpack.c.h.b16 %v168
    %v749 = vunpack.c.l.b16 %v169
    %v750 = vunpack.c.h.b16 %v169
    %v751 = vunpack.c.l.b16 %v170
    %v752 = vunpack.c.h.b16 %v170
    %v753 = vunpack.c.l.b16 %v171
    %v754 = vunpack.c.h.b16 %v171
    %v755 = vunpack.c.l.b16 %v172
    %v756 = vunpack.c.h.b16 %v172
    %v757 = vunpack.c.l.b16 %v173
    %v758 = vunpack.c.h.b16 %v173
    %v759 = vunpack.c.l.b16 %v174
    %v760 = vunpack.c.h.b16 %v174
    %v761 = vunpack.c.l.b16 %v175
    %v762 = vunpack.c.h.b16 %v175
    %v763 = vunpack.c.l.b16 %v176
    %v764 = vunpack.c.h.b16 %v176
    %v765 = vunpack.c.l.b16 %v177
    %v766 = vunpack.c.h.b16 %v177
    %v767 = vunpack.c.l.b16 %v178
    %v768 = vunpack.c.h.b16 %v178
    %v769 = vunpack.c.l.b16 %v179
    %v770 = vunpack.c.h.b16 %v179
    %v771 = vunpack.c.l.b16 %v180
    %v772 = vunpack.c.h.b16 %v180
    %v773 = vunpack.c.l.b16 %v181
    %v774 = vunpack.c.h.b16 %v181
    %v775 = vunpack.c.l.b16 %v182
    %v776 = vunpack.c.h.b16 %v182
    %v777 = vunpack.c.l.b16 %v183
    %v778 = vunpack.c.h.b16 %v183
    %v779 = vunpack.c.l.b16 %v184
    %v780 = vunpack.c.h.b16 %v184
    %v781 = vunpack.c.l.b16 %v185
    %v782 = vunpack.c.h.b16 %v185
    %v783 = vunpack.c.l.b16 %v186
    %v784 = vunpack.c.h.b16 %v186
    %v785 = vunpack.c.l.b16 %v187
    %v786 = vunpack.c.h.b16 %v187
    %v787 = vunpack.c.l.b16 %v188
    %v788 = vunpack.c.h.b16 %v188
    %v789 = vunpack.c.l.b16 %v189
    %v790 = vunpack.c.h.b16 %v189
    %v791 = vunpack.c.l.b16 %v190
    %v792 = vunpack.c.h.b16 %v190
    %v793 = vunpack.c.l.b16 %v191
    %v794 = vunpack.c.h.b16 %v191
    %v795 = vunpack.c.l.b16 %v192
    %v796 = vunpack.c.h.b16 %v192
    %v797 = vunpack.c.l.b16 %v193
    %v798 = vunpack.c.h.b16 %v193
    %v799 = vunpack.c.l.b16 %v194
    %v800 = vunpack.c.h.b16 %v194
    %v801 = vunpack.c.l.b16 %v195
    %v802 = vunpack.c.h.b16 %v195
    %v803 = vunpack.c.l.b16 %v196
    %v804 = vunpack.c.h.b16 %v196
    %v805 = vunpack.c.l.b16 %v197
    %v806 = vunpack.c.h.b16 %v197
    %v807 = vunpack.c.l.b16 %v198
    %v808 = vunpack.c.h.b16 %v198
    %v809 = vunpack.c.l.b16 %v199
    %v810 = vunpack.c.h.b16 %v199
    %v811 = vunpack.c.l.b16 %v200
    %v812 = vunpack.c.h.b16 %v200
    %v813 = vunpack.c.l.b16 %v201
    %v814 = vunpack.c.h.b16 %v201
    %v815 = vunpack.c.l.b16 %v202
    %v816 = vunpack.c.h.b16 %v202
    %v817 = vunpack.c.l.b16 %v203
    %v818 = vunpack.c.h.b16 %v203
    %v819 = vunpack.c.l.b16 %v204
    %v820 = vunpack.c.h.b16 %v204
    %v821 = vunpack.c.l.b16 %v205
    %v822 = vunpack.c.h.b16 %v205
    %v823 = vunpack.c.l.b16 %v206
    %v824 = vunpack.c.h.b16 %v206
    %v825 = vunpack.c.l.b16 %v207
    %v826 = vunpack.c.h.b16 %v207
    %v827 = vunpack.c.l.b16 %v208
    %v828 = vunpack.c.h.b16 %v208
    %v829 = vunpack.c.l.b16 %v209
    %v830 = vunpack.c.h.b16 %v209
    %v831 = vunpack.c.l.b16 %v210
    %v832 = vunpack.c.h.b16 %v210
    %v833 = vunpack.c.l.b16 %v211
    %v834 = vunpack.c.h.b16 %v211
    %v835 = vunpack.c.l.b16 %v212
    %v836 = vunpack.c.h.b16 %v212
    %v837 = vunpack.c.l.b16 %v213
    %v838 = vunpack.c.h.b16 %v213
    %v839 = vunpack.c.l.b16 %v214
    %v840 = vunpack.c.h.b16 %v214
    %v841 = vunpack.c.l.b16 %v215
    %v842 = vunpack.c.h.b16 %v215
    %v843 = vunpack.c.l.b16 %v216
    %v844 = vunpack.c.h.b16 %v216
    %v845 = vunpack.c.l.b16 %v217
    %v846 = vunpack.c.h.b16 %v217
    %v847 = vunpack.c.l.b16 %v218
    %v848 = vunpack.c.h.b16 %v218
    %v849 = vunpack.c.l.b16 %v219
    %v850 = vunpack.c.h.b16 %v219
    %v851 = vunpack.c.l.b16 %v220
    %v852 = vunpack.c.h.b16 %v220
    %v853 = vunpack.c.l.b16 %v221
    %v854 = vunpack.c.h.b16 %v221
    %v855 = vunpack.c.l.b16 %v222
    %v856 = vunpack.c.h.b16 %v222
    %v857 = vunpack.c.l.b16 %v223
    %v858 = vunpack.c.h.b16 %v223
    %v859 = vunpack.c.l.b16 %v224
    %v860 = vunpack.c.h.b16 %v224
    %v861 = vunpack.c.l.b16 %v225
    %v862 = vunpack.c.h.b16 %v225
    %v863 = vunpack.c.l.b16 %v226
    %v864 = vunpack.c.h.b16 %v226
    %v865 = vunpack.c.l.b16 %v227
    %v866 = vunpack.c.h.b16 %v227
    %v867 = vunpack.c.l.b16 %v228
    %v868 = vunpack.c.h.b16 %v228
    %v869 = vunpack.c.l.b16 %v229
    %v870 = vunpack.c.h.b16 %v229
    %v871 = vunpack.c.l.b16 %v230
    %v872 = vunpack.c.h.b16 %v230
    %v873 = vunpack.c.l.b16 %v231
    %v874 = vunpack.c.h.b16 %v231
    %v875 = vunpack.c.l.b16 %v232
    %v876 = vunpack.c.h.b16 %v232
    %v877 = vunpack.c.l.b16 %v233
    %v878 = vunpack.c.h.b16 %v233
    %v879 = vunpack.c.l.b16 %v234
    %v880 = vunpack.c.h.b16 %v234
    %v881 = vunpack.c.l.b16 %v235
    %v882 = vunpack.c.h.b16 %v235
    %v883 = vunpack.c.l.b16 %v236
    %v884 = vunpack.c.h.b16 %v236
    %v885 = vunpack.c.l.b16 %v237
    %v886 = vunpack.c.h.b16 %v237
    %v887 = vunpack.c.l.b16 %v238
    %v888 = vunpack.c.h.b16 %v238
    %v889 = vunpack.c.l.b16 %v239
    %v890 = vunpack.c.h.b16 %v239
    %v891 = vunpack.c.l.b16 %v240
    %v892 = vunpack.c.h.b16 %v240
    %v893 = vunpack.c.l.b16 %v241
    %v894 = vunpack.c.h.b16 %v241
    %v895 = vunpack.c.l.b16 %v242
    %v896 = vunpack.c.h.b16 %v242
    %v897 = vunpack.c.l.b16 %v243
    %v898 = vunpack.c.h.b16 %v243
    %v899 = vunpack.c.l.b16 %v244
    %v900 = vunpack.c.h.b16 %v244
    %v901 = vunpack.c.l.b16 %v245
    %v902 = vunpack.c.h.b16 %v245
    %v903 = vunpack.c.l.b16 %v246
    %v904 = vunpack.c.h.b16 %v246
    %v905 = vunpack.c.l.b16 %v247
    %v906 = vunpack.c.h.b16 %v247
    %v907 = vunpack.c.l.b16 %v248
    %v908 = vunpack.c.h.b16 %v248
    %v909 = vunpack.c.l.b16 %v249
    %v910 = vunpack.c.h.b16 %v249
    %v911 = vunpack.c.l.b16 %v250
    %v912 = vunpack.c.h.b16 %v250
    %v913 = vunpack.c.l.b16 %v251
    %v914 = vunpack.c.h.b16 %v251
    %v915 = vunpack.c.l.b16 %v252
    %v916 = vunpack.c.h.b16 %v252
    %v917 = vunpack.c.l.b16 %v253
    %v918 = vunpack.c.h.b16 %v253
    %v919 = vunpack.c.l.b16 %v254
    %v920 = vunpack.c.h.b16 %v254
    %v921 = vunpack.c.l.b16 %v255
    %v922 = vunpack.c.h.b16 %v255
    %v923 = vunpack.c.l.b16 %v256
    %v924 = vunpack.c.h.b16 %v256
    %v925 = vunpack.c.l.b16 %v257
    %v926 = vunpack.c.h.b16 %v257
    %v927 = vunpack.c.l.b16 %v258
    %v928 = vunpack.c.h.b16 %v258
    %v929 = vunpack.c.l.b16 %v259
    %v930 = vunpack.c.h.b16 %v259
    %v931 = vunpack.c.l.b16 %v260
    %v932 = vunpack.c.h.b16 %v260
    %v933 = vunpack.c.l.b16 %v261
    %v934 = vunpack.c.h.b16 %v261
    %v935 = vunpack.c.l.b16 %v262
    %v936 = vunpack.c.h.b16 %v262
    %v937 = vunpack.c.l.b16 %v263
    %v938 = vunpack.c.h.b16 %v263
    %v939 = vunpack.c.l.b16 %v264
    %v940 = vunpack.c.h.b16 %v264
    %v941 = vunpack.c.l.b16 %v265
    %v942 = vunpack.c.h.b16 %v265
    %v943 = vunpack.c.l.b16 %v266
    %v944 = vunpack.c.h.b16 %v266
    %v945 = vunpack.c.l.b16 %v267
    %v946 = vunpack.c.h.b16 %v267
    %v947 = vunpack.c.l.b16 %v268
    %v948 = vunpack.c.h.b16 %v268
    %v949 = vunpack.c.l.b16 %v269
    %v950 = vunpack.c.h.b16 %v269
    %v951 = vunpack.c.l.b16 %v270
    %v952 = vunpack.c.h.b16 %v270
    %v953 = vunpack.c.l.b16 %v271
    %v954 = vunpack.c.h.b16 %v271
    %v955 = vunpack.c.l.b16 %v272
    %v956 = vunpack.c.h.b16 %v272
    %v957 = vunpack.c.l.b16 %v273
    %v958 = vunpack.c.h.b16 %v273
    %v959 = vunpack.c.l.b16 %v274
    %v960 = vunpack.c.h.b16 %v274
    %v961 = vunpack.c.l.b16 %v275
    %v962 = vunpack.c.h.b16 %v275
    %v963 = vunpack.c.l.b16 %v276
    %v964 = vunpack.c.h.b16 %v276
    %v965 = vunpack.c.l.b16 %v277
    %v966 = vunpack.c.h.b16 %v277
    %v967 = vunpack.c.l.b16 %v278
    %v968 = vunpack.c.h.b16 %v278
    %v969 = vunpack.c.l.b16 %v279
    %v970 = vunpack.c.h.b16 %v279
    %v971 = vunpack.c.l.b16 %v280
    %v972 = vunpack.c.h.b16 %v280
    %v973 = vunpack.c.l.b16 %v281
    %v974 = vunpack.c.h.b16 %v281
    %v975 = vunpack.c.l.b16 %v282
    %v976 = vunpack.c.h.b16 %v282
    %v977 = vunpack.c.l.b16 %v283
    %v978 = vunpack.c.h.b16 %v283
    %v979 = vunpack.c.l.b16 %v284
    %v980 = vunpack.c.h.b16 %v284
    %v981 = vunpack.c.l.b16 %v285
    %v982 = vunpack.c.h.b16 %v285
    %v983 = vunpack.c.l.b16 %v286
    %v984 = vunpack.c.h.b16 %v286
    %v985 = vunpack.c.l.b16 %v287
    %v986 = vunpack.c.h.b16 %v287
    %v987 = vunpack.c.l.b16 %v288
    %v988 = vunpack.c.h.b16 %v288
    %v989 = vunpack.c.l.b16 %v289
    %v990 = vunpack.c.h.b16 %v289
    %v991 = vunpack.c.l.b16 %v290
    %v992 = vunpack.c.h.b16 %v290
    %v993 = vunpack.c.l.b16 %v291
    %v994 = vunpack.c.h.b16 %v291
    %v995 = vunpack.c.l.b16 %v292
    %v996 = vunpack.c.h.b16 %v292
    %v997 = vunpack.c.l.b16 %v293
    %v998 = vunpack.c.h.b16 %v293
    %v999 = vunpack.c.l.b16 %v294
    %v1000 = vunpack.c.h.b16 %v294
    %v1001 = vunpack.c.l.b16 %v295
    %v1002 = vunpack.c.h.b16 %v295
    %v1003 = vunpack.c.l.b16 %v296
    %v1004 = vunpack.c.h.b16 %v296
    %v1005 = vunpack.c.l.b16 %v297
    %v1006 = vunpack.c.h.b16 %v297
    %v1007 = vunpack.c.l.b16 %v298
    %v1008 = vunpack.c.h.b16 %v298
    %v1009 = vunpack.c.l.b16 %v299
    %v1010 = vunpack.c.h.b16 %v299
    %v1011 = vunpack.c.l.b16 %v300
    %v1012 = vunpack.c.h.b16 %v300
    %v1013 = vunpack.c.l.b16 %v301
    %v1014 = vunpack.c.h.b16 %v301
    %v1015 = vunpack.c.l.b16 %v302
    %v1016 = vunpack.c.h.b16 %v302
    %v1017 = vunpack.c.l.b16 %v303
    %v1018 = vunpack.c.h.b16 %v303
    %v1019 = vunpack.c.l.b16 %v304
    %v1020 = vunpack.c.h.b16 %v304
    %v1021 = vunpack.c.l.b16 %v305
    %v1022 = vunpack.c.h.b16 %v305
    %v1023 = vunpack.c.l.b16 %v306
    %v1024 = vunpack.c.h.b16 %v306
    %v1025 = vunpack.c.l.b16 %v307
    %v1026 = vunpack.c.h.b16 %v307
    %v1027 = vunpack.c.l.b16 %v308
    %v1028 = vunpack.c.h.b16 %v308
    %v1029 = vunpack.c.l.b16 %v309
    %v1030 = vunpack.c.h.b16 %v309
    %v1031 = vunpack.c.l.b16 %v310
    %v1032 = vunpack.c.h.b16 %v310
    %v1033 = vunpack.c.l.b16 %v311
    %v1034 = vunpack.c.h.b16 %v311
    %v1035 = vunpack.c.l.b16 %v312
    %v1036 = vunpack.c.h.b16 %v312
    %v1037 = vunpack.c.l.b16 %v313
    %v1038 = vunpack.c.h.b16 %v313
    %v1039 = vunpack.c.l.b16 %v314
    %v1040 = vunpack.c.h.b16 %v314
    %v1041 = vunpack.c.l.b16 %v315
    %v1042 = vunpack.c.h.b16 %v315
    %v1043 = vunpack.c.l.b16 %v316
    %v1044 = vunpack.c.h.b16 %v316
    %v1045 = vunpack.c.l.b16 %v317
    %v1046 = vunpack.c.h.b16 %v317
    %v1047 = vunpack.c.l.b16 %v318
    %v1048 = vunpack.c.h.b16 %v318
    %v1049 = vunpack.c.l.b16 %v319
    %v1050 = vunpack.c.h.b16 %v319
    %v1051 = vunpack.c.l.b16 %v320
    %v1052 = vunpack.c.h.b16 %v320
    %v1053 = vunpack.c.l.b16 %v321
    %v1054 = vunpack.c.h.b16 %v321
    %v1055 = vunpack.c.l.b16 %v322
    %v1056 = vunpack.c.h.b16 %v322
    %v1057 = vunpack.c.l.b16 %v323
    %v1058 = vunpack.c.h.b16 %v323
    %v1059 = vunpack.c.l.b16 %v324
    %v1060 = vunpack.c.h.b16 %v324
    %v1061 = vunpack.c.l.b16 %v325
    %v1062 = vunpack.c.h.b16 %v325
    %v1063 = vunpack.c.l.b16 %v326
    %v1064 = vunpack.c.h.b16 %v326
    %v1065 = vunpack.c.l.b16 %v327
    %v1066 = vunpack.c.h.b16 %v327
    %v1067 = vunpack.c.l.b16 %v328
    %v1068 = vunpack.c.h.b16 %v328
    %v1069 = vunpack.c.l.b16 %v329
    %v1070 = vunpack.c.h.b16 %v329
    %v1071 = vunpack.c.l.b16 %v330
    %v1072 = vunpack.c.h.b16 %v330
    %v1073 = vunpack.c.l.b16 %v331
    %v1074 = vunpack.c.h.b16 %v331
    %v1075 = vunpack.c.l.b16 %v332
    %v1076 = vunpack.c.h.b16 %v332
    %v1077 = vunpack.c.l.b16 %v333
    %v1078 = vunpack.c.h.b16 %v333
    %v1079 = vunpack.c.l.b16 %v334
    %v1080 = vunpack.c.h.b16 %v334
    %v1081 = vunpack.c.l.b16 %v335
    %v1082 = vunpack.c.h.b16 %v335
    %v1083 = vunpack.c.l.b16 %v336
    %v1084 = vunpack.c.h.b16 %v336
    %v1085 = vunpack.c.l.b16 %v337
    %v1086 = vunpack.c.h.b16 %v337
    %v1087 = vunpack.c.l.b16 %v338
    %v1088 = vunpack.c.h.b16 %v338
    %v1089 = vunpack.c.l.b16 %v339
    %v1090 = vunpack.c.h.b16 %v339
    %v1091 = vunpack.c.l.b16 %v340
    %v1092 = vunpack.c.h.b16 %v340
    %v1093 = vunpack.c.l.b16 %v341
    %v1094 = vunpack.c.h.b16 %v341
    %v1095 = vunpack.c.l.b16 %v342
    %v1096 = vunpack.c.h.b16 %v342
    %v1097 = vunpack.c.l.b16 %v343
    %v1098 = vunpack.c.h.b16 %v343
    %v1099 = vunpack.c.l.b16 %v344
    %v1100 = vunpack.c.h.b16 %v344
    %v1101 = vunpack.c.l.b16 %v345
    %v1102 = vunpack.c.h.b16 %v345
    %v1103 = vunpack.c.l.b16 %v346
    %v1104 = vunpack.c.h.b16 %v346
    %v1105 = vunpack.c.l.b16 %v347
    %v1106 = vunpack.c.h.b16 %v347
    %v1107 = vunpack.c.l.b16 %v348
    %v1108 = vunpack.c.h.b16 %v348
    %v1109 = vunpack.c.l.b16 %v349
    %v1110 = vunpack.c.h.b16 %v349
    %v1111 = vunpack.c.l.b16 %v350
    %v1112 = vunpack.c.h.b16 %v350
    %v1113 = vunpack.c.l.b16 %v351
    %v1114 = vunpack.c.h.b16 %v351
    %v1115 = vunpack.c.l.b16 %v352
    %v1116 = vunpack.c.h.b16 %v352
    %v1117 = vunpack.c.l.b16 %v353
    %v1118 = vunpack.c.h.b16 %v353
    %v1119 = vunpack.c.l.b16 %v354
    %v1120 = vunpack.c.h.b16 %v354
    %v1121 = vunpack.c.l.b16 %v355
    %v1122 = vunpack.c.h.b16 %v355
    %v1123 = vunpack.c.l.b16 %v356
    %v1124 = vunpack.c.h.b16 %v356
    %v1125 = vunpack.c.l.b16 %v357
    %v1126 = vunpack.c.h.b16 %v357
    %v1127 = vunpack.c.l.b16 %v358
    %v1128 = vunpack.c.h.b16 %v358
    %v1129 = vunpack.c.l.b16 %v359
    %v1130 = vunpack.c.h.b16 %v359
    %v1131 = vunpack.c.l.b16 %v360
    %v1132 = vunpack.c.h.b16 %v360
    %v1133 = vunpack.c.l.b16 %v361
    %v1134 = vunpack.c.h.b16 %v361
    %v1135 = vunpack.c.l.b16 %v362
    %v1136 = vunpack.c.h.b16 %v362
    %v1137 = vunpack.c.l.b16 %v363
    %v1138 = vunpack.c.h.b16 %v363
    %v1139 = vunpack.c.l.b16 %v364
    %v1140 = vunpack.c.h.b16 %v364
    %v1141 = vunpack.c.l.b16 %v365
    %v1142 = vunpack.c.h.b16 %v365
    %v1143 = vunpack.c.l.b16 %v366
    %v1144 = vunpack.c.h.b16 %v366
    %v1145 = vunpack.c.l.b16 %v367
    %v1146 = vunpack.c.h.b16 %v367
    %v1147 = vunpack.c.l.b16 %v368
    %v1148 = vunpack.c.h.b16 %v368
    %v1149 = vunpack.c.l.b16 %v369
    %v1150 = vunpack.c.h.b16 %v369
    %v1151 = vunpack.c.l.b16 %v370
    %v1152 = vunpack.c.h.b16 %v370
    %v1153 = vunpack.c.l.b16 %v371
    %v1154 = vunpack.c.h.b16 %v371
    %v1155 = vunpack.c.l.b16 %v372
    %v1156 = vunpack.c.h.b16 %v372
    %v1157 = vunpack.c.l.b16 %v373
    %v1158 = vunpack.c.h.b16 %v373
    %v1159 = vunpack.c.l.b16 %v374
    %v1160 = vunpack.c.h.b16 %v374
    %v1161 = vunpack.c.l.b16 %v375
    %v1162 = vunpack.c.h.b16 %v375
    %v1163 = vunpack.c.l.b16 %v376
    %v1164 = vunpack.c.h.b16 %v376
    %v1165 = vunpack.c.l.b16 %v377
    %v1166 = vunpack.c.h.b16 %v377
    %v1167 = vunpack.c.l.b16 %v378
    %v1168 = vunpack.c.h.b16 %v378
    %v1169 = vpack.c.b16 %v661, %v657
    %v1170 = vpack.c.b16 %v662, %v658
    %v1171 = vpack.c.b16 %v663, %v659
    %v1172 = vpack.c.b16 %v664, %v660
    %v1173 = vpack.c.b16 %v669, %v665
    %v1174 = vpack.c.b16 %v670, %v666
    %v1175 = vpack.c.b16 %v671, %v667
    %v1176 = vpack.c.b16 %v672, %v668
    %v1177 = vpack.c.b16 %v677, %v673
    %v1178 = vpack.c.b16 %v678, %v674
    %v1179 = vpack.c.b16 %v679, %v675
    %v1180 = vpack.c.b16 %v680, %v676
    %v1181 = vpack.c.b16 %v685, %v681
    %v1182 = vpack.c.b16 %v686, %v682
    %v1183 = vpack.c.b16 %v687, %v683
    %v1184 = vpack.c.b16 %v688, %v684
    %v1185 = vpack.c.b16 %v693, %v689
    %v1186 = vpack.c.b16 %v694, %v690
    %v1187 = vpack.c.b16 %v695, %v691
    %v1188 = vpack.c.b16 %v696, %v692
    %v1189 = vpack.c.b16 %v701, %v697
    %v1190 = vpack.c.b16 %v702, %v698
    %v1191 = vpack.c.b16 %v703, %v699
    %v1192 = vpack.c.b16 %v704, %v700
    %v1193 = vpack.c.b16 %v709, %v705
    %v1194 = vpack.c.b16 %v710, %v706
    %v1195 = vpack.c.b16 %v711, %v707
    %v1196 = vpack.c.b16 %v712, %v708
    %v1197 = vpack.c.b16 %v717, %v713
    %v1198 = vpack.c.b16 %v718, %v714
    %v1199 = vpack.c.b16 %v719, %v715
    %v1200 = vpack.c.b16 %v720, %v716
    %v1201 = vpack.c.b16 %v725, %v721
    %v1202 = vpack.c.b16 %v726, %v722
    %v1203 = vpack.c.b16 %v727, %v723
    %v1204 = vpack.c.b16 %v728, %v724
    %v1205 = vpack.c.b16 %v733, %v729
    %v1206 = vpack.c.b16 %v734, %v730
    %v1207 = vpack.c.b16 %v735, %v731
    %v1208 = vpack.c.b16 %v736, %v732
    %v1209 = vpack.c.b16 %v741, %v737
    %v1210 = vpack.c.b16 %v742, %v738
    %v1211 = vpack.c.b16 %v743, %v739
    %v1212 = vpack.c.b16 %v744, %v740
    %v1213 = vpack.c.b16 %v749, %v745
    %v1214 = vpack.c.b16 %v750, %v746
    %v1215 = vpack.c.b16 %v751, %v747
    %v1216 = vpack.c.b16 %v752, %v748
    %v1217 = vpack.c.b16 %v757, %v753
    %v1218 = vpack.c.b16 %v758, %v754
    %v1219 = vpack.c.b16 %v759, %v755
    %v1220 = vpack.c.b16 %v760, %v756
    %v1221 = vpack.c.b16 %v765, %v761
    %v1222 = vpack.c.b16 %v766, %v762
    %v1223 = vpack.c.b16 %v767, %v763
    %v1224 = vpack.c.b16 %v768, %v764
    %v1225 = vpack.c.b16 %v773, %v769
    %v1226 = vpack.c.b16 %v774, %v770
    %v1227 = vpack.c.b16 %v775, %v771
    %v1228 = vpack.c.b16 %v776, %v772
    %v1229 = vpack.c.b16 %v781, %v777
    %v1230 = vpack.c.b16 %v782, %v778
    %v1231 = vpack.c.b16 %v783, %v779
    %v1232 = vpack.c.b16 %v784, %v780
    %v1233 = vpack.c.b16 %v789, %v785
    %v1234 = vpack.c.b16 %v790, %v786
    %v1235 = vpack.c.b16 %v791, %v787
    %v1236 = vpack.c.b16 %v792, %v788
    %v1237 = vpack.c.b16 %v797, %v793
    %v1238 = vpack.c.b16 %v798, %v794
    %v1239 = vpack.c.b16 %v799, %v795
    %v1240 = vpack.c.b16 %v800, %v796
    %v1241 = vpack.c.b16 %v805, %v801
    %v1242 = vpack.c.b16 %v806, %v802
    %v1243 = vpack.c.b16 %v807, %v803
    %v1244 = vpack.c.b16 %v808, %v804
    %v1245 = vpack.c.b16 %v813, %v809
    %v1246 = vpack.c.b16 %v814, %v810
    %v1247 = vpack.c.b16 %v815, %v811
    %v1248 = vpack.c.b16 %v816, %v812
    %v1249 = vpack.c.b16 %v821, %v817
    %v1250 = vpack.c.b16 %v822, %v818
    %v1251 = vpack.c.b16 %v823, %v819
    %v1252 = vpack.c.b16 %v824, %v820
    %v1253 = vpack.c.b16 %v829, %v825
    %v1254 = vpack.c.b16 %v830, %v826
    %v1255 = vpack.c.b16 %v831, %v827
    %v1256 = vpack.c.b16 %v832, %v828
    %v1257 = vpack.c.b16 %v837, %v833
    %v1258 = vpack.c.b16 %v838, %v834
    %v1259 = vpack.c.b16 %v839, %v835
    %v1260 = vpack.c.b16 %v840, %v836
    %v1261 = vpack.c.b16 %v845, %v841
    %v1262 = vpack.c.b16 %v846, %v842
    %v1263 = vpack.c.b16 %v847, %v843
    %v1264 = vpack.c.b16 %v848, %v844
    %v1265 = vpack.c.b16 %v853, %v849
    %v1266 = vpack.c.b16 %v854, %v850
    %v1267 = vpack.c.b16 %v855, %v851
    %v1268 = vpack.c.b16 %v856, %v852
    %v1269 = vpack.c.b16 %v861, %v857
    %v1270 = vpack.c.b16 %v862, %v858
    %v1271 = vpack.c.b16 %v863, %v859
    %v1272 = vpack.c.b16 %v864, %v860
    %v1273 = vpack.c.b16 %v869, %v865
    %v1274 = vpack.c.b16 %v870, %v866
    %v1275 = vpack.c.b16 %v871, %v867
    %v1276 = vpack.c.b16 %v872, %v868
    %v1277 = vpack.c.b16 %v877, %v873
    %v1278 = vpack.c.b16 %v878, %v874
    %v1279 = vpack.c.b16 %v879, %v875
    %v1280 = vpack.c.b16 %v880, %v876
    %v1281 = vpack.c.b16 %v885, %v881
    %v1282 = vpack.c.b16 %v886, %v882
    %v1283 = vpack.c.b16 %v887, %v883
    %v1284 = vpack.c.b16 %v888, %v884
    %v1285 = vpack.c.b16 %v893, %v889
    %v1286 = vpack.c.b16 %v894, %v890
    %v1287 = vpack.c.b16 %v895, %v891
    %v1288 = vpack.c.b16 %v896, %v892
    %v1289 = vpack.c.b16 %v901, %v897
    %v1290 = vpack.c.b16 %v902, %v898
    %v1291 = vpack.c.b16 %v903, %v899
    %v1292 = vpack.c.b16 %v904, %v900
    %v1293 = vpack.c.b16 %v909, %v905
    %v1294 = vpack.c.b16 %v910, %v906
    %v1295 = vpack.c.b16 %v911, %v907
    %v1296 = vpack.c.b16 %v912, %v908
    %v1297 = vpack.c.b16 %v917, %v913
    %v1298 = vpack.c.b16 %v918, %v914
    %v1299 = vpack.c.b16 %v919, %v915
    %v1300 = vpack.c.b16 %v920, %v916
    %v1301 = vpack.c.b16 %v925, %v921
    %v1302 = vpack.c.b16 %v926, %v922
    %v1303 = vpack.c.b16 %v927, %v923
    %v1304 = vpack.c.b16 %v928, %v924
    %v1305 = vpack.c.b16 %v933, %v929
    %v1306 = vpack.c.b16 %v934, %v930
    %v1307 = vpack.c.b16 %v935, %v931
    %v1308 = vpack.c.b16 %v936, %v932
    %v1309 = vpack.c.b16 %v941, %v937
    %v1310 = vpack.c.b16 %v942, %v938
    %v1311 = vpack.c.b16 %v943, %v939
    %v1312 = vpack.c.b16 %v944, %v940
    %v1313 = vpack.c.b16 %v949, %v945
    %v1314 = vpack.c.b16 %v950, %v946
    %v1315 = vpack.c.b16 %v951, %v947
    %v1316 = vpack.c.b16 %v952, %v948
    %v1317 = vpack.c.b16 %v957, %v953
    %v1318 = vpack.c.b16 %v958, %v954
    %v1319 = vpack.c.b16 %v959, %v955
    %v1320 = vpack.c.b16 %v960, %v956
    %v1321 = vpack.c.b16 %v965, %v961
    %v1322 = vpack.c.b16 %v966, %v962
    %v1323 = vpack.c.b16 %v967, %v963
    %v1324 = vpack.c.b16 %v968, %v964
    %v1325 = vpack.c.b16 %v973, %v969
    %v1326 = vpack.c.b16 %v974, %v970
    %v1327 = vpack.c.b16 %v975, %v971
    %v1328 = vpack.c.b16 %v976, %v972
    %v1329 = vpack.c.b16 %v981, %v977
    %v1330 = vpack.c.b16 %v982, %v978
    %v1331 = vpack.c.b16 %v983, %v979
    %v1332 = vpack.c.b16 %v984, %v980
    %v1333 = vpack.c.b16 %v989, %v985
    %v1334 = vpack.c.b16 %v990, %v986
    %v1335 = vpack.c.b16 %v991, %v987
    %v1336 = vpack.c.b16 %v992, %v988
    %v1337 = vpack.c.b16 %v997, %v993
    %v1338 = vpack.c.b16 %v998, %v994
    %v1339 = vpack.c.b16 %v999, %v995
    %v1340 = vpack.c.b16 %v1000, %v996
    %v1341 = vpack.c.b16 %v1005, %v1001
    %v1342 = vpack.c.b16 %v1006, %v1002
    %v1343 = vpack.c.b16 %v1007, %v1003
    %v1344 = vpack.c.b16 %v1008, %v1004
    %v1345 = vpack.c.b16 %v1013, %v1009
    %v1346 = vpack.c.b16 %v1014, %v1010
    %v1347 = vpack.c.b16 %v1015, %v1011
    %v1348 = vpack.c.b16 %v1016, %v1012
    %v1349 = vpack.c.b16 %v1021, %v1017
    %v1350 = vpack.c.b16 %v1022, %v1018
    %v1351 = vpack.c.b16 %v1023, %v1019
    %v1352 = vpack.c.b16 %v1024, %v1020
    %v1353 = vpack.c.b16 %v1029, %v1025
    %v1354 = vpack.c.b16 %v1030, %v1026
    %v1355 = vpack.c.b16 %v1031, %v1027
    %v1356 = vpack.c.b16 %v1032, %v1028
    %v1357 = vpack.c.b16 %v1037, %v1033
    %v1358 = vpack.c.b16 %v1038, %v1034
    %v1359 = vpack.c.b16 %v1039, %v1035
    %v1360 = vpack.c.b16 %v1040, %v1036
    %v1361 = vpack.c.b16 %v1045, %v1041
    %v1362 = vpack.c.b16 %v1046, %v1042
    %v1363 = vpack.c.b16 %v1047, %v1043
    %v1364 = vpack.c.b16 %v1048, %v1044
    %v1365 = vpack.c.b16 %v1053, %v1049
    %v1366 = vpack.c.b16 %v1054, %v1050
    %v1367 = vpack.c.b16 %v1055, %v1051
    %v1368 = vpack.c.b16 %v1056, %v1052
    %v1369 = vpack.c.b16 %v1061, %v1057
    %v1370 = vpack.c.b16 %v1062, %v1058
    %v1371 = vpack.c.b16 %v1063, %v1059
    %v1372 = vpack.c.b16 %v1064, %v1060
    %v1373 = vpack.c.b16 %v1069, %v1065
    %v1374 = vpack.c.b16 %v1070, %v1066
    %v1375 = vpack.c.b16 %v1071, %v1067
    %v1376 = vpack.c.b16 %v1072, %v1068
    %v1377 = vpack.c.b16 %v1077, %v1073
    %v1378 = vpack.c.b16 %v1078, %v1074
    %v1379 = vpack.c.b16 %v1079, %v1075
    %v1380 = vpack.c.b16 %v1080, %v1076
    %v1381 = vpack.c.b16 %v1085, %v1081
    %v1382 = vpack.c.b16 %v1086, %v1082
    %v1383 = vpack.c.b16 %v1087, %v1083
    %v1384 = vpack.c.b16 %v1088, %v1084
    %v1385 = vpack.c.b16 %v1093, %v1089
    %v1386 = vpack.c.b16 %v1094, %v1090
    %v1387 = vpack.c.b16 %v1095, %v1091
    %v1388 = vpack.c.b16 %v1096, %v1092
    %v1389 = vpack.c.b16 %v1101, %v1097
    %v1390 = vpack.c.b16 %v1102, %v1098
    %v1391 = vpack.c.b16 %v1103, %v1099
    %v1392 = vpack.c.b16 %v1104, %v1100
    %v1393 = vpack.c.b16 %v1109, %v1105
    %v1394 = vpack.c.b16 %v1110, %v1106
    %v1395 = vpack.c.b16 %v1111, %v1107
    %v1396 = vpack.c.b16 %v1112, %v1108
    %v1397 = vpack.c.b16 %v1117, %v1113
    %v1398 = vpack.c.b16 %v1118, %v1114
    %v1399 = vpack.c.b16 %v1119, %v1115
    %v1400 = vpack.c.b16 %v1120, %v1116
    %v1401 = vpack.c.b16 %v1125, %v1121
    %v1402 = vpack.c.b16 %v1126, %v1122
    %v1403 = vpack.c.b16 %v1127, %v1123
    %v1404 = vpack.c.b16 %v1128, %v1124
    %v1405 = vpack.c.b16 %v1133, %v1129
    %v1406 = vpack.c.b16 %v1134, %v1130
    %v1407 = vpack.c.b16 %v1135, %v1131
    %v1408 = vpack.c.b16 %v1136, %v1132
    %v1409 = vpack.c.b16 %v1141, %v1137
    %v1410 = vpack.c.b16 %v1142, %v1138
    %v1411 = vpack.c.b16 %v1143, %v1139
    %v1412 = vpack.c.b16 %v1144, %v1140
    %v1413 = vpack.c.b16 %v1149, %v1145
    %v1414 = vpack.c.b16 %v1150, %v1146
    %v1415 = vpack.c.b16 %v1151, %v1147
    %v1416 = vpack.c.b16 %v1152, %v1148
    %v1417 = vpack.c.b16 %v1157, %v1153
    %v1418 = vpack.c.b16 %v1158, %v1154
    %v1419 = vpack.c.b16 %v1159, %v1155
    %v1420 = vpack.c.b16 %v1160, %v1156
    %v1421 = vpack.c.b16 %v1165, %v1161
    %v1422 = vpack.c.b16 %v1166, %v1162
    %v1423 = vpack.c.b16 %v1167, %v1163
    %v1424 = vpack.c.b16 %v1168, %v1164
    %1681 = vmatprep.subr.bf16.mxu0 %v1170
    %1682 = vmatpush1.bf16.msra.mxu0 %v1169
    %1683 = vmatprep.subr.bf16.mxu0 %v1174
    %1684 = vmatpush1.bf16.msra.mxu0 %v1173
    %1685 = vmatprep.subr.bf16.mxu0 %v1178
    %1686 = vmatpush1.bf16.msra.mxu0 %v1177
    %1687 = vmatprep.subr.bf16.mxu0 %v1182
    %1688 = vmatpush1.bf16.msra.mxu0 %v1181
    %1689 = vmatprep.subr.bf16.mxu0 %v1186
    %1690 = vmatpush1.bf16.msra.mxu0 %v1185
    %1691 = vmatprep.subr.bf16.mxu0 %v1190
    %1692 = vmatpush1.bf16.msra.mxu0 %v1189
    %1693 = vmatprep.subr.bf16.mxu0 %v1194
    %1694 = vmatpush1.bf16.msra.mxu0 %v1193
    %1695 = vmatprep.subr.bf16.mxu0 %v1198
    %1696 = vmatpush1.bf16.msra.mxu0 %v1197
    %1697 = vmatprep.subr.bf16.mxu0 %v1202
    %1698 = vmatpush1.bf16.msra.mxu0 %v1201
    %1699 = vmatprep.subr.bf16.mxu0 %v1206
    %1700 = vmatpush1.bf16.msra.mxu0 %v1205
    %1701 = vmatprep.subr.bf16.mxu0 %v1210
    %1702 = vmatpush1.bf16.msra.mxu0 %v1209
    %1703 = vmatprep.subr.bf16.mxu0 %v1214
    %1704 = vmatpush1.bf16.msra.mxu0 %v1213
    %1705 = vmatprep.subr.bf16.mxu0 %v1218
    %1706 = vmatpush1.bf16.msra.mxu0 %v1217
    %1707 = vmatprep.subr.bf16.mxu0 %v1222
    %1708 = vmatpush1.bf16.msra.mxu0 %v1221
    %1709 = vmatprep.subr.bf16.mxu0 %v1226
    %1710 = vmatpush1.bf16.msra.mxu0 %v1225
    %1711 = vmatprep.subr.bf16.mxu0 %v1230
    %1712 = vmatpush1.bf16.msra.mxu0 %v1229
    %1713 = vmatprep.mubr.bf16.mxu0 %v116
    %1714 = vmatmul.mubr.bf16.gmra.mrb[0].mxu0 %v115
    %v1715 = vpop.f32.mrb[0].mxu0
    %v1716 = vadd.f32 %v384, %v1715
    %v1717 = vpop.f32.mrb[0].mxu0
    %v1718 = vadd.f32 %v388, %v1717
    %v1719 = vpop.f32.mrb[0].mxu0
    %v1720 = vpop.f32.mrb[0].mxu0
    %1721 = vdwg.mxu0
    %1722 = vmatprep.subr.bf16.mxu0 %v1234
    %1723 = vmatpush1.bf16.msra.mxu0 %v1233
    %1724 = vmatprep.subr.bf16.mxu0 %v1238
    %1725 = vmatpush1.bf16.msra.mxu0 %v1237
    %1726 = vmatprep.subr.bf16.mxu0 %v1242
    %1727 = vmatpush1.bf16.msra.mxu0 %v1241
    %1728 = vmatprep.subr.bf16.mxu0 %v1246
    %1729 = vmatpush1.bf16.msra.mxu0 %v1245
    %1730 = vmatprep.subr.bf16.mxu0 %v1250
    %1731 = vmatpush1.bf16.msra.mxu0 %v1249
    %1732 = vmatprep.subr.bf16.mxu0 %v1254
    %1733 = vmatpush1.bf16.msra.mxu0 %v1253
    %1734 = vmatprep.subr.bf16.mxu0 %v1258
    %1735 = vmatpush1.bf16.msra.mxu0 %v1257
    %1736 = vmatprep.subr.bf16.mxu0 %v1262
    %1737 = vmatpush1.bf16.msra.mxu0 %v1261
    %1738 = vmatprep.subr.bf16.mxu0 %v1266
    %1739 = vmatpush1.bf16.msra.mxu0 %v1265
    %1740 = vmatprep.subr.bf16.mxu0 %v1270
    %1741 = vmatpush1.bf16.msra.mxu0 %v1269
    %1742 = vmatprep.subr.bf16.mxu0 %v1274
    %1743 = vmatpush1.bf16.msra.mxu0 %v1273
    %1744 = vmatprep.subr.bf16.mxu0 %v1278
    %1745 = vmatpush1.bf16.msra.mxu0 %v1277
    %1746 = vmatprep.subr.bf16.mxu0 %v1282
    %1747 = vmatpush1.bf16.msra.mxu0 %v1281
    %1748 = vmatprep.subr.bf16.mxu0 %v1286
    %1749 = vmatpush1.bf16.msra.mxu0 %v1285
    %1750 = vmatprep.subr.bf16.mxu0 %v1290
    %1751 = vmatpush1.bf16.msra.mxu0 %v1289
    %1752 = vmatprep.subr.bf16.mxu0 %v1294
    %1753 = vmatpush1.bf16.msra.mxu0 %v1293
    %1754 = vmatprep.mubr.bf16.mxu0 %v118
    %1755 = vmatmul.mubr.bf16.gmra.mrb[0].mxu0 %v117
    %v1756 = vpop.f32.mrb[0].mxu0
    %v1757 = vadd.f32 %v1716, %v1756
    %v1758 = vpop.f32.mrb[0].mxu0
    %v1759 = vadd.f32 %v1718, %v1758
    %v1760 = vpop.f32.mrb[0].mxu0
    %v1761 = vpop.f32.mrb[0].mxu0
    %1762 = vdwg.mxu0
    %1763 = vmatprep.subr.bf16.mxu0 %v1298
    %1764 = vmatpush1.bf16.msra.mxu0 %v1297
    %1765 = vmatprep.subr.bf16.mxu0 %v1302
    %1766 = vmatpush1.bf16.msra.mxu0 %v1301
    %1767 = vmatprep.subr.bf16.mxu0 %v1306
    %1768 = vmatpush1.bf16.msra.mxu0 %v1305
    %1769 = vmatprep.subr.bf16.mxu0 %v1310
    %1770 = vmatpush1.bf16.msra.mxu0 %v1309
    %1771 = vmatprep.subr.bf16.mxu0 %v1314
    %1772 = vmatpush1.bf16.msra.mxu0 %v1313
    %1773 = vmatprep.subr.bf16.mxu0 %v1318
    %1774 = vmatpush1.bf16.msra.mxu0 %v1317
    %1775 = vmatprep.subr.bf16.mxu0 %v1322
    %1776 = vmatpush1.bf16.msra.mxu0 %v1321
    %1777 = vmatprep.subr.bf16.mxu0 %v1326
    %1778 = vmatpush1.bf16.msra.mxu0 %v1325
    %1779 = vmatprep.subr.bf16.mxu0 %v1330
    %1780 = vmatpush1.bf16.msra.mxu0 %v1329
    %1781 = vmatprep.subr.bf16.mxu0 %v1334
    %1782 = vmatpush1.bf16.msra.mxu0 %v1333
    %1783 = vmatprep.subr.bf16.mxu0 %v1338
    %1784 = vmatpush1.bf16.msra.mxu0 %v1337
    %1785 = vmatprep.subr.bf16.mxu0 %v1342
    %1786 = vmatpush1.bf16.msra.mxu0 %v1341
    %1787 = vmatprep.subr.bf16.mxu0 %v1346
    %1788 = vmatpush1.bf16.msra.mxu0 %v1345
    %1789 = vmatprep.subr.bf16.mxu0 %v1350
    %1790 = vmatpush1.bf16.msra.mxu0 %v1349
    %1791 = vmatprep.subr.bf16.mxu0 %v1354
    %1792 = vmatpush1.bf16.msra.mxu0 %v1353
    %1793 = vmatprep.subr.bf16.mxu0 %v1358
    %1794 = vmatpush1.bf16.msra.mxu0 %v1357
    %1795 = vmatprep.mubr.bf16.mxu0 %v120
    %1796 = vmatmul.mubr.bf16.gmra.mrb[0].mxu0 %v119
    %v1797 = vpop.f32.mrb[0].mxu0
    %v1798 = vadd.f32 %v1757, %v1797
    %v1799 = vpop.f32.mrb[0].mxu0
    %v1800 = vadd.f32 %v1759, %v1799
    %v1801 = vpop.f32.mrb[0].mxu0
    %v1802 = vpop.f32.mrb[0].mxu0
    %1803 = vdwg.mxu0
    %1804 = vmatprep.subr.bf16.mxu0 %v1362
    %1805 = vmatpush1.bf16.msra.mxu0 %v1361
    %1806 = vmatprep.subr.bf16.mxu0 %v1366
    %1807 = vmatpush1.bf16.msra.mxu0 %v1365
    %1808 = vmatprep.subr.bf16.mxu0 %v1370
    %1809 = vmatpush1.bf16.msra.mxu0 %v1369
    %1810 = vmatprep.subr.bf16.mxu0 %v1374
    %1811 = vmatpush1.bf16.msra.mxu0 %v1373
    %1812 = vmatprep.subr.bf16.mxu0 %v1378
    %1813 = vmatpush1.bf16.msra.mxu0 %v1377
    %1814 = vmatprep.subr.bf16.mxu0 %v1382
    %1815 = vmatpush1.bf16.msra.mxu0 %v1381
    %1816 = vmatprep.subr.bf16.mxu0 %v1386
    %1817 = vmatpush1.bf16.msra.mxu0 %v1385
    %1818 = vmatprep.subr.bf16.mxu0 %v1390
    %1819 = vmatpush1.bf16.msra.mxu0 %v1389
    %1820 = vmatprep.subr.bf16.mxu0 %v1394
    %1821 = vmatpush1.bf16.msra.mxu0 %v1393
    %1822 = vmatprep.subr.bf16.mxu0 %v1398
    %1823 = vmatpush1.bf16.msra.mxu0 %v1397
    %1824 = vmatprep.subr.bf16.mxu0 %v1402
    %1825 = vmatpush1.bf16.msra.mxu0 %v1401
    %1826 = vmatprep.subr.bf16.mxu0 %v1406
    %1827 = vmatpush1.bf16.msra.mxu0 %v1405
    %1828 = vmatprep.subr.bf16.mxu0 %v1410
    %1829 = vmatpush1.bf16.msra.mxu0 %v1409
    %1830 = vmatprep.subr.bf16.mxu0 %v1414
    %1831 = vmatpush1.bf16.msra.mxu0 %v1413
    %1832 = vmatprep.subr.bf16.mxu0 %v1418
    %1833 = vmatpush1.bf16.msra.mxu0 %v1417
    %1834 = vmatprep.subr.bf16.mxu0 %v1422
    %1835 = vmatpush1.bf16.msra.mxu0 %v1421
    %1836 = vmatprep.mubr.bf16.mxu0 %v122
    %1837 = vmatmul.mubr.bf16.gmra.mrb[0].mxu0 %v121
    %v1838 = vpop.f32.mrb[0].mxu0
    %v1839 = vadd.f32 %v1798, %v1838
    %v1840 = vpop.f32.mrb[0].mxu0
    %v1841 = vadd.f32 %v1800, %v1840
    %v1842 = vpop.f32.mrb[0].mxu0
    %v1843 = vpop.f32.mrb[0].mxu0
    %1844 = vdwg.mxu0
    %1845 = vmatprep.subr.bf16.mxu0 %v1172
    %1846 = vmatpush1.bf16.msra.mxu0 %v1171
    %1847 = vmatprep.subr.bf16.mxu0 %v1176
    %1848 = vmatpush1.bf16.msra.mxu0 %v1175
    %1849 = vmatprep.subr.bf16.mxu0 %v1180
    %1850 = vmatpush1.bf16.msra.mxu0 %v1179
    %1851 = vmatprep.subr.bf16.mxu0 %v1184
    %1852 = vmatpush1.bf16.msra.mxu0 %v1183
    %1853 = vmatprep.subr.bf16.mxu0 %v1188
    %1854 = vmatpush1.bf16.msra.mxu0 %v1187
    %1855 = vmatprep.subr.bf16.mxu0 %v1192
    %1856 = vmatpush1.bf16.msra.mxu0 %v1191
    %1857 = vmatprep.subr.bf16.mxu0 %v1196
    %1858 = vmatpush1.bf16.msra.mxu0 %v1195
    %1859 = vmatprep.subr.bf16.mxu0 %v1200
    %1860 = vmatpush1.bf16.msra.mxu0 %v1199
    %1861 = vmatprep.subr.bf16.mxu0 %v1204
    %1862 = vmatpush1.bf16.msra.mxu0 %v1203
    %1863 = vmatprep.subr.bf16.mxu0 %v1208
    %1864 = vmatpush1.bf16.msra.mxu0 %v1207
    %1865 = vmatprep.subr.bf16.mxu0 %v1212
    %1866 = vmatpush1.bf16.msra.mxu0 %v1211
    %1867 = vmatprep.subr.bf16.mxu0 %v1216
    %1868 = vmatpush1.bf16.msra.mxu0 %v1215
    %1869 = vmatprep.subr.bf16.mxu0 %v1220
    %1870 = vmatpush1.bf16.msra.mxu0 %v1219
    %1871 = vmatprep.subr.bf16.mxu0 %v1224
    %1872 = vmatpush1.bf16.msra.mxu0 %v1223
    %1873 = vmatprep.subr.bf16.mxu0 %v1228
    %1874 = vmatpush1.bf16.msra.mxu0 %v1227
    %1875 = vmatprep.subr.bf16.mxu0 %v1232
    %1876 = vmatpush1.bf16.msra.mxu0 %v1231
    %1877 = vmatprep.mubr.bf16.mxu0 %v116
    %1878 = vmatmul.mubr.bf16.gmra.mrb[0].mxu0 %v115
    %v1879 = vpop.f32.mrb[0].mxu0
    %v1880 = vadd.f32 %v392, %v1879
    %v1881 = vpop.f32.mrb[0].mxu0
    %v1882 = vadd.f32 %v396, %v1881
    %v1883 = vpop.f32.mrb[0].mxu0
    %v1884 = vpop.f32.mrb[0].mxu0
    %1885 = vdwg.mxu0
    %1886 = vmatprep.subr.bf16.mxu0 %v1236
    %1887 = vmatpush1.bf16.msra.mxu0 %v1235
    %1888 = vmatprep.subr.bf16.mxu0 %v1240
    %1889 = vmatpush1.bf16.msra.mxu0 %v1239
    %1890 = vmatprep.subr.bf16.mxu0 %v1244
    %1891 = vmatpush1.bf16.msra.mxu0 %v1243
    %1892 = vmatprep.subr.bf16.mxu0 %v1248
    %1893 = vmatpush1.bf16.msra.mxu0 %v1247
    %1894 = vmatprep.subr.bf16.mxu0 %v1252
    %1895 = vmatpush1.bf16.msra.mxu0 %v1251
    %1896 = vmatprep.subr.bf16.mxu0 %v1256
    %1897 = vmatpush1.bf16.msra.mxu0 %v1255
    %1898 = vmatprep.subr.bf16.mxu0 %v1260
    %1899 = vmatpush1.bf16.msra.mxu0 %v1259
    %1900 = vmatprep.subr.bf16.mxu0 %v1264
    %1901 = vmatpush1.bf16.msra.mxu0 %v1263
    %1902 = vmatprep.subr.bf16.mxu0 %v1268
    %1903 = vmatpush1.bf16.msra.mxu0 %v1267
    %1904 = vmatprep.subr.bf16.mxu0 %v1272
    %1905 = vmatpush1.bf16.msra.mxu0 %v1271
    %1906 = vmatprep.subr.bf16.mxu0 %v1276
    %1907 = vmatpush1.bf16.msra.mxu0 %v1275
    %1908 = vmatprep.subr.bf16.mxu0 %v1280
    %1909 = vmatpush1.bf16.msra.mxu0 %v1279
    %1910 = vmatprep.subr.bf16.mxu0 %v1284
    %1911 = vmatpush1.bf16.msra.mxu0 %v1283
    %1912 = vmatprep.subr.bf16.mxu0 %v1288
    %1913 = vmatpush1.bf16.msra.mxu0 %v1287
    %1914 = vmatprep.subr.bf16.mxu0 %v1292
    %1915 = vmatpush1.bf16.msra.mxu0 %v1291
    %1916 = vmatprep.subr.bf16.mxu0 %v1296
    %1917 = vmatpush1.bf16.msra.mxu0 %v1295
    %1918 = vmatprep.mubr.bf16.mxu0 %v118
    %1919 = vmatmul.mubr.bf16.gmra.mrb[0].mxu0 %v117
    %v1920 = vpop.f32.mrb[0].mxu0
    %v1921 = vadd.f32 %v1880, %v1920
    %v1922 = vpop.f32.mrb[0].mxu0
    %v1923 = vadd.f32 %v1882, %v1922
    %v1924 = vpop.f32.mrb[0].mxu0
    %v1925 = vpop.f32.mrb[0].mxu0
    %1926 = vdwg.mxu0
    %1927 = vmatprep.subr.bf16.mxu0 %v1300
    %1928 = vmatpush1.bf16.msra.mxu0 %v1299
    %1929 = vmatprep.subr.bf16.mxu0 %v1304
    %1930 = vmatpush1.bf16.msra.mxu0 %v1303
    %1931 = vmatprep.subr.bf16.mxu0 %v1308
    %1932 = vmatpush1.bf16.msra.mxu0 %v1307
    %1933 = vmatprep.subr.bf16.mxu0 %v1312
    %1934 = vmatpush1.bf16.msra.mxu0 %v1311
    %1935 = vmatprep.subr.bf16.mxu0 %v1316
    %1936 = vmatpush1.bf16.msra.mxu0 %v1315
    %1937 = vmatprep.subr.bf16.mxu0 %v1320
    %1938 = vmatpush1.bf16.msra.mxu0 %v1319
    %1939 = vmatprep.subr.bf16.mxu0 %v1324
    %1940 = vmatpush1.bf16.msra.mxu0 %v1323
    %1941 = vmatprep.subr.bf16.mxu0 %v1328
    %1942 = vmatpush1.bf16.msra.mxu0 %v1327
    %1943 = vmatprep.subr.bf16.mxu0 %v1332
    %1944 = vmatpush1.bf16.msra.mxu0 %v1331
    %1945 = vmatprep.subr.bf16.mxu0 %v1336
    %1946 = vmatpush1.bf16.msra.mxu0 %v1335
    %1947 = vmatprep.subr.bf16.mxu0 %v1340
    %1948 = vmatpush1.bf16.msra.mxu0 %v1339
    %1949 = vmatprep.subr.bf16.mxu0 %v1344
    %1950 = vmatpush1.bf16.msra.mxu0 %v1343
    %1951 = vmatprep.subr.bf16.mxu0 %v1348
    %1952 = vmatpush1.bf16.msra.mxu0 %v1347
    %1953 = vmatprep.subr.bf16.mxu0 %v1352
    %1954 = vmatpush1.bf16.msra.mxu0 %v1351
    %1955 = vmatprep.subr.bf16.mxu0 %v1356
    %1956 = vmatpush1.bf16.msra.mxu0 %v1355
    %1957 = vmatprep.subr.bf16.mxu0 %v1360
    %1958 = vmatpush1.bf16.msra.mxu0 %v1359
    %1959 = vmatprep.mubr.bf16.mxu0 %v120
    %1960 = vmatmul.mubr.bf16.gmra.mrb[0].mxu0 %v119
    %v1961 = vpop.f32.mrb[0].mxu0
    %v1962 = vadd.f32 %v1921, %v1961
    %v1963 = vpop.f32.mrb[0].mxu0
    %v1964 = vadd.f32 %v1923, %v1963
    %v1965 = vpop.f32.mrb[0].mxu0
    %v1966 = vpop.f32.mrb[0].mxu0
    %1967 = vdwg.mxu0
    %1968 = vmatprep.subr.bf16.mxu0 %v1364
    %1969 = vmatpush1.bf16.msra.mxu0 %v1363
    %1970 = vmatprep.subr.bf16.mxu0 %v1368
    %1971 = vmatpush1.bf16.msra.mxu0 %v1367
    %1972 = vmatprep.subr.bf16.mxu0 %v1372
    %1973 = vmatpush1.bf16.msra.mxu0 %v1371
    %1974 = vmatprep.subr.bf16.mxu0 %v1376
    %1975 = vmatpush1.bf16.msra.mxu0 %v1375
    %1976 = vmatprep.subr.bf16.mxu0 %v1380
    %1977 = vmatpush1.bf16.msra.mxu0 %v1379
    %1978 = vmatprep.subr.bf16.mxu0 %v1384
    %1979 = vmatpush1.bf16.msra.mxu0 %v1383
    %1980 = vmatprep.subr.bf16.mxu0 %v1388
    %1981 = vmatpush1.bf16.msra.mxu0 %v1387
    %1982 = vmatprep.subr.bf16.mxu0 %v1392
    %1983 = vmatpush1.bf16.msra.mxu0 %v1391
    %1984 = vmatprep.subr.bf16.mxu0 %v1396
    %1985 = vmatpush1.bf16.msra.mxu0 %v1395
    %1986 = vmatprep.subr.bf16.mxu0 %v1400
    %1987 = vmatpush1.bf16.msra.mxu0 %v1399
    %1988 = vmatprep.subr.bf16.mxu0 %v1404
    %1989 = vmatpush1.bf16.msra.mxu0 %v1403
    %1990 = vmatprep.subr.bf16.mxu0 %v1408
    %1991 = vmatpush1.bf16.msra.mxu0 %v1407
    %1992 = vmatprep.subr.bf16.mxu0 %v1412
    %1993 = vmatpush1.bf16.msra.mxu0 %v1411
    %1994 = vmatprep.subr.bf16.mxu0 %v1416
    %1995 = vmatpush1.bf16.msra.mxu0 %v1415
    %1996 = vmatprep.subr.bf16.mxu0 %v1420
    %1997 = vmatpush1.bf16.msra.mxu0 %v1419
    %1998 = vmatprep.subr.bf16.mxu0 %v1424
    %1999 = vmatpush1.bf16.msra.mxu0 %v1423
    %2000 = vmatprep.mubr.bf16.mxu0 %v122
    %2001 = vmatmul.mubr.bf16.gmra.mrb[0].mxu0 %v121
    %v2002 = vpop.f32.mrb[0].mxu0
    %v2003 = vadd.f32 %v1962, %v2002
    %v2004 = vpop.f32.mrb[0].mxu0
    %v2005 = vadd.f32 %v1964, %v2004
    %v2006 = vpop.f32.mrb[0].mxu0
    %v2007 = vpop.f32.mrb[0].mxu0
    %2008 = vdwg.mxu0
    %v2009 = vmax.f32 %v1839, 0.0
    %v2010 = vmax.f32 %v1841, 0.0
    %v2011 = vmax.f32 %v2003, 0.0
    %v2012 = vmax.f32 %v2005, 0.0
    %v2013 = vpack.c.bf16 %v2009, %v2009
    %v2014 = vpack.c.bf16 %v2010, %v2010
    %v2015 = vpack.c.bf16 %v2011, %v2011
    %v2016 = vpack.c.bf16 %v2012, %v2012
    %v2017 = vld [vmem:[#allocation7] sm:$0xff]
    %v2018 = vld [vmem:[#allocation7 + $0x8] sm:$0xff]
    %v2019 = vld [vmem:[#allocation7 + $0x10] sm:$0xff]
    %v2020 = vld [vmem:[#allocation7 + $0x18] sm:$0xff]
    %v2021 = vld [vmem:[#allocation7 + $0x20] sm:$0xff]
    %v2022 = vld [vmem:[#allocation7 + $0x28] sm:$0xff]
    %v2023 = vld [vmem:[#allocation7 + $0x30] sm:$0xff]
    %v2024 = vld [vmem:[#allocation7 + $0x38] sm:$0xff]
    %v2025 = vld [vmem:[#allocation7 + $0x40] sm:$0xff]
    %v2026 = vld [vmem:[#allocation7 + $0x48] sm:$0xff]
    %v2027 = vld [vmem:[#allocation7 + $0x50] sm:$0xff]
    %v2028 = vld [vmem:[#allocation7 + $0x58] sm:$0xff]
    %v2029 = vld [vmem:[#allocation7 + $0x60] sm:$0xff]
    %v2030 = vld [vmem:[#allocation7 + $0x68] sm:$0xff]
    %v2031 = vld [vmem:[#allocation7 + $0x70] sm:$0xff]
    %v2032 = vld [vmem:[#allocation7 + $0x78] sm:$0xff]
    %v2033 = vld [vmem:[#allocation7 + $0x80] sm:$0xff]
    %v2034 = vld [vmem:[#allocation7 + $0x88] sm:$0xff]
    %v2035 = vld [vmem:[#allocation7 + $0x90] sm:$0xff]
    %v2036 = vld [vmem:[#allocation7 + $0x98] sm:$0xff]
    %v2037 = vld [vmem:[#allocation7 + $0xa0] sm:$0xff]
    %v2038 = vld [vmem:[#allocation7 + $0xa8] sm:$0xff]
    %v2039 = vld [vmem:[#allocation7 + $0xb0] sm:$0xff]
    %v2040 = vld [vmem:[#allocation7 + $0xb8] sm:$0xff]
    %v2041 = vld [vmem:[#allocation7 + $0xc0] sm:$0xff]
    %v2042 = vld [vmem:[#allocation7 + $0xc8] sm:$0xff]
    %v2043 = vld [vmem:[#allocation7 + $0xd0] sm:$0xff]
    %v2044 = vld [vmem:[#allocation7 + $0xd8] sm:$0xff]
    %v2045 = vld [vmem:[#allocation7 + $0xe0] sm:$0xff]
    %v2046 = vld [vmem:[#allocation7 + $0xe8] sm:$0xff]
    %v2047 = vld [vmem:[#allocation7 + $0xf0] sm:$0xff]
    %v2048 = vld [vmem:[#allocation7 + $0xf8] sm:$0xff]
    %v2049 = vld [vmem:[#allocation7 + $0x100] sm:$0xff]
    %v2050 = vld [vmem:[#allocation7 + $0x108] sm:$0xff]
    %v2051 = vld [vmem:[#allocation7 + $0x110] sm:$0xff]
    %v2052 = vld [vmem:[#allocation7 + $0x118] sm:$0xff]
    %v2053 = vld [vmem:[#allocation7 + $0x120] sm:$0xff]
    %v2054 = vld [vmem:[#allocation7 + $0x128] sm:$0xff]
    %v2055 = vld [vmem:[#allocation7 + $0x130] sm:$0xff]
    %v2056 = vld [vmem:[#allocation7 + $0x138] sm:$0xff]
    %v2057 = vld [vmem:[#allocation7 + $0x140] sm:$0xff]
    %v2058 = vld [vmem:[#allocation7 + $0x148] sm:$0xff]
    %v2059 = vld [vmem:[#allocation7 + $0x150] sm:$0xff]
    %v2060 = vld [vmem:[#allocation7 + $0x158] sm:$0xff]
    %v2061 = vld [vmem:[#allocation7 + $0x160] sm:$0xff]
    %v2062 = vld [vmem:[#allocation7 + $0x168] sm:$0xff]
    %v2063 = vld [vmem:[#allocation7 + $0x170] sm:$0xff]
    %v2064 = vld [vmem:[#allocation7 + $0x178] sm:$0xff]
    %v2065 = vld [vmem:[#allocation7 + $0x180] sm:$0xff]
    %v2066 = vld [vmem:[#allocation7 + $0x188] sm:$0xff]
    %v2067 = vld [vmem:[#allocation7 + $0x190] sm:$0xff]
    %v2068 = vld [vmem:[#allocation7 + $0x198] sm:$0xff]
    %v2069 = vld [vmem:[#allocation7 + $0x1a0] sm:$0xff]
    %v2070 = vld [vmem:[#allocation7 + $0x1a8] sm:$0xff]
    %v2071 = vld [vmem:[#allocation7 + $0x1b0] sm:$0xff]
    %v2072 = vld [vmem:[#allocation7 + $0x1b8] sm:$0xff]
    %v2073 = vld [vmem:[#allocation7 + $0x1c0] sm:$0xff]
    %v2074 = vld [vmem:[#allocation7 + $0x1c8] sm:$0xff]
    %v2075 = vld [vmem:[#allocation7 + $0x1d0] sm:$0xff]
    %v2076 = vld [vmem:[#allocation7 + $0x1d8] sm:$0xff]
    %v2077 = vld [vmem:[#allocation7 + $0x1e0] sm:$0xff]
    %v2078 = vld [vmem:[#allocation7 + $0x1e8] sm:$0xff]
    %v2079 = vld [vmem:[#allocation7 + $0x1f0] sm:$0xff]
    %v2080 = vld [vmem:[#allocation7 + $0x1f8] sm:$0xff]
    %v2081 = vld [vmem:[%s5] sm:$0x3]
    %v2083 = vlaneseq
    %v2084 = vshrl.u32 %v2083, 7
    %v2085 = vsub.s32 0, %v2084
    %v2086 = vrot.slane %v2081, %v2085
    %v2087 = vlaneseq
    %v2088 = vshrl.u32 %v2087, 7
    %v2089 = vsub.s32 1, %v2088
    %v2090 = vrot.slane %v2081, %v2089
    %v2157 = vunpack.c.l.b16 %v2017
    %v2158 = vunpack.c.h.b16 %v2017
    %v2159 = vunpack.c.l.b16 %v2018
    %v2160 = vunpack.c.h.b16 %v2018
    %v2161 = vunpack.c.l.b16 %v2019
    %v2162 = vunpack.c.h.b16 %v2019
    %v2163 = vunpack.c.l.b16 %v2020
    %v2164 = vunpack.c.h.b16 %v2020
    %v2165 = vunpack.c.l.b16 %v2021
    %v2166 = vunpack.c.h.b16 %v2021
    %v2167 = vunpack.c.l.b16 %v2022
    %v2168 = vunpack.c.h.b16 %v2022
    %v2169 = vunpack.c.l.b16 %v2023
    %v2170 = vunpack.c.h.b16 %v2023
    %v2171 = vunpack.c.l.b16 %v2024
    %v2172 = vunpack.c.h.b16 %v2024
    %v2173 = vunpack.c.l.b16 %v2025
    %v2174 = vunpack.c.h.b16 %v2025
    %v2175 = vunpack.c.l.b16 %v2026
    %v2176 = vunpack.c.h.b16 %v2026
    %v2177 = vunpack.c.l.b16 %v2027
    %v2178 = vunpack.c.h.b16 %v2027
    %v2179 = vunpack.c.l.b16 %v2028
    %v2180 = vunpack.c.h.b16 %v2028
    %v2181 = vunpack.c.l.b16 %v2029
    %v2182 = vunpack.c.h.b16 %v2029
    %v2183 = vunpack.c.l.b16 %v2030
    %v2184 = vunpack.c.h.b16 %v2030
    %v2185 = vunpack.c.l.b16 %v2031
    %v2186 = vunpack.c.h.b16 %v2031
    %v2187 = vunpack.c.l.b16 %v2032
    %v2188 = vunpack.c.h.b16 %v2032
    %v2189 = vunpack.c.l.b16 %v2033
    %v2190 = vunpack.c.h.b16 %v2033
    %v2191 = vunpack.c.l.b16 %v2034
    %v2192 = vunpack.c.h.b16 %v2034
    %v2193 = vunpack.c.l.b16 %v2035
    %v2194 = vunpack.c.h.b16 %v2035
    %v2195 = vunpack.c.l.b16 %v2036
    %v2196 = vunpack.c.h.b16 %v2036
    %v2197 = vunpack.c.l.b16 %v2037
    %v2198 = vunpack.c.h.b16 %v2037
    %v2199 = vunpack.c.l.b16 %v2038
    %v2200 = vunpack.c.h.b16 %v2038
    %v2201 = vunpack.c.l.b16 %v2039
    %v2202 = vunpack.c.h.b16 %v2039
    %v2203 = vunpack.c.l.b16 %v2040
    %v2204 = vunpack.c.h.b16 %v2040
    %v2205 = vunpack.c.l.b16 %v2041
    %v2206 = vunpack.c.h.b16 %v2041
    %v2207 = vunpack.c.l.b16 %v2042
    %v2208 = vunpack.c.h.b16 %v2042
    %v2209 = vunpack.c.l.b16 %v2043
    %v2210 = vunpack.c.h.b16 %v2043
    %v2211 = vunpack.c.l.b16 %v2044
    %v2212 = vunpack.c.h.b16 %v2044
    %v2213 = vunpack.c.l.b16 %v2045
    %v2214 = vunpack.c.h.b16 %v2045
    %v2215 = vunpack.c.l.b16 %v2046
    %v2216 = vunpack.c.h.b16 %v2046
    %v2217 = vunpack.c.l.b16 %v2047
    %v2218 = vunpack.c.h.b16 %v2047
    %v2219 = vunpack.c.l.b16 %v2048
    %v2220 = vunpack.c.h.b16 %v2048
    %v2221 = vunpack.c.l.b16 %v2049
    %v2222 = vunpack.c.h.b16 %v2049
    %v2223 = vunpack.c.l.b16 %v2050
    %v2224 = vunpack.c.h.b16 %v2050
    %v2225 = vunpack.c.l.b16 %v2051
    %v2226 = vunpack.c.h.b16 %v2051
    %v2227 = vunpack.c.l.b16 %v2052
    %v2228 = vunpack.c.h.b16 %v2052
    %v2229 = vunpack.c.l.b16 %v2053
    %v2230 = vunpack.c.h.b16 %v2053
    %v2231 = vunpack.c.l.b16 %v2054
    %v2232 = vunpack.c.h.b16 %v2054
    %v2233 = vunpack.c.l.b16 %v2055
    %v2234 = vunpack.c.h.b16 %v2055
    %v2235 = vunpack.c.l.b16 %v2056
    %v2236 = vunpack.c.h.b16 %v2056
    %v2237 = vunpack.c.l.b16 %v2057
    %v2238 = vunpack.c.h.b16 %v2057
    %v2239 = vunpack.c.l.b16 %v2058
    %v2240 = vunpack.c.h.b16 %v2058
    %v2241 = vunpack.c.l.b16 %v2059
    %v2242 = vunpack.c.h.b16 %v2059
    %v2243 = vunpack.c.l.b16 %v2060
    %v2244 = vunpack.c.h.b16 %v2060
    %v2245 = vunpack.c.l.b16 %v2061
    %v2246 = vunpack.c.h.b16 %v2061
    %v2247 = vunpack.c.l.b16 %v2062
    %v2248 = vunpack.c.h.b16 %v2062
    %v2249 = vunpack.c.l.b16 %v2063
    %v2250 = vunpack.c.h.b16 %v2063
    %v2251 = vunpack.c.l.b16 %v2064
    %v2252 = vunpack.c.h.b16 %v2064
    %v2253 = vunpack.c.l.b16 %v2065
    %v2254 = vunpack.c.h.b16 %v2065
    %v2255 = vunpack.c.l.b16 %v2066
    %v2256 = vunpack.c.h.b16 %v2066
    %v2257 = vunpack.c.l.b16 %v2067
    %v2258 = vunpack.c.h.b16 %v2067
    %v2259 = vunpack.c.l.b16 %v2068
    %v2260 = vunpack.c.h.b16 %v2068
    %v2261 = vunpack.c.l.b16 %v2069
    %v2262 = vunpack.c.h.b16 %v2069
    %v2263 = vunpack.c.l.b16 %v2070
    %v2264 = vunpack.c.h.b16 %v2070
    %v2265 = vunpack.c.l.b16 %v2071
    %v2266 = vunpack.c.h.b16 %v2071
    %v2267 = vunpack.c.l.b16 %v2072
    %v2268 = vunpack.c.h.b16 %v2072
    %v2269 = vunpack.c.l.b16 %v2073
    %v2270 = vunpack.c.h.b16 %v2073
    %v2271 = vunpack.c.l.b16 %v2074
    %v2272 = vunpack.c.h.b16 %v2074
    %v2273 = vunpack.c.l.b16 %v2075
    %v2274 = vunpack.c.h.b16 %v2075
    %v2275 = vunpack.c.l.b16 %v2076
    %v2276 = vunpack.c.h.b16 %v2076
    %v2277 = vunpack.c.l.b16 %v2077
    %v2278 = vunpack.c.h.b16 %v2077
    %v2279 = vunpack.c.l.b16 %v2078
    %v2280 = vunpack.c.h.b16 %v2078
    %v2281 = vunpack.c.l.b16 %v2079
    %v2282 = vunpack.c.h.b16 %v2079
    %v2283 = vunpack.c.l.b16 %v2080
    %v2284 = vunpack.c.h.b16 %v2080
    %v2285 = vpack.c.b16 %v2159, %v2157
    %v2286 = vpack.c.b16 %v2160, %v2158
    %v2287 = vpack.c.b16 %v2163, %v2161
    %v2288 = vpack.c.b16 %v2164, %v2162
    %v2289 = vpack.c.b16 %v2167, %v2165
    %v2290 = vpack.c.b16 %v2168, %v2166
    %v2291 = vpack.c.b16 %v2171, %v2169
    %v2292 = vpack.c.b16 %v2172, %v2170
    %v2293 = vpack.c.b16 %v2175, %v2173
    %v2294 = vpack.c.b16 %v2176, %v2174
    %v2295 = vpack.c.b16 %v2179, %v2177
    %v2296 = vpack.c.b16 %v2180, %v2178
    %v2297 = vpack.c.b16 %v2183, %v2181
    %v2298 = vpack.c.b16 %v2184, %v2182
    %v2299 = vpack.c.b16 %v2187, %v2185
    %v2300 = vpack.c.b16 %v2188, %v2186
    %v2301 = vpack.c.b16 %v2191, %v2189
    %v2302 = vpack.c.b16 %v2192, %v2190
    %v2303 = vpack.c.b16 %v2195, %v2193
    %v2304 = vpack.c.b16 %v2196, %v2194
    %v2305 = vpack.c.b16 %v2199, %v2197
    %v2306 = vpack.c.b16 %v2200, %v2198
    %v2307 = vpack.c.b16 %v2203, %v2201
    %v2308 = vpack.c.b16 %v2204, %v2202
    %v2309 = vpack.c.b16 %v2207, %v2205
    %v2310 = vpack.c.b16 %v2208, %v2206
    %v2311 = vpack.c.b16 %v2211, %v2209
    %v2312 = vpack.c.b16 %v2212, %v2210
    %v2313 = vpack.c.b16 %v2215, %v2213
    %v2314 = vpack.c.b16 %v2216, %v2214
    %v2315 = vpack.c.b16 %v2219, %v2217
    %v2316 = vpack.c.b16 %v2220, %v2218
    %v2317 = vpack.c.b16 %v2223, %v2221
    %v2318 = vpack.c.b16 %v2224, %v2222
    %v2319 = vpack.c.b16 %v2227, %v2225
    %v2320 = vpack.c.b16 %v2228, %v2226
    %v2321 = vpack.c.b16 %v2231, %v2229
    %v2322 = vpack.c.b16 %v2232, %v2230
    %v2323 = vpack.c.b16 %v2235, %v2233
    %v2324 = vpack.c.b16 %v2236, %v2234
    %v2325 = vpack.c.b16 %v2239, %v2237
    %v2326 = vpack.c.b16 %v2240, %v2238
    %v2327 = vpack.c.b16 %v2243, %v2241
    %v2328 = vpack.c.b16 %v2244, %v2242
    %v2329 = vpack.c.b16 %v2247, %v2245
    %v2330 = vpack.c.b16 %v2248, %v2246
    %v2331 = vpack.c.b16 %v2251, %v2249
    %v2332 = vpack.c.b16 %v2252, %v2250
    %v2333 = vpack.c.b16 %v2255, %v2253
    %v2334 = vpack.c.b16 %v2256, %v2254
    %v2335 = vpack.c.b16 %v2259, %v2257
    %v2336 = vpack.c.b16 %v2260, %v2258
    %v2337 = vpack.c.b16 %v2263, %v2261
    %v2338 = vpack.c.b16 %v2264, %v2262
    %v2339 = vpack.c.b16 %v2267, %v2265
    %v2340 = vpack.c.b16 %v2268, %v2266
    %v2341 = vpack.c.b16 %v2271, %v2269
    %v2342 = vpack.c.b16 %v2272, %v2270
    %v2343 = vpack.c.b16 %v2275, %v2273
    %v2344 = vpack.c.b16 %v2276, %v2274
    %v2345 = vpack.c.b16 %v2279, %v2277
    %v2346 = vpack.c.b16 %v2280, %v2278
    %v2347 = vpack.c.b16 %v2283, %v2281
    %v2348 = vpack.c.b16 %v2284, %v2282
    %2413 = vmatprep.subr.bf16.mxu0 %v2286
    %2414 = vmatpush1.bf16.msra.mxu0 %v2285
    %2415 = vmatprep.subr.bf16.mxu0 %v2288
    %2416 = vmatpush1.bf16.msra.mxu0 %v2287
    %2417 = vmatprep.subr.bf16.mxu0 %v2290
    %2418 = vmatpush1.bf16.msra.mxu0 %v2289
    %2419 = vmatprep.subr.bf16.mxu0 %v2292
    %2420 = vmatpush1.bf16.msra.mxu0 %v2291
    %2421 = vmatprep.subr.bf16.mxu0 %v2294
    %2422 = vmatpush1.bf16.msra.mxu0 %v2293
    %2423 = vmatprep.subr.bf16.mxu0 %v2296
    %2424 = vmatpush1.bf16.msra.mxu0 %v2295
    %2425 = vmatprep.subr.bf16.mxu0 %v2298
    %2426 = vmatpush1.bf16.msra.mxu0 %v2297
    %2427 = vmatprep.subr.bf16.mxu0 %v2300
    %2428 = vmatpush1.bf16.msra.mxu0 %v2299
    %2429 = vmatprep.subr.bf16.mxu0 %v2302
    %2430 = vmatpush1.bf16.msra.mxu0 %v2301
    %2431 = vmatprep.subr.bf16.mxu0 %v2304
    %2432 = vmatpush1.bf16.msra.mxu0 %v2303
    %2433 = vmatprep.subr.bf16.mxu0 %v2306
    %2434 = vmatpush1.bf16.msra.mxu0 %v2305
    %2435 = vmatprep.subr.bf16.mxu0 %v2308
    %2436 = vmatpush1.bf16.msra.mxu0 %v2307
    %2437 = vmatprep.subr.bf16.mxu0 %v2310
    %2438 = vmatpush1.bf16.msra.mxu0 %v2309
    %2439 = vmatprep.subr.bf16.mxu0 %v2312
    %2440 = vmatpush1.bf16.msra.mxu0 %v2311
    %2441 = vmatprep.subr.bf16.mxu0 %v2314
    %2442 = vmatpush1.bf16.msra.mxu0 %v2313
    %2443 = vmatprep.subr.bf16.mxu0 %v2316
    %2444 = vmatpush1.bf16.msra.mxu0 %v2315
    %2445 = vmatprep.mubr.bf16.mxu0 %v2014
    %2446 = vmatmul.mubr.bf16.gmra.mrb[0].mxu0 %v2013
    %v2447 = vpop.f32.mrb[0].mxu0
    %v2448 = vadd.f32 %v2086, %v2447
    %v2449 = vpop.f32.mrb[0].mxu0
    %v2450 = vadd.f32 %v2090, %v2449
    %v2451 = vpop.f32.mrb[0].mxu0
    %v2452 = vpop.f32.mrb[0].mxu0
    %2453 = vdwg.mxu0
    %2454 = vmatprep.subr.bf16.mxu0 %v2318
    %2455 = vmatpush1.bf16.msra.mxu0 %v2317
    %2456 = vmatprep.subr.bf16.mxu0 %v2320
    %2457 = vmatpush1.bf16.msra.mxu0 %v2319
    %2458 = vmatprep.subr.bf16.mxu0 %v2322
    %2459 = vmatpush1.bf16.msra.mxu0 %v2321
    %2460 = vmatprep.subr.bf16.mxu0 %v2324
    %2461 = vmatpush1.bf16.msra.mxu0 %v2323
    %2462 = vmatprep.subr.bf16.mxu0 %v2326
    %2463 = vmatpush1.bf16.msra.mxu0 %v2325
    %2464 = vmatprep.subr.bf16.mxu0 %v2328
    %2465 = vmatpush1.bf16.msra.mxu0 %v2327
    %2466 = vmatprep.subr.bf16.mxu0 %v2330
    %2467 = vmatpush1.bf16.msra.mxu0 %v2329
    %2468 = vmatprep.subr.bf16.mxu0 %v2332
    %2469 = vmatpush1.bf16.msra.mxu0 %v2331
    %2470 = vmatprep.subr.bf16.mxu0 %v2334
    %2471 = vmatpush1.bf16.msra.mxu0 %v2333
    %2472 = vmatprep.subr.bf16.mxu0 %v2336
    %2473 = vmatpush1.bf16.msra.mxu0 %v2335
    %2474 = vmatprep.subr.bf16.mxu0 %v2338
    %2475 = vmatpush1.bf16.msra.mxu0 %v2337
    %2476 = vmatprep.subr.bf16.mxu0 %v2340
    %2477 = vmatpush1.bf16.msra.mxu0 %v2339
    %2478 = vmatprep.subr.bf16.mxu0 %v2342
    %2479 = vmatpush1.bf16.msra.mxu0 %v2341
    %2480 = vmatprep.subr.bf16.mxu0 %v2344
    %2481 = vmatpush1.bf16.msra.mxu0 %v2343
    %2482 = vmatprep.subr.bf16.mxu0 %v2346
    %2483 = vmatpush1.bf16.msra.mxu0 %v2345
    %2484 = vmatprep.subr.bf16.mxu0 %v2348
    %2485 = vmatpush1.bf16.msra.mxu0 %v2347
    %2486 = vmatprep.mubr.bf16.mxu0 %v2016
    %2487 = vmatmul.mubr.bf16.gmra.mrb[0].mxu0 %v2015
    %v2488 = vpop.f32.mrb[0].mxu0
    %v2489 = vadd.f32 %v2448, %v2488
    %v2490 = vpop.f32.mrb[0].mxu0
    %v2491 = vadd.f32 %v2450, %v2490
    %v2492 = vpop.f32.mrb[0].mxu0
    %v2493 = vpop.f32.mrb[0].mxu0
    %2494 = vdwg.mxu0
    %v2495 = vmul.f32 %v2491, 1.442695
    %v2496 = vpow.pop %v2495
    %v2497 = vmul.f32 %v2496, 0.5
    %v2498 = vld [vmem:[%s1] sm:$0xff]
    %v2499 = vmul.f32 %v2497, %v2498
    %v2500 = vadd.f32 %v2489, %v2499
    %v2501 = vpack.c.bf16 %v2500, %v2500
    %v2502 = vld [vmem:[#allocation8] sm:$0xff]
    %v2503 = vld [vmem:[#allocation8 + $0x8] sm:$0xff]
    %v2504 = vld [vmem:[#allocation8 + $0x10] sm:$0xff]
    %v2505 = vld [vmem:[#allocation8 + $0x18] sm:$0xff]
    %v2506 = vld [vmem:[#allocation8 + $0x20] sm:$0xff]
    %v2507 = vld [vmem:[#allocation8 + $0x28] sm:$0xff]
    %v2508 = vld [vmem:[#allocation8 + $0x30] sm:$0xff]
    %v2509 = vld [vmem:[#allocation8 + $0x38] sm:$0xff]
    %v2510 = vld [vmem:[#allocation8 + $0x40] sm:$0xff]
    %v2511 = vld [vmem:[#allocation8 + $0x48] sm:$0xff]
    %v2512 = vld [vmem:[#allocation8 + $0x50] sm:$0xff]
    %v2513 = vld [vmem:[#allocation8 + $0x58] sm:$0xff]
    %v2514 = vld [vmem:[#allocation8 + $0x60] sm:$0xff]
    %v2515 = vld [vmem:[#allocation8 + $0x68] sm:$0xff]
    %v2516 = vld [vmem:[#allocation8 + $0x70] sm:$0xff]
    %v2517 = vld [vmem:[#allocation8 + $0x78] sm:$0xff]
    %v2518 = vld [vmem:[#allocation8 + $0x80] sm:$0xff]
    %v2519 = vld [vmem:[#allocation8 + $0x88] sm:$0xff]
    %v2520 = vld [vmem:[#allocation8 + $0x90] sm:$0xff]
    %v2521 = vld [vmem:[#allocation8 + $0x98] sm:$0xff]
    %v2522 = vld [vmem:[#allocation8 + $0xa0] sm:$0xff]
    %v2523 = vld [vmem:[#allocation8 + $0xa8] sm:$0xff]
    %v2524 = vld [vmem:[#allocation8 + $0xb0] sm:$0xff]
    %v2525 = vld [vmem:[#allocation8 + $0xb8] sm:$0xff]
    %v2526 = vld [vmem:[#allocation8 + $0xc0] sm:$0xff]
    %v2527 = vld [vmem:[#allocation8 + $0xc8] sm:$0xff]
    %v2528 = vld [vmem:[#allocation8 + $0xd0] sm:$0xff]
    %v2529 = vld [vmem:[#allocation8 + $0xd8] sm:$0xff]
    %v2530 = vld [vmem:[#allocation8 + $0xe0] sm:$0xff]
    %v2531 = vld [vmem:[#allocation8 + $0xe8] sm:$0xff]
    %v2532 = vld [vmem:[#allocation8 + $0xf0] sm:$0xff]
    %v2533 = vld [vmem:[#allocation8 + $0xf8] sm:$0xff]
    %v2534 = vld [vmem:[%s7] sm:$0xf]
    %v2536 = vlaneseq
    %v2537 = vshrl.u32 %v2536, 7
    %v2538 = vsub.s32 0, %v2537
    %v2539 = vrot.slane %v2534, %v2538
    %v2540 = vlaneseq
    %v2541 = vshrl.u32 %v2540, 7
    %v2542 = vsub.s32 1, %v2541
    %v2543 = vrot.slane %v2534, %v2542
    %v2544 = vlaneseq
    %v2545 = vshrl.u32 %v2544, 7
    %v2546 = vsub.s32 2, %v2545
    %v2547 = vrot.slane %v2534, %v2546
    %v2548 = vlaneseq
    %v2549 = vshrl.u32 %v2548, 7
    %v2550 = vsub.s32 3, %v2549
    %v2551 = vrot.slane %v2534, %v2550
    %v2588 = vunpack.c.l.b16 %v2502
    %v2589 = vunpack.c.h.b16 %v2502
    %v2590 = vunpack.c.l.b16 %v2503
    %v2591 = vunpack.c.h.b16 %v2503
    %v2592 = vunpack.c.l.b16 %v2504
    %v2593 = vunpack.c.h.b16 %v2504
    %v2594 = vunpack.c.l.b16 %v2505
    %v2595 = vunpack.c.h.b16 %v2505
    %v2596 = vunpack.c.l.b16 %v2506
    %v2597 = vunpack.c.h.b16 %v2506
    %v2598 = vunpack.c.l.b16 %v2507
    %v2599 = vunpack.c.h.b16 %v2507
    %v2600 = vunpack.c.l.b16 %v2508
    %v2601 = vunpack.c.h.b16 %v2508
    %v2602 = vunpack.c.l.b16 %v2509
    %v2603 = vunpack.c.h.b16 %v2509
    %v2604 = vunpack.c.l.b16 %v2510
    %v2605 = vunpack.c.h.b16 %v2510
    %v2606 = vunpack.c.l.b16 %v2511
    %v2607 = vunpack.c.h.b16 %v2511
    %v2608 = vunpack.c.l.b16 %v2512
    %v2609 = vunpack.c.h.b16 %v2512
    %v2610 = vunpack.c.l.b16 %v2513
    %v2611 = vunpack.c.h.b16 %v2513
    %v2612 = vunpack.c.l.b16 %v2514
    %v2613 = vunpack.c.h.b16 %v2514
    %v2614 = vunpack.c.l.b16 %v2515
    %v2615 = vunpack.c.h.b16 %v2515
    %v2616 = vunpack.c.l.b16 %v2516
    %v2617 = vunpack.c.h.b16 %v2516
    %v2618 = vunpack.c.l.b16 %v2517
    %v2619 = vunpack.c.h.b16 %v2517
    %v2620 = vunpack.c.l.b16 %v2518
    %v2621 = vunpack.c.h.b16 %v2518
    %v2622 = vunpack.c.l.b16 %v2519
    %v2623 = vunpack.c.h.b16 %v2519
    %v2624 = vunpack.c.l.b16 %v2520
    %v2625 = vunpack.c.h.b16 %v2520
    %v2626 = vunpack.c.l.b16 %v2521
    %v2627 = vunpack.c.h.b16 %v2521
    %v2628 = vunpack.c.l.b16 %v2522
    %v2629 = vunpack.c.h.b16 %v2522
    %v2630 = vunpack.c.l.b16 %v2523
    %v2631 = vunpack.c.h.b16 %v2523
    %v2632 = vunpack.c.l.b16 %v2524
    %v2633 = vunpack.c.h.b16 %v2524
    %v2634 = vunpack.c.l.b16 %v2525
    %v2635 = vunpack.c.h.b16 %v2525
    %v2636 = vunpack.c.l.b16 %v2526
    %v2637 = vunpack.c.h.b16 %v2526
    %v2638 = vunpack.c.l.b16 %v2527
    %v2639 = vunpack.c.h.b16 %v2527
    %v2640 = vunpack.c.l.b16 %v2528
    %v2641 = vunpack.c.h.b16 %v2528
    %v2642 = vunpack.c.l.b16 %v2529
    %v2643 = vunpack.c.h.b16 %v2529
    %v2644 = vunpack.c.l.b16 %v2530
    %v2645 = vunpack.c.h.b16 %v2530
    %v2646 = vunpack.c.l.b16 %v2531
    %v2647 = vunpack.c.h.b16 %v2531
    %v2648 = vunpack.c.l.b16 %v2532
    %v2649 = vunpack.c.h.b16 %v2532
    %v2650 = vunpack.c.l.b16 %v2533
    %v2651 = vunpack.c.h.b16 %v2533
    %v2652 = vpack.c.b16 %v2592, %v2588
    %v2653 = vpack.c.b16 %v2593, %v2589
    %v2654 = vpack.c.b16 %v2594, %v2590
    %v2655 = vpack.c.b16 %v2595, %v2591
    %v2656 = vpack.c.b16 %v2600, %v2596
    %v2657 = vpack.c.b16 %v2601, %v2597
    %v2658 = vpack.c.b16 %v2602, %v2598
    %v2659 = vpack.c.b16 %v2603, %v2599
    %v2660 = vpack.c.b16 %v2608, %v2604
    %v2661 = vpack.c.b16 %v2609, %v2605
    %v2662 = vpack.c.b16 %v2610, %v2606
    %v2663 = vpack.c.b16 %v2611, %v2607
    %v2664 = vpack.c.b16 %v2616, %v2612
    %v2665 = vpack.c.b16 %v2617, %v2613
    %v2666 = vpack.c.b16 %v2618, %v2614
    %v2667 = vpack.c.b16 %v2619, %v2615
    %v2668 = vpack.c.b16 %v2624, %v2620
    %v2669 = vpack.c.b16 %v2625, %v2621
    %v2670 = vpack.c.b16 %v2626, %v2622
    %v2671 = vpack.c.b16 %v2627, %v2623
    %v2672 = vpack.c.b16 %v2632, %v2628
    %v2673 = vpack.c.b16 %v2633, %v2629
    %v2674 = vpack.c.b16 %v2634, %v2630
    %v2675 = vpack.c.b16 %v2635, %v2631
    %v2676 = vpack.c.b16 %v2640, %v2636
    %v2677 = vpack.c.b16 %v2641, %v2637
    %v2678 = vpack.c.b16 %v2642, %v2638
    %v2679 = vpack.c.b16 %v2643, %v2639
    %v2680 = vpack.c.b16 %v2648, %v2644
    %v2681 = vpack.c.b16 %v2649, %v2645
    %v2682 = vpack.c.b16 %v2650, %v2646
    %v2683 = vpack.c.b16 %v2651, %v2647
    %2716 = vmatprep.subr.bf16.mxu0 %v2653
    %2717 = vmatpush1.bf16.msra.mxu0 %v2652
    %2718 = vmatprep.subr.bf16.mxu0 %v2657
    %2719 = vmatpush1.bf16.msra.mxu0 %v2656
    %2720 = vmatprep.subr.bf16.mxu0 %v2661
    %2721 = vmatpush1.bf16.msra.mxu0 %v2660
    %2722 = vmatprep.subr.bf16.mxu0 %v2665
    %2723 = vmatpush1.bf16.msra.mxu0 %v2664
    %2724 = vmatprep.subr.bf16.mxu0 %v2669
    %2725 = vmatpush1.bf16.msra.mxu0 %v2668
    %2726 = vmatprep.subr.bf16.mxu0 %v2673
    %2727 = vmatpush1.bf16.msra.mxu0 %v2672
    %2728 = vmatprep.subr.bf16.mxu0 %v2677
    %2729 = vmatpush1.bf16.msra.mxu0 %v2676
    %2730 = vmatprep.subr.bf16.mxu0 %v2681
    %2731 = vmatpush1.bf16.msra.mxu0 %v2680
    %2732 = vmatprep.subr.bf16.mxu0 0
    %2733 = vmatpush1.bf16.msra.mxu0 0
    %2734 = vmatprep.subr.bf16.mxu0 0
    %2735 = vmatpush1.bf16.msra.mxu0 0
    %2736 = vmatprep.subr.bf16.mxu0 0
    %2737 = vmatpush1.bf16.msra.mxu0 0
    %2738 = vmatprep.subr.bf16.mxu0 0
    %2739 = vmatpush1.bf16.msra.mxu0 0
    %2740 = vmatprep.subr.bf16.mxu0 0
    %2741 = vmatpush1.bf16.msra.mxu0 0
    %2742 = vmatprep.subr.bf16.mxu0 0
    %2743 = vmatpush1.bf16.msra.mxu0 0
    %2744 = vmatprep.subr.bf16.mxu0 0
    %2745 = vmatpush1.bf16.msra.mxu0 0
    %2746 = vmatprep.subr.bf16.mxu0 0
    %2747 = vmatpush1.bf16.msra.mxu0 0
    %2748 = vmatprep.mubr.bf16.mxu0 0
    %2749 = vmatmul.mubr.bf16.gmra.mrb[0].mxu0 %v2501
    %v2750 = vpop.f32.mrb[0].mxu0
    %v2751 = vadd.f32 %v2539, %v2750
    %v2752 = vpop.f32.mrb[0].mxu0
    %v2753 = vadd.f32 %v2543, %v2752
    %v2754 = vpop.f32.mrb[0].mxu0
    %v2755 = vpop.f32.mrb[0].mxu0
    %2756 = vdwg.mxu0
    %2757 = vmatprep.subr.bf16.mxu0 %v2655
    %2758 = vmatpush1.bf16.msra.mxu0 %v2654
    %2759 = vmatprep.subr.bf16.mxu0 %v2659
    %2760 = vmatpush1.bf16.msra.mxu0 %v2658
    %2761 = vmatprep.subr.bf16.mxu0 %v2663
    %2762 = vmatpush1.bf16.msra.mxu0 %v2662
    %2763 = vmatprep.subr.bf16.mxu0 %v2667
    %2764 = vmatpush1.bf16.msra.mxu0 %v2666
    %2765 = vmatprep.subr.bf16.mxu0 %v2671
    %2766 = vmatpush1.bf16.msra.mxu0 %v2670
    %2767 = vmatprep.subr.bf16.mxu0 %v2675
    %2768 = vmatpush1.bf16.msra.mxu0 %v2674
    %2769 = vmatprep.subr.bf16.mxu0 %v2679
    %2770 = vmatpush1.bf16.msra.mxu0 %v2678
    %2771 = vmatprep.subr.bf16.mxu0 %v2683
    %2772 = vmatpush1.bf16.msra.mxu0 %v2682
    %2773 = vmatprep.subr.bf16.mxu0 0
    %2774 = vmatpush1.bf16.msra.mxu0 0
    %2775 = vmatprep.subr.bf16.mxu0 0
    %2776 = vmatpush1.bf16.msra.mxu0 0
    %2777 = vmatprep.subr.bf16.mxu0 0
    %2778 = vmatpush1.bf16.msra.mxu0 0
    %2779 = vmatprep.subr.bf16.mxu0 0
    %2780 = vmatpush1.bf16.msra.mxu0 0
    %2781 = vmatprep.subr.bf16.mxu0 0
    %2782 = vmatpush1.bf16.msra.mxu0 0
    %2783 = vmatprep.subr.bf16.mxu0 0
    %2784 = vmatpush1.bf16.msra.mxu0 0
    %2785 = vmatprep.subr.bf16.mxu0 0
    %2786 = vmatpush1.bf16.msra.mxu0 0
    %2787 = vmatprep.subr.bf16.mxu0 0
    %2788 = vmatpush1.bf16.msra.mxu0 0
    %2789 = vmatprep.mubr.bf16.mxu0 0
    %2790 = vmatmul.mubr.bf16.gmra.mrb[0].mxu0 %v2501
    %v2791 = vpop.f32.mrb[0].mxu0
    %v2792 = vadd.f32 %v2547, %v2791
    %v2793 = vpop.f32.mrb[0].mxu0
    %v2794 = vadd.f32 %v2551, %v2793
    %v2795 = vpop.f32.mrb[0].mxu0
    %v2796 = vpop.f32.mrb[0].mxu0
    %2797 = vdwg.mxu0
    %v2798 = vmax.f32 %v2751, 0.0
    %v2799 = vmax.f32 %v2753, 0.0
    %v2800 = vmax.f32 %v2792, 0.0
    %v2801 = vmax.f32 %v2794, 0.0
    %v2802 = vpack.c.bf16 %v2798, %v2798
    %v2803 = vpack.c.bf16 %v2799, %v2799
    %v2804 = vpack.c.bf16 %v2800, %v2800
    %v2805 = vpack.c.bf16 %v2801, %v2801
    %v2806 = vld [vmem:[#allocation10] sm:$0xff]
    %v2807 = vld [vmem:[#allocation10 + $0x8] sm:$0xff]
    %v2808 = vld [vmem:[#allocation10 + $0x10] sm:$0xff]
    %v2809 = vld [vmem:[#allocation10 + $0x18] sm:$0xff]
    %v2810 = vld [vmem:[#allocation10 + $0x20] sm:$0xff]
    %v2811 = vld [vmem:[#allocation10 + $0x28] sm:$0xff]
    %v2812 = vld [vmem:[#allocation10 + $0x30] sm:$0xff]
    %v2813 = vld [vmem:[#allocation10 + $0x38] sm:$0xff]
    %v2814 = vld [vmem:[#allocation10 + $0x40] sm:$0xff]
    %v2815 = vld [vmem:[#allocation10 + $0x48] sm:$0xff]
    %v2816 = vld [vmem:[#allocation10 + $0x50] sm:$0xff]
    %v2817 = vld [vmem:[#allocation10 + $0x58] sm:$0xff]
    %v2818 = vld [vmem:[#allocation10 + $0x60] sm:$0xff]
    %v2819 = vld [vmem:[#allocation10 + $0x68] sm:$0xff]
    %v2820 = vld [vmem:[#allocation10 + $0x70] sm:$0xff]
    %v2821 = vld [vmem:[#allocation10 + $0x78] sm:$0xff]
    %v2822 = vld [vmem:[#allocation10 + $0x80] sm:$0xff]
    %v2823 = vld [vmem:[#allocation10 + $0x88] sm:$0xff]
    %v2824 = vld [vmem:[#allocation10 + $0x90] sm:$0xff]
    %v2825 = vld [vmem:[#allocation10 + $0x98] sm:$0xff]
    %v2826 = vld [vmem:[#allocation10 + $0xa0] sm:$0xff]
    %v2827 = vld [vmem:[#allocation10 + $0xa8] sm:$0xff]
    %v2828 = vld [vmem:[#allocation10 + $0xb0] sm:$0xff]
    %v2829 = vld [vmem:[#allocation10 + $0xb8] sm:$0xff]
    %v2830 = vld [vmem:[#allocation10 + $0xc0] sm:$0xff]
    %v2831 = vld [vmem:[#allocation10 + $0xc8] sm:$0xff]
    %v2832 = vld [vmem:[#allocation10 + $0xd0] sm:$0xff]
    %v2833 = vld [vmem:[#allocation10 + $0xd8] sm:$0xff]
    %v2834 = vld [vmem:[#allocation10 + $0xe0] sm:$0xff]
    %v2835 = vld [vmem:[#allocation10 + $0xe8] sm:$0xff]
    %v2836 = vld [vmem:[#allocation10 + $0xf0] sm:$0xff]
    %v2837 = vld [vmem:[#allocation10 + $0xf8] sm:$0xff]
    %v2838 = vld [vmem:[#allocation10 + $0x100] sm:$0xff]
    %v2839 = vld [vmem:[#allocation10 + $0x108] sm:$0xff]
    %v2840 = vld [vmem:[#allocation10 + $0x110] sm:$0xff]
    %v2841 = vld [vmem:[#allocation10 + $0x118] sm:$0xff]
    %v2842 = vld [vmem:[#allocation10 + $0x120] sm:$0xff]
    %v2843 = vld [vmem:[#allocation10 + $0x128] sm:$0xff]
    %v2844 = vld [vmem:[#allocation10 + $0x130] sm:$0xff]
    %v2845 = vld [vmem:[#allocation10 + $0x138] sm:$0xff]
    %v2846 = vld [vmem:[#allocation10 + $0x140] sm:$0xff]
    %v2847 = vld [vmem:[#allocation10 + $0x148] sm:$0xff]
    %v2848 = vld [vmem:[#allocation10 + $0x150] sm:$0xff]
    %v2849 = vld [vmem:[#allocation10 + $0x158] sm:$0xff]
    %v2850 = vld [vmem:[#allocation10 + $0x160] sm:$0xff]
    %v2851 = vld [vmem:[#allocation10 + $0x168] sm:$0xff]
    %v2852 = vld [vmem:[#allocation10 + $0x170] sm:$0xff]
    %v2853 = vld [vmem:[#allocation10 + $0x178] sm:$0xff]
    %v2854 = vld [vmem:[#allocation10 + $0x180] sm:$0xff]
    %v2855 = vld [vmem:[#allocation10 + $0x188] sm:$0xff]
    %v2856 = vld [vmem:[#allocation10 + $0x190] sm:$0xff]
    %v2857 = vld [vmem:[#allocation10 + $0x198] sm:$0xff]
    %v2858 = vld [vmem:[#allocation10 + $0x1a0] sm:$0xff]
    %v2859 = vld [vmem:[#allocation10 + $0x1a8] sm:$0xff]
    %v2860 = vld [vmem:[#allocation10 + $0x1b0] sm:$0xff]
    %v2861 = vld [vmem:[#allocation10 + $0x1b8] sm:$0xff]
    %v2862 = vld [vmem:[#allocation10 + $0x1c0] sm:$0xff]
    %v2863 = vld [vmem:[#allocation10 + $0x1c8] sm:$0xff]
    %v2864 = vld [vmem:[#allocation10 + $0x1d0] sm:$0xff]
    %v2865 = vld [vmem:[#allocation10 + $0x1d8] sm:$0xff]
    %v2866 = vld [vmem:[#allocation10 + $0x1e0] sm:$0xff]
    %v2867 = vld [vmem:[#allocation10 + $0x1e8] sm:$0xff]
    %v2868 = vld [vmem:[#allocation10 + $0x1f0] sm:$0xff]
    %v2869 = vld [vmem:[#allocation10 + $0x1f8] sm:$0xff]
    %v2870 = vld [vmem:[#allocation10 + $0x200] sm:$0xff]
    %v2871 = vld [vmem:[#allocation10 + $0x208] sm:$0xff]
    %v2872 = vld [vmem:[#allocation10 + $0x210] sm:$0xff]
    %v2873 = vld [vmem:[#allocation10 + $0x218] sm:$0xff]
    %v2874 = vld [vmem:[#allocation10 + $0x220] sm:$0xff]
    %v2875 = vld [vmem:[#allocation10 + $0x228] sm:$0xff]
    %v2876 = vld [vmem:[#allocation10 + $0x230] sm:$0xff]
    %v2877 = vld [vmem:[#allocation10 + $0x238] sm:$0xff]
    %v2878 = vld [vmem:[#allocation10 + $0x240] sm:$0xff]
    %v2879 = vld [vmem:[#allocation10 + $0x248] sm:$0xff]
    %v2880 = vld [vmem:[#allocation10 + $0x250] sm:$0xff]
    %v2881 = vld [vmem:[#allocation10 + $0x258] sm:$0xff]
    %v2882 = vld [vmem:[#allocation10 + $0x260] sm:$0xff]
    %v2883 = vld [vmem:[#allocation10 + $0x268] sm:$0xff]
    %v2884 = vld [vmem:[#allocation10 + $0x270] sm:$0xff]
    %v2885 = vld [vmem:[#allocation10 + $0x278] sm:$0xff]
    %v2886 = vld [vmem:[#allocation10 + $0x280] sm:$0xff]
    %v2887 = vld [vmem:[#allocation10 + $0x288] sm:$0xff]
    %v2888 = vld [vmem:[#allocation10 + $0x290] sm:$0xff]
    %v2889 = vld [vmem:[#allocation10 + $0x298] sm:$0xff]
    %v2890 = vld [vmem:[#allocation10 + $0x2a0] sm:$0xff]
    %v2891 = vld [vmem:[#allocation10 + $0x2a8] sm:$0xff]
    %v2892 = vld [vmem:[#allocation10 + $0x2b0] sm:$0xff]
    %v2893 = vld [vmem:[#allocation10 + $0x2b8] sm:$0xff]
    %v2894 = vld [vmem:[#allocation10 + $0x2c0] sm:$0xff]
    %v2895 = vld [vmem:[#allocation10 + $0x2c8] sm:$0xff]
    %v2896 = vld [vmem:[#allocation10 + $0x2d0] sm:$0xff]
    %v2897 = vld [vmem:[#allocation10 + $0x2d8] sm:$0xff]
    %v2898 = vld [vmem:[#allocation10 + $0x2e0] sm:$0xff]
    %v2899 = vld [vmem:[#allocation10 + $0x2e8] sm:$0xff]
    %v2900 = vld [vmem:[#allocation10 + $0x2f0] sm:$0xff]
    %v2901 = vld [vmem:[#allocation10 + $0x2f8] sm:$0xff]
    %v2902 = vld [vmem:[#allocation10 + $0x300] sm:$0xff]
    %v2903 = vld [vmem:[#allocation10 + $0x308] sm:$0xff]
    %v2904 = vld [vmem:[#allocation10 + $0x310] sm:$0xff]
    %v2905 = vld [vmem:[#allocation10 + $0x318] sm:$0xff]
    %v2906 = vld [vmem:[#allocation10 + $0x320] sm:$0xff]
    %v2907 = vld [vmem:[#allocation10 + $0x328] sm:$0xff]
    %v2908 = vld [vmem:[#allocation10 + $0x330] sm:$0xff]
    %v2909 = vld [vmem:[#allocation10 + $0x338] sm:$0xff]
    %v2910 = vld [vmem:[#allocation10 + $0x340] sm:$0xff]
    %v2911 = vld [vmem:[#allocation10 + $0x348] sm:$0xff]
    %v2912 = vld [vmem:[#allocation10 + $0x350] sm:$0xff]
    %v2913 = vld [vmem:[#allocation10 + $0x358] sm:$0xff]
    %v2914 = vld [vmem:[#allocation10 + $0x360] sm:$0xff]
    %v2915 = vld [vmem:[#allocation10 + $0x368] sm:$0xff]
    %v2916 = vld [vmem:[#allocation10 + $0x370] sm:$0xff]
    %v2917 = vld [vmem:[#allocation10 + $0x378] sm:$0xff]
    %v2918 = vld [vmem:[#allocation10 + $0x380] sm:$0xff]
    %v2919 = vld [vmem:[#allocation10 + $0x388] sm:$0xff]
    %v2920 = vld [vmem:[#allocation10 + $0x390] sm:$0xff]
    %v2921 = vld [vmem:[#allocation10 + $0x398] sm:$0xff]
    %v2922 = vld [vmem:[#allocation10 + $0x3a0] sm:$0xff]
    %v2923 = vld [vmem:[#allocation10 + $0x3a8] sm:$0xff]
    %v2924 = vld [vmem:[#allocation10 + $0x3b0] sm:$0xff]
    %v2925 = vld [vmem:[#allocation10 + $0x3b8] sm:$0xff]
    %v2926 = vld [vmem:[#allocation10 + $0x3c0] sm:$0xff]
    %v2927 = vld [vmem:[#allocation10 + $0x3c8] sm:$0xff]
    %v2928 = vld [vmem:[#allocation10 + $0x3d0] sm:$0xff]
    %v2929 = vld [vmem:[#allocation10 + $0x3d8] sm:$0xff]
    %v2930 = vld [vmem:[#allocation10 + $0x3e0] sm:$0xff]
    %v2931 = vld [vmem:[#allocation10 + $0x3e8] sm:$0xff]
    %v2932 = vld [vmem:[#allocation10 + $0x3f0] sm:$0xff]
    %v2933 = vld [vmem:[#allocation10 + $0x3f8] sm:$0xff]
    %v2934 = vld [vmem:[#allocation10 + $0x400] sm:$0xff]
    %v2935 = vld [vmem:[#allocation10 + $0x408] sm:$0xff]
    %v2936 = vld [vmem:[#allocation10 + $0x410] sm:$0xff]
    %v2937 = vld [vmem:[#allocation10 + $0x418] sm:$0xff]
    %v2938 = vld [vmem:[#allocation10 + $0x420] sm:$0xff]
    %v2939 = vld [vmem:[#allocation10 + $0x428] sm:$0xff]
    %v2940 = vld [vmem:[#allocation10 + $0x430] sm:$0xff]
    %v2941 = vld [vmem:[#allocation10 + $0x438] sm:$0xff]
    %v2942 = vld [vmem:[#allocation10 + $0x440] sm:$0xff]
    %v2943 = vld [vmem:[#allocation10 + $0x448] sm:$0xff]
    %v2944 = vld [vmem:[#allocation10 + $0x450] sm:$0xff]
    %v2945 = vld [vmem:[#allocation10 + $0x458] sm:$0xff]
    %v2946 = vld [vmem:[#allocation10 + $0x460] sm:$0xff]
    %v2947 = vld [vmem:[#allocation10 + $0x468] sm:$0xff]
    %v2948 = vld [vmem:[#allocation10 + $0x470] sm:$0xff]
    %v2949 = vld [vmem:[#allocation10 + $0x478] sm:$0xff]
    %v2950 = vld [vmem:[#allocation10 + $0x480] sm:$0xff]
    %v2951 = vld [vmem:[#allocation10 + $0x488] sm:$0xff]
    %v2952 = vld [vmem:[#allocation10 + $0x490] sm:$0xff]
    %v2953 = vld [vmem:[#allocation10 + $0x498] sm:$0xff]
    %v2954 = vld [vmem:[#allocation10 + $0x4a0] sm:$0xff]
    %v2955 = vld [vmem:[#allocation10 + $0x4a8] sm:$0xff]
    %v2956 = vld [vmem:[#allocation10 + $0x4b0] sm:$0xff]
    %v2957 = vld [vmem:[#allocation10 + $0x4b8] sm:$0xff]
    %v2958 = vld [vmem:[#allocation10 + $0x4c0] sm:$0xff]
    %v2959 = vld [vmem:[#allocation10 + $0x4c8] sm:$0xff]
    %v2960 = vld [vmem:[#allocation10 + $0x4d0] sm:$0xff]
    %v2961 = vld [vmem:[#allocation10 + $0x4d8] sm:$0xff]
    %v2962 = vld [vmem:[#allocation10 + $0x4e0] sm:$0xff]
    %v2963 = vld [vmem:[#allocation10 + $0x4e8] sm:$0xff]
    %v2964 = vld [vmem:[#allocation10 + $0x4f0] sm:$0xff]
    %v2965 = vld [vmem:[#allocation10 + $0x4f8] sm:$0xff]
    %v2966 = vld [vmem:[#allocation10 + $0x500] sm:$0xff]
    %v2967 = vld [vmem:[#allocation10 + $0x508] sm:$0xff]
    %v2968 = vld [vmem:[#allocation10 + $0x510] sm:$0xff]
    %v2969 = vld [vmem:[#allocation10 + $0x518] sm:$0xff]
    %v2970 = vld [vmem:[#allocation10 + $0x520] sm:$0xff]
    %v2971 = vld [vmem:[#allocation10 + $0x528] sm:$0xff]
    %v2972 = vld [vmem:[#allocation10 + $0x530] sm:$0xff]
    %v2973 = vld [vmem:[#allocation10 + $0x538] sm:$0xff]
    %v2974 = vld [vmem:[#allocation10 + $0x540] sm:$0xff]
    %v2975 = vld [vmem:[#allocation10 + $0x548] sm:$0xff]
    %v2976 = vld [vmem:[#allocation10 + $0x550] sm:$0xff]
    %v2977 = vld [vmem:[#allocation10 + $0x558] sm:$0xff]
    %v2978 = vld [vmem:[#allocation10 + $0x560] sm:$0xff]
    %v2979 = vld [vmem:[#allocation10 + $0x568] sm:$0xff]
    %v2980 = vld [vmem:[#allocation10 + $0x570] sm:$0xff]
    %v2981 = vld [vmem:[#allocation10 + $0x578] sm:$0xff]
    %v2982 = vld [vmem:[#allocation10 + $0x580] sm:$0xff]
    %v2983 = vld [vmem:[#allocation10 + $0x588] sm:$0xff]
    %v2984 = vld [vmem:[#allocation10 + $0x590] sm:$0xff]
    %v2985 = vld [vmem:[#allocation10 + $0x598] sm:$0xff]
    %v2986 = vld [vmem:[#allocation10 + $0x5a0] sm:$0xff]
    %v2987 = vld [vmem:[#allocation10 + $0x5a8] sm:$0xff]
    %v2988 = vld [vmem:[#allocation10 + $0x5b0] sm:$0xff]
    %v2989 = vld [vmem:[#allocation10 + $0x5b8] sm:$0xff]
    %v2990 = vld [vmem:[#allocation10 + $0x5c0] sm:$0xff]
    %v2991 = vld [vmem:[#allocation10 + $0x5c8] sm:$0xff]
    %v2992 = vld [vmem:[#allocation10 + $0x5d0] sm:$0xff]
    %v2993 = vld [vmem:[#allocation10 + $0x5d8] sm:$0xff]
    %v2994 = vld [vmem:[#allocation10 + $0x5e0] sm:$0xff]
    %v2995 = vld [vmem:[#allocation10 + $0x5e8] sm:$0xff]
    %v2996 = vld [vmem:[#allocation10 + $0x5f0] sm:$0xff]
    %v2997 = vld [vmem:[#allocation10 + $0x5f8] sm:$0xff]
    %v2998 = vld [vmem:[#allocation10 + $0x600] sm:$0xff]
    %v2999 = vld [vmem:[#allocation10 + $0x608] sm:$0xff]
    %v3000 = vld [vmem:[#allocation10 + $0x610] sm:$0xff]
    %v3001 = vld [vmem:[#allocation10 + $0x618] sm:$0xff]
    %v3002 = vld [vmem:[#allocation10 + $0x620] sm:$0xff]
    %v3003 = vld [vmem:[#allocation10 + $0x628] sm:$0xff]
    %v3004 = vld [vmem:[#allocation10 + $0x630] sm:$0xff]
    %v3005 = vld [vmem:[#allocation10 + $0x638] sm:$0xff]
    %v3006 = vld [vmem:[#allocation10 + $0x640] sm:$0xff]
    %v3007 = vld [vmem:[#allocation10 + $0x648] sm:$0xff]
    %v3008 = vld [vmem:[#allocation10 + $0x650] sm:$0xff]
    %v3009 = vld [vmem:[#allocation10 + $0x658] sm:$0xff]
    %v3010 = vld [vmem:[#allocation10 + $0x660] sm:$0xff]
    %v3011 = vld [vmem:[#allocation10 + $0x668] sm:$0xff]
    %v3012 = vld [vmem:[#allocation10 + $0x670] sm:$0xff]
    %v3013 = vld [vmem:[#allocation10 + $0x678] sm:$0xff]
    %v3014 = vld [vmem:[#allocation10 + $0x680] sm:$0xff]
    %v3015 = vld [vmem:[#allocation10 + $0x688] sm:$0xff]
    %v3016 = vld [vmem:[#allocation10 + $0x690] sm:$0xff]
    %v3017 = vld [vmem:[#allocation10 + $0x698] sm:$0xff]
    %v3018 = vld [vmem:[#allocation10 + $0x6a0] sm:$0xff]
    %v3019 = vld [vmem:[#allocation10 + $0x6a8] sm:$0xff]
    %v3020 = vld [vmem:[#allocation10 + $0x6b0] sm:$0xff]
    %v3021 = vld [vmem:[#allocation10 + $0x6b8] sm:$0xff]
    %v3022 = vld [vmem:[#allocation10 + $0x6c0] sm:$0xff]
    %v3023 = vld [vmem:[#allocation10 + $0x6c8] sm:$0xff]
    %v3024 = vld [vmem:[#allocation10 + $0x6d0] sm:$0xff]
    %v3025 = vld [vmem:[#allocation10 + $0x6d8] sm:$0xff]
    %v3026 = vld [vmem:[#allocation10 + $0x6e0] sm:$0xff]
    %v3027 = vld [vmem:[#allocation10 + $0x6e8] sm:$0xff]
    %v3028 = vld [vmem:[#allocation10 + $0x6f0] sm:$0xff]
    %v3029 = vld [vmem:[#allocation10 + $0x6f8] sm:$0xff]
    %v3030 = vld [vmem:[#allocation10 + $0x700] sm:$0xff]
    %v3031 = vld [vmem:[#allocation10 + $0x708] sm:$0xff]
    %v3032 = vld [vmem:[#allocation10 + $0x710] sm:$0xff]
    %v3033 = vld [vmem:[#allocation10 + $0x718] sm:$0xff]
    %v3034 = vld [vmem:[#allocation10 + $0x720] sm:$0xff]
    %v3035 = vld [vmem:[#allocation10 + $0x728] sm:$0xff]
    %v3036 = vld [vmem:[#allocation10 + $0x730] sm:$0xff]
    %v3037 = vld [vmem:[#allocation10 + $0x738] sm:$0xff]
    %v3038 = vld [vmem:[#allocation10 + $0x740] sm:$0xff]
    %v3039 = vld [vmem:[#allocation10 + $0x748] sm:$0xff]
    %v3040 = vld [vmem:[#allocation10 + $0x750] sm:$0xff]
    %v3041 = vld [vmem:[#allocation10 + $0x758] sm:$0xff]
    %v3042 = vld [vmem:[#allocation10 + $0x760] sm:$0xff]
    %v3043 = vld [vmem:[#allocation10 + $0x768] sm:$0xff]
    %v3044 = vld [vmem:[#allocation10 + $0x770] sm:$0xff]
    %v3045 = vld [vmem:[#allocation10 + $0x778] sm:$0xff]
    %v3046 = vld [vmem:[#allocation10 + $0x780] sm:$0xff]
    %v3047 = vld [vmem:[#allocation10 + $0x788] sm:$0xff]
    %v3048 = vld [vmem:[#allocation10 + $0x790] sm:$0xff]
    %v3049 = vld [vmem:[#allocation10 + $0x798] sm:$0xff]
    %v3050 = vld [vmem:[#allocation10 + $0x7a0] sm:$0xff]
    %v3051 = vld [vmem:[#allocation10 + $0x7a8] sm:$0xff]
    %v3052 = vld [vmem:[#allocation10 + $0x7b0] sm:$0xff]
    %v3053 = vld [vmem:[#allocation10 + $0x7b8] sm:$0xff]
    %v3054 = vld [vmem:[#allocation10 + $0x7c0] sm:$0xff]
    %v3055 = vld [vmem:[#allocation10 + $0x7c8] sm:$0xff]
    %v3056 = vld [vmem:[#allocation10 + $0x7d0] sm:$0xff]
    %v3057 = vld [vmem:[#allocation10 + $0x7d8] sm:$0xff]
    %v3058 = vld [vmem:[#allocation10 + $0x7e0] sm:$0xff]
    %v3059 = vld [vmem:[#allocation10 + $0x7e8] sm:$0xff]
    %v3060 = vld [vmem:[#allocation10 + $0x7f0] sm:$0xff]
    %v3061 = vld [vmem:[#allocation10 + $0x7f8] sm:$0xff]
    %v3062 = vld [vmem:[%s9] sm:$0xff]
    %v3064 = vlaneseq
    %v3065 = vshrl.u32 %v3064, 7
    %v3066 = vsub.s32 0, %v3065
    %v3067 = vrot.slane %v3062, %v3066
    %v3068 = vlaneseq
    %v3069 = vshrl.u32 %v3068, 7
    %v3070 = vsub.s32 1, %v3069
    %v3071 = vrot.slane %v3062, %v3070
    %v3072 = vlaneseq
    %v3073 = vshrl.u32 %v3072, 7
    %v3074 = vsub.s32 2, %v3073
    %v3075 = vrot.slane %v3062, %v3074
    %v3076 = vlaneseq
    %v3077 = vshrl.u32 %v3076, 7
    %v3078 = vsub.s32 3, %v3077
    %v3079 = vrot.slane %v3062, %v3078
    %v3080 = vlaneseq
    %v3081 = vshrl.u32 %v3080, 7
    %v3082 = vsub.s32 4, %v3081
    %v3083 = vrot.slane %v3062, %v3082
    %v3084 = vlaneseq
    %v3085 = vshrl.u32 %v3084, 7
    %v3086 = vsub.s32 5, %v3085
    %v3087 = vrot.slane %v3062, %v3086
    %v3088 = vlaneseq
    %v3089 = vshrl.u32 %v3088, 7
    %v3090 = vsub.s32 6, %v3089
    %v3091 = vrot.slane %v3062, %v3090
    %v3092 = vlaneseq
    %v3093 = vshrl.u32 %v3092, 7
    %v3094 = vsub.s32 7, %v3093
    %v3095 = vrot.slane %v3062, %v3094
    %v3360 = vunpack.c.l.b16 %v2806
    %v3361 = vunpack.c.h.b16 %v2806
    %v3362 = vunpack.c.l.b16 %v2807
    %v3363 = vunpack.c.h.b16 %v2807
    %v3364 = vunpack.c.l.b16 %v2808
    %v3365 = vunpack.c.h.b16 %v2808
    %v3366 = vunpack.c.l.b16 %v2809
    %v3367 = vunpack.c.h.b16 %v2809
    %v3368 = vunpack.c.l.b16 %v2810
    %v3369 = vunpack.c.h.b16 %v2810
    %v3370 = vunpack.c.l.b16 %v2811
    %v3371 = vunpack.c.h.b16 %v2811
    %v3372 = vunpack.c.l.b16 %v2812
    %v3373 = vunpack.c.h.b16 %v2812
    %v3374 = vunpack.c.l.b16 %v2813
    %v3375 = vunpack.c.h.b16 %v2813
    %v3376 = vunpack.c.l.b16 %v2814
    %v3377 = vunpack.c.h.b16 %v2814
    %v3378 = vunpack.c.l.b16 %v2815
    %v3379 = vunpack.c.h.b16 %v2815
    %v3380 = vunpack.c.l.b16 %v2816
    %v3381 = vunpack.c.h.b16 %v2816
    %v3382 = vunpack.c.l.b16 %v2817
    %v3383 = vunpack.c.h.b16 %v2817
    %v3384 = vunpack.c.l.b16 %v2818
    %v3385 = vunpack.c.h.b16 %v2818
    %v3386 = vunpack.c.l.b16 %v2819
    %v3387 = vunpack.c.h.b16 %v2819
    %v3388 = vunpack.c.l.b16 %v2820
    %v3389 = vunpack.c.h.b16 %v2820
    %v3390 = vunpack.c.l.b16 %v2821
    %v3391 = vunpack.c.h.b16 %v2821
    %v3392 = vunpack.c.l.b16 %v2822
    %v3393 = vunpack.c.h.b16 %v2822
    %v3394 = vunpack.c.l.b16 %v2823
    %v3395 = vunpack.c.h.b16 %v2823
    %v3396 = vunpack.c.l.b16 %v2824
    %v3397 = vunpack.c.h.b16 %v2824
    %v3398 = vunpack.c.l.b16 %v2825
    %v3399 = vunpack.c.h.b16 %v2825
    %v3400 = vunpack.c.l.b16 %v2826
    %v3401 = vunpack.c.h.b16 %v2826
    %v3402 = vunpack.c.l.b16 %v2827
    %v3403 = vunpack.c.h.b16 %v2827
    %v3404 = vunpack.c.l.b16 %v2828
    %v3405 = vunpack.c.h.b16 %v2828
    %v3406 = vunpack.c.l.b16 %v2829
    %v3407 = vunpack.c.h.b16 %v2829
    %v3408 = vunpack.c.l.b16 %v2830
    %v3409 = vunpack.c.h.b16 %v2830
    %v3410 = vunpack.c.l.b16 %v2831
    %v3411 = vunpack.c.h.b16 %v2831
    %v3412 = vunpack.c.l.b16 %v2832
    %v3413 = vunpack.c.h.b16 %v2832
    %v3414 = vunpack.c.l.b16 %v2833
    %v3415 = vunpack.c.h.b16 %v2833
    %v3416 = vunpack.c.l.b16 %v2834
    %v3417 = vunpack.c.h.b16 %v2834
    %v3418 = vunpack.c.l.b16 %v2835
    %v3419 = vunpack.c.h.b16 %v2835
    %v3420 = vunpack.c.l.b16 %v2836
    %v3421 = vunpack.c.h.b16 %v2836
    %v3422 = vunpack.c.l.b16 %v2837
    %v3423 = vunpack.c.h.b16 %v2837
    %v3424 = vunpack.c.l.b16 %v2838
    %v3425 = vunpack.c.h.b16 %v2838
    %v3426 = vunpack.c.l.b16 %v2839
    %v3427 = vunpack.c.h.b16 %v2839
    %v3428 = vunpack.c.l.b16 %v2840
    %v3429 = vunpack.c.h.b16 %v2840
    %v3430 = vunpack.c.l.b16 %v2841
    %v3431 = vunpack.c.h.b16 %v2841
    %v3432 = vunpack.c.l.b16 %v2842
    %v3433 = vunpack.c.h.b16 %v2842
    %v3434 = vunpack.c.l.b16 %v2843
    %v3435 = vunpack.c.h.b16 %v2843
    %v3436 = vunpack.c.l.b16 %v2844
    %v3437 = vunpack.c.h.b16 %v2844
    %v3438 = vunpack.c.l.b16 %v2845
    %v3439 = vunpack.c.h.b16 %v2845
    %v3440 = vunpack.c.l.b16 %v2846
    %v3441 = vunpack.c.h.b16 %v2846
    %v3442 = vunpack.c.l.b16 %v2847
    %v3443 = vunpack.c.h.b16 %v2847
    %v3444 = vunpack.c.l.b16 %v2848
    %v3445 = vunpack.c.h.b16 %v2848
    %v3446 = vunpack.c.l.b16 %v2849
    %v3447 = vunpack.c.h.b16 %v2849
    %v3448 = vunpack.c.l.b16 %v2850
    %v3449 = vunpack.c.h.b16 %v2850
    %v3450 = vunpack.c.l.b16 %v2851
    %v3451 = vunpack.c.h.b16 %v2851
    %v3452 = vunpack.c.l.b16 %v2852
    %v3453 = vunpack.c.h.b16 %v2852
    %v3454 = vunpack.c.l.b16 %v2853
    %v3455 = vunpack.c.h.b16 %v2853
    %v3456 = vunpack.c.l.b16 %v2854
    %v3457 = vunpack.c.h.b16 %v2854
    %v3458 = vunpack.c.l.b16 %v2855
    %v3459 = vunpack.c.h.b16 %v2855
    %v3460 = vunpack.c.l.b16 %v2856
    %v3461 = vunpack.c.h.b16 %v2856
    %v3462 = vunpack.c.l.b16 %v2857
    %v3463 = vunpack.c.h.b16 %v2857
    %v3464 = vunpack.c.l.b16 %v2858
    %v3465 = vunpack.c.h.b16 %v2858
    %v3466 = vunpack.c.l.b16 %v2859
    %v3467 = vunpack.c.h.b16 %v2859
    %v3468 = vunpack.c.l.b16 %v2860
    %v3469 = vunpack.c.h.b16 %v2860
    %v3470 = vunpack.c.l.b16 %v2861
    %v3471 = vunpack.c.h.b16 %v2861
    %v3472 = vunpack.c.l.b16 %v2862
    %v3473 = vunpack.c.h.b16 %v2862
    %v3474 = vunpack.c.l.b16 %v2863
    %v3475 = vunpack.c.h.b16 %v2863
    %v3476 = vunpack.c.l.b16 %v2864
    %v3477 = vunpack.c.h.b16 %v2864
    %v3478 = vunpack.c.l.b16 %v2865
    %v3479 = vunpack.c.h.b16 %v2865
    %v3480 = vunpack.c.l.b16 %v2866
    %v3481 = vunpack.c.h.b16 %v2866
    %v3482 = vunpack.c.l.b16 %v2867
    %v3483 = vunpack.c.h.b16 %v2867
    %v3484 = vunpack.c.l.b16 %v2868
    %v3485 = vunpack.c.h.b16 %v2868
    %v3486 = vunpack.c.l.b16 %v2869
    %v3487 = vunpack.c.h.b16 %v2869
    %v3488 = vunpack.c.l.b16 %v2870
    %v3489 = vunpack.c.h.b16 %v2870
    %v3490 = vunpack.c.l.b16 %v2871
    %v3491 = vunpack.c.h.b16 %v2871
    %v3492 = vunpack.c.l.b16 %v2872
    %v3493 = vunpack.c.h.b16 %v2872
    %v3494 = vunpack.c.l.b16 %v2873
    %v3495 = vunpack.c.h.b16 %v2873
    %v3496 = vunpack.c.l.b16 %v2874
    %v3497 = vunpack.c.h.b16 %v2874
    %v3498 = vunpack.c.l.b16 %v2875
    %v3499 = vunpack.c.h.b16 %v2875
    %v3500 = vunpack.c.l.b16 %v2876
    %v3501 = vunpack.c.h.b16 %v2876
    %v3502 = vunpack.c.l.b16 %v2877
    %v3503 = vunpack.c.h.b16 %v2877
    %v3504 = vunpack.c.l.b16 %v2878
    %v3505 = vunpack.c.h.b16 %v2878
    %v3506 = vunpack.c.l.b16 %v2879
    %v3507 = vunpack.c.h.b16 %v2879
    %v3508 = vunpack.c.l.b16 %v2880
    %v3509 = vunpack.c.h.b16 %v2880
    %v3510 = vunpack.c.l.b16 %v2881
    %v3511 = vunpack.c.h.b16 %v2881
    %v3512 = vunpack.c.l.b16 %v2882
    %v3513 = vunpack.c.h.b16 %v2882
    %v3514 = vunpack.c.l.b16 %v2883
    %v3515 = vunpack.c.h.b16 %v2883
    %v3516 = vunpack.c.l.b16 %v2884
    %v3517 = vunpack.c.h.b16 %v2884
    %v3518 = vunpack.c.l.b16 %v2885
    %v3519 = vunpack.c.h.b16 %v2885
    %v3520 = vunpack.c.l.b16 %v2886
    %v3521 = vunpack.c.h.b16 %v2886
    %v3522 = vunpack.c.l.b16 %v2887
    %v3523 = vunpack.c.h.b16 %v2887
    %v3524 = vunpack.c.l.b16 %v2888
    %v3525 = vunpack.c.h.b16 %v2888
    %v3526 = vunpack.c.l.b16 %v2889
    %v3527 = vunpack.c.h.b16 %v2889
    %v3528 = vunpack.c.l.b16 %v2890
    %v3529 = vunpack.c.h.b16 %v2890
    %v3530 = vunpack.c.l.b16 %v2891
    %v3531 = vunpack.c.h.b16 %v2891
    %v3532 = vunpack.c.l.b16 %v2892
    %v3533 = vunpack.c.h.b16 %v2892
    %v3534 = vunpack.c.l.b16 %v2893
    %v3535 = vunpack.c.h.b16 %v2893
    %v3536 = vunpack.c.l.b16 %v2894
    %v3537 = vunpack.c.h.b16 %v2894
    %v3538 = vunpack.c.l.b16 %v2895
    %v3539 = vunpack.c.h.b16 %v2895
    %v3540 = vunpack.c.l.b16 %v2896
    %v3541 = vunpack.c.h.b16 %v2896
    %v3542 = vunpack.c.l.b16 %v2897
    %v3543 = vunpack.c.h.b16 %v2897
    %v3544 = vunpack.c.l.b16 %v2898
    %v3545 = vunpack.c.h.b16 %v2898
    %v3546 = vunpack.c.l.b16 %v2899
    %v3547 = vunpack.c.h.b16 %v2899
    %v3548 = vunpack.c.l.b16 %v2900
    %v3549 = vunpack.c.h.b16 %v2900
    %v3550 = vunpack.c.l.b16 %v2901
    %v3551 = vunpack.c.h.b16 %v2901
    %v3552 = vunpack.c.l.b16 %v2902
    %v3553 = vunpack.c.h.b16 %v2902
    %v3554 = vunpack.c.l.b16 %v2903
    %v3555 = vunpack.c.h.b16 %v2903
    %v3556 = vunpack.c.l.b16 %v2904
    %v3557 = vunpack.c.h.b16 %v2904
    %v3558 = vunpack.c.l.b16 %v2905
    %v3559 = vunpack.c.h.b16 %v2905
    %v3560 = vunpack.c.l.b16 %v2906
    %v3561 = vunpack.c.h.b16 %v2906
    %v3562 = vunpack.c.l.b16 %v2907
    %v3563 = vunpack.c.h.b16 %v2907
    %v3564 = vunpack.c.l.b16 %v2908
    %v3565 = vunpack.c.h.b16 %v2908
    %v3566 = vunpack.c.l.b16 %v2909
    %v3567 = vunpack.c.h.b16 %v2909
    %v3568 = vunpack.c.l.b16 %v2910
    %v3569 = vunpack.c.h.b16 %v2910
    %v3570 = vunpack.c.l.b16 %v2911
    %v3571 = vunpack.c.h.b16 %v2911
    %v3572 = vunpack.c.l.b16 %v2912
    %v3573 = vunpack.c.h.b16 %v2912
    %v3574 = vunpack.c.l.b16 %v2913
    %v3575 = vunpack.c.h.b16 %v2913
    %v3576 = vunpack.c.l.b16 %v2914
    %v3577 = vunpack.c.h.b16 %v2914
    %v3578 = vunpack.c.l.b16 %v2915
    %v3579 = vunpack.c.h.b16 %v2915
    %v3580 = vunpack.c.l.b16 %v2916
    %v3581 = vunpack.c.h.b16 %v2916
    %v3582 = vunpack.c.l.b16 %v2917
    %v3583 = vunpack.c.h.b16 %v2917
    %v3584 = vunpack.c.l.b16 %v2918
    %v3585 = vunpack.c.h.b16 %v2918
    %v3586 = vunpack.c.l.b16 %v2919
    %v3587 = vunpack.c.h.b16 %v2919
    %v3588 = vunpack.c.l.b16 %v2920
    %v3589 = vunpack.c.h.b16 %v2920
    %v3590 = vunpack.c.l.b16 %v2921
    %v3591 = vunpack.c.h.b16 %v2921
    %v3592 = vunpack.c.l.b16 %v2922
    %v3593 = vunpack.c.h.b16 %v2922
    %v3594 = vunpack.c.l.b16 %v2923
    %v3595 = vunpack.c.h.b16 %v2923
    %v3596 = vunpack.c.l.b16 %v2924
    %v3597 = vunpack.c.h.b16 %v2924
    %v3598 = vunpack.c.l.b16 %v2925
    %v3599 = vunpack.c.h.b16 %v2925
    %v3600 = vunpack.c.l.b16 %v2926
    %v3601 = vunpack.c.h.b16 %v2926
    %v3602 = vunpack.c.l.b16 %v2927
    %v3603 = vunpack.c.h.b16 %v2927
    %v3604 = vunpack.c.l.b16 %v2928
    %v3605 = vunpack.c.h.b16 %v2928
    %v3606 = vunpack.c.l.b16 %v2929
    %v3607 = vunpack.c.h.b16 %v2929
    %v3608 = vunpack.c.l.b16 %v2930
    %v3609 = vunpack.c.h.b16 %v2930
    %v3610 = vunpack.c.l.b16 %v2931
    %v3611 = vunpack.c.h.b16 %v2931
    %v3612 = vunpack.c.l.b16 %v2932
    %v3613 = vunpack.c.h.b16 %v2932
    %v3614 = vunpack.c.l.b16 %v2933
    %v3615 = vunpack.c.h.b16 %v2933
    %v3616 = vunpack.c.l.b16 %v2934
    %v3617 = vunpack.c.h.b16 %v2934
    %v3618 = vunpack.c.l.b16 %v2935
    %v3619 = vunpack.c.h.b16 %v2935
    %v3620 = vunpack.c.l.b16 %v2936
    %v3621 = vunpack.c.h.b16 %v2936
    %v3622 = vunpack.c.l.b16 %v2937
    %v3623 = vunpack.c.h.b16 %v2937
    %v3624 = vunpack.c.l.b16 %v2938
    %v3625 = vunpack.c.h.b16 %v2938
    %v3626 = vunpack.c.l.b16 %v2939
    %v3627 = vunpack.c.h.b16 %v2939
    %v3628 = vunpack.c.l.b16 %v2940
    %v3629 = vunpack.c.h.b16 %v2940
    %v3630 = vunpack.c.l.b16 %v2941
    %v3631 = vunpack.c.h.b16 %v2941
    %v3632 = vunpack.c.l.b16 %v2942
    %v3633 = vunpack.c.h.b16 %v2942
    %v3634 = vunpack.c.l.b16 %v2943
    %v3635 = vunpack.c.h.b16 %v2943
    %v3636 = vunpack.c.l.b16 %v2944
    %v3637 = vunpack.c.h.b16 %v2944
    %v3638 = vunpack.c.l.b16 %v2945
    %v3639 = vunpack.c.h.b16 %v2945
    %v3640 = vunpack.c.l.b16 %v2946
    %v3641 = vunpack.c.h.b16 %v2946
    %v3642 = vunpack.c.l.b16 %v2947
    %v3643 = vunpack.c.h.b16 %v2947
    %v3644 = vunpack.c.l.b16 %v2948
    %v3645 = vunpack.c.h.b16 %v2948
    %v3646 = vunpack.c.l.b16 %v2949
    %v3647 = vunpack.c.h.b16 %v2949
    %v3648 = vunpack.c.l.b16 %v2950
    %v3649 = vunpack.c.h.b16 %v2950
    %v3650 = vunpack.c.l.b16 %v2951
    %v3651 = vunpack.c.h.b16 %v2951
    %v3652 = vunpack.c.l.b16 %v2952
    %v3653 = vunpack.c.h.b16 %v2952
    %v3654 = vunpack.c.l.b16 %v2953
    %v3655 = vunpack.c.h.b16 %v2953
    %v3656 = vunpack.c.l.b16 %v2954
    %v3657 = vunpack.c.h.b16 %v2954
    %v3658 = vunpack.c.l.b16 %v2955
    %v3659 = vunpack.c.h.b16 %v2955
    %v3660 = vunpack.c.l.b16 %v2956
    %v3661 = vunpack.c.h.b16 %v2956
    %v3662 = vunpack.c.l.b16 %v2957
    %v3663 = vunpack.c.h.b16 %v2957
    %v3664 = vunpack.c.l.b16 %v2958
    %v3665 = vunpack.c.h.b16 %v2958
    %v3666 = vunpack.c.l.b16 %v2959
    %v3667 = vunpack.c.h.b16 %v2959
    %v3668 = vunpack.c.l.b16 %v2960
    %v3669 = vunpack.c.h.b16 %v2960
    %v3670 = vunpack.c.l.b16 %v2961
    %v3671 = vunpack.c.h.b16 %v2961
    %v3672 = vunpack.c.l.b16 %v2962
    %v3673 = vunpack.c.h.b16 %v2962
    %v3674 = vunpack.c.l.b16 %v2963
    %v3675 = vunpack.c.h.b16 %v2963
    %v3676 = vunpack.c.l.b16 %v2964
    %v3677 = vunpack.c.h.b16 %v2964
    %v3678 = vunpack.c.l.b16 %v2965
    %v3679 = vunpack.c.h.b16 %v2965
    %v3680 = vunpack.c.l.b16 %v2966
    %v3681 = vunpack.c.h.b16 %v2966
    %v3682 = vunpack.c.l.b16 %v2967
    %v3683 = vunpack.c.h.b16 %v2967
    %v3684 = vunpack.c.l.b16 %v2968
    %v3685 = vunpack.c.h.b16 %v2968
    %v3686 = vunpack.c.l.b16 %v2969
    %v3687 = vunpack.c.h.b16 %v2969
    %v3688 = vunpack.c.l.b16 %v2970
    %v3689 = vunpack.c.h.b16 %v2970
    %v3690 = vunpack.c.l.b16 %v2971
    %v3691 = vunpack.c.h.b16 %v2971
    %v3692 = vunpack.c.l.b16 %v2972
    %v3693 = vunpack.c.h.b16 %v2972
    %v3694 = vunpack.c.l.b16 %v2973
    %v3695 = vunpack.c.h.b16 %v2973
    %v3696 = vunpack.c.l.b16 %v2974
    %v3697 = vunpack.c.h.b16 %v2974
    %v3698 = vunpack.c.l.b16 %v2975
    %v3699 = vunpack.c.h.b16 %v2975
    %v3700 = vunpack.c.l.b16 %v2976
    %v3701 = vunpack.c.h.b16 %v2976
    %v3702 = vunpack.c.l.b16 %v2977
    %v3703 = vunpack.c.h.b16 %v2977
    %v3704 = vunpack.c.l.b16 %v2978
    %v3705 = vunpack.c.h.b16 %v2978
    %v3706 = vunpack.c.l.b16 %v2979
    %v3707 = vunpack.c.h.b16 %v2979
    %v3708 = vunpack.c.l.b16 %v2980
    %v3709 = vunpack.c.h.b16 %v2980
    %v3710 = vunpack.c.l.b16 %v2981
    %v3711 = vunpack.c.h.b16 %v2981
    %v3712 = vunpack.c.l.b16 %v2982
    %v3713 = vunpack.c.h.b16 %v2982
    %v3714 = vunpack.c.l.b16 %v2983
    %v3715 = vunpack.c.h.b16 %v2983
    %v3716 = vunpack.c.l.b16 %v2984
    %v3717 = vunpack.c.h.b16 %v2984
    %v3718 = vunpack.c.l.b16 %v2985
    %v3719 = vunpack.c.h.b16 %v2985
    %v3720 = vunpack.c.l.b16 %v2986
    %v3721 = vunpack.c.h.b16 %v2986
    %v3722 = vunpack.c.l.b16 %v2987
    %v3723 = vunpack.c.h.b16 %v2987
    %v3724 = vunpack.c.l.b16 %v2988
    %v3725 = vunpack.c.h.b16 %v2988
    %v3726 = vunpack.c.l.b16 %v2989
    %v3727 = vunpack.c.h.b16 %v2989
    %v3728 = vunpack.c.l.b16 %v2990
    %v3729 = vunpack.c.h.b16 %v2990
    %v3730 = vunpack.c.l.b16 %v2991
    %v3731 = vunpack.c.h.b16 %v2991
    %v3732 = vunpack.c.l.b16 %v2992
    %v3733 = vunpack.c.h.b16 %v2992
    %v3734 = vunpack.c.l.b16 %v2993
    %v3735 = vunpack.c.h.b16 %v2993
    %v3736 = vunpack.c.l.b16 %v2994
    %v3737 = vunpack.c.h.b16 %v2994
    %v3738 = vunpack.c.l.b16 %v2995
    %v3739 = vunpack.c.h.b16 %v2995
    %v3740 = vunpack.c.l.b16 %v2996
    %v3741 = vunpack.c.h.b16 %v2996
    %v3742 = vunpack.c.l.b16 %v2997
    %v3743 = vunpack.c.h.b16 %v2997
    %v3744 = vunpack.c.l.b16 %v2998
    %v3745 = vunpack.c.h.b16 %v2998
    %v3746 = vunpack.c.l.b16 %v2999
    %v3747 = vunpack.c.h.b16 %v2999
    %v3748 = vunpack.c.l.b16 %v3000
    %v3749 = vunpack.c.h.b16 %v3000
    %v3750 = vunpack.c.l.b16 %v3001
    %v3751 = vunpack.c.h.b16 %v3001
    %v3752 = vunpack.c.l.b16 %v3002
    %v3753 = vunpack.c.h.b16 %v3002
    %v3754 = vunpack.c.l.b16 %v3003
    %v3755 = vunpack.c.h.b16 %v3003
    %v3756 = vunpack.c.l.b16 %v3004
    %v3757 = vunpack.c.h.b16 %v3004
    %v3758 = vunpack.c.l.b16 %v3005
    %v3759 = vunpack.c.h.b16 %v3005
    %v3760 = vunpack.c.l.b16 %v3006
    %v3761 = vunpack.c.h.b16 %v3006
    %v3762 = vunpack.c.l.b16 %v3007
    %v3763 = vunpack.c.h.b16 %v3007
    %v3764 = vunpack.c.l.b16 %v3008
    %v3765 = vunpack.c.h.b16 %v3008
    %v3766 = vunpack.c.l.b16 %v3009
    %v3767 = vunpack.c.h.b16 %v3009
    %v3768 = vunpack.c.l.b16 %v3010
    %v3769 = vunpack.c.h.b16 %v3010
    %v3770 = vunpack.c.l.b16 %v3011
    %v3771 = vunpack.c.h.b16 %v3011
    %v3772 = vunpack.c.l.b16 %v3012
    %v3773 = vunpack.c.h.b16 %v3012
    %v3774 = vunpack.c.l.b16 %v3013
    %v3775 = vunpack.c.h.b16 %v3013
    %v3776 = vunpack.c.l.b16 %v3014
    %v3777 = vunpack.c.h.b16 %v3014
    %v3778 = vunpack.c.l.b16 %v3015
    %v3779 = vunpack.c.h.b16 %v3015
    %v3780 = vunpack.c.l.b16 %v3016
    %v3781 = vunpack.c.h.b16 %v3016
    %v3782 = vunpack.c.l.b16 %v3017
    %v3783 = vunpack.c.h.b16 %v3017
    %v3784 = vunpack.c.l.b16 %v3018
    %v3785 = vunpack.c.h.b16 %v3018
    %v3786 = vunpack.c.l.b16 %v3019
    %v3787 = vunpack.c.h.b16 %v3019
    %v3788 = vunpack.c.l.b16 %v3020
    %v3789 = vunpack.c.h.b16 %v3020
    %v3790 = vunpack.c.l.b16 %v3021
    %v3791 = vunpack.c.h.b16 %v3021
    %v3792 = vunpack.c.l.b16 %v3022
    %v3793 = vunpack.c.h.b16 %v3022
    %v3794 = vunpack.c.l.b16 %v3023
    %v3795 = vunpack.c.h.b16 %v3023
    %v3796 = vunpack.c.l.b16 %v3024
    %v3797 = vunpack.c.h.b16 %v3024
    %v3798 = vunpack.c.l.b16 %v3025
    %v3799 = vunpack.c.h.b16 %v3025
    %v3800 = vunpack.c.l.b16 %v3026
    %v3801 = vunpack.c.h.b16 %v3026
    %v3802 = vunpack.c.l.b16 %v3027
    %v3803 = vunpack.c.h.b16 %v3027
    %v3804 = vunpack.c.l.b16 %v3028
    %v3805 = vunpack.c.h.b16 %v3028
    %v3806 = vunpack.c.l.b16 %v3029
    %v3807 = vunpack.c.h.b16 %v3029
    %v3808 = vunpack.c.l.b16 %v3030
    %v3809 = vunpack.c.h.b16 %v3030
    %v3810 = vunpack.c.l.b16 %v3031
    %v3811 = vunpack.c.h.b16 %v3031
    %v3812 = vunpack.c.l.b16 %v3032
    %v3813 = vunpack.c.h.b16 %v3032
    %v3814 = vunpack.c.l.b16 %v3033
    %v3815 = vunpack.c.h.b16 %v3033
    %v3816 = vunpack.c.l.b16 %v3034
    %v3817 = vunpack.c.h.b16 %v3034
    %v3818 = vunpack.c.l.b16 %v3035
    %v3819 = vunpack.c.h.b16 %v3035
    %v3820 = vunpack.c.l.b16 %v3036
    %v3821 = vunpack.c.h.b16 %v3036
    %v3822 = vunpack.c.l.b16 %v3037
    %v3823 = vunpack.c.h.b16 %v3037
    %v3824 = vunpack.c.l.b16 %v3038
    %v3825 = vunpack.c.h.b16 %v3038
    %v3826 = vunpack.c.l.b16 %v3039
    %v3827 = vunpack.c.h.b16 %v3039
    %v3828 = vunpack.c.l.b16 %v3040
    %v3829 = vunpack.c.h.b16 %v3040
    %v3830 = vunpack.c.l.b16 %v3041
    %v3831 = vunpack.c.h.b16 %v3041
    %v3832 = vunpack.c.l.b16 %v3042
    %v3833 = vunpack.c.h.b16 %v3042
    %v3834 = vunpack.c.l.b16 %v3043
    %v3835 = vunpack.c.h.b16 %v3043
    %v3836 = vunpack.c.l.b16 %v3044
    %v3837 = vunpack.c.h.b16 %v3044
    %v3838 = vunpack.c.l.b16 %v3045
    %v3839 = vunpack.c.h.b16 %v3045
    %v3840 = vunpack.c.l.b16 %v3046
    %v3841 = vunpack.c.h.b16 %v3046
    %v3842 = vunpack.c.l.b16 %v3047
    %v3843 = vunpack.c.h.b16 %v3047
    %v3844 = vunpack.c.l.b16 %v3048
    %v3845 = vunpack.c.h.b16 %v3048
    %v3846 = vunpack.c.l.b16 %v3049
    %v3847 = vunpack.c.h.b16 %v3049
    %v3848 = vunpack.c.l.b16 %v3050
    %v3849 = vunpack.c.h.b16 %v3050
    %v3850 = vunpack.c.l.b16 %v3051
    %v3851 = vunpack.c.h.b16 %v3051
    %v3852 = vunpack.c.l.b16 %v3052
    %v3853 = vunpack.c.h.b16 %v3052
    %v3854 = vunpack.c.l.b16 %v3053
    %v3855 = vunpack.c.h.b16 %v3053
    %v3856 = vunpack.c.l.b16 %v3054
    %v3857 = vunpack.c.h.b16 %v3054
    %v3858 = vunpack.c.l.b16 %v3055
    %v3859 = vunpack.c.h.b16 %v3055
    %v3860 = vunpack.c.l.b16 %v3056
    %v3861 = vunpack.c.h.b16 %v3056
    %v3862 = vunpack.c.l.b16 %v3057
    %v3863 = vunpack.c.h.b16 %v3057
    %v3864 = vunpack.c.l.b16 %v3058
    %v3865 = vunpack.c.h.b16 %v3058
    %v3866 = vunpack.c.l.b16 %v3059
    %v3867 = vunpack.c.h.b16 %v3059
    %v3868 = vunpack.c.l.b16 %v3060
    %v3869 = vunpack.c.h.b16 %v3060
    %v3870 = vunpack.c.l.b16 %v3061
    %v3871 = vunpack.c.h.b16 %v3061
    %v3872 = vpack.c.b16 %v3368, %v3360
    %v3873 = vpack.c.b16 %v3369, %v3361
    %v3874 = vpack.c.b16 %v3370, %v3362
    %v3875 = vpack.c.b16 %v3371, %v3363
    %v3876 = vpack.c.b16 %v3372, %v3364
    %v3877 = vpack.c.b16 %v3373, %v3365
    %v3878 = vpack.c.b16 %v3374, %v3366
    %v3879 = vpack.c.b16 %v3375, %v3367
    %v3880 = vpack.c.b16 %v3384, %v3376
    %v3881 = vpack.c.b16 %v3385, %v3377
    %v3882 = vpack.c.b16 %v3386, %v3378
    %v3883 = vpack.c.b16 %v3387, %v3379
    %v3884 = vpack.c.b16 %v3388, %v3380
    %v3885 = vpack.c.b16 %v3389, %v3381
    %v3886 = vpack.c.b16 %v3390, %v3382
    %v3887 = vpack.c.b16 %v3391, %v3383
    %v3888 = vpack.c.b16 %v3400, %v3392
    %v3889 = vpack.c.b16 %v3401, %v3393
    %v3890 = vpack.c.b16 %v3402, %v3394
    %v3891 = vpack.c.b16 %v3403, %v3395
    %v3892 = vpack.c.b16 %v3404, %v3396
    %v3893 = vpack.c.b16 %v3405, %v3397
    %v3894 = vpack.c.b16 %v3406, %v3398
    %v3895 = vpack.c.b16 %v3407, %v3399
    %v3896 = vpack.c.b16 %v3416, %v3408
    %v3897 = vpack.c.b16 %v3417, %v3409
    %v3898 = vpack.c.b16 %v3418, %v3410
    %v3899 = vpack.c.b16 %v3419, %v3411
    %v3900 = vpack.c.b16 %v3420, %v3412
    %v3901 = vpack.c.b16 %v3421, %v3413
    %v3902 = vpack.c.b16 %v3422, %v3414
    %v3903 = vpack.c.b16 %v3423, %v3415
    %v3904 = vpack.c.b16 %v3432, %v3424
    %v3905 = vpack.c.b16 %v3433, %v3425
    %v3906 = vpack.c.b16 %v3434, %v3426
    %v3907 = vpack.c.b16 %v3435, %v3427
    %v3908 = vpack.c.b16 %v3436, %v3428
    %v3909 = vpack.c.b16 %v3437, %v3429
    %v3910 = vpack.c.b16 %v3438, %v3430
    %v3911 = vpack.c.b16 %v3439, %v3431
    %v3912 = vpack.c.b16 %v3448, %v3440
    %v3913 = vpack.c.b16 %v3449, %v3441
    %v3914 = vpack.c.b16 %v3450, %v3442
    %v3915 = vpack.c.b16 %v3451, %v3443
    %v3916 = vpack.c.b16 %v3452, %v3444
    %v3917 = vpack.c.b16 %v3453, %v3445
    %v3918 = vpack.c.b16 %v3454, %v3446
    %v3919 = vpack.c.b16 %v3455, %v3447
    %v3920 = vpack.c.b16 %v3464, %v3456
    %v3921 = vpack.c.b16 %v3465, %v3457
    %v3922 = vpack.c.b16 %v3466, %v3458
    %v3923 = vpack.c.b16 %v3467, %v3459
    %v3924 = vpack.c.b16 %v3468, %v3460
    %v3925 = vpack.c.b16 %v3469, %v3461
    %v3926 = vpack.c.b16 %v3470, %v3462
    %v3927 = vpack.c.b16 %v3471, %v3463
    %v3928 = vpack.c.b16 %v3480, %v3472
    %v3929 = vpack.c.b16 %v3481, %v3473
    %v3930 = vpack.c.b16 %v3482, %v3474
    %v3931 = vpack.c.b16 %v3483, %v3475
    %v3932 = vpack.c.b16 %v3484, %v3476
    %v3933 = vpack.c.b16 %v3485, %v3477
    %v3934 = vpack.c.b16 %v3486, %v3478
    %v3935 = vpack.c.b16 %v3487, %v3479
    %v3936 = vpack.c.b16 %v3496, %v3488
    %v3937 = vpack.c.b16 %v3497, %v3489
    %v3938 = vpack.c.b16 %v3498, %v3490
    %v3939 = vpack.c.b16 %v3499, %v3491
    %v3940 = vpack.c.b16 %v3500, %v3492
    %v3941 = vpack.c.b16 %v3501, %v3493
    %v3942 = vpack.c.b16 %v3502, %v3494
    %v3943 = vpack.c.b16 %v3503, %v3495
    %v3944 = vpack.c.b16 %v3512, %v3504
    %v3945 = vpack.c.b16 %v3513, %v3505
    %v3946 = vpack.c.b16 %v3514, %v3506
    %v3947 = vpack.c.b16 %v3515, %v3507
    %v3948 = vpack.c.b16 %v3516, %v3508
    %v3949 = vpack.c.b16 %v3517, %v3509
    %v3950 = vpack.c.b16 %v3518, %v3510
    %v3951 = vpack.c.b16 %v3519, %v3511
    %v3952 = vpack.c.b16 %v3528, %v3520
    %v3953 = vpack.c.b16 %v3529, %v3521
    %v3954 = vpack.c.b16 %v3530, %v3522
    %v3955 = vpack.c.b16 %v3531, %v3523
    %v3956 = vpack.c.b16 %v3532, %v3524
    %v3957 = vpack.c.b16 %v3533, %v3525
    %v3958 = vpack.c.b16 %v3534, %v3526
    %v3959 = vpack.c.b16 %v3535, %v3527
    %v3960 = vpack.c.b16 %v3544, %v3536
    %v3961 = vpack.c.b16 %v3545, %v3537
    %v3962 = vpack.c.b16 %v3546, %v3538
    %v3963 = vpack.c.b16 %v3547, %v3539
    %v3964 = vpack.c.b16 %v3548, %v3540
    %v3965 = vpack.c.b16 %v3549, %v3541
    %v3966 = vpack.c.b16 %v3550, %v3542
    %v3967 = vpack.c.b16 %v3551, %v3543
    %v3968 = vpack.c.b16 %v3560, %v3552
    %v3969 = vpack.c.b16 %v3561, %v3553
    %v3970 = vpack.c.b16 %v3562, %v3554
    %v3971 = vpack.c.b16 %v3563, %v3555
    %v3972 = vpack.c.b16 %v3564, %v3556
    %v3973 = vpack.c.b16 %v3565, %v3557
    %v3974 = vpack.c.b16 %v3566, %v3558
    %v3975 = vpack.c.b16 %v3567, %v3559
    %v3976 = vpack.c.b16 %v3576, %v3568
    %v3977 = vpack.c.b16 %v3577, %v3569
    %v3978 = vpack.c.b16 %v3578, %v3570
    %v3979 = vpack.c.b16 %v3579, %v3571
    %v3980 = vpack.c.b16 %v3580, %v3572
    %v3981 = vpack.c.b16 %v3581, %v3573
    %v3982 = vpack.c.b16 %v3582, %v3574
    %v3983 = vpack.c.b16 %v3583, %v3575
    %v3984 = vpack.c.b16 %v3592, %v3584
    %v3985 = vpack.c.b16 %v3593, %v3585
    %v3986 = vpack.c.b16 %v3594, %v3586
    %v3987 = vpack.c.b16 %v3595, %v3587
    %v3988 = vpack.c.b16 %v3596, %v3588
    %v3989 = vpack.c.b16 %v3597, %v3589
    %v3990 = vpack.c.b16 %v3598, %v3590
    %v3991 = vpack.c.b16 %v3599, %v3591
    %v3992 = vpack.c.b16 %v3608, %v3600
    %v3993 = vpack.c.b16 %v3609, %v3601
    %v3994 = vpack.c.b16 %v3610, %v3602
    %v3995 = vpack.c.b16 %v3611, %v3603
    %v3996 = vpack.c.b16 %v3612, %v3604
    %v3997 = vpack.c.b16 %v3613, %v3605
    %v3998 = vpack.c.b16 %v3614, %v3606
    %v3999 = vpack.c.b16 %v3615, %v3607
    %v4000 = vpack.c.b16 %v3624, %v3616
    %v4001 = vpack.c.b16 %v3625, %v3617
    %v4002 = vpack.c.b16 %v3626, %v3618
    %v4003 = vpack.c.b16 %v3627, %v3619
    %v4004 = vpack.c.b16 %v3628, %v3620
    %v4005 = vpack.c.b16 %v3629, %v3621
    %v4006 = vpack.c.b16 %v3630, %v3622
    %v4007 = vpack.c.b16 %v3631, %v3623
    %v4008 = vpack.c.b16 %v3640, %v3632
    %v4009 = vpack.c.b16 %v3641, %v3633
    %v4010 = vpack.c.b16 %v3642, %v3634
    %v4011 = vpack.c.b16 %v3643, %v3635
    %v4012 = vpack.c.b16 %v3644, %v3636
    %v4013 = vpack.c.b16 %v3645, %v3637
    %v4014 = vpack.c.b16 %v3646, %v3638
    %v4015 = vpack.c.b16 %v3647, %v3639
    %v4016 = vpack.c.b16 %v3656, %v3648
    %v4017 = vpack.c.b16 %v3657, %v3649
    %v4018 = vpack.c.b16 %v3658, %v3650
    %v4019 = vpack.c.b16 %v3659, %v3651
    %v4020 = vpack.c.b16 %v3660, %v3652
    %v4021 = vpack.c.b16 %v3661, %v3653
    %v4022 = vpack.c.b16 %v3662, %v3654
    %v4023 = vpack.c.b16 %v3663, %v3655
    %v4024 = vpack.c.b16 %v3672, %v3664
    %v4025 = vpack.c.b16 %v3673, %v3665
    %v4026 = vpack.c.b16 %v3674, %v3666
    %v4027 = vpack.c.b16 %v3675, %v3667
    %v4028 = vpack.c.b16 %v3676, %v3668
    %v4029 = vpack.c.b16 %v3677, %v3669
    %v4030 = vpack.c.b16 %v3678, %v3670
    %v4031 = vpack.c.b16 %v3679, %v3671
    %v4032 = vpack.c.b16 %v3688, %v3680
    %v4033 = vpack.c.b16 %v3689, %v3681
    %v4034 = vpack.c.b16 %v3690, %v3682
    %v4035 = vpack.c.b16 %v3691, %v3683
    %v4036 = vpack.c.b16 %v3692, %v3684
    %v4037 = vpack.c.b16 %v3693, %v3685
    %v4038 = vpack.c.b16 %v3694, %v3686
    %v4039 = vpack.c.b16 %v3695, %v3687
    %v4040 = vpack.c.b16 %v3704, %v3696
    %v4041 = vpack.c.b16 %v3705, %v3697
    %v4042 = vpack.c.b16 %v3706, %v3698
    %v4043 = vpack.c.b16 %v3707, %v3699
    %v4044 = vpack.c.b16 %v3708, %v3700
    %v4045 = vpack.c.b16 %v3709, %v3701
    %v4046 = vpack.c.b16 %v3710, %v3702
    %v4047 = vpack.c.b16 %v3711, %v3703
    %v4048 = vpack.c.b16 %v3720, %v3712
    %v4049 = vpack.c.b16 %v3721, %v3713
    %v4050 = vpack.c.b16 %v3722, %v3714
    %v4051 = vpack.c.b16 %v3723, %v3715
    %v4052 = vpack.c.b16 %v3724, %v3716
    %v4053 = vpack.c.b16 %v3725, %v3717
    %v4054 = vpack.c.b16 %v3726, %v3718
    %v4055 = vpack.c.b16 %v3727, %v3719
    %v4056 = vpack.c.b16 %v3736, %v3728
    %v4057 = vpack.c.b16 %v3737, %v3729
    %v4058 = vpack.c.b16 %v3738, %v3730
    %v4059 = vpack.c.b16 %v3739, %v3731
    %v4060 = vpack.c.b16 %v3740, %v3732
    %v4061 = vpack.c.b16 %v3741, %v3733
    %v4062 = vpack.c.b16 %v3742, %v3734
    %v4063 = vpack.c.b16 %v3743, %v3735
    %v4064 = vpack.c.b16 %v3752, %v3744
    %v4065 = vpack.c.b16 %v3753, %v3745
    %v4066 = vpack.c.b16 %v3754, %v3746
    %v4067 = vpack.c.b16 %v3755, %v3747
    %v4068 = vpack.c.b16 %v3756, %v3748
    %v4069 = vpack.c.b16 %v3757, %v3749
    %v4070 = vpack.c.b16 %v3758, %v3750
    %v4071 = vpack.c.b16 %v3759, %v3751
    %v4072 = vpack.c.b16 %v3768, %v3760
    %v4073 = vpack.c.b16 %v3769, %v3761
    %v4074 = vpack.c.b16 %v3770, %v3762
    %v4075 = vpack.c.b16 %v3771, %v3763
    %v4076 = vpack.c.b16 %v3772, %v3764
    %v4077 = vpack.c.b16 %v3773, %v3765
    %v4078 = vpack.c.b16 %v3774, %v3766
    %v4079 = vpack.c.b16 %v3775, %v3767
    %v4080 = vpack.c.b16 %v3784, %v3776
    %v4081 = vpack.c.b16 %v3785, %v3777
    %v4082 = vpack.c.b16 %v3786, %v3778
    %v4083 = vpack.c.b16 %v3787, %v3779
    %v4084 = vpack.c.b16 %v3788, %v3780
    %v4085 = vpack.c.b16 %v3789, %v3781
    %v4086 = vpack.c.b16 %v3790, %v3782
    %v4087 = vpack.c.b16 %v3791, %v3783
    %v4088 = vpack.c.b16 %v3800, %v3792
    %v4089 = vpack.c.b16 %v3801, %v3793
    %v4090 = vpack.c.b16 %v3802, %v3794
    %v4091 = vpack.c.b16 %v3803, %v3795
    %v4092 = vpack.c.b16 %v3804, %v3796
    %v4093 = vpack.c.b16 %v3805, %v3797
    %v4094 = vpack.c.b16 %v3806, %v3798
    %v4095 = vpack.c.b16 %v3807, %v3799
    %v4096 = vpack.c.b16 %v3816, %v3808
    %v4097 = vpack.c.b16 %v3817, %v3809
    %v4098 = vpack.c.b16 %v3818, %v3810
    %v4099 = vpack.c.b16 %v3819, %v3811
    %v4100 = vpack.c.b16 %v3820, %v3812
    %v4101 = vpack.c.b16 %v3821, %v3813
    %v4102 = vpack.c.b16 %v3822, %v3814
    %v4103 = vpack.c.b16 %v3823, %v3815
    %v4104 = vpack.c.b16 %v3832, %v3824
    %v4105 = vpack.c.b16 %v3833, %v3825
    %v4106 = vpack.c.b16 %v3834, %v3826
    %v4107 = vpack.c.b16 %v3835, %v3827
    %v4108 = vpack.c.b16 %v3836, %v3828
    %v4109 = vpack.c.b16 %v3837, %v3829
    %v4110 = vpack.c.b16 %v3838, %v3830
    %v4111 = vpack.c.b16 %v3839, %v3831
    %v4112 = vpack.c.b16 %v3848, %v3840
    %v4113 = vpack.c.b16 %v3849, %v3841
    %v4114 = vpack.c.b16 %v3850, %v3842
    %v4115 = vpack.c.b16 %v3851, %v3843
    %v4116 = vpack.c.b16 %v3852, %v3844
    %v4117 = vpack.c.b16 %v3853, %v3845
    %v4118 = vpack.c.b16 %v3854, %v3846
    %v4119 = vpack.c.b16 %v3855, %v3847
    %v4120 = vpack.c.b16 %v3864, %v3856
    %v4121 = vpack.c.b16 %v3865, %v3857
    %v4122 = vpack.c.b16 %v3866, %v3858
    %v4123 = vpack.c.b16 %v3867, %v3859
    %v4124 = vpack.c.b16 %v3868, %v3860
    %v4125 = vpack.c.b16 %v3869, %v3861
    %v4126 = vpack.c.b16 %v3870, %v3862
    %v4127 = vpack.c.b16 %v3871, %v3863
    %4384 = vmatprep.subr.bf16.mxu0 %v3873
    %4385 = vmatpush1.bf16.msra.mxu0 %v3872
    %4386 = vmatprep.subr.bf16.mxu0 %v3881
    %4387 = vmatpush1.bf16.msra.mxu0 %v3880
    %4388 = vmatprep.subr.bf16.mxu0 %v3889
    %4389 = vmatpush1.bf16.msra.mxu0 %v3888
    %4390 = vmatprep.subr.bf16.mxu0 %v3897
    %4391 = vmatpush1.bf16.msra.mxu0 %v3896
    %4392 = vmatprep.subr.bf16.mxu0 %v3905
    %4393 = vmatpush1.bf16.msra.mxu0 %v3904
    %4394 = vmatprep.subr.bf16.mxu0 %v3913
    %4395 = vmatpush1.bf16.msra.mxu0 %v3912
    %4396 = vmatprep.subr.bf16.mxu0 %v3921
    %4397 = vmatpush1.bf16.msra.mxu0 %v3920
    %4398 = vmatprep.subr.bf16.mxu0 %v3929
    %4399 = vmatpush1.bf16.msra.mxu0 %v3928
    %4400 = vmatprep.subr.bf16.mxu0 %v3937
    %4401 = vmatpush1.bf16.msra.mxu0 %v3936
    %4402 = vmatprep.subr.bf16.mxu0 %v3945
    %4403 = vmatpush1.bf16.msra.mxu0 %v3944
    %4404 = vmatprep.subr.bf16.mxu0 %v3953
    %4405 = vmatpush1.bf16.msra.mxu0 %v3952
    %4406 = vmatprep.subr.bf16.mxu0 %v3961
    %4407 = vmatpush1.bf16.msra.mxu0 %v3960
    %4408 = vmatprep.subr.bf16.mxu0 %v3969
    %4409 = vmatpush1.bf16.msra.mxu0 %v3968
    %4410 = vmatprep.subr.bf16.mxu0 %v3977
    %4411 = vmatpush1.bf16.msra.mxu0 %v3976
    %4412 = vmatprep.subr.bf16.mxu0 %v3985
    %4413 = vmatpush1.bf16.msra.mxu0 %v3984
    %4414 = vmatprep.subr.bf16.mxu0 %v3993
    %4415 = vmatpush1.bf16.msra.mxu0 %v3992
    %4416 = vmatprep.mubr.bf16.mxu0 %v2803
    %4417 = vmatmul.mubr.bf16.gmra.mrb[0].mxu0 %v2802
    %v4418 = vpop.f32.mrb[0].mxu0
    %v4419 = vadd.f32 %v3067, %v4418
    %v4420 = vpop.f32.mrb[0].mxu0
    %v4421 = vadd.f32 %v3071, %v4420
    %v4422 = vpop.f32.mrb[0].mxu0
    %v4423 = vpop.f32.mrb[0].mxu0
    %4424 = vdwg.mxu0
    %4425 = vmatprep.subr.bf16.mxu0 %v4001
    %4426 = vmatpush1.bf16.msra.mxu0 %v4000
    %4427 = vmatprep.subr.bf16.mxu0 %v4009
    %4428 = vmatpush1.bf16.msra.mxu0 %v4008
    %4429 = vmatprep.subr.bf16.mxu0 %v4017
    %4430 = vmatpush1.bf16.msra.mxu0 %v4016
    %4431 = vmatprep.subr.bf16.mxu0 %v4025
    %4432 = vmatpush1.bf16.msra.mxu0 %v4024
    %4433 = vmatprep.subr.bf16.mxu0 %v4033
    %4434 = vmatpush1.bf16.msra.mxu0 %v4032
    %4435 = vmatprep.subr.bf16.mxu0 %v4041
    %4436 = vmatpush1.bf16.msra.mxu0 %v4040
    %4437 = vmatprep.subr.bf16.mxu0 %v4049
    %4438 = vmatpush1.bf16.msra.mxu0 %v4048
    %4439 = vmatprep.subr.bf16.mxu0 %v4057
    %4440 = vmatpush1.bf16.msra.mxu0 %v4056
    %4441 = vmatprep.subr.bf16.mxu0 %v4065
    %4442 = vmatpush1.bf16.msra.mxu0 %v4064
    %4443 = vmatprep.subr.bf16.mxu0 %v4073
    %4444 = vmatpush1.bf16.msra.mxu0 %v4072
    %4445 = vmatprep.subr.bf16.mxu0 %v4081
    %4446 = vmatpush1.bf16.msra.mxu0 %v4080
    %4447 = vmatprep.subr.bf16.mxu0 %v4089
    %4448 = vmatpush1.bf16.msra.mxu0 %v4088
    %4449 = vmatprep.subr.bf16.mxu0 %v4097
    %4450 = vmatpush1.bf16.msra.mxu0 %v4096
    %4451 = vmatprep.subr.bf16.mxu0 %v4105
    %4452 = vmatpush1.bf16.msra.mxu0 %v4104
    %4453 = vmatprep.subr.bf16.mxu0 %v4113
    %4454 = vmatpush1.bf16.msra.mxu0 %v4112
    %4455 = vmatprep.subr.bf16.mxu0 %v4121
    %4456 = vmatpush1.bf16.msra.mxu0 %v4120
    %4457 = vmatprep.mubr.bf16.mxu0 %v2805
    %4458 = vmatmul.mubr.bf16.gmra.mrb[0].mxu0 %v2804
    %v4459 = vpop.f32.mrb[0].mxu0
    %v4460 = vadd.f32 %v4419, %v4459
    %v4461 = vpop.f32.mrb[0].mxu0
    %v4462 = vadd.f32 %v4421, %v4461
    %v4463 = vpop.f32.mrb[0].mxu0
    %v4464 = vpop.f32.mrb[0].mxu0
    %4465 = vdwg.mxu0
    %4466 = vmatprep.subr.bf16.mxu0 %v3875
    %4467 = vmatpush1.bf16.msra.mxu0 %v3874
    %4468 = vmatprep.subr.bf16.mxu0 %v3883
    %4469 = vmatpush1.bf16.msra.mxu0 %v3882
    %4470 = vmatprep.subr.bf16.mxu0 %v3891
    %4471 = vmatpush1.bf16.msra.mxu0 %v3890
    %4472 = vmatprep.subr.bf16.mxu0 %v3899
    %4473 = vmatpush1.bf16.msra.mxu0 %v3898
    %4474 = vmatprep.subr.bf16.mxu0 %v3907
    %4475 = vmatpush1.bf16.msra.mxu0 %v3906
    %4476 = vmatprep.subr.bf16.mxu0 %v3915
    %4477 = vmatpush1.bf16.msra.mxu0 %v3914
    %4478 = vmatprep.subr.bf16.mxu0 %v3923
    %4479 = vmatpush1.bf16.msra.mxu0 %v3922
    %4480 = vmatprep.subr.bf16.mxu0 %v3931
    %4481 = vmatpush1.bf16.msra.mxu0 %v3930
    %4482 = vmatprep.subr.bf16.mxu0 %v3939
    %4483 = vmatpush1.bf16.msra.mxu0 %v3938
    %4484 = vmatprep.subr.bf16.mxu0 %v3947
    %4485 = vmatpush1.bf16.msra.mxu0 %v3946
    %4486 = vmatprep.subr.bf16.mxu0 %v3955
    %4487 = vmatpush1.bf16.msra.mxu0 %v3954
    %4488 = vmatprep.subr.bf16.mxu0 %v3963
    %4489 = vmatpush1.bf16.msra.mxu0 %v3962
    %4490 = vmatprep.subr.bf16.mxu0 %v3971
    %4491 = vmatpush1.bf16.msra.mxu0 %v3970
    %4492 = vmatprep.subr.bf16.mxu0 %v3979
    %4493 = vmatpush1.bf16.msra.mxu0 %v3978
    %4494 = vmatprep.subr.bf16.mxu0 %v3987
    %4495 = vmatpush1.bf16.msra.mxu0 %v3986
    %4496 = vmatprep.subr.bf16.mxu0 %v3995
    %4497 = vmatpush1.bf16.msra.mxu0 %v3994
    %4498 = vmatprep.mubr.bf16.mxu0 %v2803
    %4499 = vmatmul.mubr.bf16.gmra.mrb[0].mxu0 %v2802
    %v4500 = vpop.f32.mrb[0].mxu0
    %v4501 = vadd.f32 %v3075, %v4500
    %v4502 = vpop.f32.mrb[0].mxu0
    %v4503 = vadd.f32 %v3079, %v4502
    %v4504 = vpop.f32.mrb[0].mxu0
    %v4505 = vpop.f32.mrb[0].mxu0
    %4506 = vdwg.mxu0
    %4507 = vmatprep.subr.bf16.mxu0 %v4003
    %4508 = vmatpush1.bf16.msra.mxu0 %v4002
    %4509 = vmatprep.subr.bf16.mxu0 %v4011
    %4510 = vmatpush1.bf16.msra.mxu0 %v4010
    %4511 = vmatprep.subr.bf16.mxu0 %v4019
    %4512 = vmatpush1.bf16.msra.mxu0 %v4018
    %4513 = vmatprep.subr.bf16.mxu0 %v4027
    %4514 = vmatpush1.bf16.msra.mxu0 %v4026
    %4515 = vmatprep.subr.bf16.mxu0 %v4035
    %4516 = vmatpush1.bf16.msra.mxu0 %v4034
    %4517 = vmatprep.subr.bf16.mxu0 %v4043
    %4518 = vmatpush1.bf16.msra.mxu0 %v4042
    %4519 = vmatprep.subr.bf16.mxu0 %v4051
    %4520 = vmatpush1.bf16.msra.mxu0 %v4050
    %4521 = vmatprep.subr.bf16.mxu0 %v4059
    %4522 = vmatpush1.bf16.msra.mxu0 %v4058
    %4523 = vmatprep.subr.bf16.mxu0 %v4067
    %4524 = vmatpush1.bf16.msra.mxu0 %v4066
    %4525 = vmatprep.subr.bf16.mxu0 %v4075
    %4526 = vmatpush1.bf16.msra.mxu0 %v4074
    %4527 = vmatprep.subr.bf16.mxu0 %v4083
    %4528 = vmatpush1.bf16.msra.mxu0 %v4082
    %4529 = vmatprep.subr.bf16.mxu0 %v4091
    %4530 = vmatpush1.bf16.msra.mxu0 %v4090
    %4531 = vmatprep.subr.bf16.mxu0 %v4099
    %4532 = vmatpush1.bf16.msra.mxu0 %v4098
    %4533 = vmatprep.subr.bf16.mxu0 %v4107
    %4534 = vmatpush1.bf16.msra.mxu0 %v4106
    %4535 = vmatprep.subr.bf16.mxu0 %v4115
    %4536 = vmatpush1.bf16.msra.mxu0 %v4114
    %4537 = vmatprep.subr.bf16.mxu0 %v4123
    %4538 = vmatpush1.bf16.msra.mxu0 %v4122
    %4539 = vmatprep.mubr.bf16.mxu0 %v2805
    %4540 = vmatmul.mubr.bf16.gmra.mrb[0].mxu0 %v2804
    %v4541 = vpop.f32.mrb[0].mxu0
    %v4542 = vadd.f32 %v4501, %v4541
    %v4543 = vpop.f32.mrb[0].mxu0
    %v4544 = vadd.f32 %v4503, %v4543
    %v4545 = vpop.f32.mrb[0].mxu0
    %v4546 = vpop.f32.mrb[0].mxu0
    %4547 = vdwg.mxu0
    %4548 = vmatprep.subr.bf16.mxu0 %v3877
    %4549 = vmatpush1.bf16.msra.mxu0 %v3876
    %4550 = vmatprep.subr.bf16.mxu0 %v3885
    %4551 = vmatpush1.bf16.msra.mxu0 %v3884
    %4552 = vmatprep.subr.bf16.mxu0 %v3893
    %4553 = vmatpush1.bf16.msra.mxu0 %v3892
    %4554 = vmatprep.subr.bf16.mxu0 %v3901
    %4555 = vmatpush1.bf16.msra.mxu0 %v3900
    %4556 = vmatprep.subr.bf16.mxu0 %v3909
    %4557 = vmatpush1.bf16.msra.mxu0 %v3908
    %4558 = vmatprep.subr.bf16.mxu0 %v3917
    %4559 = vmatpush1.bf16.msra.mxu0 %v3916
    %4560 = vmatprep.subr.bf16.mxu0 %v3925
    %4561 = vmatpush1.bf16.msra.mxu0 %v3924
    %4562 = vmatprep.subr.bf16.mxu0 %v3933
    %4563 = vmatpush1.bf16.msra.mxu0 %v3932
    %4564 = vmatprep.subr.bf16.mxu0 %v3941
    %4565 = vmatpush1.bf16.msra.mxu0 %v3940
    %4566 = vmatprep.subr.bf16.mxu0 %v3949
    %4567 = vmatpush1.bf16.msra.mxu0 %v3948
    %4568 = vmatprep.subr.bf16.mxu0 %v3957
    %4569 = vmatpush1.bf16.msra.mxu0 %v3956
    %4570 = vmatprep.subr.bf16.mxu0 %v3965
    %4571 = vmatpush1.bf16.msra.mxu0 %v3964
    %4572 = vmatprep.subr.bf16.mxu0 %v3973
    %4573 = vmatpush1.bf16.msra.mxu0 %v3972
    %4574 = vmatprep.subr.bf16.mxu0 %v3981
    %4575 = vmatpush1.bf16.msra.mxu0 %v3980
    %4576 = vmatprep.subr.bf16.mxu0 %v3989
    %4577 = vmatpush1.bf16.msra.mxu0 %v3988
    %4578 = vmatprep.subr.bf16.mxu0 %v3997
    %4579 = vmatpush1.bf16.msra.mxu0 %v3996
    %4580 = vmatprep.mubr.bf16.mxu0 %v2803
    %4581 = vmatmul.mubr.bf16.gmra.mrb[0].mxu0 %v2802
    %v4582 = vpop.f32.mrb[0].mxu0
    %v4583 = vadd.f32 %v3083, %v4582
    %v4584 = vpop.f32.mrb[0].mxu0
    %v4585 = vadd.f32 %v3087, %v4584
    %v4586 = vpop.f32.mrb[0].mxu0
    %v4587 = vpop.f32.mrb[0].mxu0
    %4588 = vdwg.mxu0
    %4589 = vmatprep.subr.bf16.mxu0 %v4005
    %4590 = vmatpush1.bf16.msra.mxu0 %v4004
    %4591 = vmatprep.subr.bf16.mxu0 %v4013
    %4592 = vmatpush1.bf16.msra.mxu0 %v4012
    %4593 = vmatprep.subr.bf16.mxu0 %v4021
    %4594 = vmatpush1.bf16.msra.mxu0 %v4020
    %4595 = vmatprep.subr.bf16.mxu0 %v4029
    %4596 = vmatpush1.bf16.msra.mxu0 %v4028
    %4597 = vmatprep.subr.bf16.mxu0 %v4037
    %4598 = vmatpush1.bf16.msra.mxu0 %v4036
    %4599 = vmatprep.subr.bf16.mxu0 %v4045
    %4600 = vmatpush1.bf16.msra.mxu0 %v4044
    %4601 = vmatprep.subr.bf16.mxu0 %v4053
    %4602 = vmatpush1.bf16.msra.mxu0 %v4052
    %4603 = vmatprep.subr.bf16.mxu0 %v4061
    %4604 = vmatpush1.bf16.msra.mxu0 %v4060
    %4605 = vmatprep.subr.bf16.mxu0 %v4069
    %4606 = vmatpush1.bf16.msra.mxu0 %v4068
    %4607 = vmatprep.subr.bf16.mxu0 %v4077
    %4608 = vmatpush1.bf16.msra.mxu0 %v4076
    %4609 = vmatprep.subr.bf16.mxu0 %v4085
    %4610 = vmatpush1.bf16.msra.mxu0 %v4084
    %4611 = vmatprep.subr.bf16.mxu0 %v4093
    %4612 = vmatpush1.bf16.msra.mxu0 %v4092
    %4613 = vmatprep.subr.bf16.mxu0 %v4101
    %4614 = vmatpush1.bf16.msra.mxu0 %v4100
    %4615 = vmatprep.subr.bf16.mxu0 %v4109
    %4616 = vmatpush1.bf16.msra.mxu0 %v4108
    %4617 = vmatprep.subr.bf16.mxu0 %v4117
    %4618 = vmatpush1.bf16.msra.mxu0 %v4116
    %4619 = vmatprep.subr.bf16.mxu0 %v4125
    %4620 = vmatpush1.bf16.msra.mxu0 %v4124
    %4621 = vmatprep.mubr.bf16.mxu0 %v2805
    %4622 = vmatmul.mubr.bf16.gmra.mrb[0].mxu0 %v2804
    %v4623 = vpop.f32.mrb[0].mxu0
    %v4624 = vadd.f32 %v4583, %v4623
    %v4625 = vpop.f32.mrb[0].mxu0
    %v4626 = vadd.f32 %v4585, %v4625
    %v4627 = vpop.f32.mrb[0].mxu0
    %v4628 = vpop.f32.mrb[0].mxu0
    %4629 = vdwg.mxu0
    %4630 = vmatprep.subr.bf16.mxu0 %v3879
    %4631 = vmatpush1.bf16.msra.mxu0 %v3878
    %4632 = vmatprep.subr.bf16.mxu0 %v3887
    %4633 = vmatpush1.bf16.msra.mxu0 %v3886
    %4634 = vmatprep.subr.bf16.mxu0 %v3895
    %4635 = vmatpush1.bf16.msra.mxu0 %v3894
    %4636 = vmatprep.subr.bf16.mxu0 %v3903
    %4637 = vmatpush1.bf16.msra.mxu0 %v3902
    %4638 = vmatprep.subr.bf16.mxu0 %v3911
    %4639 = vmatpush1.bf16.msra.mxu0 %v3910
    %4640 = vmatprep.subr.bf16.mxu0 %v3919
    %4641 = vmatpush1.bf16.msra.mxu0 %v3918
    %4642 = vmatprep.subr.bf16.mxu0 %v3927
    %4643 = vmatpush1.bf16.msra.mxu0 %v3926
    %4644 = vmatprep.subr.bf16.mxu0 %v3935
    %4645 = vmatpush1.bf16.msra.mxu0 %v3934
    %4646 = vmatprep.subr.bf16.mxu0 %v3943
    %4647 = vmatpush1.bf16.msra.mxu0 %v3942
    %4648 = vmatprep.subr.bf16.mxu0 %v3951
    %4649 = vmatpush1.bf16.msra.mxu0 %v3950
    %4650 = vmatprep.subr.bf16.mxu0 %v3959
    %4651 = vmatpush1.bf16.msra.mxu0 %v3958
    %4652 = vmatprep.subr.bf16.mxu0 %v3967
    %4653 = vmatpush1.bf16.msra.mxu0 %v3966
    %4654 = vmatprep.subr.bf16.mxu0 %v3975
    %4655 = vmatpush1.bf16.msra.mxu0 %v3974
    %4656 = vmatprep.subr.bf16.mxu0 %v3983
    %4657 = vmatpush1.bf16.msra.mxu0 %v3982
    %4658 = vmatprep.subr.bf16.mxu0 %v3991
    %4659 = vmatpush1.bf16.msra.mxu0 %v3990
    %4660 = vmatprep.subr.bf16.mxu0 %v3999
    %4661 = vmatpush1.bf16.msra.mxu0 %v3998
    %4662 = vmatprep.mubr.bf16.mxu0 %v2803
    %4663 = vmatmul.mubr.bf16.gmra.mrb[0].mxu0 %v2802
    %v4664 = vpop.f32.mrb[0].mxu0
    %v4665 = vadd.f32 %v3091, %v4664
    %v4666 = vpop.f32.mrb[0].mxu0
    %v4667 = vadd.f32 %v3095, %v4666
    %v4668 = vpop.f32.mrb[0].mxu0
    %v4669 = vpop.f32.mrb[0].mxu0
    %4670 = vdwg.mxu0
    %4671 = vmatprep.subr.bf16.mxu0 %v4007
    %4672 = vmatpush1.bf16.msra.mxu0 %v4006
    %4673 = vmatprep.subr.bf16.mxu0 %v4015
    %4674 = vmatpush1.bf16.msra.mxu0 %v4014
    %4675 = vmatprep.subr.bf16.mxu0 %v4023
    %4676 = vmatpush1.bf16.msra.mxu0 %v4022
    %4677 = vmatprep.subr.bf16.mxu0 %v4031
    %4678 = vmatpush1.bf16.msra.mxu0 %v4030
    %4679 = vmatprep.subr.bf16.mxu0 %v4039
    %4680 = vmatpush1.bf16.msra.mxu0 %v4038
    %4681 = vmatprep.subr.bf16.mxu0 %v4047
    %4682 = vmatpush1.bf16.msra.mxu0 %v4046
    %4683 = vmatprep.subr.bf16.mxu0 %v4055
    %4684 = vmatpush1.bf16.msra.mxu0 %v4054
    %4685 = vmatprep.subr.bf16.mxu0 %v4063
    %4686 = vmatpush1.bf16.msra.mxu0 %v4062
    %4687 = vmatprep.subr.bf16.mxu0 %v4071
    %4688 = vmatpush1.bf16.msra.mxu0 %v4070
    %4689 = vmatprep.subr.bf16.mxu0 %v4079
    %4690 = vmatpush1.bf16.msra.mxu0 %v4078
    %4691 = vmatprep.subr.bf16.mxu0 %v4087
    %4692 = vmatpush1.bf16.msra.mxu0 %v4086
    %4693 = vmatprep.subr.bf16.mxu0 %v4095
    %4694 = vmatpush1.bf16.msra.mxu0 %v4094
    %4695 = vmatprep.subr.bf16.mxu0 %v4103
    %4696 = vmatpush1.bf16.msra.mxu0 %v4102
    %4697 = vmatprep.subr.bf16.mxu0 %v4111
    %4698 = vmatpush1.bf16.msra.mxu0 %v4110
    %4699 = vmatprep.subr.bf16.mxu0 %v4119
    %4700 = vmatpush1.bf16.msra.mxu0 %v4118
    %4701 = vmatprep.subr.bf16.mxu0 %v4127
    %4702 = vmatpush1.bf16.msra.mxu0 %v4126
    %4703 = vmatprep.mubr.bf16.mxu0 %v2805
    %4704 = vmatmul.mubr.bf16.gmra.mrb[0].mxu0 %v2804
    %v4705 = vpop.f32.mrb[0].mxu0
    %v4706 = vadd.f32 %v4665, %v4705
    %v4707 = vpop.f32.mrb[0].mxu0
    %v4708 = vadd.f32 %v4667, %v4707
    %v4709 = vpop.f32.mrb[0].mxu0
    %v4710 = vpop.f32.mrb[0].mxu0
    %4711 = vdwg.mxu0
    %v4712 = vmul.f32 %v4460, 0.5
    %v4713 = vmul.f32 %v4462, 0.5
    %v4714 = vmul.f32 %v4542, 0.5
    %v4715 = vmul.f32 %v4544, 0.5
    %v4716 = vmul.f32 %v4624, 0.5
    %v4717 = vmul.f32 %v4626, 0.5
    %v4718 = vmul.f32 %v4706, 0.5
    %v4719 = vmul.f32 %v4708, 0.5
    %v4720 = vtanh.pop %v4712
    %v4721 = vtanh.pop %v4713
    %v4722 = vtanh.pop %v4714
    %v4723 = vtanh.pop %v4715
    %v4724 = vtanh.pop %v4716
    %v4725 = vtanh.pop %v4717
    %v4726 = vtanh.pop %v4718
    %v4727 = vtanh.pop %v4719
    %v4728 = vadd.f32 %v4720, 1.0
    %v4729 = vadd.f32 %v4721, 1.0
    %v4730 = vadd.f32 %v4722, 1.0
    %v4731 = vadd.f32 %v4723, 1.0
    %v4732 = vadd.f32 %v4724, 1.0
    %v4733 = vadd.f32 %v4725, 1.0
    %v4734 = vadd.f32 %v4726, 1.0
    %v4735 = vadd.f32 %v4727, 1.0
    %v4736 = vmul.f32 %v4728, 0.5
    %v4737 = vmul.f32 %v4729, 0.5
    %v4738 = vmul.f32 %v4730, 0.5
    %v4739 = vmul.f32 %v4731, 0.5
    %v4740 = vmul.f32 %v4732, 0.5
    %v4741 = vmul.f32 %v4733, 0.5
    %v4742 = vmul.f32 %v4734, 0.5
    %v4743 = vmul.f32 %v4735, 0.5
    %4744 = vst [vmem:[#allocation11] sm:$0xff] %v4736
    %4745 = vst [vmem:[#allocation11 + $0x8] sm:$0xff] %v4737
    %4746 = vst [vmem:[#allocation11 + $0x10] sm:$0xff] %v4738
    %4747 = vst [vmem:[#allocation11 + $0x18] sm:$0xff] %v4739
    %4748 = vst [vmem:[#allocation11 + $0x20] sm:$0xff] %v4740
    %4749 = vst [vmem:[#allocation11 + $0x28] sm:$0xff] %v4741
    %4750 = vst [vmem:[#allocation11 + $0x30] sm:$0xff] %v4742
    %4751 = vst [vmem:[#allocation11 + $0x38] sm:$0xff] %v4743
    %4752 = vst [vmem:[#allocation12] sm:$0xff] %v2489
    %4753 = vst [vmem:[#allocation14] sm:$0xff] %v2491
    // Predicated region
    $region62: #{_vae_forward_impl.1} parent=1 // pred_check
      _
    $region63: #{_vae_forward_impl.1} parent=1 // pred_check_branch
      %4755 = sbr.rel (0) target = $region65
    $region64: #{_vae_forward_impl.1} parent=1 // pred_region
      %s4757 = ssub.s32 1024, 1024
      %4758 = vsyncadd [#allocation4], %s4757
      %s4760 = sshll.u32 [#allocation11], 4
      %s4761 = int_to_ptr.vmem [resolvable:$true] %s4760
      %4763 = dma.vmem_to_hbm [thread:$0]  %s4761, 1024, %s10, [#allocation4]
    $region65: #{_vae_forward_impl.1} parent=1 // pred_fallthru
      _
    // Predicated region
    $region66: #{_vae_forward_impl.1} parent=1 // pred_check
      _
    $region67: #{_vae_forward_impl.1} parent=1 // pred_check_branch
      %4765 = sbr.rel (0) target = $region69
    $region68: #{_vae_forward_impl.1} parent=1 // pred_region
      %s4767 = ssub.s32 128, 128
      %4768 = vsyncadd [#allocation13], %s4767
      %s4770 = sshll.u32 [#allocation12], 4
      %s4771 = int_to_ptr.vmem [resolvable:$true] %s4770
      %4773 = dma.vmem_to_hbm [thread:$0]  %s4771, 128, %s11, [#allocation13]
    $region69: #{_vae_forward_impl.1} parent=1 // pred_fallthru
      _
    // Predicated region
    $region70: #{_vae_forward_impl.1} parent=1 // pred_check
      _
    $region71: #{_vae_forward_impl.1} parent=1 // pred_check_branch
      %4775 = sbr.rel (0) target = $region73
    $region72: #{_vae_forward_impl.1} parent=1 // pred_region
      %s4777 = ssub.s32 128, 128
      %4778 = vsyncadd [#allocation13], %s4777
      %s4780 = sshll.u32 [#allocation14], 4
      %s4781 = int_to_ptr.vmem [resolvable:$true] %s4780
      %4783 = dma.vmem_to_hbm [thread:$0]  %s4781, 128, %s12, [#allocation13]
    $region73: #{_vae_forward_impl.1} parent=1 // pred_fallthru
      _
    // Predicated region
    $region74: #{_vae_forward_impl.1} parent=1 // pred_check
      _
    $region75: #{_vae_forward_impl.1} parent=1 // pred_check_branch
      %4785 = sbr.rel (0) target = $region77
    $region76: #{_vae_forward_impl.1} parent=1 // pred_region
      %4786 = dma.done [#allocation4], 1024
    $region77: #{_vae_forward_impl.1} parent=1 // pred_fallthru
      _
    // Predicated region
    $region78: #{_vae_forward_impl.1} parent=1 // pred_check
      _
    $region79: #{_vae_forward_impl.1} parent=1 // pred_check_branch
      %4788 = sbr.rel (0) target = $region81
    $region80: #{_vae_forward_impl.1} parent=1 // pred_region
      %4789 = dma.done [#allocation13], 128
    $region81: #{_vae_forward_impl.1} parent=1 // pred_fallthru
      _
    // Predicated region
    $region82: #{_vae_forward_impl.1} parent=1 // pred_check
      _
    $region83: #{_vae_forward_impl.1} parent=1 // pred_check_branch
      %4791 = sbr.rel (0) target = $region85
    $region84: #{_vae_forward_impl.1} parent=1 // pred_region
      %4792 = dma.done [#allocation13], 128
    $region85: #{_vae_forward_impl.1} parent=1 // pred_fallthru
      _
    %4793 = vsyncpa [#allocation3], 1
    %4794 = vsyncpa [#allocation6], 1
    %4795 = vsyncpa [#allocation9], 1
    %4796 = vsyncpa [#allocation4], 1
    %4797 = vsyncpa [#allocation13], 1

</llo_original>
